<compile_context>
chip_gen: v7x
topology: tpu7x:2x2x1
jax: 0.10.0
libtpu: 0.0.40
codegen_flags: <defaults>
</compile_context>

<pallas_src>
import functools
import math

import jax
import jax.numpy as jnp
from jax.experimental import pallas as pl

# ----------------- config (consistent with the PyTorch module) -----------------
IMG = 16          # img_size
PATCH = 8         # patch_size
EMBED = 64        # embed_dim
DEPTH = 2         # depth
HEADS = 4         # n_heads
MLP_RATIO = 4.0
N_CLASSES = 10
BATCH = 2

HEAD_DIM = EMBED // HEADS
HIDDEN = int(EMBED * MLP_RATIO)
N_PATCHES = (IMG // PATCH) ** 3
SEQ = N_PATCHES + 1                 # cls token + patches = 9
TOKENS = BATCH * SEQ                # 18 real token rows
TOKENS_PAD = 24                     # padded to a multiple of 8 sublanes
SCALE = HEAD_DIM ** (-0.5)
EPS = 1e-6                          # matches nn.LayerNorm(dim, eps=1e-06)
LANE_PAD = 128                      # lane-dense classifier width (sliced to 10 outside)
NEG_INF = -1e30                     # additive mask value (exp underflows to 0)


# ----------------------------- in-kernel helpers -----------------------------
def _layernorm(x, g, b):
    mu = jnp.mean(x, axis=-1, keepdims=True)
    var = jnp.mean(jnp.square(x - mu), axis=-1, keepdims=True)
    return (x - mu) * jax.lax.rsqrt(var + EPS) * g + b


_SQRT1_2 = 1.0 / math.sqrt(2.0)


def _erf(z):
    # Abramowitz-Stegun 7.1.26 rational approximation, |abs err| < 1.5e-7
    # (f32 round-off level).  Uses only exp / abs / where / arithmetic, all of
    # which have guaranteed Mosaic lowerings.
    a1, a2, a3, a4, a5 = (0.254829592, -0.284496736, 1.421413741,
                          -1.453152027, 1.061405429)
    p_ = 0.3275911
    az = jnp.abs(z)
    t = 1.0 / (1.0 + p_ * az)
    poly = t * (a1 + t * (a2 + t * (a3 + t * (a4 + t * a5))))
    y = 1.0 - poly * jnp.exp(-az * az)
    return jnp.where(z >= 0.0, y, -y)


def _gelu(x):
    # exact (erf-based) GELU, matching torch.nn.GELU() default
    return 0.5 * x * (1.0 + _erf(x * _SQRT1_2))


# ------------------------------ fused Pallas kernel ----------------------------
def vit3d_kernel(patches_ref, tokbias_ref, mask_ref, pew_ref,
                 ln1g_ref, ln1b_ref,
                 qw_ref, qb_ref, kw_ref, kb_ref, vw_ref, vb_ref,
                 projw_ref, projb_ref, ln2g_ref, ln2b_ref,
                 fc1w_ref, fc1b_ref, fc2w_ref, fc2b_ref,
                 lng_ref, lnb_ref, headw_ref, headb_ref,
                 o_ref):
    # Cross-batch (and pad-row) additive score mask, hoisted above the layer loop.
    mask = mask_ref[...]                                              # (TP, TP)

    # ---- PatchEmbed3D (Conv3d k=s=patch == matmul) + cls token + pos embed ----
    # patches has a zero row at each cls slot and zero pad rows; tokbias carries
    # cls_token + pos_embed on cls rows, conv_bias + pos_embed on patch rows.
    x = (jnp.dot(patches_ref[...], pew_ref[...],
                 preferred_element_type=jnp.float32) + tokbias_ref[...])

    # ---- DEPTH transformer blocks, fully unrolled, weights resident in VMEM ----
    # (attn_drop / proj_drop / pos_drop / drop_path are identity in eval mode)
    for layer in range(DEPTH):
        # ----- attention branch -----
        h = _layernorm(x, ln1g_ref[layer], ln1b_ref[layer])
        # Three 64-lane projections (SCALE pre-folded into qw/qb at weight prep).
        q = jnp.dot(h, qw_ref[layer], preferred_element_type=jnp.float32) + qb_ref[layer]
        k = jnp.dot(h, kw_ref[layer], preferred_element_type=jnp.float32) + kb_ref[layer]
        v = jnp.dot(h, vw_ref[layer], preferred_element_type=jnp.float32) + vb_ref[layer]
        projw = projw_ref[layer]
        acc = None
        for hh in range(HEADS):
            lo = hh * HEAD_DIM
            # scores: one 2-D dot per head, contracting last dims (q . k^T)
            s = jax.lax.dot_general(
                q[:, lo:lo + HEAD_DIM], k[:, lo:lo + HEAD_DIM],
                (((1,), (1,)), ((), ())),
                preferred_element_type=jnp.float32) + mask            # (TP, TP)
            s = s - jnp.max(s, axis=-1, keepdims=True)
            p = jnp.exp(s)
            attn = p / jnp.sum(p, axis=-1, keepdims=True)             # exact softmax
            oh = jnp.dot(attn, v[:, lo:lo + HEAD_DIM],
                         preferred_element_type=jnp.float32)          # (TP, hd)
            # fold this head's output straight into the output projection
            contrib = jnp.dot(oh, projw[lo:lo + HEAD_DIM, :],
                              preferred_element_type=jnp.float32)     # (TP, D)
            if acc is None:
                acc = contrib + projb_ref[layer]                      # proj bias once
            else:
                acc = acc + contrib
        x = x + acc                                                   # residual

        # ----- MLP branch -----
        h = _layernorm(x, ln2g_ref[layer], ln2b_ref[layer])
        h = (jnp.dot(h, fc1w_ref[layer],
                     preferred_element_type=jnp.float32) + fc1b_ref[layer])
        h = _gelu(h)
        x = x + (jnp.dot(h, fc2w_ref[layer],
                         preferred_element_type=jnp.float32) + fc2b_ref[layer])  # residual

    # ---- final LayerNorm + classifier over the FULL token slab (lane-dense store) ----
    xn = _layernorm(x, lng_ref[...], lnb_ref[...])
    o_ref[...] = (jnp.dot(xn, headw_ref[...],
                          preferred_element_type=jnp.float32) + headb_ref[...])


# ------------------------------- parameters -----------------------------------
def init_params(key):
    ks = iter(jax.random.split(key, 32))

    def nrm(shape, scale=0.02):
        return (scale * jax.random.normal(next(ks), shape)).astype(jnp.float32)

    p = {}
    # Conv3d(1, EMBED, k=PATCH, s=PATCH) weight, reshaped to (P^3, EMBED)
    p['pe_w'] = nrm((PATCH ** 3, EMBED))
    p['pe_b'] = nrm((1, EMBED))
    p['cls'] = jax.random.uniform(next(ks), (1, 1, EMBED), jnp.float32)    # torch.rand
    p['pos'] = jax.random.uniform(next(ks), (1, SEQ, EMBED), jnp.float32)  # torch.rand
    # per-block params stacked with a leading DEPTH axis; Linear weights stored (Din, Dout)
    p['ln1g'] = jnp.ones((DEPTH, 1, EMBED), jnp.float32)
    p['ln1b'] = jnp.zeros((DEPTH, 1, EMBED), jnp.float32)
    p['qkvw'] = nrm((DEPTH, EMBED, 3 * EMBED))
    p['qkvb'] = nrm((DEPTH, 1, 3 * EMBED))
    p['projw'] = nrm((DEPTH, EMBED, EMBED))
    p['projb'] = nrm((DEPTH, 1, EMBED))
    p['ln2g'] = jnp.ones((DEPTH, 1, EMBED), jnp.float32)
    p['ln2b'] = jnp.zeros((DEPTH, 1, EMBED), jnp.float32)
    p['fc1w'] = nrm((DEPTH, EMBED, HIDDEN))
    p['fc1b'] = nrm((DEPTH, 1, HIDDEN))
    p['fc2w'] = nrm((DEPTH, HIDDEN, EMBED))
    p['fc2b'] = nrm((DEPTH, 1, EMBED))
    # final norm + head
    p['ln_g'] = jnp.ones((1, EMBED), jnp.float32)
    p['ln_b'] = jnp.zeros((1, EMBED), jnp.float32)
    p['head_w'] = nrm((EMBED, N_CLASSES))
    p['head_b'] = nrm((1, N_CLASSES))
    return p


# --------------------------------- forward ------------------------------------
def vit3d_forward(x, p):
    # x: (B, 1, S, S, S)  (NCDHW, like PyTorch)
    b = x.shape[0]
    g = IMG // PATCH

    # Patch extraction (layout shuffle only) stays as cheap XLA glue.
    vol = x[:, 0]                                                    # (B, S, S, S)
    patches = vol.reshape(b, g, PATCH, g, PATCH, g, PATCH)
    patches = patches.transpose(0, 1, 3, 5, 2, 4, 6).reshape(b, N_PATCHES, PATCH ** 3)
    # zero pixel-row at each batch's cls slot -> one patch-embed matmul covers all rows
    patches = jnp.concatenate(
        [jnp.zeros((b, 1, PATCH ** 3), jnp.float32), patches], axis=1
    ).reshape(TOKENS, PATCH ** 3)
    # pad token rows 18 -> 24 (sublane multiple); pad rows are all-zero
    patches = jnp.pad(patches, ((0, TOKENS_PAD - TOKENS), (0, 0)))

    # Additive token term: cls rows get cls_token + pos_embed,
    # patch rows get conv_bias + pos_embed; pad rows zero.
    bias_cls = p['cls'][0] + p['pos'][0, 0:1, :]                     # (1, D)
    bias_pat = p['pos'][0, 1:, :] + p['pe_b']                        # (N_PATCHES, D)
    tok_bias = jnp.tile(jnp.concatenate([bias_cls, bias_pat], axis=0), (b, 1))
    tok_bias = jnp.pad(tok_bias, ((0, TOKENS_PAD - TOKENS), (0, 0)))

    # Cross-batch block mask: tokens only attend within their own image;
    # pad rows (id BATCH) attend among themselves -> stay finite.
    ids = jnp.arange(TOKENS_PAD) // SEQ
    mask = jnp.where(ids[:, None] == ids[None, :], 0.0, NEG_INF).astype(jnp.float32)

    # Split fused QKV into three 64-lane slabs; fold softmax SCALE into Wq/bq.
    qw = p['qkvw'][:, :, 0:EMBED] * SCALE
    kw = p['qkvw'][:, :, EMBED:2 * EMBED]
    vw = p['qkvw'][:, :, 2 * EMBED:3 * EMBED]
    qb = p['qkvb'][:, :, 0:EMBED] * SCALE
    kb = p['qkvb'][:, :, EMBED:2 * EMBED]
    vb = p['qkvb'][:, :, 2 * EMBED:3 * EMBED]

    # Lane-pad the classifier to 128 outputs (dense vst); sliced back below.
    head_w = jnp.zeros((EMBED, LANE_PAD), jnp.float32).at[:, :N_CLASSES].set(p['head_w'])
    head_b = jnp.zeros((1, LANE_PAD), jnp.float32).at[:, :N_CLASSES].set(p['head_b'])

    out = pl.pallas_call(
        vit3d_kernel,
        out_shape=jax.ShapeDtypeStruct((TOKENS_PAD, LANE_PAD), jnp.float32),
    )(patches, tok_bias, mask, p['pe_w'],
      p['ln1g'], p['ln1b'],
      qw, qb, kw, kb, vw, vb,
      p['projw'], p['projb'], p['ln2g'], p['ln2b'],
      p['fc1w'], p['fc1b'], p['fc2w'], p['fc2b'],
      p['ln_g'], p['ln_b'], head_w, head_b)

    # cls rows sit at row b*SEQ; select them and the real 10 classes outside the kernel
    return out[0:TOKENS:SEQ, :N_CLASSES]


# ----------------------------------- main --------------------------------------
if __name__ == "__main__":
    key = jax.random.PRNGKey(0)
    pkey, xkey = jax.random.split(key)
    params = init_params(pkey)
    x = jax.random.normal(xkey, (BATCH, 1, IMG, IMG, IMG), dtype=jnp.float32)

    fwd = jax.jit(functools.partial(vit3d_forward, p=params))
    out = jax.block_until_ready(fwd(x))

    assert out.shape == (BATCH, N_CLASSES)
    assert bool(jnp.all(jnp.isfinite(out)))
    print("KERNEL_OK")
</pallas_src>

<mosaic_0001>
module attributes {stable_mosaic.version = 11 : i64} {
  func.func @vit3d_kernel(%arg0: memref<24x512xf32, #tpu.memory_space<vmem>>, %arg1: memref<24x64xf32, #tpu.memory_space<vmem>>, %arg2: memref<24x24xf32, #tpu.memory_space<vmem>>, %arg3: memref<512x64xf32, #tpu.memory_space<vmem>>, %arg4: memref<2x1x64xf32, #tpu.memory_space<vmem>>, %arg5: memref<2x1x64xf32, #tpu.memory_space<vmem>>, %arg6: memref<2x64x64xf32, #tpu.memory_space<vmem>>, %arg7: memref<2x1x64xf32, #tpu.memory_space<vmem>>, %arg8: memref<2x64x64xf32, #tpu.memory_space<vmem>>, %arg9: memref<2x1x64xf32, #tpu.memory_space<vmem>>, %arg10: memref<2x64x64xf32, #tpu.memory_space<vmem>>, %arg11: memref<2x1x64xf32, #tpu.memory_space<vmem>>, %arg12: memref<2x64x64xf32, #tpu.memory_space<vmem>>, %arg13: memref<2x1x64xf32, #tpu.memory_space<vmem>>, %arg14: memref<2x1x64xf32, #tpu.memory_space<vmem>>, %arg15: memref<2x1x64xf32, #tpu.memory_space<vmem>>, %arg16: memref<2x64x256xf32, #tpu.memory_space<vmem>>, %arg17: memref<2x1x256xf32, #tpu.memory_space<vmem>>, %arg18: memref<2x256x64xf32, #tpu.memory_space<vmem>>, %arg19: memref<2x1x64xf32, #tpu.memory_space<vmem>>, %arg20: memref<1x64xf32, #tpu.memory_space<vmem>>, %arg21: memref<1x64xf32, #tpu.memory_space<vmem>>, %arg22: memref<64x128xf32, #tpu.memory_space<vmem>>, %arg23: memref<1x128xf32, #tpu.memory_space<vmem>>, %arg24: memref<24x128xf32, #tpu.memory_space<vmem>>) attributes {dimension_semantics = [], scalar_prefetch = 0 : i64, scratch_operands = 0 : i64, tpu.core_type = #tpu.core_type<tc>} {
    %c0 = arith.constant 0 : index
    %c0_0 = arith.constant 0 : index
    %0 = vector.load %arg2[%c0, %c0_0] : memref<24x24xf32, #tpu.memory_space<vmem>>, vector<24x24xf32>
    %c0_1 = arith.constant 0 : index
    %c0_2 = arith.constant 0 : index
    %1 = vector.load %arg0[%c0_1, %c0_2] : memref<24x512xf32, #tpu.memory_space<vmem>>, vector<24x512xf32>
    %c0_3 = arith.constant 0 : index
    %c0_4 = arith.constant 0 : index
    %2 = vector.load %arg3[%c0_3, %c0_4] : memref<512x64xf32, #tpu.memory_space<vmem>>, vector<512x64xf32>
    %cst = arith.constant dense<0.000000e+00> : vector<24x64xf32>
    %3 = tpu.matmul %1, %2, %cst {dimension_numbers = #tpu.dot_dimension_numbers<[1], [0], [0], [1], [0, 0, 1, 1], [], []>} : vector<24x512xf32>, vector<512x64xf32>, vector<24x64xf32> -> vector<24x64xf32>
    %c0_5 = arith.constant 0 : index
    %c0_6 = arith.constant 0 : index
    %4 = vector.load %arg1[%c0_5, %c0_6] : memref<24x64xf32, #tpu.memory_space<vmem>>, vector<24x64xf32>
    %5 = arith.addf %3, %4 : vector<24x64xf32>
    %c0_7 = arith.constant 0 : index
    %c0_8 = arith.constant 0 : index
    %c0_9 = arith.constant 0 : index
    %6 = vector.load %arg4[%c0_7, %c0_8, %c0_9] : memref<2x1x64xf32, #tpu.memory_space<vmem>>, vector<1x1x64xf32>
    %7 = vector.shape_cast %6 : vector<1x1x64xf32> to vector<1x64xf32>
    %c0_10 = arith.constant 0 : index
    %c0_11 = arith.constant 0 : index
    %c0_12 = arith.constant 0 : index
    %8 = vector.load %arg5[%c0_10, %c0_11, %c0_12] : memref<2x1x64xf32, #tpu.memory_space<vmem>>, vector<1x1x64xf32>
    %9 = vector.shape_cast %8 : vector<1x1x64xf32> to vector<1x64xf32>
    %cst_13 = arith.constant dense<0.000000e+00> : vector<24xf32>
    %10 = vector.multi_reduction <add>, %5, %cst_13 [1] : vector<24x64xf32> to vector<24xf32>
    %11 = vector.shape_cast %10 : vector<24xf32> to vector<24x1xf32>
    %cst_14 = arith.constant 6.400000e+01 : f32
    %12 = vector.broadcast %cst_14 : f32 to vector<24x1xf32>
    %13 = arith.divf %11, %12 : vector<24x1xf32>
    %14 = vector.broadcast %13 : vector<24x1xf32> to vector<24x64xf32>
    %15 = arith.subf %5, %14 : vector<24x64xf32>
    %16 = arith.mulf %15, %15 : vector<24x64xf32>
    %cst_15 = arith.constant dense<0.000000e+00> : vector<24xf32>
    %17 = vector.multi_reduction <add>, %16, %cst_15 [1] : vector<24x64xf32> to vector<24xf32>
    %18 = vector.shape_cast %17 : vector<24xf32> to vector<24x1xf32>
    %cst_16 = arith.constant 6.400000e+01 : f32
    %19 = vector.broadcast %cst_16 : f32 to vector<24x1xf32>
    %20 = arith.divf %18, %19 : vector<24x1xf32>
    %21 = vector.broadcast %13 : vector<24x1xf32> to vector<24x64xf32>
    %22 = arith.subf %5, %21 : vector<24x64xf32>
    %cst_17 = arith.constant 9.99999997E-7 : f32
    %23 = vector.broadcast %cst_17 : f32 to vector<24x1xf32>
    %24 = arith.addf %20, %23 : vector<24x1xf32>
    %25 = math.rsqrt %24 : vector<24x1xf32>
    %26 = vector.broadcast %25 : vector<24x1xf32> to vector<24x64xf32>
    %27 = arith.mulf %22, %26 : vector<24x64xf32>
    %28 = vector.broadcast %7 : vector<1x64xf32> to vector<24x64xf32>
    %29 = arith.mulf %27, %28 : vector<24x64xf32>
    %30 = vector.broadcast %9 : vector<1x64xf32> to vector<24x64xf32>
    %31 = arith.addf %29, %30 : vector<24x64xf32>
    %c0_18 = arith.constant 0 : index
    %c0_19 = arith.constant 0 : index
    %c0_20 = arith.constant 0 : index
    %32 = vector.load %arg6[%c0_18, %c0_19, %c0_20] : memref<2x64x64xf32, #tpu.memory_space<vmem>>, vector<1x64x64xf32>
    %33 = vector.shape_cast %32 : vector<1x64x64xf32> to vector<64x64xf32>
    %cst_21 = arith.constant dense<0.000000e+00> : vector<24x64xf32>
    %34 = tpu.matmul %31, %33, %cst_21 {dimension_numbers = #tpu.dot_dimension_numbers<[1], [0], [0], [1], [0, 0, 1, 1], [], []>} : vector<24x64xf32>, vector<64x64xf32>, vector<24x64xf32> -> vector<24x64xf32>
    %c0_22 = arith.constant 0 : index
    %c0_23 = arith.constant 0 : index
    %c0_24 = arith.constant 0 : index
    %35 = vector.load %arg7[%c0_22, %c0_23, %c0_24] : memref<2x1x64xf32, #tpu.memory_space<vmem>>, vector<1x1x64xf32>
    %36 = vector.shape_cast %35 : vector<1x1x64xf32> to vector<1x64xf32>
    %37 = vector.broadcast %36 : vector<1x64xf32> to vector<24x64xf32>
    %38 = arith.addf %34, %37 : vector<24x64xf32>
    %c0_25 = arith.constant 0 : index
    %c0_26 = arith.constant 0 : index
    %c0_27 = arith.constant 0 : index
    %39 = vector.load %arg8[%c0_25, %c0_26, %c0_27] : memref<2x64x64xf32, #tpu.memory_space<vmem>>, vector<1x64x64xf32>
    %40 = vector.shape_cast %39 : vector<1x64x64xf32> to vector<64x64xf32>
    %cst_28 = arith.constant dense<0.000000e+00> : vector<24x64xf32>
    %41 = tpu.matmul %31, %40, %cst_28 {dimension_numbers = #tpu.dot_dimension_numbers<[1], [0], [0], [1], [0, 0, 1, 1], [], []>} : vector<24x64xf32>, vector<64x64xf32>, vector<24x64xf32> -> vector<24x64xf32>
    %c0_29 = arith.constant 0 : index
    %c0_30 = arith.constant 0 : index
    %c0_31 = arith.constant 0 : index
    %42 = vector.load %arg9[%c0_29, %c0_30, %c0_31] : memref<2x1x64xf32, #tpu.memory_space<vmem>>, vector<1x1x64xf32>
    %43 = vector.shape_cast %42 : vector<1x1x64xf32> to vector<1x64xf32>
    %44 = vector.broadcast %43 : vector<1x64xf32> to vector<24x64xf32>
    %45 = arith.addf %41, %44 : vector<24x64xf32>
    %c0_32 = arith.constant 0 : index
    %c0_33 = arith.constant 0 : index
    %c0_34 = arith.constant 0 : index
    %46 = vector.load %arg10[%c0_32, %c0_33, %c0_34] : memref<2x64x64xf32, #tpu.memory_space<vmem>>, vector<1x64x64xf32>
    %47 = vector.shape_cast %46 : vector<1x64x64xf32> to vector<64x64xf32>
    %cst_35 = arith.constant dense<0.000000e+00> : vector<24x64xf32>
    %48 = tpu.matmul %31, %47, %cst_35 {dimension_numbers = #tpu.dot_dimension_numbers<[1], [0], [0], [1], [0, 0, 1, 1], [], []>} : vector<24x64xf32>, vector<64x64xf32>, vector<24x64xf32> -> vector<24x64xf32>
    %c0_36 = arith.constant 0 : index
    %c0_37 = arith.constant 0 : index
    %c0_38 = arith.constant 0 : index
    %49 = vector.load %arg11[%c0_36, %c0_37, %c0_38] : memref<2x1x64xf32, #tpu.memory_space<vmem>>, vector<1x1x64xf32>
    %50 = vector.shape_cast %49 : vector<1x1x64xf32> to vector<1x64xf32>
    %51 = vector.broadcast %50 : vector<1x64xf32> to vector<24x64xf32>
    %52 = arith.addf %48, %51 : vector<24x64xf32>
    %c0_39 = arith.constant 0 : index
    %c0_40 = arith.constant 0 : index
    %c0_41 = arith.constant 0 : index
    %53 = vector.load %arg12[%c0_39, %c0_40, %c0_41] : memref<2x64x64xf32, #tpu.memory_space<vmem>>, vector<1x64x64xf32>
    %54 = vector.shape_cast %53 : vector<1x64x64xf32> to vector<64x64xf32>
    %55 = vector.extract_strided_slice %38 {offsets = [0, 0], sizes = [24, 16], strides = [1, 1]} : vector<24x64xf32> to vector<24x16xf32>
    %56 = vector.extract_strided_slice %45 {offsets = [0, 0], sizes = [24, 16], strides = [1, 1]} : vector<24x64xf32> to vector<24x16xf32>
    %cst_42 = arith.constant dense<0.000000e+00> : vector<24x24xf32>
    %57 = tpu.matmul %55, %56, %cst_42 {dimension_numbers = #tpu.dot_dimension_numbers<[1], [1], [0], [0], [0, 0, 1, 0], [], []>} : vector<24x16xf32>, vector<24x16xf32>, vector<24x24xf32> -> vector<24x24xf32>
    %58 = arith.addf %57, %0 : vector<24x24xf32>
    %cst_43 = arith.constant dense<0xFF800000> : vector<24xf32>
    %59 = vector.multi_reduction <maximumf>, %58, %cst_43 [1] : vector<24x24xf32> to vector<24xf32>
    %60 = vector.shape_cast %59 : vector<24xf32> to vector<24x1xf32>
    %61 = vector.broadcast %60 : vector<24x1xf32> to vector<24x24xf32>
    %62 = arith.subf %58, %61 : vector<24x24xf32>
    %63 = math.exp %62 : vector<24x24xf32>
    %cst_44 = arith.constant dense<0.000000e+00> : vector<24xf32>
    %64 = vector.multi_reduction <add>, %63, %cst_44 [1] : vector<24x24xf32> to vector<24xf32>
    %65 = vector.shape_cast %64 : vector<24xf32> to vector<24x1xf32>
    %66 = vector.broadcast %65 : vector<24x1xf32> to vector<24x24xf32>
    %67 = arith.divf %63, %66 : vector<24x24xf32>
    %68 = vector.extract_strided_slice %52 {offsets = [0, 0], sizes = [24, 16], strides = [1, 1]} : vector<24x64xf32> to vector<24x16xf32>
    %cst_45 = arith.constant dense<0.000000e+00> : vector<24x16xf32>
    %69 = tpu.matmul %67, %68, %cst_45 {dimension_numbers = #tpu.dot_dimension_numbers<[1], [0], [0], [1], [0, 0, 1, 1], [], []>} : vector<24x24xf32>, vector<24x16xf32>, vector<24x16xf32> -> vector<24x16xf32>
    %70 = vector.extract_strided_slice %54 {offsets = [0, 0], sizes = [16, 64], strides = [1, 1]} : vector<64x64xf32> to vector<16x64xf32>
    %cst_46 = arith.constant dense<0.000000e+00> : vector<24x64xf32>
    %71 = tpu.matmul %69, %70, %cst_46 {dimension_numbers = #tpu.dot_dimension_numbers<[1], [0], [0], [1], [0, 0, 1, 1], [], []>} : vector<24x16xf32>, vector<16x64xf32>, vector<24x64xf32> -> vector<24x64xf32>
    %c0_47 = arith.constant 0 : index
    %c0_48 = arith.constant 0 : index
    %c0_49 = arith.constant 0 : index
    %72 = vector.load %arg13[%c0_47, %c0_48, %c0_49] : memref<2x1x64xf32, #tpu.memory_space<vmem>>, vector<1x1x64xf32>
    %73 = vector.shape_cast %72 : vector<1x1x64xf32> to vector<1x64xf32>
    %74 = vector.broadcast %73 : vector<1x64xf32> to vector<24x64xf32>
    %75 = arith.addf %71, %74 : vector<24x64xf32>
    %76 = vector.extract_strided_slice %38 {offsets = [0, 16], sizes = [24, 16], strides = [1, 1]} : vector<24x64xf32> to vector<24x16xf32>
    %77 = vector.extract_strided_slice %45 {offsets = [0, 16], sizes = [24, 16], strides = [1, 1]} : vector<24x64xf32> to vector<24x16xf32>
    %cst_50 = arith.constant dense<0.000000e+00> : vector<24x24xf32>
    %78 = tpu.matmul %76, %77, %cst_50 {dimension_numbers = #tpu.dot_dimension_numbers<[1], [1], [0], [0], [0, 0, 1, 0], [], []>} : vector<24x16xf32>, vector<24x16xf32>, vector<24x24xf32> -> vector<24x24xf32>
    %79 = arith.addf %78, %0 : vector<24x24xf32>
    %cst_51 = arith.constant dense<0xFF800000> : vector<24xf32>
    %80 = vector.multi_reduction <maximumf>, %79, %cst_51 [1] : vector<24x24xf32> to vector<24xf32>
    %81 = vector.shape_cast %80 : vector<24xf32> to vector<24x1xf32>
    %82 = vector.broadcast %81 : vector<24x1xf32> to vector<24x24xf32>
    %83 = arith.subf %79, %82 : vector<24x24xf32>
    %84 = math.exp %83 : vector<24x24xf32>
    %cst_52 = arith.constant dense<0.000000e+00> : vector<24xf32>
    %85 = vector.multi_reduction <add>, %84, %cst_52 [1] : vector<24x24xf32> to vector<24xf32>
    %86 = vector.shape_cast %85 : vector<24xf32> to vector<24x1xf32>
    %87 = vector.broadcast %86 : vector<24x1xf32> to vector<24x24xf32>
    %88 = arith.divf %84, %87 : vector<24x24xf32>
    %89 = vector.extract_strided_slice %52 {offsets = [0, 16], sizes = [24, 16], strides = [1, 1]} : vector<24x64xf32> to vector<24x16xf32>
    %cst_53 = arith.constant dense<0.000000e+00> : vector<24x16xf32>
    %90 = tpu.matmul %88, %89, %cst_53 {dimension_numbers = #tpu.dot_dimension_numbers<[1], [0], [0], [1], [0, 0, 1, 1], [], []>} : vector<24x24xf32>, vector<24x16xf32>, vector<24x16xf32> -> vector<24x16xf32>
    %91 = vector.extract_strided_slice %54 {offsets = [16, 0], sizes = [16, 64], strides = [1, 1]} : vector<64x64xf32> to vector<16x64xf32>
    %cst_54 = arith.constant dense<0.000000e+00> : vector<24x64xf32>
    %92 = tpu.matmul %90, %91, %cst_54 {dimension_numbers = #tpu.dot_dimension_numbers<[1], [0], [0], [1], [0, 0, 1, 1], [], []>} : vector<24x16xf32>, vector<16x64xf32>, vector<24x64xf32> -> vector<24x64xf32>
    %93 = arith.addf %75, %92 : vector<24x64xf32>
    %94 = vector.extract_strided_slice %38 {offsets = [0, 32], sizes = [24, 16], strides = [1, 1]} : vector<24x64xf32> to vector<24x16xf32>
    %95 = vector.extract_strided_slice %45 {offsets = [0, 32], sizes = [24, 16], strides = [1, 1]} : vector<24x64xf32> to vector<24x16xf32>
    %cst_55 = arith.constant dense<0.000000e+00> : vector<24x24xf32>
    %96 = tpu.matmul %94, %95, %cst_55 {dimension_numbers = #tpu.dot_dimension_numbers<[1], [1], [0], [0], [0, 0, 1, 0], [], []>} : vector<24x16xf32>, vector<24x16xf32>, vector<24x24xf32> -> vector<24x24xf32>
    %97 = arith.addf %96, %0 : vector<24x24xf32>
    %cst_56 = arith.constant dense<0xFF800000> : vector<24xf32>
    %98 = vector.multi_reduction <maximumf>, %97, %cst_56 [1] : vector<24x24xf32> to vector<24xf32>
    %99 = vector.shape_cast %98 : vector<24xf32> to vector<24x1xf32>
    %100 = vector.broadcast %99 : vector<24x1xf32> to vector<24x24xf32>
    %101 = arith.subf %97, %100 : vector<24x24xf32>
    %102 = math.exp %101 : vector<24x24xf32>
    %cst_57 = arith.constant dense<0.000000e+00> : vector<24xf32>
    %103 = vector.multi_reduction <add>, %102, %cst_57 [1] : vector<24x24xf32> to vector<24xf32>
    %104 = vector.shape_cast %103 : vector<24xf32> to vector<24x1xf32>
    %105 = vector.broadcast %104 : vector<24x1xf32> to vector<24x24xf32>
    %106 = arith.divf %102, %105 : vector<24x24xf32>
    %107 = vector.extract_strided_slice %52 {offsets = [0, 32], sizes = [24, 16], strides = [1, 1]} : vector<24x64xf32> to vector<24x16xf32>
    %cst_58 = arith.constant dense<0.000000e+00> : vector<24x16xf32>
    %108 = tpu.matmul %106, %107, %cst_58 {dimension_numbers = #tpu.dot_dimension_numbers<[1], [0], [0], [1], [0, 0, 1, 1], [], []>} : vector<24x24xf32>, vector<24x16xf32>, vector<24x16xf32> -> vector<24x16xf32>
    %109 = vector.extract_strided_slice %54 {offsets = [32, 0], sizes = [16, 64], strides = [1, 1]} : vector<64x64xf32> to vector<16x64xf32>
    %cst_59 = arith.constant dense<0.000000e+00> : vector<24x64xf32>
    %110 = tpu.matmul %108, %109, %cst_59 {dimension_numbers = #tpu.dot_dimension_numbers<[1], [0], [0], [1], [0, 0, 1, 1], [], []>} : vector<24x16xf32>, vector<16x64xf32>, vector<24x64xf32> -> vector<24x64xf32>
    %111 = arith.addf %93, %110 : vector<24x64xf32>
    %112 = vector.extract_strided_slice %38 {offsets = [0, 48], sizes = [24, 16], strides = [1, 1]} : vector<24x64xf32> to vector<24x16xf32>
    %113 = vector.extract_strided_slice %45 {offsets = [0, 48], sizes = [24, 16], strides = [1, 1]} : vector<24x64xf32> to vector<24x16xf32>
    %cst_60 = arith.constant dense<0.000000e+00> : vector<24x24xf32>
    %114 = tpu.matmul %112, %113, %cst_60 {dimension_numbers = #tpu.dot_dimension_numbers<[1], [1], [0], [0], [0, 0, 1, 0], [], []>} : vector<24x16xf32>, vector<24x16xf32>, vector<24x24xf32> -> vector<24x24xf32>
    %115 = arith.addf %114, %0 : vector<24x24xf32>
    %cst_61 = arith.constant dense<0xFF800000> : vector<24xf32>
    %116 = vector.multi_reduction <maximumf>, %115, %cst_61 [1] : vector<24x24xf32> to vector<24xf32>
    %117 = vector.shape_cast %116 : vector<24xf32> to vector<24x1xf32>
    %118 = vector.broadcast %117 : vector<24x1xf32> to vector<24x24xf32>
    %119 = arith.subf %115, %118 : vector<24x24xf32>
    %120 = math.exp %119 : vector<24x24xf32>
    %cst_62 = arith.constant dense<0.000000e+00> : vector<24xf32>
    %121 = vector.multi_reduction <add>, %120, %cst_62 [1] : vector<24x24xf32> to vector<24xf32>
    %122 = vector.shape_cast %121 : vector<24xf32> to vector<24x1xf32>
    %123 = vector.broadcast %122 : vector<24x1xf32> to vector<24x24xf32>
    %124 = arith.divf %120, %123 : vector<24x24xf32>
    %125 = vector.extract_strided_slice %52 {offsets = [0, 48], sizes = [24, 16], strides = [1, 1]} : vector<24x64xf32> to vector<24x16xf32>
    %cst_63 = arith.constant dense<0.000000e+00> : vector<24x16xf32>
    %126 = tpu.matmul %124, %125, %cst_63 {dimension_numbers = #tpu.dot_dimension_numbers<[1], [0], [0], [1], [0, 0, 1, 1], [], []>} : vector<24x24xf32>, vector<24x16xf32>, vector<24x16xf32> -> vector<24x16xf32>
    %127 = vector.extract_strided_slice %54 {offsets = [48, 0], sizes = [16, 64], strides = [1, 1]} : vector<64x64xf32> to vector<16x64xf32>
    %cst_64 = arith.constant dense<0.000000e+00> : vector<24x64xf32>
    %128 = tpu.matmul %126, %127, %cst_64 {dimension_numbers = #tpu.dot_dimension_numbers<[1], [0], [0], [1], [0, 0, 1, 1], [], []>} : vector<24x16xf32>, vector<16x64xf32>, vector<24x64xf32> -> vector<24x64xf32>
    %129 = arith.addf %111, %128 : vector<24x64xf32>
    %130 = arith.addf %5, %129 : vector<24x64xf32>
    %c0_65 = arith.constant 0 : index
    %c0_66 = arith.constant 0 : index
    %c0_67 = arith.constant 0 : index
    %131 = vector.load %arg14[%c0_65, %c0_66, %c0_67] : memref<2x1x64xf32, #tpu.memory_space<vmem>>, vector<1x1x64xf32>
    %132 = vector.shape_cast %131 : vector<1x1x64xf32> to vector<1x64xf32>
    %c0_68 = arith.constant 0 : index
    %c0_69 = arith.constant 0 : index
    %c0_70 = arith.constant 0 : index
    %133 = vector.load %arg15[%c0_68, %c0_69, %c0_70] : memref<2x1x64xf32, #tpu.memory_space<vmem>>, vector<1x1x64xf32>
    %134 = vector.shape_cast %133 : vector<1x1x64xf32> to vector<1x64xf32>
    %cst_71 = arith.constant dense<0.000000e+00> : vector<24xf32>
    %135 = vector.multi_reduction <add>, %130, %cst_71 [1] : vector<24x64xf32> to vector<24xf32>
    %136 = vector.shape_cast %135 : vector<24xf32> to vector<24x1xf32>
    %cst_72 = arith.constant 6.400000e+01 : f32
    %137 = vector.broadcast %cst_72 : f32 to vector<24x1xf32>
    %138 = arith.divf %136, %137 : vector<24x1xf32>
    %139 = vector.broadcast %138 : vector<24x1xf32> to vector<24x64xf32>
    %140 = arith.subf %130, %139 : vector<24x64xf32>
    %141 = arith.mulf %140, %140 : vector<24x64xf32>
    %cst_73 = arith.constant dense<0.000000e+00> : vector<24xf32>
    %142 = vector.multi_reduction <add>, %141, %cst_73 [1] : vector<24x64xf32> to vector<24xf32>
    %143 = vector.shape_cast %142 : vector<24xf32> to vector<24x1xf32>
    %cst_74 = arith.constant 6.400000e+01 : f32
    %144 = vector.broadcast %cst_74 : f32 to vector<24x1xf32>
    %145 = arith.divf %143, %144 : vector<24x1xf32>
    %146 = vector.broadcast %138 : vector<24x1xf32> to vector<24x64xf32>
    %147 = arith.subf %130, %146 : vector<24x64xf32>
    %cst_75 = arith.constant 9.99999997E-7 : f32
    %148 = vector.broadcast %cst_75 : f32 to vector<24x1xf32>
    %149 = arith.addf %145, %148 : vector<24x1xf32>
    %150 = math.rsqrt %149 : vector<24x1xf32>
    %151 = vector.broadcast %150 : vector<24x1xf32> to vector<24x64xf32>
    %152 = arith.mulf %147, %151 : vector<24x64xf32>
    %153 = vector.broadcast %132 : vector<1x64xf32> to vector<24x64xf32>
    %154 = arith.mulf %152, %153 : vector<24x64xf32>
    %155 = vector.broadcast %134 : vector<1x64xf32> to vector<24x64xf32>
    %156 = arith.addf %154, %155 : vector<24x64xf32>
    %c0_76 = arith.constant 0 : index
    %c0_77 = arith.constant 0 : index
    %c0_78 = arith.constant 0 : index
    %157 = vector.load %arg16[%c0_76, %c0_77, %c0_78] : memref<2x64x256xf32, #tpu.memory_space<vmem>>, vector<1x64x256xf32>
    %158 = vector.shape_cast %157 : vector<1x64x256xf32> to vector<64x256xf32>
    %cst_79 = arith.constant dense<0.000000e+00> : vector<24x256xf32>
    %159 = tpu.matmul %156, %158, %cst_79 {dimension_numbers = #tpu.dot_dimension_numbers<[1], [0], [0], [1], [0, 0, 1, 1], [], []>} : vector<24x64xf32>, vector<64x256xf32>, vector<24x256xf32> -> vector<24x256xf32>
    %c0_80 = arith.constant 0 : index
    %c0_81 = arith.constant 0 : index
    %c0_82 = arith.constant 0 : index
    %160 = vector.load %arg17[%c0_80, %c0_81, %c0_82] : memref<2x1x256xf32, #tpu.memory_space<vmem>>, vector<1x1x256xf32>
    %161 = vector.shape_cast %160 : vector<1x1x256xf32> to vector<1x256xf32>
    %162 = vector.broadcast %161 : vector<1x256xf32> to vector<24x256xf32>
    %163 = arith.addf %159, %162 : vector<24x256xf32>
    %cst_83 = arith.constant 5.000000e-01 : f32
    %164 = vector.broadcast %cst_83 : f32 to vector<24x256xf32>
    %165 = arith.mulf %164, %163 : vector<24x256xf32>
    %cst_84 = arith.constant 0.707106769 : f32
    %166 = vector.broadcast %cst_84 : f32 to vector<24x256xf32>
    %167 = arith.mulf %163, %166 : vector<24x256xf32>
    %168 = math.absf %167 : vector<24x256xf32>
    %cst_85 = arith.constant 0.327591091 : f32
    %169 = vector.broadcast %cst_85 : f32 to vector<24x256xf32>
    %170 = arith.mulf %169, %168 : vector<24x256xf32>
    %cst_86 = arith.constant 1.000000e+00 : f32
    %171 = vector.broadcast %cst_86 : f32 to vector<24x256xf32>
    %172 = arith.addf %171, %170 : vector<24x256xf32>
    %cst_87 = arith.constant 1.000000e+00 : f32
    %173 = vector.broadcast %cst_87 : f32 to vector<24x256xf32>
    %174 = arith.divf %173, %172 : vector<24x256xf32>
    %cst_88 = arith.constant 1.06140542 : f32
    %175 = vector.broadcast %cst_88 : f32 to vector<24x256xf32>
    %176 = arith.mulf %174, %175 : vector<24x256xf32>
    %cst_89 = arith.constant -1.45315206 : f32
    %177 = vector.broadcast %cst_89 : f32 to vector<24x256xf32>
    %178 = arith.addf %177, %176 : vector<24x256xf32>
    %179 = arith.mulf %174, %178 : vector<24x256xf32>
    %cst_90 = arith.constant 1.42141378 : f32
    %180 = vector.broadcast %cst_90 : f32 to vector<24x256xf32>
    %181 = arith.addf %180, %179 : vector<24x256xf32>
    %182 = arith.mulf %174, %181 : vector<24x256xf32>
    %cst_91 = arith.constant -0.284496725 : f32
    %183 = vector.broadcast %cst_91 : f32 to vector<24x256xf32>
    %184 = arith.addf %183, %182 : vector<24x256xf32>
    %185 = arith.mulf %174, %184 : vector<24x256xf32>
    %cst_92 = arith.constant 0.254829586 : f32
    %186 = vector.broadcast %cst_92 : f32 to vector<24x256xf32>
    %187 = arith.addf %186, %185 : vector<24x256xf32>
    %188 = arith.mulf %174, %187 : vector<24x256xf32>
    %cst_93 = arith.constant 0.000000e+00 : f32
    %189 = vector.broadcast %cst_93 : f32 to vector<24x256xf32>
    %190 = arith.subf %189, %168 : vector<24x256xf32>
    %191 = arith.mulf %190, %168 : vector<24x256xf32>
    %192 = math.exp %191 : vector<24x256xf32>
    %193 = arith.mulf %188, %192 : vector<24x256xf32>
    %cst_94 = arith.constant 1.000000e+00 : f32
    %194 = vector.broadcast %cst_94 : f32 to vector<24x256xf32>
    %195 = arith.subf %194, %193 : vector<24x256xf32>
    %cst_95 = arith.constant 0.000000e+00 : f32
    %196 = vector.broadcast %cst_95 : f32 to vector<24x256xf32>
    %197 = arith.cmpf oge, %167, %196 : vector<24x256xf32>
    %cst_96 = arith.constant 0.000000e+00 : f32
    %198 = vector.broadcast %cst_96 : f32 to vector<24x256xf32>
    %199 = arith.subf %198, %195 : vector<24x256xf32>
    %200 = arith.select %197, %195, %199 : vector<24x256xi1>, vector<24x256xf32>
    %cst_97 = arith.constant 1.000000e+00 : f32
    %201 = vector.broadcast %cst_97 : f32 to vector<24x256xf32>
    %202 = arith.addf %201, %200 : vector<24x256xf32>
    %203 = arith.mulf %165, %202 : vector<24x256xf32>
    %c0_98 = arith.constant 0 : index
    %c0_99 = arith.constant 0 : index
    %c0_100 = arith.constant 0 : index
    %204 = vector.load %arg18[%c0_98, %c0_99, %c0_100] : memref<2x256x64xf32, #tpu.memory_space<vmem>>, vector<1x256x64xf32>
    %205 = vector.shape_cast %204 : vector<1x256x64xf32> to vector<256x64xf32>
    %cst_101 = arith.constant dense<0.000000e+00> : vector<24x64xf32>
    %206 = tpu.matmul %203, %205, %cst_101 {dimension_numbers = #tpu.dot_dimension_numbers<[1], [0], [0], [1], [0, 0, 1, 1], [], []>} : vector<24x256xf32>, vector<256x64xf32>, vector<24x64xf32> -> vector<24x64xf32>
    %c0_102 = arith.constant 0 : index
    %c0_103 = arith.constant 0 : index
    %c0_104 = arith.constant 0 : index
    %207 = vector.load %arg19[%c0_102, %c0_103, %c0_104] : memref<2x1x64xf32, #tpu.memory_space<vmem>>, vector<1x1x64xf32>
    %208 = vector.shape_cast %207 : vector<1x1x64xf32> to vector<1x64xf32>
    %209 = vector.broadcast %208 : vector<1x64xf32> to vector<24x64xf32>
    %210 = arith.addf %206, %209 : vector<24x64xf32>
    %211 = arith.addf %130, %210 : vector<24x64xf32>
    %c1 = arith.constant 1 : index
    %c0_105 = arith.constant 0 : index
    %c0_106 = arith.constant 0 : index
    %212 = vector.load %arg4[%c1, %c0_105, %c0_106] : memref<2x1x64xf32, #tpu.memory_space<vmem>>, vector<1x1x64xf32>
    %213 = vector.shape_cast %212 : vector<1x1x64xf32> to vector<1x64xf32>
    %c1_107 = arith.constant 1 : index
    %c0_108 = arith.constant 0 : index
    %c0_109 = arith.constant 0 : index
    %214 = vector.load %arg5[%c1_107, %c0_108, %c0_109] : memref<2x1x64xf32, #tpu.memory_space<vmem>>, vector<1x1x64xf32>
    %215 = vector.shape_cast %214 : vector<1x1x64xf32> to vector<1x64xf32>
    %cst_110 = arith.constant dense<0.000000e+00> : vector<24xf32>
    %216 = vector.multi_reduction <add>, %211, %cst_110 [1] : vector<24x64xf32> to vector<24xf32>
    %217 = vector.shape_cast %216 : vector<24xf32> to vector<24x1xf32>
    %cst_111 = arith.constant 6.400000e+01 : f32
    %218 = vector.broadcast %cst_111 : f32 to vector<24x1xf32>
    %219 = arith.divf %217, %218 : vector<24x1xf32>
    %220 = vector.broadcast %219 : vector<24x1xf32> to vector<24x64xf32>
    %221 = arith.subf %211, %220 : vector<24x64xf32>
    %222 = arith.mulf %221, %221 : vector<24x64xf32>
    %cst_112 = arith.constant dense<0.000000e+00> : vector<24xf32>
    %223 = vector.multi_reduction <add>, %222, %cst_112 [1] : vector<24x64xf32> to vector<24xf32>
    %224 = vector.shape_cast %223 : vector<24xf32> to vector<24x1xf32>
    %cst_113 = arith.constant 6.400000e+01 : f32
    %225 = vector.broadcast %cst_113 : f32 to vector<24x1xf32>
    %226 = arith.divf %224, %225 : vector<24x1xf32>
    %227 = vector.broadcast %219 : vector<24x1xf32> to vector<24x64xf32>
    %228 = arith.subf %211, %227 : vector<24x64xf32>
    %cst_114 = arith.constant 9.99999997E-7 : f32
    %229 = vector.broadcast %cst_114 : f32 to vector<24x1xf32>
    %230 = arith.addf %226, %229 : vector<24x1xf32>
    %231 = math.rsqrt %230 : vector<24x1xf32>
    %232 = vector.broadcast %231 : vector<24x1xf32> to vector<24x64xf32>
    %233 = arith.mulf %228, %232 : vector<24x64xf32>
    %234 = vector.broadcast %213 : vector<1x64xf32> to vector<24x64xf32>
    %235 = arith.mulf %233, %234 : vector<24x64xf32>
    %236 = vector.broadcast %215 : vector<1x64xf32> to vector<24x64xf32>
    %237 = arith.addf %235, %236 : vector<24x64xf32>
    %c1_115 = arith.constant 1 : index
    %c0_116 = arith.constant 0 : index
    %c0_117 = arith.constant 0 : index
    %238 = vector.load %arg6[%c1_115, %c0_116, %c0_117] : memref<2x64x64xf32, #tpu.memory_space<vmem>>, vector<1x64x64xf32>
    %239 = vector.shape_cast %238 : vector<1x64x64xf32> to vector<64x64xf32>
    %cst_118 = arith.constant dense<0.000000e+00> : vector<24x64xf32>
    %240 = tpu.matmul %237, %239, %cst_118 {dimension_numbers = #tpu.dot_dimension_numbers<[1], [0], [0], [1], [0, 0, 1, 1], [], []>} : vector<24x64xf32>, vector<64x64xf32>, vector<24x64xf32> -> vector<24x64xf32>
    %c1_119 = arith.constant 1 : index
    %c0_120 = arith.constant 0 : index
    %c0_121 = arith.constant 0 : index
    %241 = vector.load %arg7[%c1_119, %c0_120, %c0_121] : memref<2x1x64xf32, #tpu.memory_space<vmem>>, vector<1x1x64xf32>
    %242 = vector.shape_cast %241 : vector<1x1x64xf32> to vector<1x64xf32>
    %243 = vector.broadcast %242 : vector<1x64xf32> to vector<24x64xf32>
    %244 = arith.addf %240, %243 : vector<24x64xf32>
    %c1_122 = arith.constant 1 : index
    %c0_123 = arith.constant 0 : index
    %c0_124 = arith.constant 0 : index
    %245 = vector.load %arg8[%c1_122, %c0_123, %c0_124] : memref<2x64x64xf32, #tpu.memory_space<vmem>>, vector<1x64x64xf32>
    %246 = vector.shape_cast %245 : vector<1x64x64xf32> to vector<64x64xf32>
    %cst_125 = arith.constant dense<0.000000e+00> : vector<24x64xf32>
    %247 = tpu.matmul %237, %246, %cst_125 {dimension_numbers = #tpu.dot_dimension_numbers<[1], [0], [0], [1], [0, 0, 1, 1], [], []>} : vector<24x64xf32>, vector<64x64xf32>, vector<24x64xf32> -> vector<24x64xf32>
    %c1_126 = arith.constant 1 : index
    %c0_127 = arith.constant 0 : index
    %c0_128 = arith.constant 0 : index
    %248 = vector.load %arg9[%c1_126, %c0_127, %c0_128] : memref<2x1x64xf32, #tpu.memory_space<vmem>>, vector<1x1x64xf32>
    %249 = vector.shape_cast %248 : vector<1x1x64xf32> to vector<1x64xf32>
    %250 = vector.broadcast %249 : vector<1x64xf32> to vector<24x64xf32>
    %251 = arith.addf %247, %250 : vector<24x64xf32>
    %c1_129 = arith.constant 1 : index
    %c0_130 = arith.constant 0 : index
    %c0_131 = arith.constant 0 : index
    %252 = vector.load %arg10[%c1_129, %c0_130, %c0_131] : memref<2x64x64xf32, #tpu.memory_space<vmem>>, vector<1x64x64xf32>
    %253 = vector.shape_cast %252 : vector<1x64x64xf32> to vector<64x64xf32>
    %cst_132 = arith.constant dense<0.000000e+00> : vector<24x64xf32>
    %254 = tpu.matmul %237, %253, %cst_132 {dimension_numbers = #tpu.dot_dimension_numbers<[1], [0], [0], [1], [0, 0, 1, 1], [], []>} : vector<24x64xf32>, vector<64x64xf32>, vector<24x64xf32> -> vector<24x64xf32>
    %c1_133 = arith.constant 1 : index
    %c0_134 = arith.constant 0 : index
    %c0_135 = arith.constant 0 : index
    %255 = vector.load %arg11[%c1_133, %c0_134, %c0_135] : memref<2x1x64xf32, #tpu.memory_space<vmem>>, vector<1x1x64xf32>
    %256 = vector.shape_cast %255 : vector<1x1x64xf32> to vector<1x64xf32>
    %257 = vector.broadcast %256 : vector<1x64xf32> to vector<24x64xf32>
    %258 = arith.addf %254, %257 : vector<24x64xf32>
    %c1_136 = arith.constant 1 : index
    %c0_137 = arith.constant 0 : index
    %c0_138 = arith.constant 0 : index
    %259 = vector.load %arg12[%c1_136, %c0_137, %c0_138] : memref<2x64x64xf32, #tpu.memory_space<vmem>>, vector<1x64x64xf32>
    %260 = vector.shape_cast %259 : vector<1x64x64xf32> to vector<64x64xf32>
    %261 = vector.extract_strided_slice %244 {offsets = [0, 0], sizes = [24, 16], strides = [1, 1]} : vector<24x64xf32> to vector<24x16xf32>
    %262 = vector.extract_strided_slice %251 {offsets = [0, 0], sizes = [24, 16], strides = [1, 1]} : vector<24x64xf32> to vector<24x16xf32>
    %cst_139 = arith.constant dense<0.000000e+00> : vector<24x24xf32>
    %263 = tpu.matmul %261, %262, %cst_139 {dimension_numbers = #tpu.dot_dimension_numbers<[1], [1], [0], [0], [0, 0, 1, 0], [], []>} : vector<24x16xf32>, vector<24x16xf32>, vector<24x24xf32> -> vector<24x24xf32>
    %264 = arith.addf %263, %0 : vector<24x24xf32>
    %cst_140 = arith.constant dense<0xFF800000> : vector<24xf32>
    %265 = vector.multi_reduction <maximumf>, %264, %cst_140 [1] : vector<24x24xf32> to vector<24xf32>
    %266 = vector.shape_cast %265 : vector<24xf32> to vector<24x1xf32>
    %267 = vector.broadcast %266 : vector<24x1xf32> to vector<24x24xf32>
    %268 = arith.subf %264, %267 : vector<24x24xf32>
    %269 = math.exp %268 : vector<24x24xf32>
    %cst_141 = arith.constant dense<0.000000e+00> : vector<24xf32>
    %270 = vector.multi_reduction <add>, %269, %cst_141 [1] : vector<24x24xf32> to vector<24xf32>
    %271 = vector.shape_cast %270 : vector<24xf32> to vector<24x1xf32>
    %272 = vector.broadcast %271 : vector<24x1xf32> to vector<24x24xf32>
    %273 = arith.divf %269, %272 : vector<24x24xf32>
    %274 = vector.extract_strided_slice %258 {offsets = [0, 0], sizes = [24, 16], strides = [1, 1]} : vector<24x64xf32> to vector<24x16xf32>
    %cst_142 = arith.constant dense<0.000000e+00> : vector<24x16xf32>
    %275 = tpu.matmul %273, %274, %cst_142 {dimension_numbers = #tpu.dot_dimension_numbers<[1], [0], [0], [1], [0, 0, 1, 1], [], []>} : vector<24x24xf32>, vector<24x16xf32>, vector<24x16xf32> -> vector<24x16xf32>
    %276 = vector.extract_strided_slice %260 {offsets = [0, 0], sizes = [16, 64], strides = [1, 1]} : vector<64x64xf32> to vector<16x64xf32>
    %cst_143 = arith.constant dense<0.000000e+00> : vector<24x64xf32>
    %277 = tpu.matmul %275, %276, %cst_143 {dimension_numbers = #tpu.dot_dimension_numbers<[1], [0], [0], [1], [0, 0, 1, 1], [], []>} : vector<24x16xf32>, vector<16x64xf32>, vector<24x64xf32> -> vector<24x64xf32>
    %c1_144 = arith.constant 1 : index
    %c0_145 = arith.constant 0 : index
    %c0_146 = arith.constant 0 : index
    %278 = vector.load %arg13[%c1_144, %c0_145, %c0_146] : memref<2x1x64xf32, #tpu.memory_space<vmem>>, vector<1x1x64xf32>
    %279 = vector.shape_cast %278 : vector<1x1x64xf32> to vector<1x64xf32>
    %280 = vector.broadcast %279 : vector<1x64xf32> to vector<24x64xf32>
    %281 = arith.addf %277, %280 : vector<24x64xf32>
    %282 = vector.extract_strided_slice %244 {offsets = [0, 16], sizes = [24, 16], strides = [1, 1]} : vector<24x64xf32> to vector<24x16xf32>
    %283 = vector.extract_strided_slice %251 {offsets = [0, 16], sizes = [24, 16], strides = [1, 1]} : vector<24x64xf32> to vector<24x16xf32>
    %cst_147 = arith.constant dense<0.000000e+00> : vector<24x24xf32>
    %284 = tpu.matmul %282, %283, %cst_147 {dimension_numbers = #tpu.dot_dimension_numbers<[1], [1], [0], [0], [0, 0, 1, 0], [], []>} : vector<24x16xf32>, vector<24x16xf32>, vector<24x24xf32> -> vector<24x24xf32>
    %285 = arith.addf %284, %0 : vector<24x24xf32>
    %cst_148 = arith.constant dense<0xFF800000> : vector<24xf32>
    %286 = vector.multi_reduction <maximumf>, %285, %cst_148 [1] : vector<24x24xf32> to vector<24xf32>
    %287 = vector.shape_cast %286 : vector<24xf32> to vector<24x1xf32>
    %288 = vector.broadcast %287 : vector<24x1xf32> to vector<24x24xf32>
    %289 = arith.subf %285, %288 : vector<24x24xf32>
    %290 = math.exp %289 : vector<24x24xf32>
    %cst_149 = arith.constant dense<0.000000e+00> : vector<24xf32>
    %291 = vector.multi_reduction <add>, %290, %cst_149 [1] : vector<24x24xf32> to vector<24xf32>
    %292 = vector.shape_cast %291 : vector<24xf32> to vector<24x1xf32>
    %293 = vector.broadcast %292 : vector<24x1xf32> to vector<24x24xf32>
    %294 = arith.divf %290, %293 : vector<24x24xf32>
    %295 = vector.extract_strided_slice %258 {offsets = [0, 16], sizes = [24, 16], strides = [1, 1]} : vector<24x64xf32> to vector<24x16xf32>
    %cst_150 = arith.constant dense<0.000000e+00> : vector<24x16xf32>
    %296 = tpu.matmul %294, %295, %cst_150 {dimension_numbers = #tpu.dot_dimension_numbers<[1], [0], [0], [1], [0, 0, 1, 1], [], []>} : vector<24x24xf32>, vector<24x16xf32>, vector<24x16xf32> -> vector<24x16xf32>
    %297 = vector.extract_strided_slice %260 {offsets = [16, 0], sizes = [16, 64], strides = [1, 1]} : vector<64x64xf32> to vector<16x64xf32>
    %cst_151 = arith.constant dense<0.000000e+00> : vector<24x64xf32>
    %298 = tpu.matmul %296, %297, %cst_151 {dimension_numbers = #tpu.dot_dimension_numbers<[1], [0], [0], [1], [0, 0, 1, 1], [], []>} : vector<24x16xf32>, vector<16x64xf32>, vector<24x64xf32> -> vector<24x64xf32>
    %299 = arith.addf %281, %298 : vector<24x64xf32>
    %300 = vector.extract_strided_slice %244 {offsets = [0, 32], sizes = [24, 16], strides = [1, 1]} : vector<24x64xf32> to vector<24x16xf32>
    %301 = vector.extract_strided_slice %251 {offsets = [0, 32], sizes = [24, 16], strides = [1, 1]} : vector<24x64xf32> to vector<24x16xf32>
    %cst_152 = arith.constant dense<0.000000e+00> : vector<24x24xf32>
    %302 = tpu.matmul %300, %301, %cst_152 {dimension_numbers = #tpu.dot_dimension_numbers<[1], [1], [0], [0], [0, 0, 1, 0], [], []>} : vector<24x16xf32>, vector<24x16xf32>, vector<24x24xf32> -> vector<24x24xf32>
    %303 = arith.addf %302, %0 : vector<24x24xf32>
    %cst_153 = arith.constant dense<0xFF800000> : vector<24xf32>
    %304 = vector.multi_reduction <maximumf>, %303, %cst_153 [1] : vector<24x24xf32> to vector<24xf32>
    %305 = vector.shape_cast %304 : vector<24xf32> to vector<24x1xf32>
    %306 = vector.broadcast %305 : vector<24x1xf32> to vector<24x24xf32>
    %307 = arith.subf %303, %306 : vector<24x24xf32>
    %308 = math.exp %307 : vector<24x24xf32>
    %cst_154 = arith.constant dense<0.000000e+00> : vector<24xf32>
    %309 = vector.multi_reduction <add>, %308, %cst_154 [1] : vector<24x24xf32> to vector<24xf32>
    %310 = vector.shape_cast %309 : vector<24xf32> to vector<24x1xf32>
    %311 = vector.broadcast %310 : vector<24x1xf32> to vector<24x24xf32>
    %312 = arith.divf %308, %311 : vector<24x24xf32>
    %313 = vector.extract_strided_slice %258 {offsets = [0, 32], sizes = [24, 16], strides = [1, 1]} : vector<24x64xf32> to vector<24x16xf32>
    %cst_155 = arith.constant dense<0.000000e+00> : vector<24x16xf32>
    %314 = tpu.matmul %312, %313, %cst_155 {dimension_numbers = #tpu.dot_dimension_numbers<[1], [0], [0], [1], [0, 0, 1, 1], [], []>} : vector<24x24xf32>, vector<24x16xf32>, vector<24x16xf32> -> vector<24x16xf32>
    %315 = vector.extract_strided_slice %260 {offsets = [32, 0], sizes = [16, 64], strides = [1, 1]} : vector<64x64xf32> to vector<16x64xf32>
    %cst_156 = arith.constant dense<0.000000e+00> : vector<24x64xf32>
    %316 = tpu.matmul %314, %315, %cst_156 {dimension_numbers = #tpu.dot_dimension_numbers<[1], [0], [0], [1], [0, 0, 1, 1], [], []>} : vector<24x16xf32>, vector<16x64xf32>, vector<24x64xf32> -> vector<24x64xf32>
    %317 = arith.addf %299, %316 : vector<24x64xf32>
    %318 = vector.extract_strided_slice %244 {offsets = [0, 48], sizes = [24, 16], strides = [1, 1]} : vector<24x64xf32> to vector<24x16xf32>
    %319 = vector.extract_strided_slice %251 {offsets = [0, 48], sizes = [24, 16], strides = [1, 1]} : vector<24x64xf32> to vector<24x16xf32>
    %cst_157 = arith.constant dense<0.000000e+00> : vector<24x24xf32>
    %320 = tpu.matmul %318, %319, %cst_157 {dimension_numbers = #tpu.dot_dimension_numbers<[1], [1], [0], [0], [0, 0, 1, 0], [], []>} : vector<24x16xf32>, vector<24x16xf32>, vector<24x24xf32> -> vector<24x24xf32>
    %321 = arith.addf %320, %0 : vector<24x24xf32>
    %cst_158 = arith.constant dense<0xFF800000> : vector<24xf32>
    %322 = vector.multi_reduction <maximumf>, %321, %cst_158 [1] : vector<24x24xf32> to vector<24xf32>
    %323 = vector.shape_cast %322 : vector<24xf32> to vector<24x1xf32>
    %324 = vector.broadcast %323 : vector<24x1xf32> to vector<24x24xf32>
    %325 = arith.subf %321, %324 : vector<24x24xf32>
    %326 = math.exp %325 : vector<24x24xf32>
    %cst_159 = arith.constant dense<0.000000e+00> : vector<24xf32>
    %327 = vector.multi_reduction <add>, %326, %cst_159 [1] : vector<24x24xf32> to vector<24xf32>
    %328 = vector.shape_cast %327 : vector<24xf32> to vector<24x1xf32>
    %329 = vector.broadcast %328 : vector<24x1xf32> to vector<24x24xf32>
    %330 = arith.divf %326, %329 : vector<24x24xf32>
    %331 = vector.extract_strided_slice %258 {offsets = [0, 48], sizes = [24, 16], strides = [1, 1]} : vector<24x64xf32> to vector<24x16xf32>
    %cst_160 = arith.constant dense<0.000000e+00> : vector<24x16xf32>
    %332 = tpu.matmul %330, %331, %cst_160 {dimension_numbers = #tpu.dot_dimension_numbers<[1], [0], [0], [1], [0, 0, 1, 1], [], []>} : vector<24x24xf32>, vector<24x16xf32>, vector<24x16xf32> -> vector<24x16xf32>
    %333 = vector.extract_strided_slice %260 {offsets = [48, 0], sizes = [16, 64], strides = [1, 1]} : vector<64x64xf32> to vector<16x64xf32>
    %cst_161 = arith.constant dense<0.000000e+00> : vector<24x64xf32>
    %334 = tpu.matmul %332, %333, %cst_161 {dimension_numbers = #tpu.dot_dimension_numbers<[1], [0], [0], [1], [0, 0, 1, 1], [], []>} : vector<24x16xf32>, vector<16x64xf32>, vector<24x64xf32> -> vector<24x64xf32>
    %335 = arith.addf %317, %334 : vector<24x64xf32>
    %336 = arith.addf %211, %335 : vector<24x64xf32>
    %c1_162 = arith.constant 1 : index
    %c0_163 = arith.constant 0 : index
    %c0_164 = arith.constant 0 : index
    %337 = vector.load %arg14[%c1_162, %c0_163, %c0_164] : memref<2x1x64xf32, #tpu.memory_space<vmem>>, vector<1x1x64xf32>
    %338 = vector.shape_cast %337 : vector<1x1x64xf32> to vector<1x64xf32>
    %c1_165 = arith.constant 1 : index
    %c0_166 = arith.constant 0 : index
    %c0_167 = arith.constant 0 : index
    %339 = vector.load %arg15[%c1_165, %c0_166, %c0_167] : memref<2x1x64xf32, #tpu.memory_space<vmem>>, vector<1x1x64xf32>
    %340 = vector.shape_cast %339 : vector<1x1x64xf32> to vector<1x64xf32>
    %cst_168 = arith.constant dense<0.000000e+00> : vector<24xf32>
    %341 = vector.multi_reduction <add>, %336, %cst_168 [1] : vector<24x64xf32> to vector<24xf32>
    %342 = vector.shape_cast %341 : vector<24xf32> to vector<24x1xf32>
    %cst_169 = arith.constant 6.400000e+01 : f32
    %343 = vector.broadcast %cst_169 : f32 to vector<24x1xf32>
    %344 = arith.divf %342, %343 : vector<24x1xf32>
    %345 = vector.broadcast %344 : vector<24x1xf32> to vector<24x64xf32>
    %346 = arith.subf %336, %345 : vector<24x64xf32>
    %347 = arith.mulf %346, %346 : vector<24x64xf32>
    %cst_170 = arith.constant dense<0.000000e+00> : vector<24xf32>
    %348 = vector.multi_reduction <add>, %347, %cst_170 [1] : vector<24x64xf32> to vector<24xf32>
    %349 = vector.shape_cast %348 : vector<24xf32> to vector<24x1xf32>
    %cst_171 = arith.constant 6.400000e+01 : f32
    %350 = vector.broadcast %cst_171 : f32 to vector<24x1xf32>
    %351 = arith.divf %349, %350 : vector<24x1xf32>
    %352 = vector.broadcast %344 : vector<24x1xf32> to vector<24x64xf32>
    %353 = arith.subf %336, %352 : vector<24x64xf32>
    %cst_172 = arith.constant 9.99999997E-7 : f32
    %354 = vector.broadcast %cst_172 : f32 to vector<24x1xf32>
    %355 = arith.addf %351, %354 : vector<24x1xf32>
    %356 = math.rsqrt %355 : vector<24x1xf32>
    %357 = vector.broadcast %356 : vector<24x1xf32> to vector<24x64xf32>
    %358 = arith.mulf %353, %357 : vector<24x64xf32>
    %359 = vector.broadcast %338 : vector<1x64xf32> to vector<24x64xf32>
    %360 = arith.mulf %358, %359 : vector<24x64xf32>
    %361 = vector.broadcast %340 : vector<1x64xf32> to vector<24x64xf32>
    %362 = arith.addf %360, %361 : vector<24x64xf32>
    %c1_173 = arith.constant 1 : index
    %c0_174 = arith.constant 0 : index
    %c0_175 = arith.constant 0 : index
    %363 = vector.load %arg16[%c1_173, %c0_174, %c0_175] : memref<2x64x256xf32, #tpu.memory_space<vmem>>, vector<1x64x256xf32>
    %364 = vector.shape_cast %363 : vector<1x64x256xf32> to vector<64x256xf32>
    %cst_176 = arith.constant dense<0.000000e+00> : vector<24x256xf32>
    %365 = tpu.matmul %362, %364, %cst_176 {dimension_numbers = #tpu.dot_dimension_numbers<[1], [0], [0], [1], [0, 0, 1, 1], [], []>} : vector<24x64xf32>, vector<64x256xf32>, vector<24x256xf32> -> vector<24x256xf32>
    %c1_177 = arith.constant 1 : index
    %c0_178 = arith.constant 0 : index
    %c0_179 = arith.constant 0 : index
    %366 = vector.load %arg17[%c1_177, %c0_178, %c0_179] : memref<2x1x256xf32, #tpu.memory_space<vmem>>, vector<1x1x256xf32>
    %367 = vector.shape_cast %366 : vector<1x1x256xf32> to vector<1x256xf32>
    %368 = vector.broadcast %367 : vector<1x256xf32> to vector<24x256xf32>
    %369 = arith.addf %365, %368 : vector<24x256xf32>
    %cst_180 = arith.constant 5.000000e-01 : f32
    %370 = vector.broadcast %cst_180 : f32 to vector<24x256xf32>
    %371 = arith.mulf %370, %369 : vector<24x256xf32>
    %cst_181 = arith.constant 0.707106769 : f32
    %372 = vector.broadcast %cst_181 : f32 to vector<24x256xf32>
    %373 = arith.mulf %369, %372 : vector<24x256xf32>
    %374 = math.absf %373 : vector<24x256xf32>
    %cst_182 = arith.constant 0.327591091 : f32
    %375 = vector.broadcast %cst_182 : f32 to vector<24x256xf32>
    %376 = arith.mulf %375, %374 : vector<24x256xf32>
    %cst_183 = arith.constant 1.000000e+00 : f32
    %377 = vector.broadcast %cst_183 : f32 to vector<24x256xf32>
    %378 = arith.addf %377, %376 : vector<24x256xf32>
    %cst_184 = arith.constant 1.000000e+00 : f32
    %379 = vector.broadcast %cst_184 : f32 to vector<24x256xf32>
    %380 = arith.divf %379, %378 : vector<24x256xf32>
    %cst_185 = arith.constant 1.06140542 : f32
    %381 = vector.broadcast %cst_185 : f32 to vector<24x256xf32>
    %382 = arith.mulf %380, %381 : vector<24x256xf32>
    %cst_186 = arith.constant -1.45315206 : f32
    %383 = vector.broadcast %cst_186 : f32 to vector<24x256xf32>
    %384 = arith.addf %383, %382 : vector<24x256xf32>
    %385 = arith.mulf %380, %384 : vector<24x256xf32>
    %cst_187 = arith.constant 1.42141378 : f32
    %386 = vector.broadcast %cst_187 : f32 to vector<24x256xf32>
    %387 = arith.addf %386, %385 : vector<24x256xf32>
    %388 = arith.mulf %380, %387 : vector<24x256xf32>
    %cst_188 = arith.constant -0.284496725 : f32
    %389 = vector.broadcast %cst_188 : f32 to vector<24x256xf32>
    %390 = arith.addf %389, %388 : vector<24x256xf32>
    %391 = arith.mulf %380, %390 : vector<24x256xf32>
    %cst_189 = arith.constant 0.254829586 : f32
    %392 = vector.broadcast %cst_189 : f32 to vector<24x256xf32>
    %393 = arith.addf %392, %391 : vector<24x256xf32>
    %394 = arith.mulf %380, %393 : vector<24x256xf32>
    %cst_190 = arith.constant 0.000000e+00 : f32
    %395 = vector.broadcast %cst_190 : f32 to vector<24x256xf32>
    %396 = arith.subf %395, %374 : vector<24x256xf32>
    %397 = arith.mulf %396, %374 : vector<24x256xf32>
    %398 = math.exp %397 : vector<24x256xf32>
    %399 = arith.mulf %394, %398 : vector<24x256xf32>
    %cst_191 = arith.constant 1.000000e+00 : f32
    %400 = vector.broadcast %cst_191 : f32 to vector<24x256xf32>
    %401 = arith.subf %400, %399 : vector<24x256xf32>
    %cst_192 = arith.constant 0.000000e+00 : f32
    %402 = vector.broadcast %cst_192 : f32 to vector<24x256xf32>
    %403 = arith.cmpf oge, %373, %402 : vector<24x256xf32>
    %cst_193 = arith.constant 0.000000e+00 : f32
    %404 = vector.broadcast %cst_193 : f32 to vector<24x256xf32>
    %405 = arith.subf %404, %401 : vector<24x256xf32>
    %406 = arith.select %403, %401, %405 : vector<24x256xi1>, vector<24x256xf32>
    %cst_194 = arith.constant 1.000000e+00 : f32
    %407 = vector.broadcast %cst_194 : f32 to vector<24x256xf32>
    %408 = arith.addf %407, %406 : vector<24x256xf32>
    %409 = arith.mulf %371, %408 : vector<24x256xf32>
    %c1_195 = arith.constant 1 : index
    %c0_196 = arith.constant 0 : index
    %c0_197 = arith.constant 0 : index
    %410 = vector.load %arg18[%c1_195, %c0_196, %c0_197] : memref<2x256x64xf32, #tpu.memory_space<vmem>>, vector<1x256x64xf32>
    %411 = vector.shape_cast %410 : vector<1x256x64xf32> to vector<256x64xf32>
    %cst_198 = arith.constant dense<0.000000e+00> : vector<24x64xf32>
    %412 = tpu.matmul %409, %411, %cst_198 {dimension_numbers = #tpu.dot_dimension_numbers<[1], [0], [0], [1], [0, 0, 1, 1], [], []>} : vector<24x256xf32>, vector<256x64xf32>, vector<24x64xf32> -> vector<24x64xf32>
    %c1_199 = arith.constant 1 : index
    %c0_200 = arith.constant 0 : index
    %c0_201 = arith.constant 0 : index
    %413 = vector.load %arg19[%c1_199, %c0_200, %c0_201] : memref<2x1x64xf32, #tpu.memory_space<vmem>>, vector<1x1x64xf32>
    %414 = vector.shape_cast %413 : vector<1x1x64xf32> to vector<1x64xf32>
    %415 = vector.broadcast %414 : vector<1x64xf32> to vector<24x64xf32>
    %416 = arith.addf %412, %415 : vector<24x64xf32>
    %417 = arith.addf %336, %416 : vector<24x64xf32>
    %c0_202 = arith.constant 0 : index
    %c0_203 = arith.constant 0 : index
    %418 = vector.load %arg20[%c0_202, %c0_203] : memref<1x64xf32, #tpu.memory_space<vmem>>, vector<1x64xf32>
    %c0_204 = arith.constant 0 : index
    %c0_205 = arith.constant 0 : index
    %419 = vector.load %arg21[%c0_204, %c0_205] : memref<1x64xf32, #tpu.memory_space<vmem>>, vector<1x64xf32>
    %cst_206 = arith.constant dense<0.000000e+00> : vector<24xf32>
    %420 = vector.multi_reduction <add>, %417, %cst_206 [1] : vector<24x64xf32> to vector<24xf32>
    %421 = vector.shape_cast %420 : vector<24xf32> to vector<24x1xf32>
    %cst_207 = arith.constant 6.400000e+01 : f32
    %422 = vector.broadcast %cst_207 : f32 to vector<24x1xf32>
    %423 = arith.divf %421, %422 : vector<24x1xf32>
    %424 = vector.broadcast %423 : vector<24x1xf32> to vector<24x64xf32>
    %425 = arith.subf %417, %424 : vector<24x64xf32>
    %426 = arith.mulf %425, %425 : vector<24x64xf32>
    %cst_208 = arith.constant dense<0.000000e+00> : vector<24xf32>
    %427 = vector.multi_reduction <add>, %426, %cst_208 [1] : vector<24x64xf32> to vector<24xf32>
    %428 = vector.shape_cast %427 : vector<24xf32> to vector<24x1xf32>
    %cst_209 = arith.constant 6.400000e+01 : f32
    %429 = vector.broadcast %cst_209 : f32 to vector<24x1xf32>
    %430 = arith.divf %428, %429 : vector<24x1xf32>
    %431 = vector.broadcast %423 : vector<24x1xf32> to vector<24x64xf32>
    %432 = arith.subf %417, %431 : vector<24x64xf32>
    %cst_210 = arith.constant 9.99999997E-7 : f32
    %433 = vector.broadcast %cst_210 : f32 to vector<24x1xf32>
    %434 = arith.addf %430, %433 : vector<24x1xf32>
    %435 = math.rsqrt %434 : vector<24x1xf32>
    %436 = vector.broadcast %435 : vector<24x1xf32> to vector<24x64xf32>
    %437 = arith.mulf %432, %436 : vector<24x64xf32>
    %438 = vector.broadcast %418 : vector<1x64xf32> to vector<24x64xf32>
    %439 = arith.mulf %437, %438 : vector<24x64xf32>
    %440 = vector.broadcast %419 : vector<1x64xf32> to vector<24x64xf32>
    %441 = arith.addf %439, %440 : vector<24x64xf32>
    %c0_211 = arith.constant 0 : index
    %c0_212 = arith.constant 0 : index
    %442 = vector.load %arg22[%c0_211, %c0_212] : memref<64x128xf32, #tpu.memory_space<vmem>>, vector<64x128xf32>
    %cst_213 = arith.constant dense<0.000000e+00> : vector<24x128xf32>
    %443 = tpu.matmul %441, %442, %cst_213 {dimension_numbers = #tpu.dot_dimension_numbers<[1], [0], [0], [1], [0, 0, 1, 1], [], []>} : vector<24x64xf32>, vector<64x128xf32>, vector<24x128xf32> -> vector<24x128xf32>
    %c0_214 = arith.constant 0 : index
    %c0_215 = arith.constant 0 : index
    %444 = vector.load %arg23[%c0_214, %c0_215] : memref<1x128xf32, #tpu.memory_space<vmem>>, vector<1x128xf32>
    %445 = vector.broadcast %444 : vector<1x128xf32> to vector<24x128xf32>
    %446 = arith.addf %443, %445 : vector<24x128xf32>
    %c0_216 = arith.constant 0 : index
    %c0_217 = arith.constant 0 : index
    %447 = vector.load %arg24[%c0_216, %c0_217] : memref<24x128xf32, #tpu.memory_space<vmem>>, vector<24x128xf32>
    tpu.vector_store %arg24[%c0_216, %c0_217], %446 {strides = array<i32>} : memref<24x128xf32, #tpu.memory_space<vmem>>, vector<24x128xf32>,
    return
  }
}

</mosaic_0001>

<llo_original>
// kernel: squeeze.2
$region0: #{squeeze.2}
  %s0 = inlined_call_operand.hbm [shape: f32[2,1,16,16,16], index: 0, kind: input, shape index: {}]
  %s1 = inlined_call_operand.vmem [shape: f32[2,2,8,2,8,2,8], index: 1, kind: output, shape index: {}]
  $region1: #{squeeze.2} parent=0
    #allocation0 [shape = 'u8[262144]{0}', space=vmem, size = 0x40000, scoped, tag = 'operand span for operand 0']
    #allocation1 [shape = 's32[1]{0}', space=sflag, size = 0x4, scoped, tag = 'scoped memory for squeeze.2']
    #allocation2 [shape = 'u8[2097152]{0}', space=vmem, size = 0x200000, scoped, tag = 'scoped mem for output reshape']
    %2 = vsyncpa [#allocation1], 0
    %s4 = ssub.s32 8192, 8192
    %5 = vsyncadd [#allocation1], %s4
    %s7 = sshll.u32 [#allocation0], 4
    %s8 = int_to_ptr.vmem [resolvable:$true] %s7
    %10 = dma.hbm_to_vmem [thread:$0]  %s0, 8192, %s8, [#allocation1]
    %11 = dma.done [#allocation1], 8192
    %v12 = vld [vmem:[#allocation0] sm:$0xff]
    %vm13 = vcmask 64512
    %14 = vst.msk [vmem:[#allocation2] ss:$8 sm:$0xf] %vm13, %v12
    %15 = vst.msk [vmem:[#allocation2] ss:$8 sm:$0xf0] %vm13, %v12
    %s16 = scalar_lea.vmem [#allocation0], 8
    %v17 = vld [vmem:[%s16] sm:$0xff]
    %vm18 = vcmask 64512
    %s19 = scalar_lea.vmem [#allocation2], 64
    %20 = vst.msk [vmem:[%s19] ss:$8 sm:$0xf] %vm18, %v17
    %s21 = scalar_lea.vmem [#allocation2], 64
    %22 = vst.msk [vmem:[%s21] ss:$8 sm:$0xf0] %vm18, %v17
    %s23 = scalar_lea.vmem [#allocation0], 16
    %v24 = vld [vmem:[%s23] sm:$0xff]
    %vm25 = vcmask 64512
    %s26 = scalar_lea.vmem [#allocation2], 128
    %27 = vst.msk [vmem:[%s26] ss:$8 sm:$0xf] %vm25, %v24
    %s28 = scalar_lea.vmem [#allocation2], 128
    %29 = vst.msk [vmem:[%s28] ss:$8 sm:$0xf0] %vm25, %v24
    %s30 = scalar_lea.vmem [#allocation0], 24
    %v31 = vld [vmem:[%s30] sm:$0xff]
    %vm32 = vcmask 64512
    %s33 = scalar_lea.vmem [#allocation2], 192
    %34 = vst.msk [vmem:[%s33] ss:$8 sm:$0xf] %vm32, %v31
    %s35 = scalar_lea.vmem [#allocation2], 192
    %36 = vst.msk [vmem:[%s35] ss:$8 sm:$0xf0] %vm32, %v31
    %s37 = scalar_lea.vmem [#allocation0], 32
    %v38 = vld [vmem:[%s37] sm:$0xff]
    %vm39 = vcmask 64512
    %s40 = scalar_lea.vmem [#allocation2], 256
    %41 = vst.msk [vmem:[%s40] ss:$8 sm:$0xf] %vm39, %v38
    %s42 = scalar_lea.vmem [#allocation2], 256
    %43 = vst.msk [vmem:[%s42] ss:$8 sm:$0xf0] %vm39, %v38
    %s44 = scalar_lea.vmem [#allocation0], 40
    %v45 = vld [vmem:[%s44] sm:$0xff]
    %vm46 = vcmask 64512
    %s47 = scalar_lea.vmem [#allocation2], 320
    %48 = vst.msk [vmem:[%s47] ss:$8 sm:$0xf] %vm46, %v45
    %s49 = scalar_lea.vmem [#allocation2], 320
    %50 = vst.msk [vmem:[%s49] ss:$8 sm:$0xf0] %vm46, %v45
    %s51 = scalar_lea.vmem [#allocation0], 48
    %v52 = vld [vmem:[%s51] sm:$0xff]
    %vm53 = vcmask 64512
    %s54 = scalar_lea.vmem [#allocation2], 384
    %55 = vst.msk [vmem:[%s54] ss:$8 sm:$0xf] %vm53, %v52
    %s56 = scalar_lea.vmem [#allocation2], 384
    %57 = vst.msk [vmem:[%s56] ss:$8 sm:$0xf0] %vm53, %v52
    %s58 = scalar_lea.vmem [#allocation0], 56
    %v59 = vld [vmem:[%s58] sm:$0xff]
    %vm60 = vcmask 64512
    %s61 = scalar_lea.vmem [#allocation2], 448
    %62 = vst.msk [vmem:[%s61] ss:$8 sm:$0xf] %vm60, %v59
    %s63 = scalar_lea.vmem [#allocation2], 448
    %64 = vst.msk [vmem:[%s63] ss:$8 sm:$0xf0] %vm60, %v59
    %s65 = scalar_lea.vmem [#allocation0], 64
    %v66 = vld [vmem:[%s65] sm:$0xff]
    %vm67 = vcmask 64512
    %s68 = scalar_lea.vmem [#allocation2], 512
    %69 = vst.msk [vmem:[%s68] ss:$8 sm:$0xf] %vm67, %v66
    %s70 = scalar_lea.vmem [#allocation2], 512
    %71 = vst.msk [vmem:[%s70] ss:$8 sm:$0xf0] %vm67, %v66
    %s72 = scalar_lea.vmem [#allocation0], 72
    %v73 = vld [vmem:[%s72] sm:$0xff]
    %vm74 = vcmask 64512
    %s75 = scalar_lea.vmem [#allocation2], 576
    %76 = vst.msk [vmem:[%s75] ss:$8 sm:$0xf] %vm74, %v73
    %s77 = scalar_lea.vmem [#allocation2], 576
    %78 = vst.msk [vmem:[%s77] ss:$8 sm:$0xf0] %vm74, %v73
    %s79 = scalar_lea.vmem [#allocation0], 80
    %v80 = vld [vmem:[%s79] sm:$0xff]
    %vm81 = vcmask 64512
    %s82 = scalar_lea.vmem [#allocation2], 640
    %83 = vst.msk [vmem:[%s82] ss:$8 sm:$0xf] %vm81, %v80
    %s84 = scalar_lea.vmem [#allocation2], 640
    %85 = vst.msk [vmem:[%s84] ss:$8 sm:$0xf0] %vm81, %v80
    %s86 = scalar_lea.vmem [#allocation0], 88
    %v87 = vld [vmem:[%s86] sm:$0xff]
    %vm88 = vcmask 64512
    %s89 = scalar_lea.vmem [#allocation2], 704
    %90 = vst.msk [vmem:[%s89] ss:$8 sm:$0xf] %vm88, %v87
    %s91 = scalar_lea.vmem [#allocation2], 704
    %92 = vst.msk [vmem:[%s91] ss:$8 sm:$0xf0] %vm88, %v87
    %s93 = scalar_lea.vmem [#allocation0], 96
    %v94 = vld [vmem:[%s93] sm:$0xff]
    %vm95 = vcmask 64512
    %s96 = scalar_lea.vmem [#allocation2], 768
    %97 = vst.msk [vmem:[%s96] ss:$8 sm:$0xf] %vm95, %v94
    %s98 = scalar_lea.vmem [#allocation2], 768
    %99 = vst.msk [vmem:[%s98] ss:$8 sm:$0xf0] %vm95, %v94
    %s100 = scalar_lea.vmem [#allocation0], 104
    %v101 = vld [vmem:[%s100] sm:$0xff]
    %vm102 = vcmask 64512
    %s103 = scalar_lea.vmem [#allocation2], 832
    %104 = vst.msk [vmem:[%s103] ss:$8 sm:$0xf] %vm102, %v101
    %s105 = scalar_lea.vmem [#allocation2], 832
    %106 = vst.msk [vmem:[%s105] ss:$8 sm:$0xf0] %vm102, %v101
    %s107 = scalar_lea.vmem [#allocation0], 112
    %v108 = vld [vmem:[%s107] sm:$0xff]
    %vm109 = vcmask 64512
    %s110 = scalar_lea.vmem [#allocation2], 896
    %111 = vst.msk [vmem:[%s110] ss:$8 sm:$0xf] %vm109, %v108
    %s112 = scalar_lea.vmem [#allocation2], 896
    %113 = vst.msk [vmem:[%s112] ss:$8 sm:$0xf0] %vm109, %v108
    %s114 = scalar_lea.vmem [#allocation0], 120
    %v115 = vld [vmem:[%s114] sm:$0xff]
    %vm116 = vcmask 64512
    %s117 = scalar_lea.vmem [#allocation2], 960
    %118 = vst.msk [vmem:[%s117] ss:$8 sm:$0xf] %vm116, %v115
    %s119 = scalar_lea.vmem [#allocation2], 960
    %120 = vst.msk [vmem:[%s119] ss:$8 sm:$0xf0] %vm116, %v115
    %s121 = scalar_lea.vmem [#allocation0], 128
    %v122 = vld [vmem:[%s121] sm:$0xff]
    %vm123 = vcmask 64512
    %s124 = scalar_lea.vmem [#allocation2], 1024
    %125 = vst.msk [vmem:[%s124] ss:$8 sm:$0xf] %vm123, %v122
    %s126 = scalar_lea.vmem [#allocation2], 1024
    %127 = vst.msk [vmem:[%s126] ss:$8 sm:$0xf0] %vm123, %v122
    %s128 = scalar_lea.vmem [#allocation0], 136
    %v129 = vld [vmem:[%s128] sm:$0xff]
    %vm130 = vcmask 64512
    %s131 = scalar_lea.vmem [#allocation2], 1088
    %132 = vst.msk [vmem:[%s131] ss:$8 sm:$0xf] %vm130, %v129
    %s133 = scalar_lea.vmem [#allocation2], 1088
    %134 = vst.msk [vmem:[%s133] ss:$8 sm:$0xf0] %vm130, %v129
    %s135 = scalar_lea.vmem [#allocation0], 144
    %v136 = vld [vmem:[%s135] sm:$0xff]
    %vm137 = vcmask 64512
    %s138 = scalar_lea.vmem [#allocation2], 1152
    %139 = vst.msk [vmem:[%s138] ss:$8 sm:$0xf] %vm137, %v136
    %s140 = scalar_lea.vmem [#allocation2], 1152
    %141 = vst.msk [vmem:[%s140] ss:$8 sm:$0xf0] %vm137, %v136
    %s142 = scalar_lea.vmem [#allocation0], 152
    %v143 = vld [vmem:[%s142] sm:$0xff]
    %vm144 = vcmask 64512
    %s145 = scalar_lea.vmem [#allocation2], 1216
    %146 = vst.msk [vmem:[%s145] ss:$8 sm:$0xf] %vm144, %v143
    %s147 = scalar_lea.vmem [#allocation2], 1216
    %148 = vst.msk [vmem:[%s147] ss:$8 sm:$0xf0] %vm144, %v143
    %s149 = scalar_lea.vmem [#allocation0], 160
    %v150 = vld [vmem:[%s149] sm:$0xff]
    %vm151 = vcmask 64512
    %s152 = scalar_lea.vmem [#allocation2], 1280
    %153 = vst.msk [vmem:[%s152] ss:$8 sm:$0xf] %vm151, %v150
    %s154 = scalar_lea.vmem [#allocation2], 1280
    %155 = vst.msk [vmem:[%s154] ss:$8 sm:$0xf0] %vm151, %v150
    %s156 = scalar_lea.vmem [#allocation0], 168
    %v157 = vld [vmem:[%s156] sm:$0xff]
    %vm158 = vcmask 64512
    %s159 = scalar_lea.vmem [#allocation2], 1344
    %160 = vst.msk [vmem:[%s159] ss:$8 sm:$0xf] %vm158, %v157
    %s161 = scalar_lea.vmem [#allocation2], 1344
    %162 = vst.msk [vmem:[%s161] ss:$8 sm:$0xf0] %vm158, %v157
    %s163 = scalar_lea.vmem [#allocation0], 176
    %v164 = vld [vmem:[%s163] sm:$0xff]
    %vm165 = vcmask 64512
    %s166 = scalar_lea.vmem [#allocation2], 1408
    %167 = vst.msk [vmem:[%s166] ss:$8 sm:$0xf] %vm165, %v164
    %s168 = scalar_lea.vmem [#allocation2], 1408
    %169 = vst.msk [vmem:[%s168] ss:$8 sm:$0xf0] %vm165, %v164
    %s170 = scalar_lea.vmem [#allocation0], 184
    %v171 = vld [vmem:[%s170] sm:$0xff]
    %vm172 = vcmask 64512
    %s173 = scalar_lea.vmem [#allocation2], 1472
    %174 = vst.msk [vmem:[%s173] ss:$8 sm:$0xf] %vm172, %v171
    %s175 = scalar_lea.vmem [#allocation2], 1472
    %176 = vst.msk [vmem:[%s175] ss:$8 sm:$0xf0] %vm172, %v171
    %s177 = scalar_lea.vmem [#allocation0], 192
    %v178 = vld [vmem:[%s177] sm:$0xff]
    %vm179 = vcmask 64512
    %s180 = scalar_lea.vmem [#allocation2], 1536
    %181 = vst.msk [vmem:[%s180] ss:$8 sm:$0xf] %vm179, %v178
    %s182 = scalar_lea.vmem [#allocation2], 1536
    %183 = vst.msk [vmem:[%s182] ss:$8 sm:$0xf0] %vm179, %v178
    %s184 = scalar_lea.vmem [#allocation0], 200
    %v185 = vld [vmem:[%s184] sm:$0xff]
    %vm186 = vcmask 64512
    %s187 = scalar_lea.vmem [#allocation2], 1600
    %188 = vst.msk [vmem:[%s187] ss:$8 sm:$0xf] %vm186, %v185
    %s189 = scalar_lea.vmem [#allocation2], 1600
    %190 = vst.msk [vmem:[%s189] ss:$8 sm:$0xf0] %vm186, %v185
    %s191 = scalar_lea.vmem [#allocation0], 208
    %v192 = vld [vmem:[%s191] sm:$0xff]
    %vm193 = vcmask 64512
    %s194 = scalar_lea.vmem [#allocation2], 1664
    %195 = vst.msk [vmem:[%s194] ss:$8 sm:$0xf] %vm193, %v192
    %s196 = scalar_lea.vmem [#allocation2], 1664
    %197 = vst.msk [vmem:[%s196] ss:$8 sm:$0xf0] %vm193, %v192
    %s198 = scalar_lea.vmem [#allocation0], 216
    %v199 = vld [vmem:[%s198] sm:$0xff]
    %vm200 = vcmask 64512
    %s201 = scalar_lea.vmem [#allocation2], 1728
    %202 = vst.msk [vmem:[%s201] ss:$8 sm:$0xf] %vm200, %v199
    %s203 = scalar_lea.vmem [#allocation2], 1728
    %204 = vst.msk [vmem:[%s203] ss:$8 sm:$0xf0] %vm200, %v199
    %s205 = scalar_lea.vmem [#allocation0], 224
    %v206 = vld [vmem:[%s205] sm:$0xff]
    %vm207 = vcmask 64512
    %s208 = scalar_lea.vmem [#allocation2], 1792
    %209 = vst.msk [vmem:[%s208] ss:$8 sm:$0xf] %vm207, %v206
    %s210 = scalar_lea.vmem [#allocation2], 1792
    %211 = vst.msk [vmem:[%s210] ss:$8 sm:$0xf0] %vm207, %v206
    %s212 = scalar_lea.vmem [#allocation0], 232
    %v213 = vld [vmem:[%s212] sm:$0xff]
    %vm214 = vcmask 64512
    %s215 = scalar_lea.vmem [#allocation2], 1856
    %216 = vst.msk [vmem:[%s215] ss:$8 sm:$0xf] %vm214, %v213
    %s217 = scalar_lea.vmem [#allocation2], 1856
    %218 = vst.msk [vmem:[%s217] ss:$8 sm:$0xf0] %vm214, %v213
    %s219 = scalar_lea.vmem [#allocation0], 240
    %v220 = vld [vmem:[%s219] sm:$0xff]
    %vm221 = vcmask 64512
    %s222 = scalar_lea.vmem [#allocation2], 1920
    %223 = vst.msk [vmem:[%s222] ss:$8 sm:$0xf] %vm221, %v220
    %s224 = scalar_lea.vmem [#allocation2], 1920
    %225 = vst.msk [vmem:[%s224] ss:$8 sm:$0xf0] %vm221, %v220
    %s226 = scalar_lea.vmem [#allocation0], 248
    %v227 = vld [vmem:[%s226] sm:$0xff]
    %vm228 = vcmask 64512
    %s229 = scalar_lea.vmem [#allocation2], 1984
    %230 = vst.msk [vmem:[%s229] ss:$8 sm:$0xf] %vm228, %v227
    %s231 = scalar_lea.vmem [#allocation2], 1984
    %232 = vst.msk [vmem:[%s231] ss:$8 sm:$0xf0] %vm228, %v227
    %s233 = scalar_lea.vmem [#allocation0], 256
    %v234 = vld [vmem:[%s233] sm:$0xff]
    %vm235 = vcmask 64512
    %s236 = scalar_lea.vmem [#allocation2], 2048
    %237 = vst.msk [vmem:[%s236] ss:$8 sm:$0xf] %vm235, %v234
    %s238 = scalar_lea.vmem [#allocation2], 2048
    %239 = vst.msk [vmem:[%s238] ss:$8 sm:$0xf0] %vm235, %v234
    %s240 = scalar_lea.vmem [#allocation0], 264
    %v241 = vld [vmem:[%s240] sm:$0xff]
    %vm242 = vcmask 64512
    %s243 = scalar_lea.vmem [#allocation2], 2112
    %244 = vst.msk [vmem:[%s243] ss:$8 sm:$0xf] %vm242, %v241
    %s245 = scalar_lea.vmem [#allocation2], 2112
    %246 = vst.msk [vmem:[%s245] ss:$8 sm:$0xf0] %vm242, %v241
    %s247 = scalar_lea.vmem [#allocation0], 272
    %v248 = vld [vmem:[%s247] sm:$0xff]
    %vm249 = vcmask 64512
    %s250 = scalar_lea.vmem [#allocation2], 2176
    %251 = vst.msk [vmem:[%s250] ss:$8 sm:$0xf] %vm249, %v248
    %s252 = scalar_lea.vmem [#allocation2], 2176
    %253 = vst.msk [vmem:[%s252] ss:$8 sm:$0xf0] %vm249, %v248
    %s254 = scalar_lea.vmem [#allocation0], 280
    %v255 = vld [vmem:[%s254] sm:$0xff]
    %vm256 = vcmask 64512
    %s257 = scalar_lea.vmem [#allocation2], 2240
    %258 = vst.msk [vmem:[%s257] ss:$8 sm:$0xf] %vm256, %v255
    %s259 = scalar_lea.vmem [#allocation2], 2240
    %260 = vst.msk [vmem:[%s259] ss:$8 sm:$0xf0] %vm256, %v255
    %s261 = scalar_lea.vmem [#allocation0], 288
    %v262 = vld [vmem:[%s261] sm:$0xff]
    %vm263 = vcmask 64512
    %s264 = scalar_lea.vmem [#allocation2], 2304
    %265 = vst.msk [vmem:[%s264] ss:$8 sm:$0xf] %vm263, %v262
    %s266 = scalar_lea.vmem [#allocation2], 2304
    %267 = vst.msk [vmem:[%s266] ss:$8 sm:$0xf0] %vm263, %v262
    %s268 = scalar_lea.vmem [#allocation0], 296
    %v269 = vld [vmem:[%s268] sm:$0xff]
    %vm270 = vcmask 64512
    %s271 = scalar_lea.vmem [#allocation2], 2368
    %272 = vst.msk [vmem:[%s271] ss:$8 sm:$0xf] %vm270, %v269
    %s273 = scalar_lea.vmem [#allocation2], 2368
    %274 = vst.msk [vmem:[%s273] ss:$8 sm:$0xf0] %vm270, %v269
    %s275 = scalar_lea.vmem [#allocation0], 304
    %v276 = vld [vmem:[%s275] sm:$0xff]
    %vm277 = vcmask 64512
    %s278 = scalar_lea.vmem [#allocation2], 2432
    %279 = vst.msk [vmem:[%s278] ss:$8 sm:$0xf] %vm277, %v276
    %s280 = scalar_lea.vmem [#allocation2], 2432
    %281 = vst.msk [vmem:[%s280] ss:$8 sm:$0xf0] %vm277, %v276
    %s282 = scalar_lea.vmem [#allocation0], 312
    %v283 = vld [vmem:[%s282] sm:$0xff]
    %vm284 = vcmask 64512
    %s285 = scalar_lea.vmem [#allocation2], 2496
    %286 = vst.msk [vmem:[%s285] ss:$8 sm:$0xf] %vm284, %v283
    %s287 = scalar_lea.vmem [#allocation2], 2496
    %288 = vst.msk [vmem:[%s287] ss:$8 sm:$0xf0] %vm284, %v283
    %s289 = scalar_lea.vmem [#allocation0], 320
    %v290 = vld [vmem:[%s289] sm:$0xff]
    %vm291 = vcmask 64512
    %s292 = scalar_lea.vmem [#allocation2], 2560
    %293 = vst.msk [vmem:[%s292] ss:$8 sm:$0xf] %vm291, %v290
    %s294 = scalar_lea.vmem [#allocation2], 2560
    %295 = vst.msk [vmem:[%s294] ss:$8 sm:$0xf0] %vm291, %v290
    %s296 = scalar_lea.vmem [#allocation0], 328
    %v297 = vld [vmem:[%s296] sm:$0xff]
    %vm298 = vcmask 64512
    %s299 = scalar_lea.vmem [#allocation2], 2624
    %300 = vst.msk [vmem:[%s299] ss:$8 sm:$0xf] %vm298, %v297
    %s301 = scalar_lea.vmem [#allocation2], 2624
    %302 = vst.msk [vmem:[%s301] ss:$8 sm:$0xf0] %vm298, %v297
    %s303 = scalar_lea.vmem [#allocation0], 336
    %v304 = vld [vmem:[%s303] sm:$0xff]
    %vm305 = vcmask 64512
    %s306 = scalar_lea.vmem [#allocation2], 2688
    %307 = vst.msk [vmem:[%s306] ss:$8 sm:$0xf] %vm305, %v304
    %s308 = scalar_lea.vmem [#allocation2], 2688
    %309 = vst.msk [vmem:[%s308] ss:$8 sm:$0xf0] %vm305, %v304
    %s310 = scalar_lea.vmem [#allocation0], 344
    %v311 = vld [vmem:[%s310] sm:$0xff]
    %vm312 = vcmask 64512
    %s313 = scalar_lea.vmem [#allocation2], 2752
    %314 = vst.msk [vmem:[%s313] ss:$8 sm:$0xf] %vm312, %v311
    %s315 = scalar_lea.vmem [#allocation2], 2752
    %316 = vst.msk [vmem:[%s315] ss:$8 sm:$0xf0] %vm312, %v311
    %s317 = scalar_lea.vmem [#allocation0], 352
    %v318 = vld [vmem:[%s317] sm:$0xff]
    %vm319 = vcmask 64512
    %s320 = scalar_lea.vmem [#allocation2], 2816
    %321 = vst.msk [vmem:[%s320] ss:$8 sm:$0xf] %vm319, %v318
    %s322 = scalar_lea.vmem [#allocation2], 2816
    %323 = vst.msk [vmem:[%s322] ss:$8 sm:$0xf0] %vm319, %v318
    %s324 = scalar_lea.vmem [#allocation0], 360
    %v325 = vld [vmem:[%s324] sm:$0xff]
    %vm326 = vcmask 64512
    %s327 = scalar_lea.vmem [#allocation2], 2880
    %328 = vst.msk [vmem:[%s327] ss:$8 sm:$0xf] %vm326, %v325
    %s329 = scalar_lea.vmem [#allocation2], 2880
    %330 = vst.msk [vmem:[%s329] ss:$8 sm:$0xf0] %vm326, %v325
    %s331 = scalar_lea.vmem [#allocation0], 368
    %v332 = vld [vmem:[%s331] sm:$0xff]
    %vm333 = vcmask 64512
    %s334 = scalar_lea.vmem [#allocation2], 2944
    %335 = vst.msk [vmem:[%s334] ss:$8 sm:$0xf] %vm333, %v332
    %s336 = scalar_lea.vmem [#allocation2], 2944
    %337 = vst.msk [vmem:[%s336] ss:$8 sm:$0xf0] %vm333, %v332
    %s338 = scalar_lea.vmem [#allocation0], 376
    %v339 = vld [vmem:[%s338] sm:$0xff]
    %vm340 = vcmask 64512
    %s341 = scalar_lea.vmem [#allocation2], 3008
    %342 = vst.msk [vmem:[%s341] ss:$8 sm:$0xf] %vm340, %v339
    %s343 = scalar_lea.vmem [#allocation2], 3008
    %344 = vst.msk [vmem:[%s343] ss:$8 sm:$0xf0] %vm340, %v339
    %s345 = scalar_lea.vmem [#allocation0], 384
    %v346 = vld [vmem:[%s345] sm:$0xff]
    %vm347 = vcmask 64512
    %s348 = scalar_lea.vmem [#allocation2], 3072
    %349 = vst.msk [vmem:[%s348] ss:$8 sm:$0xf] %vm347, %v346
    %s350 = scalar_lea.vmem [#allocation2], 3072
    %351 = vst.msk [vmem:[%s350] ss:$8 sm:$0xf0] %vm347, %v346
    %s352 = scalar_lea.vmem [#allocation0], 392
    %v353 = vld [vmem:[%s352] sm:$0xff]
    %vm354 = vcmask 64512
    %s355 = scalar_lea.vmem [#allocation2], 3136
    %356 = vst.msk [vmem:[%s355] ss:$8 sm:$0xf] %vm354, %v353
    %s357 = scalar_lea.vmem [#allocation2], 3136
    %358 = vst.msk [vmem:[%s357] ss:$8 sm:$0xf0] %vm354, %v353
    %s359 = scalar_lea.vmem [#allocation0], 400
    %v360 = vld [vmem:[%s359] sm:$0xff]
    %vm361 = vcmask 64512
    %s362 = scalar_lea.vmem [#allocation2], 3200
    %363 = vst.msk [vmem:[%s362] ss:$8 sm:$0xf] %vm361, %v360
    %s364 = scalar_lea.vmem [#allocation2], 3200
    %365 = vst.msk [vmem:[%s364] ss:$8 sm:$0xf0] %vm361, %v360
    %s366 = scalar_lea.vmem [#allocation0], 408
    %v367 = vld [vmem:[%s366] sm:$0xff]
    %vm368 = vcmask 64512
    %s369 = scalar_lea.vmem [#allocation2], 3264
    %370 = vst.msk [vmem:[%s369] ss:$8 sm:$0xf] %vm368, %v367
    %s371 = scalar_lea.vmem [#allocation2], 3264
    %372 = vst.msk [vmem:[%s371] ss:$8 sm:$0xf0] %vm368, %v367
    %s373 = scalar_lea.vmem [#allocation0], 416
    %v374 = vld [vmem:[%s373] sm:$0xff]
    %vm375 = vcmask 64512
    %s376 = scalar_lea.vmem [#allocation2], 3328
    %377 = vst.msk [vmem:[%s376] ss:$8 sm:$0xf] %vm375, %v374
    %s378 = scalar_lea.vmem [#allocation2], 3328
    %379 = vst.msk [vmem:[%s378] ss:$8 sm:$0xf0] %vm375, %v374
    %s380 = scalar_lea.vmem [#allocation0], 424
    %v381 = vld [vmem:[%s380] sm:$0xff]
    %vm382 = vcmask 64512
    %s383 = scalar_lea.vmem [#allocation2], 3392
    %384 = vst.msk [vmem:[%s383] ss:$8 sm:$0xf] %vm382, %v381
    %s385 = scalar_lea.vmem [#allocation2], 3392
    %386 = vst.msk [vmem:[%s385] ss:$8 sm:$0xf0] %vm382, %v381
    %s387 = scalar_lea.vmem [#allocation0], 432
    %v388 = vld [vmem:[%s387] sm:$0xff]
    %vm389 = vcmask 64512
    %s390 = scalar_lea.vmem [#allocation2], 3456
    %391 = vst.msk [vmem:[%s390] ss:$8 sm:$0xf] %vm389, %v388
    %s392 = scalar_lea.vmem [#allocation2], 3456
    %393 = vst.msk [vmem:[%s392] ss:$8 sm:$0xf0] %vm389, %v388
    %s394 = scalar_lea.vmem [#allocation0], 440
    %v395 = vld [vmem:[%s394] sm:$0xff]
    %vm396 = vcmask 64512
    %s397 = scalar_lea.vmem [#allocation2], 3520
    %398 = vst.msk [vmem:[%s397] ss:$8 sm:$0xf] %vm396, %v395
    %s399 = scalar_lea.vmem [#allocation2], 3520
    %400 = vst.msk [vmem:[%s399] ss:$8 sm:$0xf0] %vm396, %v395
    %s401 = scalar_lea.vmem [#allocation0], 448
    %v402 = vld [vmem:[%s401] sm:$0xff]
    %vm403 = vcmask 64512
    %s404 = scalar_lea.vmem [#allocation2], 3584
    %405 = vst.msk [vmem:[%s404] ss:$8 sm:$0xf] %vm403, %v402
    %s406 = scalar_lea.vmem [#allocation2], 3584
    %407 = vst.msk [vmem:[%s406] ss:$8 sm:$0xf0] %vm403, %v402
    %s408 = scalar_lea.vmem [#allocation0], 456
    %v409 = vld [vmem:[%s408] sm:$0xff]
    %vm410 = vcmask 64512
    %s411 = scalar_lea.vmem [#allocation2], 3648
    %412 = vst.msk [vmem:[%s411] ss:$8 sm:$0xf] %vm410, %v409
    %s413 = scalar_lea.vmem [#allocation2], 3648
    %414 = vst.msk [vmem:[%s413] ss:$8 sm:$0xf0] %vm410, %v409
    %s415 = scalar_lea.vmem [#allocation0], 464
    %v416 = vld [vmem:[%s415] sm:$0xff]
    %vm417 = vcmask 64512
    %s418 = scalar_lea.vmem [#allocation2], 3712
    %419 = vst.msk [vmem:[%s418] ss:$8 sm:$0xf] %vm417, %v416
    %s420 = scalar_lea.vmem [#allocation2], 3712
    %421 = vst.msk [vmem:[%s420] ss:$8 sm:$0xf0] %vm417, %v416
    %s422 = scalar_lea.vmem [#allocation0], 472
    %v423 = vld [vmem:[%s422] sm:$0xff]
    %vm424 = vcmask 64512
    %s425 = scalar_lea.vmem [#allocation2], 3776
    %426 = vst.msk [vmem:[%s425] ss:$8 sm:$0xf] %vm424, %v423
    %s427 = scalar_lea.vmem [#allocation2], 3776
    %428 = vst.msk [vmem:[%s427] ss:$8 sm:$0xf0] %vm424, %v423
    %s429 = scalar_lea.vmem [#allocation0], 480
    %v430 = vld [vmem:[%s429] sm:$0xff]
    %vm431 = vcmask 64512
    %s432 = scalar_lea.vmem [#allocation2], 3840
    %433 = vst.msk [vmem:[%s432] ss:$8 sm:$0xf] %vm431, %v430
    %s434 = scalar_lea.vmem [#allocation2], 3840
    %435 = vst.msk [vmem:[%s434] ss:$8 sm:$0xf0] %vm431, %v430
    %s436 = scalar_lea.vmem [#allocation0], 488
    %v437 = vld [vmem:[%s436] sm:$0xff]
    %vm438 = vcmask 64512
    %s439 = scalar_lea.vmem [#allocation2], 3904
    %440 = vst.msk [vmem:[%s439] ss:$8 sm:$0xf] %vm438, %v437
    %s441 = scalar_lea.vmem [#allocation2], 3904
    %442 = vst.msk [vmem:[%s441] ss:$8 sm:$0xf0] %vm438, %v437
    %s443 = scalar_lea.vmem [#allocation0], 496
    %v444 = vld [vmem:[%s443] sm:$0xff]
    %vm445 = vcmask 64512
    %s446 = scalar_lea.vmem [#allocation2], 3968
    %447 = vst.msk [vmem:[%s446] ss:$8 sm:$0xf] %vm445, %v444
    %s448 = scalar_lea.vmem [#allocation2], 3968
    %449 = vst.msk [vmem:[%s448] ss:$8 sm:$0xf0] %vm445, %v444
    %s450 = scalar_lea.vmem [#allocation0], 504
    %v451 = vld [vmem:[%s450] sm:$0xff]
    %vm452 = vcmask 64512
    %s453 = scalar_lea.vmem [#allocation2], 4032
    %454 = vst.msk [vmem:[%s453] ss:$8 sm:$0xf] %vm452, %v451
    %s455 = scalar_lea.vmem [#allocation2], 4032
    %456 = vst.msk [vmem:[%s455] ss:$8 sm:$0xf0] %vm452, %v451
    %v457 = vld [vmem:[#allocation0] sm:$0xff]
    %458 = vrot.lane.b32.xlu0 %v457, 120
    %v459 = vpop.permute.xlu0 %458
    %vm460 = vcmask 64512
    %s461 = scalar_lea.vmem [#allocation2], 1
    %462 = vst.msk [vmem:[%s461] ss:$8 sm:$0xf] %vm460, %v459
    %s463 = scalar_lea.vmem [#allocation2], 1
    %464 = vst.msk [vmem:[%s463] ss:$8 sm:$0xf0] %vm460, %v459
    %s465 = scalar_lea.vmem [#allocation0], 8
    %v466 = vld [vmem:[%s465] sm:$0xff]
    %467 = vrot.lane.b32.xlu0 %v466, 120
    %v468 = vpop.permute.xlu0 %467
    %vm469 = vcmask 64512
    %s470 = scalar_lea.vmem [#allocation2], 65
    %471 = vst.msk [vmem:[%s470] ss:$8 sm:$0xf] %vm469, %v468
    %s472 = scalar_lea.vmem [#allocation2], 65
    %473 = vst.msk [vmem:[%s472] ss:$8 sm:$0xf0] %vm469, %v468
    %s474 = scalar_lea.vmem [#allocation0], 16
    %v475 = vld [vmem:[%s474] sm:$0xff]
    %476 = vrot.lane.b32.xlu0 %v475, 120
    %v477 = vpop.permute.xlu0 %476
    %vm478 = vcmask 64512
    %s479 = scalar_lea.vmem [#allocation2], 129
    %480 = vst.msk [vmem:[%s479] ss:$8 sm:$0xf] %vm478, %v477
    %s481 = scalar_lea.vmem [#allocation2], 129
    %482 = vst.msk [vmem:[%s481] ss:$8 sm:$0xf0] %vm478, %v477
    %s483 = scalar_lea.vmem [#allocation0], 24
    %v484 = vld [vmem:[%s483] sm:$0xff]
    %485 = vrot.lane.b32.xlu0 %v484, 120
    %v486 = vpop.permute.xlu0 %485
    %vm487 = vcmask 64512
    %s488 = scalar_lea.vmem [#allocation2], 193
    %489 = vst.msk [vmem:[%s488] ss:$8 sm:$0xf] %vm487, %v486
    %s490 = scalar_lea.vmem [#allocation2], 193
    %491 = vst.msk [vmem:[%s490] ss:$8 sm:$0xf0] %vm487, %v486
    %s492 = scalar_lea.vmem [#allocation0], 32
    %v493 = vld [vmem:[%s492] sm:$0xff]
    %494 = vrot.lane.b32.xlu0 %v493, 120
    %v495 = vpop.permute.xlu0 %494
    %vm496 = vcmask 64512
    %s497 = scalar_lea.vmem [#allocation2], 257
    %498 = vst.msk [vmem:[%s497] ss:$8 sm:$0xf] %vm496, %v495
    %s499 = scalar_lea.vmem [#allocation2], 257
    %500 = vst.msk [vmem:[%s499] ss:$8 sm:$0xf0] %vm496, %v495
    %s501 = scalar_lea.vmem [#allocation0], 40
    %v502 = vld [vmem:[%s501] sm:$0xff]
    %503 = vrot.lane.b32.xlu0 %v502, 120
    %v504 = vpop.permute.xlu0 %503
    %vm505 = vcmask 64512
    %s506 = scalar_lea.vmem [#allocation2], 321
    %507 = vst.msk [vmem:[%s506] ss:$8 sm:$0xf] %vm505, %v504
    %s508 = scalar_lea.vmem [#allocation2], 321
    %509 = vst.msk [vmem:[%s508] ss:$8 sm:$0xf0] %vm505, %v504
    %s510 = scalar_lea.vmem [#allocation0], 48
    %v511 = vld [vmem:[%s510] sm:$0xff]
    %512 = vrot.lane.b32.xlu0 %v511, 120
    %v513 = vpop.permute.xlu0 %512
    %vm514 = vcmask 64512
    %s515 = scalar_lea.vmem [#allocation2], 385
    %516 = vst.msk [vmem:[%s515] ss:$8 sm:$0xf] %vm514, %v513
    %s517 = scalar_lea.vmem [#allocation2], 385
    %518 = vst.msk [vmem:[%s517] ss:$8 sm:$0xf0] %vm514, %v513
    %s519 = scalar_lea.vmem [#allocation0], 56
    %v520 = vld [vmem:[%s519] sm:$0xff]
    %521 = vrot.lane.b32.xlu0 %v520, 120
    %v522 = vpop.permute.xlu0 %521
    %vm523 = vcmask 64512
    %s524 = scalar_lea.vmem [#allocation2], 449
    %525 = vst.msk [vmem:[%s524] ss:$8 sm:$0xf] %vm523, %v522
    %s526 = scalar_lea.vmem [#allocation2], 449
    %527 = vst.msk [vmem:[%s526] ss:$8 sm:$0xf0] %vm523, %v522
    %s528 = scalar_lea.vmem [#allocation0], 64
    %v529 = vld [vmem:[%s528] sm:$0xff]
    %530 = vrot.lane.b32.xlu0 %v529, 120
    %v531 = vpop.permute.xlu0 %530
    %vm532 = vcmask 64512
    %s533 = scalar_lea.vmem [#allocation2], 513
    %534 = vst.msk [vmem:[%s533] ss:$8 sm:$0xf] %vm532, %v531
    %s535 = scalar_lea.vmem [#allocation2], 513
    %536 = vst.msk [vmem:[%s535] ss:$8 sm:$0xf0] %vm532, %v531
    %s537 = scalar_lea.vmem [#allocation0], 72
    %v538 = vld [vmem:[%s537] sm:$0xff]
    %539 = vrot.lane.b32.xlu0 %v538, 120
    %v540 = vpop.permute.xlu0 %539
    %vm541 = vcmask 64512
    %s542 = scalar_lea.vmem [#allocation2], 577
    %543 = vst.msk [vmem:[%s542] ss:$8 sm:$0xf] %vm541, %v540
    %s544 = scalar_lea.vmem [#allocation2], 577
    %545 = vst.msk [vmem:[%s544] ss:$8 sm:$0xf0] %vm541, %v540
    %s546 = scalar_lea.vmem [#allocation0], 80
    %v547 = vld [vmem:[%s546] sm:$0xff]
    %548 = vrot.lane.b32.xlu0 %v547, 120
    %v549 = vpop.permute.xlu0 %548
    %vm550 = vcmask 64512
    %s551 = scalar_lea.vmem [#allocation2], 641
    %552 = vst.msk [vmem:[%s551] ss:$8 sm:$0xf] %vm550, %v549
    %s553 = scalar_lea.vmem [#allocation2], 641
    %554 = vst.msk [vmem:[%s553] ss:$8 sm:$0xf0] %vm550, %v549
    %s555 = scalar_lea.vmem [#allocation0], 88
    %v556 = vld [vmem:[%s555] sm:$0xff]
    %557 = vrot.lane.b32.xlu0 %v556, 120
    %v558 = vpop.permute.xlu0 %557
    %vm559 = vcmask 64512
    %s560 = scalar_lea.vmem [#allocation2], 705
    %561 = vst.msk [vmem:[%s560] ss:$8 sm:$0xf] %vm559, %v558
    %s562 = scalar_lea.vmem [#allocation2], 705
    %563 = vst.msk [vmem:[%s562] ss:$8 sm:$0xf0] %vm559, %v558
    %s564 = scalar_lea.vmem [#allocation0], 96
    %v565 = vld [vmem:[%s564] sm:$0xff]
    %566 = vrot.lane.b32.xlu0 %v565, 120
    %v567 = vpop.permute.xlu0 %566
    %vm568 = vcmask 64512
    %s569 = scalar_lea.vmem [#allocation2], 769
    %570 = vst.msk [vmem:[%s569] ss:$8 sm:$0xf] %vm568, %v567
    %s571 = scalar_lea.vmem [#allocation2], 769
    %572 = vst.msk [vmem:[%s571] ss:$8 sm:$0xf0] %vm568, %v567
    %s573 = scalar_lea.vmem [#allocation0], 104
    %v574 = vld [vmem:[%s573] sm:$0xff]
    %575 = vrot.lane.b32.xlu0 %v574, 120
    %v576 = vpop.permute.xlu0 %575
    %vm577 = vcmask 64512
    %s578 = scalar_lea.vmem [#allocation2], 833
    %579 = vst.msk [vmem:[%s578] ss:$8 sm:$0xf] %vm577, %v576
    %s580 = scalar_lea.vmem [#allocation2], 833
    %581 = vst.msk [vmem:[%s580] ss:$8 sm:$0xf0] %vm577, %v576
    %s582 = scalar_lea.vmem [#allocation0], 112
    %v583 = vld [vmem:[%s582] sm:$0xff]
    %584 = vrot.lane.b32.xlu0 %v583, 120
    %v585 = vpop.permute.xlu0 %584
    %vm586 = vcmask 64512
    %s587 = scalar_lea.vmem [#allocation2], 897
    %588 = vst.msk [vmem:[%s587] ss:$8 sm:$0xf] %vm586, %v585
    %s589 = scalar_lea.vmem [#allocation2], 897
    %590 = vst.msk [vmem:[%s589] ss:$8 sm:$0xf0] %vm586, %v585
    %s591 = scalar_lea.vmem [#allocation0], 120
    %v592 = vld [vmem:[%s591] sm:$0xff]
    %593 = vrot.lane.b32.xlu0 %v592, 120
    %v594 = vpop.permute.xlu0 %593
    %vm595 = vcmask 64512
    %s596 = scalar_lea.vmem [#allocation2], 961
    %597 = vst.msk [vmem:[%s596] ss:$8 sm:$0xf] %vm595, %v594
    %s598 = scalar_lea.vmem [#allocation2], 961
    %599 = vst.msk [vmem:[%s598] ss:$8 sm:$0xf0] %vm595, %v594
    %s600 = scalar_lea.vmem [#allocation0], 128
    %v601 = vld [vmem:[%s600] sm:$0xff]
    %602 = vrot.lane.b32.xlu0 %v601, 120
    %v603 = vpop.permute.xlu0 %602
    %vm604 = vcmask 64512
    %s605 = scalar_lea.vmem [#allocation2], 1025
    %606 = vst.msk [vmem:[%s605] ss:$8 sm:$0xf] %vm604, %v603
    %s607 = scalar_lea.vmem [#allocation2], 1025
    %608 = vst.msk [vmem:[%s607] ss:$8 sm:$0xf0] %vm604, %v603
    %s609 = scalar_lea.vmem [#allocation0], 136
    %v610 = vld [vmem:[%s609] sm:$0xff]
    %611 = vrot.lane.b32.xlu0 %v610, 120
    %v612 = vpop.permute.xlu0 %611
    %vm613 = vcmask 64512
    %s614 = scalar_lea.vmem [#allocation2], 1089
    %615 = vst.msk [vmem:[%s614] ss:$8 sm:$0xf] %vm613, %v612
    %s616 = scalar_lea.vmem [#allocation2], 1089
    %617 = vst.msk [vmem:[%s616] ss:$8 sm:$0xf0] %vm613, %v612
    %s618 = scalar_lea.vmem [#allocation0], 144
    %v619 = vld [vmem:[%s618] sm:$0xff]
    %620 = vrot.lane.b32.xlu0 %v619, 120
    %v621 = vpop.permute.xlu0 %620
    %vm622 = vcmask 64512
    %s623 = scalar_lea.vmem [#allocation2], 1153
    %624 = vst.msk [vmem:[%s623] ss:$8 sm:$0xf] %vm622, %v621
    %s625 = scalar_lea.vmem [#allocation2], 1153
    %626 = vst.msk [vmem:[%s625] ss:$8 sm:$0xf0] %vm622, %v621
    %s627 = scalar_lea.vmem [#allocation0], 152
    %v628 = vld [vmem:[%s627] sm:$0xff]
    %629 = vrot.lane.b32.xlu0 %v628, 120
    %v630 = vpop.permute.xlu0 %629
    %vm631 = vcmask 64512
    %s632 = scalar_lea.vmem [#allocation2], 1217
    %633 = vst.msk [vmem:[%s632] ss:$8 sm:$0xf] %vm631, %v630
    %s634 = scalar_lea.vmem [#allocation2], 1217
    %635 = vst.msk [vmem:[%s634] ss:$8 sm:$0xf0] %vm631, %v630
    %s636 = scalar_lea.vmem [#allocation0], 160
    %v637 = vld [vmem:[%s636] sm:$0xff]
    %638 = vrot.lane.b32.xlu0 %v637, 120
    %v639 = vpop.permute.xlu0 %638
    %vm640 = vcmask 64512
    %s641 = scalar_lea.vmem [#allocation2], 1281
    %642 = vst.msk [vmem:[%s641] ss:$8 sm:$0xf] %vm640, %v639
    %s643 = scalar_lea.vmem [#allocation2], 1281
    %644 = vst.msk [vmem:[%s643] ss:$8 sm:$0xf0] %vm640, %v639
    %s645 = scalar_lea.vmem [#allocation0], 168
    %v646 = vld [vmem:[%s645] sm:$0xff]
    %647 = vrot.lane.b32.xlu0 %v646, 120
    %v648 = vpop.permute.xlu0 %647
    %vm649 = vcmask 64512
    %s650 = scalar_lea.vmem [#allocation2], 1345
    %651 = vst.msk [vmem:[%s650] ss:$8 sm:$0xf] %vm649, %v648
    %s652 = scalar_lea.vmem [#allocation2], 1345
    %653 = vst.msk [vmem:[%s652] ss:$8 sm:$0xf0] %vm649, %v648
    %s654 = scalar_lea.vmem [#allocation0], 176
    %v655 = vld [vmem:[%s654] sm:$0xff]
    %656 = vrot.lane.b32.xlu0 %v655, 120
    %v657 = vpop.permute.xlu0 %656
    %vm658 = vcmask 64512
    %s659 = scalar_lea.vmem [#allocation2], 1409
    %660 = vst.msk [vmem:[%s659] ss:$8 sm:$0xf] %vm658, %v657
    %s661 = scalar_lea.vmem [#allocation2], 1409
    %662 = vst.msk [vmem:[%s661] ss:$8 sm:$0xf0] %vm658, %v657
    %s663 = scalar_lea.vmem [#allocation0], 184
    %v664 = vld [vmem:[%s663] sm:$0xff]
    %665 = vrot.lane.b32.xlu0 %v664, 120
    %v666 = vpop.permute.xlu0 %665
    %vm667 = vcmask 64512
    %s668 = scalar_lea.vmem [#allocation2], 1473
    %669 = vst.msk [vmem:[%s668] ss:$8 sm:$0xf] %vm667, %v666
    %s670 = scalar_lea.vmem [#allocation2], 1473
    %671 = vst.msk [vmem:[%s670] ss:$8 sm:$0xf0] %vm667, %v666
    %s672 = scalar_lea.vmem [#allocation0], 192
    %v673 = vld [vmem:[%s672] sm:$0xff]
    %674 = vrot.lane.b32.xlu0 %v673, 120
    %v675 = vpop.permute.xlu0 %674
    %vm676 = vcmask 64512
    %s677 = scalar_lea.vmem [#allocation2], 1537
    %678 = vst.msk [vmem:[%s677] ss:$8 sm:$0xf] %vm676, %v675
    %s679 = scalar_lea.vmem [#allocation2], 1537
    %680 = vst.msk [vmem:[%s679] ss:$8 sm:$0xf0] %vm676, %v675
    %s681 = scalar_lea.vmem [#allocation0], 200
    %v682 = vld [vmem:[%s681] sm:$0xff]
    %683 = vrot.lane.b32.xlu0 %v682, 120
    %v684 = vpop.permute.xlu0 %683
    %vm685 = vcmask 64512
    %s686 = scalar_lea.vmem [#allocation2], 1601
    %687 = vst.msk [vmem:[%s686] ss:$8 sm:$0xf] %vm685, %v684
    %s688 = scalar_lea.vmem [#allocation2], 1601
    %689 = vst.msk [vmem:[%s688] ss:$8 sm:$0xf0] %vm685, %v684
    %s690 = scalar_lea.vmem [#allocation0], 208
    %v691 = vld [vmem:[%s690] sm:$0xff]
    %692 = vrot.lane.b32.xlu0 %v691, 120
    %v693 = vpop.permute.xlu0 %692
    %vm694 = vcmask 64512
    %s695 = scalar_lea.vmem [#allocation2], 1665
    %696 = vst.msk [vmem:[%s695] ss:$8 sm:$0xf] %vm694, %v693
    %s697 = scalar_lea.vmem [#allocation2], 1665
    %698 = vst.msk [vmem:[%s697] ss:$8 sm:$0xf0] %vm694, %v693
    %s699 = scalar_lea.vmem [#allocation0], 216
    %v700 = vld [vmem:[%s699] sm:$0xff]
    %701 = vrot.lane.b32.xlu0 %v700, 120
    %v702 = vpop.permute.xlu0 %701
    %vm703 = vcmask 64512
    %s704 = scalar_lea.vmem [#allocation2], 1729
    %705 = vst.msk [vmem:[%s704] ss:$8 sm:$0xf] %vm703, %v702
    %s706 = scalar_lea.vmem [#allocation2], 1729
    %707 = vst.msk [vmem:[%s706] ss:$8 sm:$0xf0] %vm703, %v702
    %s708 = scalar_lea.vmem [#allocation0], 224
    %v709 = vld [vmem:[%s708] sm:$0xff]
    %710 = vrot.lane.b32.xlu0 %v709, 120
    %v711 = vpop.permute.xlu0 %710
    %vm712 = vcmask 64512
    %s713 = scalar_lea.vmem [#allocation2], 1793
    %714 = vst.msk [vmem:[%s713] ss:$8 sm:$0xf] %vm712, %v711
    %s715 = scalar_lea.vmem [#allocation2], 1793
    %716 = vst.msk [vmem:[%s715] ss:$8 sm:$0xf0] %vm712, %v711
    %s717 = scalar_lea.vmem [#allocation0], 232
    %v718 = vld [vmem:[%s717] sm:$0xff]
    %719 = vrot.lane.b32.xlu0 %v718, 120
    %v720 = vpop.permute.xlu0 %719
    %vm721 = vcmask 64512
    %s722 = scalar_lea.vmem [#allocation2], 1857
    %723 = vst.msk [vmem:[%s722] ss:$8 sm:$0xf] %vm721, %v720
    %s724 = scalar_lea.vmem [#allocation2], 1857
    %725 = vst.msk [vmem:[%s724] ss:$8 sm:$0xf0] %vm721, %v720
    %s726 = scalar_lea.vmem [#allocation0], 240
    %v727 = vld [vmem:[%s726] sm:$0xff]
    %728 = vrot.lane.b32.xlu0 %v727, 120
    %v729 = vpop.permute.xlu0 %728
    %vm730 = vcmask 64512
    %s731 = scalar_lea.vmem [#allocation2], 1921
    %732 = vst.msk [vmem:[%s731] ss:$8 sm:$0xf] %vm730, %v729
    %s733 = scalar_lea.vmem [#allocation2], 1921
    %734 = vst.msk [vmem:[%s733] ss:$8 sm:$0xf0] %vm730, %v729
    %s735 = scalar_lea.vmem [#allocation0], 248
    %v736 = vld [vmem:[%s735] sm:$0xff]
    %737 = vrot.lane.b32.xlu0 %v736, 120
    %v738 = vpop.permute.xlu0 %737
    %vm739 = vcmask 64512
    %s740 = scalar_lea.vmem [#allocation2], 1985
    %741 = vst.msk [vmem:[%s740] ss:$8 sm:$0xf] %vm739, %v738
    %s742 = scalar_lea.vmem [#allocation2], 1985
    %743 = vst.msk [vmem:[%s742] ss:$8 sm:$0xf0] %vm739, %v738
    %s744 = scalar_lea.vmem [#allocation0], 256
    %v745 = vld [vmem:[%s744] sm:$0xff]
    %746 = vrot.lane.b32.xlu0 %v745, 120
    %v747 = vpop.permute.xlu0 %746
    %vm748 = vcmask 64512
    %s749 = scalar_lea.vmem [#allocation2], 2049
    %750 = vst.msk [vmem:[%s749] ss:$8 sm:$0xf] %vm748, %v747
    %s751 = scalar_lea.vmem [#allocation2], 2049
    %752 = vst.msk [vmem:[%s751] ss:$8 sm:$0xf0] %vm748, %v747
    %s753 = scalar_lea.vmem [#allocation0], 264
    %v754 = vld [vmem:[%s753] sm:$0xff]
    %755 = vrot.lane.b32.xlu0 %v754, 120
    %v756 = vpop.permute.xlu0 %755
    %vm757 = vcmask 64512
    %s758 = scalar_lea.vmem [#allocation2], 2113
    %759 = vst.msk [vmem:[%s758] ss:$8 sm:$0xf] %vm757, %v756
    %s760 = scalar_lea.vmem [#allocation2], 2113
    %761 = vst.msk [vmem:[%s760] ss:$8 sm:$0xf0] %vm757, %v756
    %s762 = scalar_lea.vmem [#allocation0], 272
    %v763 = vld [vmem:[%s762] sm:$0xff]
    %764 = vrot.lane.b32.xlu0 %v763, 120
    %v765 = vpop.permute.xlu0 %764
    %vm766 = vcmask 64512
    %s767 = scalar_lea.vmem [#allocation2], 2177
    %768 = vst.msk [vmem:[%s767] ss:$8 sm:$0xf] %vm766, %v765
    %s769 = scalar_lea.vmem [#allocation2], 2177
    %770 = vst.msk [vmem:[%s769] ss:$8 sm:$0xf0] %vm766, %v765
    %s771 = scalar_lea.vmem [#allocation0], 280
    %v772 = vld [vmem:[%s771] sm:$0xff]
    %773 = vrot.lane.b32.xlu0 %v772, 120
    %v774 = vpop.permute.xlu0 %773
    %vm775 = vcmask 64512
    %s776 = scalar_lea.vmem [#allocation2], 2241
    %777 = vst.msk [vmem:[%s776] ss:$8 sm:$0xf] %vm775, %v774
    %s778 = scalar_lea.vmem [#allocation2], 2241
    %779 = vst.msk [vmem:[%s778] ss:$8 sm:$0xf0] %vm775, %v774
    %s780 = scalar_lea.vmem [#allocation0], 288
    %v781 = vld [vmem:[%s780] sm:$0xff]
    %782 = vrot.lane.b32.xlu0 %v781, 120
    %v783 = vpop.permute.xlu0 %782
    %vm784 = vcmask 64512
    %s785 = scalar_lea.vmem [#allocation2], 2305
    %786 = vst.msk [vmem:[%s785] ss:$8 sm:$0xf] %vm784, %v783
    %s787 = scalar_lea.vmem [#allocation2], 2305
    %788 = vst.msk [vmem:[%s787] ss:$8 sm:$0xf0] %vm784, %v783
    %s789 = scalar_lea.vmem [#allocation0], 296
    %v790 = vld [vmem:[%s789] sm:$0xff]
    %791 = vrot.lane.b32.xlu0 %v790, 120
    %v792 = vpop.permute.xlu0 %791
    %vm793 = vcmask 64512
    %s794 = scalar_lea.vmem [#allocation2], 2369
    %795 = vst.msk [vmem:[%s794] ss:$8 sm:$0xf] %vm793, %v792
    %s796 = scalar_lea.vmem [#allocation2], 2369
    %797 = vst.msk [vmem:[%s796] ss:$8 sm:$0xf0] %vm793, %v792
    %s798 = scalar_lea.vmem [#allocation0], 304
    %v799 = vld [vmem:[%s798] sm:$0xff]
    %800 = vrot.lane.b32.xlu0 %v799, 120
    %v801 = vpop.permute.xlu0 %800
    %vm802 = vcmask 64512
    %s803 = scalar_lea.vmem [#allocation2], 2433
    %804 = vst.msk [vmem:[%s803] ss:$8 sm:$0xf] %vm802, %v801
    %s805 = scalar_lea.vmem [#allocation2], 2433
    %806 = vst.msk [vmem:[%s805] ss:$8 sm:$0xf0] %vm802, %v801
    %s807 = scalar_lea.vmem [#allocation0], 312
    %v808 = vld [vmem:[%s807] sm:$0xff]
    %809 = vrot.lane.b32.xlu0 %v808, 120
    %v810 = vpop.permute.xlu0 %809
    %vm811 = vcmask 64512
    %s812 = scalar_lea.vmem [#allocation2], 2497
    %813 = vst.msk [vmem:[%s812] ss:$8 sm:$0xf] %vm811, %v810
    %s814 = scalar_lea.vmem [#allocation2], 2497
    %815 = vst.msk [vmem:[%s814] ss:$8 sm:$0xf0] %vm811, %v810
    %s816 = scalar_lea.vmem [#allocation0], 320
    %v817 = vld [vmem:[%s816] sm:$0xff]
    %818 = vrot.lane.b32.xlu0 %v817, 120
    %v819 = vpop.permute.xlu0 %818
    %vm820 = vcmask 64512
    %s821 = scalar_lea.vmem [#allocation2], 2561
    %822 = vst.msk [vmem:[%s821] ss:$8 sm:$0xf] %vm820, %v819
    %s823 = scalar_lea.vmem [#allocation2], 2561
    %824 = vst.msk [vmem:[%s823] ss:$8 sm:$0xf0] %vm820, %v819
    %s825 = scalar_lea.vmem [#allocation0], 328
    %v826 = vld [vmem:[%s825] sm:$0xff]
    %827 = vrot.lane.b32.xlu0 %v826, 120
    %v828 = vpop.permute.xlu0 %827
    %vm829 = vcmask 64512
    %s830 = scalar_lea.vmem [#allocation2], 2625
    %831 = vst.msk [vmem:[%s830] ss:$8 sm:$0xf] %vm829, %v828
    %s832 = scalar_lea.vmem [#allocation2], 2625
    %833 = vst.msk [vmem:[%s832] ss:$8 sm:$0xf0] %vm829, %v828
    %s834 = scalar_lea.vmem [#allocation0], 336
    %v835 = vld [vmem:[%s834] sm:$0xff]
    %836 = vrot.lane.b32.xlu0 %v835, 120
    %v837 = vpop.permute.xlu0 %836
    %vm838 = vcmask 64512
    %s839 = scalar_lea.vmem [#allocation2], 2689
    %840 = vst.msk [vmem:[%s839] ss:$8 sm:$0xf] %vm838, %v837
    %s841 = scalar_lea.vmem [#allocation2], 2689
    %842 = vst.msk [vmem:[%s841] ss:$8 sm:$0xf0] %vm838, %v837
    %s843 = scalar_lea.vmem [#allocation0], 344
    %v844 = vld [vmem:[%s843] sm:$0xff]
    %845 = vrot.lane.b32.xlu0 %v844, 120
    %v846 = vpop.permute.xlu0 %845
    %vm847 = vcmask 64512
    %s848 = scalar_lea.vmem [#allocation2], 2753
    %849 = vst.msk [vmem:[%s848] ss:$8 sm:$0xf] %vm847, %v846
    %s850 = scalar_lea.vmem [#allocation2], 2753
    %851 = vst.msk [vmem:[%s850] ss:$8 sm:$0xf0] %vm847, %v846
    %s852 = scalar_lea.vmem [#allocation0], 352
    %v853 = vld [vmem:[%s852] sm:$0xff]
    %854 = vrot.lane.b32.xlu0 %v853, 120
    %v855 = vpop.permute.xlu0 %854
    %vm856 = vcmask 64512
    %s857 = scalar_lea.vmem [#allocation2], 2817
    %858 = vst.msk [vmem:[%s857] ss:$8 sm:$0xf] %vm856, %v855
    %s859 = scalar_lea.vmem [#allocation2], 2817
    %860 = vst.msk [vmem:[%s859] ss:$8 sm:$0xf0] %vm856, %v855
    %s861 = scalar_lea.vmem [#allocation0], 360
    %v862 = vld [vmem:[%s861] sm:$0xff]
    %863 = vrot.lane.b32.xlu0 %v862, 120
    %v864 = vpop.permute.xlu0 %863
    %vm865 = vcmask 64512
    %s866 = scalar_lea.vmem [#allocation2], 2881
    %867 = vst.msk [vmem:[%s866] ss:$8 sm:$0xf] %vm865, %v864
    %s868 = scalar_lea.vmem [#allocation2], 2881
    %869 = vst.msk [vmem:[%s868] ss:$8 sm:$0xf0] %vm865, %v864
    %s870 = scalar_lea.vmem [#allocation0], 368
    %v871 = vld [vmem:[%s870] sm:$0xff]
    %872 = vrot.lane.b32.xlu0 %v871, 120
    %v873 = vpop.permute.xlu0 %872
    %vm874 = vcmask 64512
    %s875 = scalar_lea.vmem [#allocation2], 2945
    %876 = vst.msk [vmem:[%s875] ss:$8 sm:$0xf] %vm874, %v873
    %s877 = scalar_lea.vmem [#allocation2], 2945
    %878 = vst.msk [vmem:[%s877] ss:$8 sm:$0xf0] %vm874, %v873
    %s879 = scalar_lea.vmem [#allocation0], 376
    %v880 = vld [vmem:[%s879] sm:$0xff]
    %881 = vrot.lane.b32.xlu0 %v880, 120
    %v882 = vpop.permute.xlu0 %881
    %vm883 = vcmask 64512
    %s884 = scalar_lea.vmem [#allocation2], 3009
    %885 = vst.msk [vmem:[%s884] ss:$8 sm:$0xf] %vm883, %v882
    %s886 = scalar_lea.vmem [#allocation2], 3009
    %887 = vst.msk [vmem:[%s886] ss:$8 sm:$0xf0] %vm883, %v882
    %s888 = scalar_lea.vmem [#allocation0], 384
    %v889 = vld [vmem:[%s888] sm:$0xff]
    %890 = vrot.lane.b32.xlu0 %v889, 120
    %v891 = vpop.permute.xlu0 %890
    %vm892 = vcmask 64512
    %s893 = scalar_lea.vmem [#allocation2], 3073
    %894 = vst.msk [vmem:[%s893] ss:$8 sm:$0xf] %vm892, %v891
    %s895 = scalar_lea.vmem [#allocation2], 3073
    %896 = vst.msk [vmem:[%s895] ss:$8 sm:$0xf0] %vm892, %v891
    %s897 = scalar_lea.vmem [#allocation0], 392
    %v898 = vld [vmem:[%s897] sm:$0xff]
    %899 = vrot.lane.b32.xlu0 %v898, 120
    %v900 = vpop.permute.xlu0 %899
    %vm901 = vcmask 64512
    %s902 = scalar_lea.vmem [#allocation2], 3137
    %903 = vst.msk [vmem:[%s902] ss:$8 sm:$0xf] %vm901, %v900
    %s904 = scalar_lea.vmem [#allocation2], 3137
    %905 = vst.msk [vmem:[%s904] ss:$8 sm:$0xf0] %vm901, %v900
    %s906 = scalar_lea.vmem [#allocation0], 400
    %v907 = vld [vmem:[%s906] sm:$0xff]
    %908 = vrot.lane.b32.xlu0 %v907, 120
    %v909 = vpop.permute.xlu0 %908
    %vm910 = vcmask 64512
    %s911 = scalar_lea.vmem [#allocation2], 3201
    %912 = vst.msk [vmem:[%s911] ss:$8 sm:$0xf] %vm910, %v909
    %s913 = scalar_lea.vmem [#allocation2], 3201
    %914 = vst.msk [vmem:[%s913] ss:$8 sm:$0xf0] %vm910, %v909
    %s915 = scalar_lea.vmem [#allocation0], 408
    %v916 = vld [vmem:[%s915] sm:$0xff]
    %917 = vrot.lane.b32.xlu0 %v916, 120
    %v918 = vpop.permute.xlu0 %917
    %vm919 = vcmask 64512
    %s920 = scalar_lea.vmem [#allocation2], 3265
    %921 = vst.msk [vmem:[%s920] ss:$8 sm:$0xf] %vm919, %v918
    %s922 = scalar_lea.vmem [#allocation2], 3265
    %923 = vst.msk [vmem:[%s922] ss:$8 sm:$0xf0] %vm919, %v918
    %s924 = scalar_lea.vmem [#allocation0], 416
    %v925 = vld [vmem:[%s924] sm:$0xff]
    %926 = vrot.lane.b32.xlu0 %v925, 120
    %v927 = vpop.permute.xlu0 %926
    %vm928 = vcmask 64512
    %s929 = scalar_lea.vmem [#allocation2], 3329
    %930 = vst.msk [vmem:[%s929] ss:$8 sm:$0xf] %vm928, %v927
    %s931 = scalar_lea.vmem [#allocation2], 3329
    %932 = vst.msk [vmem:[%s931] ss:$8 sm:$0xf0] %vm928, %v927
    %s933 = scalar_lea.vmem [#allocation0], 424
    %v934 = vld [vmem:[%s933] sm:$0xff]
    %935 = vrot.lane.b32.xlu0 %v934, 120
    %v936 = vpop.permute.xlu0 %935
    %vm937 = vcmask 64512
    %s938 = scalar_lea.vmem [#allocation2], 3393
    %939 = vst.msk [vmem:[%s938] ss:$8 sm:$0xf] %vm937, %v936
    %s940 = scalar_lea.vmem [#allocation2], 3393
    %941 = vst.msk [vmem:[%s940] ss:$8 sm:$0xf0] %vm937, %v936
    %s942 = scalar_lea.vmem [#allocation0], 432
    %v943 = vld [vmem:[%s942] sm:$0xff]
    %944 = vrot.lane.b32.xlu0 %v943, 120
    %v945 = vpop.permute.xlu0 %944
    %vm946 = vcmask 64512
    %s947 = scalar_lea.vmem [#allocation2], 3457
    %948 = vst.msk [vmem:[%s947] ss:$8 sm:$0xf] %vm946, %v945
    %s949 = scalar_lea.vmem [#allocation2], 3457
    %950 = vst.msk [vmem:[%s949] ss:$8 sm:$0xf0] %vm946, %v945
    %s951 = scalar_lea.vmem [#allocation0], 440
    %v952 = vld [vmem:[%s951] sm:$0xff]
    %953 = vrot.lane.b32.xlu0 %v952, 120
    %v954 = vpop.permute.xlu0 %953
    %vm955 = vcmask 64512
    %s956 = scalar_lea.vmem [#allocation2], 3521
    %957 = vst.msk [vmem:[%s956] ss:$8 sm:$0xf] %vm955, %v954
    %s958 = scalar_lea.vmem [#allocation2], 3521
    %959 = vst.msk [vmem:[%s958] ss:$8 sm:$0xf0] %vm955, %v954
    %s960 = scalar_lea.vmem [#allocation0], 448
    %v961 = vld [vmem:[%s960] sm:$0xff]
    %962 = vrot.lane.b32.xlu0 %v961, 120
    %v963 = vpop.permute.xlu0 %962
    %vm964 = vcmask 64512
    %s965 = scalar_lea.vmem [#allocation2], 3585
    %966 = vst.msk [vmem:[%s965] ss:$8 sm:$0xf] %vm964, %v963
    %s967 = scalar_lea.vmem [#allocation2], 3585
    %968 = vst.msk [vmem:[%s967] ss:$8 sm:$0xf0] %vm964, %v963
    %s969 = scalar_lea.vmem [#allocation0], 456
    %v970 = vld [vmem:[%s969] sm:$0xff]
    %971 = vrot.lane.b32.xlu0 %v970, 120
    %v972 = vpop.permute.xlu0 %971
    %vm973 = vcmask 64512
    %s974 = scalar_lea.vmem [#allocation2], 3649
    %975 = vst.msk [vmem:[%s974] ss:$8 sm:$0xf] %vm973, %v972
    %s976 = scalar_lea.vmem [#allocation2], 3649
    %977 = vst.msk [vmem:[%s976] ss:$8 sm:$0xf0] %vm973, %v972
    %s978 = scalar_lea.vmem [#allocation0], 464
    %v979 = vld [vmem:[%s978] sm:$0xff]
    %980 = vrot.lane.b32.xlu0 %v979, 120
    %v981 = vpop.permute.xlu0 %980
    %vm982 = vcmask 64512
    %s983 = scalar_lea.vmem [#allocation2], 3713
    %984 = vst.msk [vmem:[%s983] ss:$8 sm:$0xf] %vm982, %v981
    %s985 = scalar_lea.vmem [#allocation2], 3713
    %986 = vst.msk [vmem:[%s985] ss:$8 sm:$0xf0] %vm982, %v981
    %s987 = scalar_lea.vmem [#allocation0], 472
    %v988 = vld [vmem:[%s987] sm:$0xff]
    %989 = vrot.lane.b32.xlu0 %v988, 120
    %v990 = vpop.permute.xlu0 %989
    %vm991 = vcmask 64512
    %s992 = scalar_lea.vmem [#allocation2], 3777
    %993 = vst.msk [vmem:[%s992] ss:$8 sm:$0xf] %vm991, %v990
    %s994 = scalar_lea.vmem [#allocation2], 3777
    %995 = vst.msk [vmem:[%s994] ss:$8 sm:$0xf0] %vm991, %v990
    %s996 = scalar_lea.vmem [#allocation0], 480
    %v997 = vld [vmem:[%s996] sm:$0xff]
    %998 = vrot.lane.b32.xlu0 %v997, 120
    %v999 = vpop.permute.xlu0 %998
    %vm1000 = vcmask 64512
    %s1001 = scalar_lea.vmem [#allocation2], 3841
    %1002 = vst.msk [vmem:[%s1001] ss:$8 sm:$0xf] %vm1000, %v999
    %s1003 = scalar_lea.vmem [#allocation2], 3841
    %1004 = vst.msk [vmem:[%s1003] ss:$8 sm:$0xf0] %vm1000, %v999
    %s1005 = scalar_lea.vmem [#allocation0], 488
    %v1006 = vld [vmem:[%s1005] sm:$0xff]
    %1007 = vrot.lane.b32.xlu0 %v1006, 120
    %v1008 = vpop.permute.xlu0 %1007
    %vm1009 = vcmask 64512
    %s1010 = scalar_lea.vmem [#allocation2], 3905
    %1011 = vst.msk [vmem:[%s1010] ss:$8 sm:$0xf] %vm1009, %v1008
    %s1012 = scalar_lea.vmem [#allocation2], 3905
    %1013 = vst.msk [vmem:[%s1012] ss:$8 sm:$0xf0] %vm1009, %v1008
    %s1014 = scalar_lea.vmem [#allocation0], 496
    %v1015 = vld [vmem:[%s1014] sm:$0xff]
    %1016 = vrot.lane.b32.xlu0 %v1015, 120
    %v1017 = vpop.permute.xlu0 %1016
    %vm1018 = vcmask 64512
    %s1019 = scalar_lea.vmem [#allocation2], 3969
    %1020 = vst.msk [vmem:[%s1019] ss:$8 sm:$0xf] %vm1018, %v1017
    %s1021 = scalar_lea.vmem [#allocation2], 3969
    %1022 = vst.msk [vmem:[%s1021] ss:$8 sm:$0xf0] %vm1018, %v1017
    %s1023 = scalar_lea.vmem [#allocation0], 504
    %v1024 = vld [vmem:[%s1023] sm:$0xff]
    %1025 = vrot.lane.b32.xlu0 %v1024, 120
    %v1026 = vpop.permute.xlu0 %1025
    %vm1027 = vcmask 64512
    %s1028 = scalar_lea.vmem [#allocation2], 4033
    %1029 = vst.msk [vmem:[%s1028] ss:$8 sm:$0xf] %vm1027, %v1026
    %s1030 = scalar_lea.vmem [#allocation2], 4033
    %1031 = vst.msk [vmem:[%s1030] ss:$8 sm:$0xf0] %vm1027, %v1026
    %s1033 = sshllo.u32 0, 2
    %v1035 = vld [vmem:[#allocation2] sm:%s1033]
    %s1036 = sshllo.u32 0, 2
    %1037 = vst [vmem:[%s1] sm:%s1036] %v1035
    %s1038 = scalar_lea.vmem [#allocation2], 8
    %v1039 = vld [vmem:[%s1038] sm:%s1033]
    %s1040 = sshllo.u32 0, 2
    %s1041 = scalar_lea.vmem %s1, 2
    %1042 = vst [vmem:[%s1041] sm:%s1040] %v1039
    %s1043 = scalar_lea.vmem [#allocation2], 16
    %v1044 = vld [vmem:[%s1043] sm:%s1033]
    %s1045 = sshllo.u32 0, 2
    %s1046 = smul.addr 2, 2
    %s1047 = scalar_lea.vmem %s1, %s1046
    %1048 = vst [vmem:[%s1047] sm:%s1045] %v1044
    %s1049 = scalar_lea.vmem [#allocation2], 24
    %v1050 = vld [vmem:[%s1049] sm:%s1033]
    %s1051 = sshllo.u32 0, 2
    %s1052 = smul.addr 2, 3
    %s1053 = scalar_lea.vmem %s1, %s1052
    %1054 = vst [vmem:[%s1053] sm:%s1051] %v1050
    %s1055 = scalar_lea.vmem [#allocation2], 32
    %v1056 = vld [vmem:[%s1055] sm:%s1033]
    %s1057 = sshllo.u32 0, 2
    %s1058 = smul.addr 2, 4
    %s1059 = scalar_lea.vmem %s1, %s1058
    %1060 = vst [vmem:[%s1059] sm:%s1057] %v1056
    %s1061 = scalar_lea.vmem [#allocation2], 40
    %v1062 = vld [vmem:[%s1061] sm:%s1033]
    %s1063 = sshllo.u32 0, 2
    %s1064 = smul.addr 2, 5
    %s1065 = scalar_lea.vmem %s1, %s1064
    %1066 = vst [vmem:[%s1065] sm:%s1063] %v1062
    %s1067 = scalar_lea.vmem [#allocation2], 48
    %v1068 = vld [vmem:[%s1067] sm:%s1033]
    %s1069 = sshllo.u32 0, 2
    %s1070 = smul.addr 2, 6
    %s1071 = scalar_lea.vmem %s1, %s1070
    %1072 = vst [vmem:[%s1071] sm:%s1069] %v1068
    %s1073 = scalar_lea.vmem [#allocation2], 56
    %v1074 = vld [vmem:[%s1073] sm:%s1033]
    %s1075 = sshllo.u32 0, 2
    %s1076 = smul.addr 2, 7
    %s1077 = scalar_lea.vmem %s1, %s1076
    %1078 = vst [vmem:[%s1077] sm:%s1075] %v1074
    %s1079 = scalar_lea.vmem [#allocation2], 64
    %v1080 = vld [vmem:[%s1079] sm:%s1033]
    %s1081 = sshllo.u32 0, 2
    %s1082 = smul.addr 2, 8
    %s1083 = scalar_lea.vmem %s1, %s1082
    %1084 = vst [vmem:[%s1083] sm:%s1081] %v1080
    %s1085 = scalar_lea.vmem [#allocation2], 72
    %v1086 = vld [vmem:[%s1085] sm:%s1033]
    %s1087 = sshllo.u32 0, 2
    %s1088 = smul.addr 2, 9
    %s1089 = scalar_lea.vmem %s1, %s1088
    %1090 = vst [vmem:[%s1089] sm:%s1087] %v1086
    %s1091 = scalar_lea.vmem [#allocation2], 80
    %v1092 = vld [vmem:[%s1091] sm:%s1033]
    %s1093 = sshllo.u32 0, 2
    %s1094 = smul.addr 2, 10
    %s1095 = scalar_lea.vmem %s1, %s1094
    %1096 = vst [vmem:[%s1095] sm:%s1093] %v1092
    %s1097 = scalar_lea.vmem [#allocation2], 88
    %v1098 = vld [vmem:[%s1097] sm:%s1033]
    %s1099 = sshllo.u32 0, 2
    %s1100 = smul.addr 2, 11
    %s1101 = scalar_lea.vmem %s1, %s1100
    %1102 = vst [vmem:[%s1101] sm:%s1099] %v1098
    %s1103 = scalar_lea.vmem [#allocation2], 96
    %v1104 = vld [vmem:[%s1103] sm:%s1033]
    %s1105 = sshllo.u32 0, 2
    %s1106 = smul.addr 2, 12
    %s1107 = scalar_lea.vmem %s1, %s1106
    %1108 = vst [vmem:[%s1107] sm:%s1105] %v1104
    %s1109 = scalar_lea.vmem [#allocation2], 104
    %v1110 = vld [vmem:[%s1109] sm:%s1033]
    %s1111 = sshllo.u32 0, 2
    %s1112 = smul.addr 2, 13
    %s1113 = scalar_lea.vmem %s1, %s1112
    %1114 = vst [vmem:[%s1113] sm:%s1111] %v1110
    %s1115 = scalar_lea.vmem [#allocation2], 112
    %v1116 = vld [vmem:[%s1115] sm:%s1033]
    %s1117 = sshllo.u32 0, 2
    %s1118 = smul.addr 2, 14
    %s1119 = scalar_lea.vmem %s1, %s1118
    %1120 = vst [vmem:[%s1119] sm:%s1117] %v1116
    %s1121 = scalar_lea.vmem [#allocation2], 120
    %v1122 = vld [vmem:[%s1121] sm:%s1033]
    %s1123 = sshllo.u32 0, 2
    %s1124 = smul.addr 2, 15
    %s1125 = scalar_lea.vmem %s1, %s1124
    %1126 = vst [vmem:[%s1125] sm:%s1123] %v1122
    %s1127 = scalar_lea.vmem [#allocation2], 128
    %v1128 = vld [vmem:[%s1127] sm:%s1033]
    %s1129 = sshllo.u32 0, 2
    %s1130 = smul.addr 2, 16
    %s1131 = scalar_lea.vmem %s1, %s1130
    %1132 = vst [vmem:[%s1131] sm:%s1129] %v1128
    %s1133 = scalar_lea.vmem [#allocation2], 136
    %v1134 = vld [vmem:[%s1133] sm:%s1033]
    %s1135 = sshllo.u32 0, 2
    %s1136 = smul.addr 2, 17
    %s1137 = scalar_lea.vmem %s1, %s1136
    %1138 = vst [vmem:[%s1137] sm:%s1135] %v1134
    %s1139 = scalar_lea.vmem [#allocation2], 144
    %v1140 = vld [vmem:[%s1139] sm:%s1033]
    %s1141 = sshllo.u32 0, 2
    %s1142 = smul.addr 2, 18
    %s1143 = scalar_lea.vmem %s1, %s1142
    %1144 = vst [vmem:[%s1143] sm:%s1141] %v1140
    %s1145 = scalar_lea.vmem [#allocation2], 152
    %v1146 = vld [vmem:[%s1145] sm:%s1033]
    %s1147 = sshllo.u32 0, 2
    %s1148 = smul.addr 2, 19
    %s1149 = scalar_lea.vmem %s1, %s1148
    %1150 = vst [vmem:[%s1149] sm:%s1147] %v1146
    %s1151 = scalar_lea.vmem [#allocation2], 160
    %v1152 = vld [vmem:[%s1151] sm:%s1033]
    %s1153 = sshllo.u32 0, 2
    %s1154 = smul.addr 2, 20
    %s1155 = scalar_lea.vmem %s1, %s1154
    %1156 = vst [vmem:[%s1155] sm:%s1153] %v1152
    %s1157 = scalar_lea.vmem [#allocation2], 168
    %v1158 = vld [vmem:[%s1157] sm:%s1033]
    %s1159 = sshllo.u32 0, 2
    %s1160 = smul.addr 2, 21
    %s1161 = scalar_lea.vmem %s1, %s1160
    %1162 = vst [vmem:[%s1161] sm:%s1159] %v1158
    %s1163 = scalar_lea.vmem [#allocation2], 176
    %v1164 = vld [vmem:[%s1163] sm:%s1033]
    %s1165 = sshllo.u32 0, 2
    %s1166 = smul.addr 2, 22
    %s1167 = scalar_lea.vmem %s1, %s1166
    %1168 = vst [vmem:[%s1167] sm:%s1165] %v1164
    %s1169 = scalar_lea.vmem [#allocation2], 184
    %v1170 = vld [vmem:[%s1169] sm:%s1033]
    %s1171 = sshllo.u32 0, 2
    %s1172 = smul.addr 2, 23
    %s1173 = scalar_lea.vmem %s1, %s1172
    %1174 = vst [vmem:[%s1173] sm:%s1171] %v1170
    %s1175 = scalar_lea.vmem [#allocation2], 192
    %v1176 = vld [vmem:[%s1175] sm:%s1033]
    %s1177 = sshllo.u32 0, 2
    %s1178 = smul.addr 2, 24
    %s1179 = scalar_lea.vmem %s1, %s1178
    %1180 = vst [vmem:[%s1179] sm:%s1177] %v1176
    %s1181 = scalar_lea.vmem [#allocation2], 200
    %v1182 = vld [vmem:[%s1181] sm:%s1033]
    %s1183 = sshllo.u32 0, 2
    %s1184 = smul.addr 2, 25
    %s1185 = scalar_lea.vmem %s1, %s1184
    %1186 = vst [vmem:[%s1185] sm:%s1183] %v1182
    %s1187 = scalar_lea.vmem [#allocation2], 208
    %v1188 = vld [vmem:[%s1187] sm:%s1033]
    %s1189 = sshllo.u32 0, 2
    %s1190 = smul.addr 2, 26
    %s1191 = scalar_lea.vmem %s1, %s1190
    %1192 = vst [vmem:[%s1191] sm:%s1189] %v1188
    %s1193 = scalar_lea.vmem [#allocation2], 216
    %v1194 = vld [vmem:[%s1193] sm:%s1033]
    %s1195 = sshllo.u32 0, 2
    %s1196 = smul.addr 2, 27
    %s1197 = scalar_lea.vmem %s1, %s1196
    %1198 = vst [vmem:[%s1197] sm:%s1195] %v1194
    %s1199 = scalar_lea.vmem [#allocation2], 224
    %v1200 = vld [vmem:[%s1199] sm:%s1033]
    %s1201 = sshllo.u32 0, 2
    %s1202 = smul.addr 2, 28
    %s1203 = scalar_lea.vmem %s1, %s1202
    %1204 = vst [vmem:[%s1203] sm:%s1201] %v1200
    %s1205 = scalar_lea.vmem [#allocation2], 232
    %v1206 = vld [vmem:[%s1205] sm:%s1033]
    %s1207 = sshllo.u32 0, 2
    %s1208 = smul.addr 2, 29
    %s1209 = scalar_lea.vmem %s1, %s1208
    %1210 = vst [vmem:[%s1209] sm:%s1207] %v1206
    %s1211 = scalar_lea.vmem [#allocation2], 240
    %v1212 = vld [vmem:[%s1211] sm:%s1033]
    %s1213 = sshllo.u32 0, 2
    %s1214 = smul.addr 2, 30
    %s1215 = scalar_lea.vmem %s1, %s1214
    %1216 = vst [vmem:[%s1215] sm:%s1213] %v1212
    %s1217 = scalar_lea.vmem [#allocation2], 248
    %v1218 = vld [vmem:[%s1217] sm:%s1033]
    %s1219 = sshllo.u32 0, 2
    %s1220 = smul.addr 2, 31
    %s1221 = scalar_lea.vmem %s1, %s1220
    %1222 = vst [vmem:[%s1221] sm:%s1219] %v1218
    %s1223 = scalar_lea.vmem [#allocation2], 256
    %v1224 = vld [vmem:[%s1223] sm:%s1033]
    %s1225 = sshllo.u32 0, 2
    %s1226 = smul.addr 2, 32
    %s1227 = scalar_lea.vmem %s1, %s1226
    %1228 = vst [vmem:[%s1227] sm:%s1225] %v1224
    %s1229 = scalar_lea.vmem [#allocation2], 264
    %v1230 = vld [vmem:[%s1229] sm:%s1033]
    %s1231 = sshllo.u32 0, 2
    %s1232 = smul.addr 2, 33
    %s1233 = scalar_lea.vmem %s1, %s1232
    %1234 = vst [vmem:[%s1233] sm:%s1231] %v1230
    %s1235 = scalar_lea.vmem [#allocation2], 272
    %v1236 = vld [vmem:[%s1235] sm:%s1033]
    %s1237 = sshllo.u32 0, 2
    %s1238 = smul.addr 2, 34
    %s1239 = scalar_lea.vmem %s1, %s1238
    %1240 = vst [vmem:[%s1239] sm:%s1237] %v1236
    %s1241 = scalar_lea.vmem [#allocation2], 280
    %v1242 = vld [vmem:[%s1241] sm:%s1033]
    %s1243 = sshllo.u32 0, 2
    %s1244 = smul.addr 2, 35
    %s1245 = scalar_lea.vmem %s1, %s1244
    %1246 = vst [vmem:[%s1245] sm:%s1243] %v1242
    %s1247 = scalar_lea.vmem [#allocation2], 288
    %v1248 = vld [vmem:[%s1247] sm:%s1033]
    %s1249 = sshllo.u32 0, 2
    %s1250 = smul.addr 2, 36
    %s1251 = scalar_lea.vmem %s1, %s1250
    %1252 = vst [vmem:[%s1251] sm:%s1249] %v1248
    %s1253 = scalar_lea.vmem [#allocation2], 296
    %v1254 = vld [vmem:[%s1253] sm:%s1033]
    %s1255 = sshllo.u32 0, 2
    %s1256 = smul.addr 2, 37
    %s1257 = scalar_lea.vmem %s1, %s1256
    %1258 = vst [vmem:[%s1257] sm:%s1255] %v1254
    %s1259 = scalar_lea.vmem [#allocation2], 304
    %v1260 = vld [vmem:[%s1259] sm:%s1033]
    %s1261 = sshllo.u32 0, 2
    %s1262 = smul.addr 2, 38
    %s1263 = scalar_lea.vmem %s1, %s1262
    %1264 = vst [vmem:[%s1263] sm:%s1261] %v1260
    %s1265 = scalar_lea.vmem [#allocation2], 312
    %v1266 = vld [vmem:[%s1265] sm:%s1033]
    %s1267 = sshllo.u32 0, 2
    %s1268 = smul.addr 2, 39
    %s1269 = scalar_lea.vmem %s1, %s1268
    %1270 = vst [vmem:[%s1269] sm:%s1267] %v1266
    %s1271 = scalar_lea.vmem [#allocation2], 320
    %v1272 = vld [vmem:[%s1271] sm:%s1033]
    %s1273 = sshllo.u32 0, 2
    %s1274 = smul.addr 2, 40
    %s1275 = scalar_lea.vmem %s1, %s1274
    %1276 = vst [vmem:[%s1275] sm:%s1273] %v1272
    %s1277 = scalar_lea.vmem [#allocation2], 328
    %v1278 = vld [vmem:[%s1277] sm:%s1033]
    %s1279 = sshllo.u32 0, 2
    %s1280 = smul.addr 2, 41
    %s1281 = scalar_lea.vmem %s1, %s1280
    %1282 = vst [vmem:[%s1281] sm:%s1279] %v1278
    %s1283 = scalar_lea.vmem [#allocation2], 336
    %v1284 = vld [vmem:[%s1283] sm:%s1033]
    %s1285 = sshllo.u32 0, 2
    %s1286 = smul.addr 2, 42
    %s1287 = scalar_lea.vmem %s1, %s1286
    %1288 = vst [vmem:[%s1287] sm:%s1285] %v1284
    %s1289 = scalar_lea.vmem [#allocation2], 344
    %v1290 = vld [vmem:[%s1289] sm:%s1033]
    %s1291 = sshllo.u32 0, 2
    %s1292 = smul.addr 2, 43
    %s1293 = scalar_lea.vmem %s1, %s1292
    %1294 = vst [vmem:[%s1293] sm:%s1291] %v1290
    %s1295 = scalar_lea.vmem [#allocation2], 352
    %v1296 = vld [vmem:[%s1295] sm:%s1033]
    %s1297 = sshllo.u32 0, 2
    %s1298 = smul.addr 2, 44
    %s1299 = scalar_lea.vmem %s1, %s1298
    %1300 = vst [vmem:[%s1299] sm:%s1297] %v1296
    %s1301 = scalar_lea.vmem [#allocation2], 360
    %v1302 = vld [vmem:[%s1301] sm:%s1033]
    %s1303 = sshllo.u32 0, 2
    %s1304 = smul.addr 2, 45
    %s1305 = scalar_lea.vmem %s1, %s1304
    %1306 = vst [vmem:[%s1305] sm:%s1303] %v1302
    %s1307 = scalar_lea.vmem [#allocation2], 368
    %v1308 = vld [vmem:[%s1307] sm:%s1033]
    %s1309 = sshllo.u32 0, 2
    %s1310 = smul.addr 2, 46
    %s1311 = scalar_lea.vmem %s1, %s1310
    %1312 = vst [vmem:[%s1311] sm:%s1309] %v1308
    %s1313 = scalar_lea.vmem [#allocation2], 376
    %v1314 = vld [vmem:[%s1313] sm:%s1033]
    %s1315 = sshllo.u32 0, 2
    %s1316 = smul.addr 2, 47
    %s1317 = scalar_lea.vmem %s1, %s1316
    %1318 = vst [vmem:[%s1317] sm:%s1315] %v1314
    %s1319 = scalar_lea.vmem [#allocation2], 384
    %v1320 = vld [vmem:[%s1319] sm:%s1033]
    %s1321 = sshllo.u32 0, 2
    %s1322 = smul.addr 2, 48
    %s1323 = scalar_lea.vmem %s1, %s1322
    %1324 = vst [vmem:[%s1323] sm:%s1321] %v1320
    %s1325 = scalar_lea.vmem [#allocation2], 392
    %v1326 = vld [vmem:[%s1325] sm:%s1033]
    %s1327 = sshllo.u32 0, 2
    %s1328 = smul.addr 2, 49
    %s1329 = scalar_lea.vmem %s1, %s1328
    %1330 = vst [vmem:[%s1329] sm:%s1327] %v1326
    %s1331 = scalar_lea.vmem [#allocation2], 400
    %v1332 = vld [vmem:[%s1331] sm:%s1033]
    %s1333 = sshllo.u32 0, 2
    %s1334 = smul.addr 2, 50
    %s1335 = scalar_lea.vmem %s1, %s1334
    %1336 = vst [vmem:[%s1335] sm:%s1333] %v1332
    %s1337 = scalar_lea.vmem [#allocation2], 408
    %v1338 = vld [vmem:[%s1337] sm:%s1033]
    %s1339 = sshllo.u32 0, 2
    %s1340 = smul.addr 2, 51
    %s1341 = scalar_lea.vmem %s1, %s1340
    %1342 = vst [vmem:[%s1341] sm:%s1339] %v1338
    %s1343 = scalar_lea.vmem [#allocation2], 416
    %v1344 = vld [vmem:[%s1343] sm:%s1033]
    %s1345 = sshllo.u32 0, 2
    %s1346 = smul.addr 2, 52
    %s1347 = scalar_lea.vmem %s1, %s1346
    %1348 = vst [vmem:[%s1347] sm:%s1345] %v1344
    %s1349 = scalar_lea.vmem [#allocation2], 424
    %v1350 = vld [vmem:[%s1349] sm:%s1033]
    %s1351 = sshllo.u32 0, 2
    %s1352 = smul.addr 2, 53
    %s1353 = scalar_lea.vmem %s1, %s1352
    %1354 = vst [vmem:[%s1353] sm:%s1351] %v1350
    %s1355 = scalar_lea.vmem [#allocation2], 432
    %v1356 = vld [vmem:[%s1355] sm:%s1033]
    %s1357 = sshllo.u32 0, 2
    %s1358 = smul.addr 2, 54
    %s1359 = scalar_lea.vmem %s1, %s1358
    %1360 = vst [vmem:[%s1359] sm:%s1357] %v1356
    %s1361 = scalar_lea.vmem [#allocation2], 440
    %v1362 = vld [vmem:[%s1361] sm:%s1033]
    %s1363 = sshllo.u32 0, 2
    %s1364 = smul.addr 2, 55
    %s1365 = scalar_lea.vmem %s1, %s1364
    %1366 = vst [vmem:[%s1365] sm:%s1363] %v1362
    %s1367 = scalar_lea.vmem [#allocation2], 448
    %v1368 = vld [vmem:[%s1367] sm:%s1033]
    %s1369 = sshllo.u32 0, 2
    %s1370 = smul.addr 2, 56
    %s1371 = scalar_lea.vmem %s1, %s1370
    %1372 = vst [vmem:[%s1371] sm:%s1369] %v1368
    %s1373 = scalar_lea.vmem [#allocation2], 456
    %v1374 = vld [vmem:[%s1373] sm:%s1033]
    %s1375 = sshllo.u32 0, 2
    %s1376 = smul.addr 2, 57
    %s1377 = scalar_lea.vmem %s1, %s1376
    %1378 = vst [vmem:[%s1377] sm:%s1375] %v1374
    %s1379 = scalar_lea.vmem [#allocation2], 464
    %v1380 = vld [vmem:[%s1379] sm:%s1033]
    %s1381 = sshllo.u32 0, 2
    %s1382 = smul.addr 2, 58
    %s1383 = scalar_lea.vmem %s1, %s1382
    %1384 = vst [vmem:[%s1383] sm:%s1381] %v1380
    %s1385 = scalar_lea.vmem [#allocation2], 472
    %v1386 = vld [vmem:[%s1385] sm:%s1033]
    %s1387 = sshllo.u32 0, 2
    %s1388 = smul.addr 2, 59
    %s1389 = scalar_lea.vmem %s1, %s1388
    %1390 = vst [vmem:[%s1389] sm:%s1387] %v1386
    %s1391 = scalar_lea.vmem [#allocation2], 480
    %v1392 = vld [vmem:[%s1391] sm:%s1033]
    %s1393 = sshllo.u32 0, 2
    %s1394 = smul.addr 2, 60
    %s1395 = scalar_lea.vmem %s1, %s1394
    %1396 = vst [vmem:[%s1395] sm:%s1393] %v1392
    %s1397 = scalar_lea.vmem [#allocation2], 488
    %v1398 = vld [vmem:[%s1397] sm:%s1033]
    %s1399 = sshllo.u32 0, 2
    %s1400 = smul.addr 2, 61
    %s1401 = scalar_lea.vmem %s1, %s1400
    %1402 = vst [vmem:[%s1401] sm:%s1399] %v1398
    %s1403 = scalar_lea.vmem [#allocation2], 496
    %v1404 = vld [vmem:[%s1403] sm:%s1033]
    %s1405 = sshllo.u32 0, 2
    %s1406 = smul.addr 2, 62
    %s1407 = scalar_lea.vmem %s1, %s1406
    %1408 = vst [vmem:[%s1407] sm:%s1405] %v1404
    %s1409 = scalar_lea.vmem [#allocation2], 504
    %v1410 = vld [vmem:[%s1409] sm:%s1033]
    %s1411 = sshllo.u32 0, 2
    %s1412 = smul.addr 2, 63
    %s1413 = scalar_lea.vmem %s1, %s1412
    %1414 = vst [vmem:[%s1413] sm:%s1411] %v1410
    %s1415 = scalar_lea.vmem [#allocation2], 512
    %v1416 = vld [vmem:[%s1415] sm:%s1033]
    %s1417 = sshllo.u32 0, 2
    %s1418 = smul.addr 2, 64
    %s1419 = scalar_lea.vmem %s1, %s1418
    %1420 = vst [vmem:[%s1419] sm:%s1417] %v1416
    %s1421 = scalar_lea.vmem [#allocation2], 520
    %v1422 = vld [vmem:[%s1421] sm:%s1033]
    %s1423 = sshllo.u32 0, 2
    %s1424 = smul.addr 2, 65
    %s1425 = scalar_lea.vmem %s1, %s1424
    %1426 = vst [vmem:[%s1425] sm:%s1423] %v1422
    %s1427 = scalar_lea.vmem [#allocation2], 528
    %v1428 = vld [vmem:[%s1427] sm:%s1033]
    %s1429 = sshllo.u32 0, 2
    %s1430 = smul.addr 2, 66
    %s1431 = scalar_lea.vmem %s1, %s1430
    %1432 = vst [vmem:[%s1431] sm:%s1429] %v1428
    %s1433 = scalar_lea.vmem [#allocation2], 536
    %v1434 = vld [vmem:[%s1433] sm:%s1033]
    %s1435 = sshllo.u32 0, 2
    %s1436 = smul.addr 2, 67
    %s1437 = scalar_lea.vmem %s1, %s1436
    %1438 = vst [vmem:[%s1437] sm:%s1435] %v1434
    %s1439 = scalar_lea.vmem [#allocation2], 544
    %v1440 = vld [vmem:[%s1439] sm:%s1033]
    %s1441 = sshllo.u32 0, 2
    %s1442 = smul.addr 2, 68
    %s1443 = scalar_lea.vmem %s1, %s1442
    %1444 = vst [vmem:[%s1443] sm:%s1441] %v1440
    %s1445 = scalar_lea.vmem [#allocation2], 552
    %v1446 = vld [vmem:[%s1445] sm:%s1033]
    %s1447 = sshllo.u32 0, 2
    %s1448 = smul.addr 2, 69
    %s1449 = scalar_lea.vmem %s1, %s1448
    %1450 = vst [vmem:[%s1449] sm:%s1447] %v1446
    %s1451 = scalar_lea.vmem [#allocation2], 560
    %v1452 = vld [vmem:[%s1451] sm:%s1033]
    %s1453 = sshllo.u32 0, 2
    %s1454 = smul.addr 2, 70
    %s1455 = scalar_lea.vmem %s1, %s1454
    %1456 = vst [vmem:[%s1455] sm:%s1453] %v1452
    %s1457 = scalar_lea.vmem [#allocation2], 568
    %v1458 = vld [vmem:[%s1457] sm:%s1033]
    %s1459 = sshllo.u32 0, 2
    %s1460 = smul.addr 2, 71
    %s1461 = scalar_lea.vmem %s1, %s1460
    %1462 = vst [vmem:[%s1461] sm:%s1459] %v1458
    %s1463 = scalar_lea.vmem [#allocation2], 576
    %v1464 = vld [vmem:[%s1463] sm:%s1033]
    %s1465 = sshllo.u32 0, 2
    %s1466 = smul.addr 2, 72
    %s1467 = scalar_lea.vmem %s1, %s1466
    %1468 = vst [vmem:[%s1467] sm:%s1465] %v1464
    %s1469 = scalar_lea.vmem [#allocation2], 584
    %v1470 = vld [vmem:[%s1469] sm:%s1033]
    %s1471 = sshllo.u32 0, 2
    %s1472 = smul.addr 2, 73
    %s1473 = scalar_lea.vmem %s1, %s1472
    %1474 = vst [vmem:[%s1473] sm:%s1471] %v1470
    %s1475 = scalar_lea.vmem [#allocation2], 592
    %v1476 = vld [vmem:[%s1475] sm:%s1033]
    %s1477 = sshllo.u32 0, 2
    %s1478 = smul.addr 2, 74
    %s1479 = scalar_lea.vmem %s1, %s1478
    %1480 = vst [vmem:[%s1479] sm:%s1477] %v1476
    %s1481 = scalar_lea.vmem [#allocation2], 600
    %v1482 = vld [vmem:[%s1481] sm:%s1033]
    %s1483 = sshllo.u32 0, 2
    %s1484 = smul.addr 2, 75
    %s1485 = scalar_lea.vmem %s1, %s1484
    %1486 = vst [vmem:[%s1485] sm:%s1483] %v1482
    %s1487 = scalar_lea.vmem [#allocation2], 608
    %v1488 = vld [vmem:[%s1487] sm:%s1033]
    %s1489 = sshllo.u32 0, 2
    %s1490 = smul.addr 2, 76
    %s1491 = scalar_lea.vmem %s1, %s1490
    %1492 = vst [vmem:[%s1491] sm:%s1489] %v1488
    %s1493 = scalar_lea.vmem [#allocation2], 616
    %v1494 = vld [vmem:[%s1493] sm:%s1033]
    %s1495 = sshllo.u32 0, 2
    %s1496 = smul.addr 2, 77
    %s1497 = scalar_lea.vmem %s1, %s1496
    %1498 = vst [vmem:[%s1497] sm:%s1495] %v1494
    %s1499 = scalar_lea.vmem [#allocation2], 624
    %v1500 = vld [vmem:[%s1499] sm:%s1033]
    %s1501 = sshllo.u32 0, 2
    %s1502 = smul.addr 2, 78
    %s1503 = scalar_lea.vmem %s1, %s1502
    %1504 = vst [vmem:[%s1503] sm:%s1501] %v1500
    %s1505 = scalar_lea.vmem [#allocation2], 632
    %v1506 = vld [vmem:[%s1505] sm:%s1033]
    %s1507 = sshllo.u32 0, 2
    %s1508 = smul.addr 2, 79
    %s1509 = scalar_lea.vmem %s1, %s1508
    %1510 = vst [vmem:[%s1509] sm:%s1507] %v1506
    %s1511 = scalar_lea.vmem [#allocation2], 640
    %v1512 = vld [vmem:[%s1511] sm:%s1033]
    %s1513 = sshllo.u32 0, 2
    %s1514 = smul.addr 2, 80
    %s1515 = scalar_lea.vmem %s1, %s1514
    %1516 = vst [vmem:[%s1515] sm:%s1513] %v1512
    %s1517 = scalar_lea.vmem [#allocation2], 648
    %v1518 = vld [vmem:[%s1517] sm:%s1033]
    %s1519 = sshllo.u32 0, 2
    %s1520 = smul.addr 2, 81
    %s1521 = scalar_lea.vmem %s1, %s1520
    %1522 = vst [vmem:[%s1521] sm:%s1519] %v1518
    %s1523 = scalar_lea.vmem [#allocation2], 656
    %v1524 = vld [vmem:[%s1523] sm:%s1033]
    %s1525 = sshllo.u32 0, 2
    %s1526 = smul.addr 2, 82
    %s1527 = scalar_lea.vmem %s1, %s1526
    %1528 = vst [vmem:[%s1527] sm:%s1525] %v1524
    %s1529 = scalar_lea.vmem [#allocation2], 664
    %v1530 = vld [vmem:[%s1529] sm:%s1033]
    %s1531 = sshllo.u32 0, 2
    %s1532 = smul.addr 2, 83
    %s1533 = scalar_lea.vmem %s1, %s1532
    %1534 = vst [vmem:[%s1533] sm:%s1531] %v1530
    %s1535 = scalar_lea.vmem [#allocation2], 672
    %v1536 = vld [vmem:[%s1535] sm:%s1033]
    %s1537 = sshllo.u32 0, 2
    %s1538 = smul.addr 2, 84
    %s1539 = scalar_lea.vmem %s1, %s1538
    %1540 = vst [vmem:[%s1539] sm:%s1537] %v1536
    %s1541 = scalar_lea.vmem [#allocation2], 680
    %v1542 = vld [vmem:[%s1541] sm:%s1033]
    %s1543 = sshllo.u32 0, 2
    %s1544 = smul.addr 2, 85
    %s1545 = scalar_lea.vmem %s1, %s1544
    %1546 = vst [vmem:[%s1545] sm:%s1543] %v1542
    %s1547 = scalar_lea.vmem [#allocation2], 688
    %v1548 = vld [vmem:[%s1547] sm:%s1033]
    %s1549 = sshllo.u32 0, 2
    %s1550 = smul.addr 2, 86
    %s1551 = scalar_lea.vmem %s1, %s1550
    %1552 = vst [vmem:[%s1551] sm:%s1549] %v1548
    %s1553 = scalar_lea.vmem [#allocation2], 696
    %v1554 = vld [vmem:[%s1553] sm:%s1033]
    %s1555 = sshllo.u32 0, 2
    %s1556 = smul.addr 2, 87
    %s1557 = scalar_lea.vmem %s1, %s1556
    %1558 = vst [vmem:[%s1557] sm:%s1555] %v1554
    %s1559 = scalar_lea.vmem [#allocation2], 704
    %v1560 = vld [vmem:[%s1559] sm:%s1033]
    %s1561 = sshllo.u32 0, 2
    %s1562 = smul.addr 2, 88
    %s1563 = scalar_lea.vmem %s1, %s1562
    %1564 = vst [vmem:[%s1563] sm:%s1561] %v1560
    %s1565 = scalar_lea.vmem [#allocation2], 712
    %v1566 = vld [vmem:[%s1565] sm:%s1033]
    %s1567 = sshllo.u32 0, 2
    %s1568 = smul.addr 2, 89
    %s1569 = scalar_lea.vmem %s1, %s1568
    %1570 = vst [vmem:[%s1569] sm:%s1567] %v1566
    %s1571 = scalar_lea.vmem [#allocation2], 720
    %v1572 = vld [vmem:[%s1571] sm:%s1033]
    %s1573 = sshllo.u32 0, 2
    %s1574 = smul.addr 2, 90
    %s1575 = scalar_lea.vmem %s1, %s1574
    %1576 = vst [vmem:[%s1575] sm:%s1573] %v1572
    %s1577 = scalar_lea.vmem [#allocation2], 728
    %v1578 = vld [vmem:[%s1577] sm:%s1033]
    %s1579 = sshllo.u32 0, 2
    %s1580 = smul.addr 2, 91
    %s1581 = scalar_lea.vmem %s1, %s1580
    %1582 = vst [vmem:[%s1581] sm:%s1579] %v1578
    %s1583 = scalar_lea.vmem [#allocation2], 736
    %v1584 = vld [vmem:[%s1583] sm:%s1033]
    %s1585 = sshllo.u32 0, 2
    %s1586 = smul.addr 2, 92
    %s1587 = scalar_lea.vmem %s1, %s1586
    %1588 = vst [vmem:[%s1587] sm:%s1585] %v1584
    %s1589 = scalar_lea.vmem [#allocation2], 744
    %v1590 = vld [vmem:[%s1589] sm:%s1033]
    %s1591 = sshllo.u32 0, 2
    %s1592 = smul.addr 2, 93
    %s1593 = scalar_lea.vmem %s1, %s1592
    %1594 = vst [vmem:[%s1593] sm:%s1591] %v1590
    %s1595 = scalar_lea.vmem [#allocation2], 752
    %v1596 = vld [vmem:[%s1595] sm:%s1033]
    %s1597 = sshllo.u32 0, 2
    %s1598 = smul.addr 2, 94
    %s1599 = scalar_lea.vmem %s1, %s1598
    %1600 = vst [vmem:[%s1599] sm:%s1597] %v1596
    %s1601 = scalar_lea.vmem [#allocation2], 760
    %v1602 = vld [vmem:[%s1601] sm:%s1033]
    %s1603 = sshllo.u32 0, 2
    %s1604 = smul.addr 2, 95
    %s1605 = scalar_lea.vmem %s1, %s1604
    %1606 = vst [vmem:[%s1605] sm:%s1603] %v1602
    %s1607 = scalar_lea.vmem [#allocation2], 768
    %v1608 = vld [vmem:[%s1607] sm:%s1033]
    %s1609 = sshllo.u32 0, 2
    %s1610 = smul.addr 2, 96
    %s1611 = scalar_lea.vmem %s1, %s1610
    %1612 = vst [vmem:[%s1611] sm:%s1609] %v1608
    %s1613 = scalar_lea.vmem [#allocation2], 776
    %v1614 = vld [vmem:[%s1613] sm:%s1033]
    %s1615 = sshllo.u32 0, 2
    %s1616 = smul.addr 2, 97
    %s1617 = scalar_lea.vmem %s1, %s1616
    %1618 = vst [vmem:[%s1617] sm:%s1615] %v1614
    %s1619 = scalar_lea.vmem [#allocation2], 784
    %v1620 = vld [vmem:[%s1619] sm:%s1033]
    %s1621 = sshllo.u32 0, 2
    %s1622 = smul.addr 2, 98
    %s1623 = scalar_lea.vmem %s1, %s1622
    %1624 = vst [vmem:[%s1623] sm:%s1621] %v1620
    %s1625 = scalar_lea.vmem [#allocation2], 792
    %v1626 = vld [vmem:[%s1625] sm:%s1033]
    %s1627 = sshllo.u32 0, 2
    %s1628 = smul.addr 2, 99
    %s1629 = scalar_lea.vmem %s1, %s1628
    %1630 = vst [vmem:[%s1629] sm:%s1627] %v1626
    %s1631 = scalar_lea.vmem [#allocation2], 800
    %v1632 = vld [vmem:[%s1631] sm:%s1033]
    %s1633 = sshllo.u32 0, 2
    %s1634 = smul.addr 2, 100
    %s1635 = scalar_lea.vmem %s1, %s1634
    %1636 = vst [vmem:[%s1635] sm:%s1633] %v1632
    %s1637 = scalar_lea.vmem [#allocation2], 808
    %v1638 = vld [vmem:[%s1637] sm:%s1033]
    %s1639 = sshllo.u32 0, 2
    %s1640 = smul.addr 2, 101
    %s1641 = scalar_lea.vmem %s1, %s1640
    %1642 = vst [vmem:[%s1641] sm:%s1639] %v1638
    %s1643 = scalar_lea.vmem [#allocation2], 816
    %v1644 = vld [vmem:[%s1643] sm:%s1033]
    %s1645 = sshllo.u32 0, 2
    %s1646 = smul.addr 2, 102
    %s1647 = scalar_lea.vmem %s1, %s1646
    %1648 = vst [vmem:[%s1647] sm:%s1645] %v1644
    %s1649 = scalar_lea.vmem [#allocation2], 824
    %v1650 = vld [vmem:[%s1649] sm:%s1033]
    %s1651 = sshllo.u32 0, 2
    %s1652 = smul.addr 2, 103
    %s1653 = scalar_lea.vmem %s1, %s1652
    %1654 = vst [vmem:[%s1653] sm:%s1651] %v1650
    %s1655 = scalar_lea.vmem [#allocation2], 832
    %v1656 = vld [vmem:[%s1655] sm:%s1033]
    %s1657 = sshllo.u32 0, 2
    %s1658 = smul.addr 2, 104
    %s1659 = scalar_lea.vmem %s1, %s1658
    %1660 = vst [vmem:[%s1659] sm:%s1657] %v1656
    %s1661 = scalar_lea.vmem [#allocation2], 840
    %v1662 = vld [vmem:[%s1661] sm:%s1033]
    %s1663 = sshllo.u32 0, 2
    %s1664 = smul.addr 2, 105
    %s1665 = scalar_lea.vmem %s1, %s1664
    %1666 = vst [vmem:[%s1665] sm:%s1663] %v1662
    %s1667 = scalar_lea.vmem [#allocation2], 848
    %v1668 = vld [vmem:[%s1667] sm:%s1033]
    %s1669 = sshllo.u32 0, 2
    %s1670 = smul.addr 2, 106
    %s1671 = scalar_lea.vmem %s1, %s1670
    %1672 = vst [vmem:[%s1671] sm:%s1669] %v1668
    %s1673 = scalar_lea.vmem [#allocation2], 856
    %v1674 = vld [vmem:[%s1673] sm:%s1033]
    %s1675 = sshllo.u32 0, 2
    %s1676 = smul.addr 2, 107
    %s1677 = scalar_lea.vmem %s1, %s1676
    %1678 = vst [vmem:[%s1677] sm:%s1675] %v1674
    %s1679 = scalar_lea.vmem [#allocation2], 864
    %v1680 = vld [vmem:[%s1679] sm:%s1033]
    %s1681 = sshllo.u32 0, 2
    %s1682 = smul.addr 2, 108
    %s1683 = scalar_lea.vmem %s1, %s1682
    %1684 = vst [vmem:[%s1683] sm:%s1681] %v1680
    %s1685 = scalar_lea.vmem [#allocation2], 872
    %v1686 = vld [vmem:[%s1685] sm:%s1033]
    %s1687 = sshllo.u32 0, 2
    %s1688 = smul.addr 2, 109
    %s1689 = scalar_lea.vmem %s1, %s1688
    %1690 = vst [vmem:[%s1689] sm:%s1687] %v1686
    %s1691 = scalar_lea.vmem [#allocation2], 880
    %v1692 = vld [vmem:[%s1691] sm:%s1033]
    %s1693 = sshllo.u32 0, 2
    %s1694 = smul.addr 2, 110
    %s1695 = scalar_lea.vmem %s1, %s1694
    %1696 = vst [vmem:[%s1695] sm:%s1693] %v1692
    %s1697 = scalar_lea.vmem [#allocation2], 888
    %v1698 = vld [vmem:[%s1697] sm:%s1033]
    %s1699 = sshllo.u32 0, 2
    %s1700 = smul.addr 2, 111
    %s1701 = scalar_lea.vmem %s1, %s1700
    %1702 = vst [vmem:[%s1701] sm:%s1699] %v1698
    %s1703 = scalar_lea.vmem [#allocation2], 896
    %v1704 = vld [vmem:[%s1703] sm:%s1033]
    %s1705 = sshllo.u32 0, 2
    %s1706 = smul.addr 2, 112
    %s1707 = scalar_lea.vmem %s1, %s1706
    %1708 = vst [vmem:[%s1707] sm:%s1705] %v1704
    %s1709 = scalar_lea.vmem [#allocation2], 904
    %v1710 = vld [vmem:[%s1709] sm:%s1033]
    %s1711 = sshllo.u32 0, 2
    %s1712 = smul.addr 2, 113
    %s1713 = scalar_lea.vmem %s1, %s1712
    %1714 = vst [vmem:[%s1713] sm:%s1711] %v1710
    %s1715 = scalar_lea.vmem [#allocation2], 912
    %v1716 = vld [vmem:[%s1715] sm:%s1033]
    %s1717 = sshllo.u32 0, 2
    %s1718 = smul.addr 2, 114
    %s1719 = scalar_lea.vmem %s1, %s1718
    %1720 = vst [vmem:[%s1719] sm:%s1717] %v1716
    %s1721 = scalar_lea.vmem [#allocation2], 920
    %v1722 = vld [vmem:[%s1721] sm:%s1033]
    %s1723 = sshllo.u32 0, 2
    %s1724 = smul.addr 2, 115
    %s1725 = scalar_lea.vmem %s1, %s1724
    %1726 = vst [vmem:[%s1725] sm:%s1723] %v1722
    %s1727 = scalar_lea.vmem [#allocation2], 928
    %v1728 = vld [vmem:[%s1727] sm:%s1033]
    %s1729 = sshllo.u32 0, 2
    %s1730 = smul.addr 2, 116
    %s1731 = scalar_lea.vmem %s1, %s1730
    %1732 = vst [vmem:[%s1731] sm:%s1729] %v1728
    %s1733 = scalar_lea.vmem [#allocation2], 936
    %v1734 = vld [vmem:[%s1733] sm:%s1033]
    %s1735 = sshllo.u32 0, 2
    %s1736 = smul.addr 2, 117
    %s1737 = scalar_lea.vmem %s1, %s1736
    %1738 = vst [vmem:[%s1737] sm:%s1735] %v1734
    %s1739 = scalar_lea.vmem [#allocation2], 944
    %v1740 = vld [vmem:[%s1739] sm:%s1033]
    %s1741 = sshllo.u32 0, 2
    %s1742 = smul.addr 2, 118
    %s1743 = scalar_lea.vmem %s1, %s1742
    %1744 = vst [vmem:[%s1743] sm:%s1741] %v1740
    %s1745 = scalar_lea.vmem [#allocation2], 952
    %v1746 = vld [vmem:[%s1745] sm:%s1033]
    %s1747 = sshllo.u32 0, 2
    %s1748 = smul.addr 2, 119
    %s1749 = scalar_lea.vmem %s1, %s1748
    %1750 = vst [vmem:[%s1749] sm:%s1747] %v1746
    %s1751 = scalar_lea.vmem [#allocation2], 960
    %v1752 = vld [vmem:[%s1751] sm:%s1033]
    %s1753 = sshllo.u32 0, 2
    %s1754 = smul.addr 2, 120
    %s1755 = scalar_lea.vmem %s1, %s1754
    %1756 = vst [vmem:[%s1755] sm:%s1753] %v1752
    %s1757 = scalar_lea.vmem [#allocation2], 968
    %v1758 = vld [vmem:[%s1757] sm:%s1033]
    %s1759 = sshllo.u32 0, 2
    %s1760 = smul.addr 2, 121
    %s1761 = scalar_lea.vmem %s1, %s1760
    %1762 = vst [vmem:[%s1761] sm:%s1759] %v1758
    %s1763 = scalar_lea.vmem [#allocation2], 976
    %v1764 = vld [vmem:[%s1763] sm:%s1033]
    %s1765 = sshllo.u32 0, 2
    %s1766 = smul.addr 2, 122
    %s1767 = scalar_lea.vmem %s1, %s1766
    %1768 = vst [vmem:[%s1767] sm:%s1765] %v1764
    %s1769 = scalar_lea.vmem [#allocation2], 984
    %v1770 = vld [vmem:[%s1769] sm:%s1033]
    %s1771 = sshllo.u32 0, 2
    %s1772 = smul.addr 2, 123
    %s1773 = scalar_lea.vmem %s1, %s1772
    %1774 = vst [vmem:[%s1773] sm:%s1771] %v1770
    %s1775 = scalar_lea.vmem [#allocation2], 992
    %v1776 = vld [vmem:[%s1775] sm:%s1033]
    %s1777 = sshllo.u32 0, 2
    %s1778 = smul.addr 2, 124
    %s1779 = scalar_lea.vmem %s1, %s1778
    %1780 = vst [vmem:[%s1779] sm:%s1777] %v1776
    %s1781 = scalar_lea.vmem [#allocation2], 1000
    %v1782 = vld [vmem:[%s1781] sm:%s1033]
    %s1783 = sshllo.u32 0, 2
    %s1784 = smul.addr 2, 125
    %s1785 = scalar_lea.vmem %s1, %s1784
    %1786 = vst [vmem:[%s1785] sm:%s1783] %v1782
    %s1787 = scalar_lea.vmem [#allocation2], 1008
    %v1788 = vld [vmem:[%s1787] sm:%s1033]
    %s1789 = sshllo.u32 0, 2
    %s1790 = smul.addr 2, 126
    %s1791 = scalar_lea.vmem %s1, %s1790
    %1792 = vst [vmem:[%s1791] sm:%s1789] %v1788
    %s1793 = scalar_lea.vmem [#allocation2], 1016
    %v1794 = vld [vmem:[%s1793] sm:%s1033]
    %s1795 = sshllo.u32 0, 2
    %s1796 = smul.addr 2, 127
    %s1797 = scalar_lea.vmem %s1, %s1796
    %1798 = vst [vmem:[%s1797] sm:%s1795] %v1794
    %s1799 = scalar_lea.vmem [#allocation2], 1024
    %v1800 = vld [vmem:[%s1799] sm:%s1033]
    %s1801 = sshllo.u32 0, 2
    %s1802 = smul.addr 2, 128
    %s1803 = scalar_lea.vmem %s1, %s1802
    %1804 = vst [vmem:[%s1803] sm:%s1801] %v1800
    %s1805 = scalar_lea.vmem [#allocation2], 1032
    %v1806 = vld [vmem:[%s1805] sm:%s1033]
    %s1807 = sshllo.u32 0, 2
    %s1808 = smul.addr 2, 129
    %s1809 = scalar_lea.vmem %s1, %s1808
    %1810 = vst [vmem:[%s1809] sm:%s1807] %v1806
    %s1811 = scalar_lea.vmem [#allocation2], 1040
    %v1812 = vld [vmem:[%s1811] sm:%s1033]
    %s1813 = sshllo.u32 0, 2
    %s1814 = smul.addr 2, 130
    %s1815 = scalar_lea.vmem %s1, %s1814
    %1816 = vst [vmem:[%s1815] sm:%s1813] %v1812
    %s1817 = scalar_lea.vmem [#allocation2], 1048
    %v1818 = vld [vmem:[%s1817] sm:%s1033]
    %s1819 = sshllo.u32 0, 2
    %s1820 = smul.addr 2, 131
    %s1821 = scalar_lea.vmem %s1, %s1820
    %1822 = vst [vmem:[%s1821] sm:%s1819] %v1818
    %s1823 = scalar_lea.vmem [#allocation2], 1056
    %v1824 = vld [vmem:[%s1823] sm:%s1033]
    %s1825 = sshllo.u32 0, 2
    %s1826 = smul.addr 2, 132
    %s1827 = scalar_lea.vmem %s1, %s1826
    %1828 = vst [vmem:[%s1827] sm:%s1825] %v1824
    %s1829 = scalar_lea.vmem [#allocation2], 1064
    %v1830 = vld [vmem:[%s1829] sm:%s1033]
    %s1831 = sshllo.u32 0, 2
    %s1832 = smul.addr 2, 133
    %s1833 = scalar_lea.vmem %s1, %s1832
    %1834 = vst [vmem:[%s1833] sm:%s1831] %v1830
    %s1835 = scalar_lea.vmem [#allocation2], 1072
    %v1836 = vld [vmem:[%s1835] sm:%s1033]
    %s1837 = sshllo.u32 0, 2
    %s1838 = smul.addr 2, 134
    %s1839 = scalar_lea.vmem %s1, %s1838
    %1840 = vst [vmem:[%s1839] sm:%s1837] %v1836
    %s1841 = scalar_lea.vmem [#allocation2], 1080
    %v1842 = vld [vmem:[%s1841] sm:%s1033]
    %s1843 = sshllo.u32 0, 2
    %s1844 = smul.addr 2, 135
    %s1845 = scalar_lea.vmem %s1, %s1844
    %1846 = vst [vmem:[%s1845] sm:%s1843] %v1842
    %s1847 = scalar_lea.vmem [#allocation2], 1088
    %v1848 = vld [vmem:[%s1847] sm:%s1033]
    %s1849 = sshllo.u32 0, 2
    %s1850 = smul.addr 2, 136
    %s1851 = scalar_lea.vmem %s1, %s1850
    %1852 = vst [vmem:[%s1851] sm:%s1849] %v1848
    %s1853 = scalar_lea.vmem [#allocation2], 1096
    %v1854 = vld [vmem:[%s1853] sm:%s1033]
    %s1855 = sshllo.u32 0, 2
    %s1856 = smul.addr 2, 137
    %s1857 = scalar_lea.vmem %s1, %s1856
    %1858 = vst [vmem:[%s1857] sm:%s1855] %v1854
    %s1859 = scalar_lea.vmem [#allocation2], 1104
    %v1860 = vld [vmem:[%s1859] sm:%s1033]
    %s1861 = sshllo.u32 0, 2
    %s1862 = smul.addr 2, 138
    %s1863 = scalar_lea.vmem %s1, %s1862
    %1864 = vst [vmem:[%s1863] sm:%s1861] %v1860
    %s1865 = scalar_lea.vmem [#allocation2], 1112
    %v1866 = vld [vmem:[%s1865] sm:%s1033]
    %s1867 = sshllo.u32 0, 2
    %s1868 = smul.addr 2, 139
    %s1869 = scalar_lea.vmem %s1, %s1868
    %1870 = vst [vmem:[%s1869] sm:%s1867] %v1866
    %s1871 = scalar_lea.vmem [#allocation2], 1120
    %v1872 = vld [vmem:[%s1871] sm:%s1033]
    %s1873 = sshllo.u32 0, 2
    %s1874 = smul.addr 2, 140
    %s1875 = scalar_lea.vmem %s1, %s1874
    %1876 = vst [vmem:[%s1875] sm:%s1873] %v1872
    %s1877 = scalar_lea.vmem [#allocation2], 1128
    %v1878 = vld [vmem:[%s1877] sm:%s1033]
    %s1879 = sshllo.u32 0, 2
    %s1880 = smul.addr 2, 141
    %s1881 = scalar_lea.vmem %s1, %s1880
    %1882 = vst [vmem:[%s1881] sm:%s1879] %v1878
    %s1883 = scalar_lea.vmem [#allocation2], 1136
    %v1884 = vld [vmem:[%s1883] sm:%s1033]
    %s1885 = sshllo.u32 0, 2
    %s1886 = smul.addr 2, 142
    %s1887 = scalar_lea.vmem %s1, %s1886
    %1888 = vst [vmem:[%s1887] sm:%s1885] %v1884
    %s1889 = scalar_lea.vmem [#allocation2], 1144
    %v1890 = vld [vmem:[%s1889] sm:%s1033]
    %s1891 = sshllo.u32 0, 2
    %s1892 = smul.addr 2, 143
    %s1893 = scalar_lea.vmem %s1, %s1892
    %1894 = vst [vmem:[%s1893] sm:%s1891] %v1890
    %s1895 = scalar_lea.vmem [#allocation2], 1152
    %v1896 = vld [vmem:[%s1895] sm:%s1033]
    %s1897 = sshllo.u32 0, 2
    %s1898 = smul.addr 2, 144
    %s1899 = scalar_lea.vmem %s1, %s1898
    %1900 = vst [vmem:[%s1899] sm:%s1897] %v1896
    %s1901 = scalar_lea.vmem [#allocation2], 1160
    %v1902 = vld [vmem:[%s1901] sm:%s1033]
    %s1903 = sshllo.u32 0, 2
    %s1904 = smul.addr 2, 145
    %s1905 = scalar_lea.vmem %s1, %s1904
    %1906 = vst [vmem:[%s1905] sm:%s1903] %v1902
    %s1907 = scalar_lea.vmem [#allocation2], 1168
    %v1908 = vld [vmem:[%s1907] sm:%s1033]
    %s1909 = sshllo.u32 0, 2
    %s1910 = smul.addr 2, 146
    %s1911 = scalar_lea.vmem %s1, %s1910
    %1912 = vst [vmem:[%s1911] sm:%s1909] %v1908
    %s1913 = scalar_lea.vmem [#allocation2], 1176
    %v1914 = vld [vmem:[%s1913] sm:%s1033]
    %s1915 = sshllo.u32 0, 2
    %s1916 = smul.addr 2, 147
    %s1917 = scalar_lea.vmem %s1, %s1916
    %1918 = vst [vmem:[%s1917] sm:%s1915] %v1914
    %s1919 = scalar_lea.vmem [#allocation2], 1184
    %v1920 = vld [vmem:[%s1919] sm:%s1033]
    %s1921 = sshllo.u32 0, 2
    %s1922 = smul.addr 2, 148
    %s1923 = scalar_lea.vmem %s1, %s1922
    %1924 = vst [vmem:[%s1923] sm:%s1921] %v1920
    %s1925 = scalar_lea.vmem [#allocation2], 1192
    %v1926 = vld [vmem:[%s1925] sm:%s1033]
    %s1927 = sshllo.u32 0, 2
    %s1928 = smul.addr 2, 149
    %s1929 = scalar_lea.vmem %s1, %s1928
    %1930 = vst [vmem:[%s1929] sm:%s1927] %v1926
    %s1931 = scalar_lea.vmem [#allocation2], 1200
    %v1932 = vld [vmem:[%s1931] sm:%s1033]
    %s1933 = sshllo.u32 0, 2
    %s1934 = smul.addr 2, 150
    %s1935 = scalar_lea.vmem %s1, %s1934
    %1936 = vst [vmem:[%s1935] sm:%s1933] %v1932
    %s1937 = scalar_lea.vmem [#allocation2], 1208
    %v1938 = vld [vmem:[%s1937] sm:%s1033]
    %s1939 = sshllo.u32 0, 2
    %s1940 = smul.addr 2, 151
    %s1941 = scalar_lea.vmem %s1, %s1940
    %1942 = vst [vmem:[%s1941] sm:%s1939] %v1938
    %s1943 = scalar_lea.vmem [#allocation2], 1216
    %v1944 = vld [vmem:[%s1943] sm:%s1033]
    %s1945 = sshllo.u32 0, 2
    %s1946 = smul.addr 2, 152
    %s1947 = scalar_lea.vmem %s1, %s1946
    %1948 = vst [vmem:[%s1947] sm:%s1945] %v1944
    %s1949 = scalar_lea.vmem [#allocation2], 1224
    %v1950 = vld [vmem:[%s1949] sm:%s1033]
    %s1951 = sshllo.u32 0, 2
    %s1952 = smul.addr 2, 153
    %s1953 = scalar_lea.vmem %s1, %s1952
    %1954 = vst [vmem:[%s1953] sm:%s1951] %v1950
    %s1955 = scalar_lea.vmem [#allocation2], 1232
    %v1956 = vld [vmem:[%s1955] sm:%s1033]
    %s1957 = sshllo.u32 0, 2
    %s1958 = smul.addr 2, 154
    %s1959 = scalar_lea.vmem %s1, %s1958
    %1960 = vst [vmem:[%s1959] sm:%s1957] %v1956
    %s1961 = scalar_lea.vmem [#allocation2], 1240
    %v1962 = vld [vmem:[%s1961] sm:%s1033]
    %s1963 = sshllo.u32 0, 2
    %s1964 = smul.addr 2, 155
    %s1965 = scalar_lea.vmem %s1, %s1964
    %1966 = vst [vmem:[%s1965] sm:%s1963] %v1962
    %s1967 = scalar_lea.vmem [#allocation2], 1248
    %v1968 = vld [vmem:[%s1967] sm:%s1033]
    %s1969 = sshllo.u32 0, 2
    %s1970 = smul.addr 2, 156
    %s1971 = scalar_lea.vmem %s1, %s1970
    %1972 = vst [vmem:[%s1971] sm:%s1969] %v1968
    %s1973 = scalar_lea.vmem [#allocation2], 1256
    %v1974 = vld [vmem:[%s1973] sm:%s1033]
    %s1975 = sshllo.u32 0, 2
    %s1976 = smul.addr 2, 157
    %s1977 = scalar_lea.vmem %s1, %s1976
    %1978 = vst [vmem:[%s1977] sm:%s1975] %v1974
    %s1979 = scalar_lea.vmem [#allocation2], 1264
    %v1980 = vld [vmem:[%s1979] sm:%s1033]
    %s1981 = sshllo.u32 0, 2
    %s1982 = smul.addr 2, 158
    %s1983 = scalar_lea.vmem %s1, %s1982
    %1984 = vst [vmem:[%s1983] sm:%s1981] %v1980
    %s1985 = scalar_lea.vmem [#allocation2], 1272
    %v1986 = vld [vmem:[%s1985] sm:%s1033]
    %s1987 = sshllo.u32 0, 2
    %s1988 = smul.addr 2, 159
    %s1989 = scalar_lea.vmem %s1, %s1988
    %1990 = vst [vmem:[%s1989] sm:%s1987] %v1986
    %s1991 = scalar_lea.vmem [#allocation2], 1280
    %v1992 = vld [vmem:[%s1991] sm:%s1033]
    %s1993 = sshllo.u32 0, 2
    %s1994 = smul.addr 2, 160
    %s1995 = scalar_lea.vmem %s1, %s1994
    %1996 = vst [vmem:[%s1995] sm:%s1993] %v1992
    %s1997 = scalar_lea.vmem [#allocation2], 1288
    %v1998 = vld [vmem:[%s1997] sm:%s1033]
    %s1999 = sshllo.u32 0, 2
    %s2000 = smul.addr 2, 161
    %s2001 = scalar_lea.vmem %s1, %s2000
    %2002 = vst [vmem:[%s2001] sm:%s1999] %v1998
    %s2003 = scalar_lea.vmem [#allocation2], 1296
    %v2004 = vld [vmem:[%s2003] sm:%s1033]
    %s2005 = sshllo.u32 0, 2
    %s2006 = smul.addr 2, 162
    %s2007 = scalar_lea.vmem %s1, %s2006
    %2008 = vst [vmem:[%s2007] sm:%s2005] %v2004
    %s2009 = scalar_lea.vmem [#allocation2], 1304
    %v2010 = vld [vmem:[%s2009] sm:%s1033]
    %s2011 = sshllo.u32 0, 2
    %s2012 = smul.addr 2, 163
    %s2013 = scalar_lea.vmem %s1, %s2012
    %2014 = vst [vmem:[%s2013] sm:%s2011] %v2010
    %s2015 = scalar_lea.vmem [#allocation2], 1312
    %v2016 = vld [vmem:[%s2015] sm:%s1033]
    %s2017 = sshllo.u32 0, 2
    %s2018 = smul.addr 2, 164
    %s2019 = scalar_lea.vmem %s1, %s2018
    %2020 = vst [vmem:[%s2019] sm:%s2017] %v2016
    %s2021 = scalar_lea.vmem [#allocation2], 1320
    %v2022 = vld [vmem:[%s2021] sm:%s1033]
    %s2023 = sshllo.u32 0, 2
    %s2024 = smul.addr 2, 165
    %s2025 = scalar_lea.vmem %s1, %s2024
    %2026 = vst [vmem:[%s2025] sm:%s2023] %v2022
    %s2027 = scalar_lea.vmem [#allocation2], 1328
    %v2028 = vld [vmem:[%s2027] sm:%s1033]
    %s2029 = sshllo.u32 0, 2
    %s2030 = smul.addr 2, 166
    %s2031 = scalar_lea.vmem %s1, %s2030
    %2032 = vst [vmem:[%s2031] sm:%s2029] %v2028
    %s2033 = scalar_lea.vmem [#allocation2], 1336
    %v2034 = vld [vmem:[%s2033] sm:%s1033]
    %s2035 = sshllo.u32 0, 2
    %s2036 = smul.addr 2, 167
    %s2037 = scalar_lea.vmem %s1, %s2036
    %2038 = vst [vmem:[%s2037] sm:%s2035] %v2034
    %s2039 = scalar_lea.vmem [#allocation2], 1344
    %v2040 = vld [vmem:[%s2039] sm:%s1033]
    %s2041 = sshllo.u32 0, 2
    %s2042 = smul.addr 2, 168
    %s2043 = scalar_lea.vmem %s1, %s2042
    %2044 = vst [vmem:[%s2043] sm:%s2041] %v2040
    %s2045 = scalar_lea.vmem [#allocation2], 1352
    %v2046 = vld [vmem:[%s2045] sm:%s1033]
    %s2047 = sshllo.u32 0, 2
    %s2048 = smul.addr 2, 169
    %s2049 = scalar_lea.vmem %s1, %s2048
    %2050 = vst [vmem:[%s2049] sm:%s2047] %v2046
    %s2051 = scalar_lea.vmem [#allocation2], 1360
    %v2052 = vld [vmem:[%s2051] sm:%s1033]
    %s2053 = sshllo.u32 0, 2
    %s2054 = smul.addr 2, 170
    %s2055 = scalar_lea.vmem %s1, %s2054
    %2056 = vst [vmem:[%s2055] sm:%s2053] %v2052
    %s2057 = scalar_lea.vmem [#allocation2], 1368
    %v2058 = vld [vmem:[%s2057] sm:%s1033]
    %s2059 = sshllo.u32 0, 2
    %s2060 = smul.addr 2, 171
    %s2061 = scalar_lea.vmem %s1, %s2060
    %2062 = vst [vmem:[%s2061] sm:%s2059] %v2058
    %s2063 = scalar_lea.vmem [#allocation2], 1376
    %v2064 = vld [vmem:[%s2063] sm:%s1033]
    %s2065 = sshllo.u32 0, 2
    %s2066 = smul.addr 2, 172
    %s2067 = scalar_lea.vmem %s1, %s2066
    %2068 = vst [vmem:[%s2067] sm:%s2065] %v2064
    %s2069 = scalar_lea.vmem [#allocation2], 1384
    %v2070 = vld [vmem:[%s2069] sm:%s1033]
    %s2071 = sshllo.u32 0, 2
    %s2072 = smul.addr 2, 173
    %s2073 = scalar_lea.vmem %s1, %s2072
    %2074 = vst [vmem:[%s2073] sm:%s2071] %v2070
    %s2075 = scalar_lea.vmem [#allocation2], 1392
    %v2076 = vld [vmem:[%s2075] sm:%s1033]
    %s2077 = sshllo.u32 0, 2
    %s2078 = smul.addr 2, 174
    %s2079 = scalar_lea.vmem %s1, %s2078
    %2080 = vst [vmem:[%s2079] sm:%s2077] %v2076
    %s2081 = scalar_lea.vmem [#allocation2], 1400
    %v2082 = vld [vmem:[%s2081] sm:%s1033]
    %s2083 = sshllo.u32 0, 2
    %s2084 = smul.addr 2, 175
    %s2085 = scalar_lea.vmem %s1, %s2084
    %2086 = vst [vmem:[%s2085] sm:%s2083] %v2082
    %s2087 = scalar_lea.vmem [#allocation2], 1408
    %v2088 = vld [vmem:[%s2087] sm:%s1033]
    %s2089 = sshllo.u32 0, 2
    %s2090 = smul.addr 2, 176
    %s2091 = scalar_lea.vmem %s1, %s2090
    %2092 = vst [vmem:[%s2091] sm:%s2089] %v2088
    %s2093 = scalar_lea.vmem [#allocation2], 1416
    %v2094 = vld [vmem:[%s2093] sm:%s1033]
    %s2095 = sshllo.u32 0, 2
    %s2096 = smul.addr 2, 177
    %s2097 = scalar_lea.vmem %s1, %s2096
    %2098 = vst [vmem:[%s2097] sm:%s2095] %v2094
    %s2099 = scalar_lea.vmem [#allocation2], 1424
    %v2100 = vld [vmem:[%s2099] sm:%s1033]
    %s2101 = sshllo.u32 0, 2
    %s2102 = smul.addr 2, 178
    %s2103 = scalar_lea.vmem %s1, %s2102
    %2104 = vst [vmem:[%s2103] sm:%s2101] %v2100
    %s2105 = scalar_lea.vmem [#allocation2], 1432
    %v2106 = vld [vmem:[%s2105] sm:%s1033]
    %s2107 = sshllo.u32 0, 2
    %s2108 = smul.addr 2, 179
    %s2109 = scalar_lea.vmem %s1, %s2108
    %2110 = vst [vmem:[%s2109] sm:%s2107] %v2106
    %s2111 = scalar_lea.vmem [#allocation2], 1440
    %v2112 = vld [vmem:[%s2111] sm:%s1033]
    %s2113 = sshllo.u32 0, 2
    %s2114 = smul.addr 2, 180
    %s2115 = scalar_lea.vmem %s1, %s2114
    %2116 = vst [vmem:[%s2115] sm:%s2113] %v2112
    %s2117 = scalar_lea.vmem [#allocation2], 1448
    %v2118 = vld [vmem:[%s2117] sm:%s1033]
    %s2119 = sshllo.u32 0, 2
    %s2120 = smul.addr 2, 181
    %s2121 = scalar_lea.vmem %s1, %s2120
    %2122 = vst [vmem:[%s2121] sm:%s2119] %v2118
    %s2123 = scalar_lea.vmem [#allocation2], 1456
    %v2124 = vld [vmem:[%s2123] sm:%s1033]
    %s2125 = sshllo.u32 0, 2
    %s2126 = smul.addr 2, 182
    %s2127 = scalar_lea.vmem %s1, %s2126
    %2128 = vst [vmem:[%s2127] sm:%s2125] %v2124
    %s2129 = scalar_lea.vmem [#allocation2], 1464
    %v2130 = vld [vmem:[%s2129] sm:%s1033]
    %s2131 = sshllo.u32 0, 2
    %s2132 = smul.addr 2, 183
    %s2133 = scalar_lea.vmem %s1, %s2132
    %2134 = vst [vmem:[%s2133] sm:%s2131] %v2130
    %s2135 = scalar_lea.vmem [#allocation2], 1472
    %v2136 = vld [vmem:[%s2135] sm:%s1033]
    %s2137 = sshllo.u32 0, 2
    %s2138 = smul.addr 2, 184
    %s2139 = scalar_lea.vmem %s1, %s2138
    %2140 = vst [vmem:[%s2139] sm:%s2137] %v2136
    %s2141 = scalar_lea.vmem [#allocation2], 1480
    %v2142 = vld [vmem:[%s2141] sm:%s1033]
    %s2143 = sshllo.u32 0, 2
    %s2144 = smul.addr 2, 185
    %s2145 = scalar_lea.vmem %s1, %s2144
    %2146 = vst [vmem:[%s2145] sm:%s2143] %v2142
    %s2147 = scalar_lea.vmem [#allocation2], 1488
    %v2148 = vld [vmem:[%s2147] sm:%s1033]
    %s2149 = sshllo.u32 0, 2
    %s2150 = smul.addr 2, 186
    %s2151 = scalar_lea.vmem %s1, %s2150
    %2152 = vst [vmem:[%s2151] sm:%s2149] %v2148
    %s2153 = scalar_lea.vmem [#allocation2], 1496
    %v2154 = vld [vmem:[%s2153] sm:%s1033]
    %s2155 = sshllo.u32 0, 2
    %s2156 = smul.addr 2, 187
    %s2157 = scalar_lea.vmem %s1, %s2156
    %2158 = vst [vmem:[%s2157] sm:%s2155] %v2154
    %s2159 = scalar_lea.vmem [#allocation2], 1504
    %v2160 = vld [vmem:[%s2159] sm:%s1033]
    %s2161 = sshllo.u32 0, 2
    %s2162 = smul.addr 2, 188
    %s2163 = scalar_lea.vmem %s1, %s2162
    %2164 = vst [vmem:[%s2163] sm:%s2161] %v2160
    %s2165 = scalar_lea.vmem [#allocation2], 1512
    %v2166 = vld [vmem:[%s2165] sm:%s1033]
    %s2167 = sshllo.u32 0, 2
    %s2168 = smul.addr 2, 189
    %s2169 = scalar_lea.vmem %s1, %s2168
    %2170 = vst [vmem:[%s2169] sm:%s2167] %v2166
    %s2171 = scalar_lea.vmem [#allocation2], 1520
    %v2172 = vld [vmem:[%s2171] sm:%s1033]
    %s2173 = sshllo.u32 0, 2
    %s2174 = smul.addr 2, 190
    %s2175 = scalar_lea.vmem %s1, %s2174
    %2176 = vst [vmem:[%s2175] sm:%s2173] %v2172
    %s2177 = scalar_lea.vmem [#allocation2], 1528
    %v2178 = vld [vmem:[%s2177] sm:%s1033]
    %s2179 = sshllo.u32 0, 2
    %s2180 = smul.addr 2, 191
    %s2181 = scalar_lea.vmem %s1, %s2180
    %2182 = vst [vmem:[%s2181] sm:%s2179] %v2178
    %s2183 = scalar_lea.vmem [#allocation2], 1536
    %v2184 = vld [vmem:[%s2183] sm:%s1033]
    %s2185 = sshllo.u32 0, 2
    %s2186 = smul.addr 2, 192
    %s2187 = scalar_lea.vmem %s1, %s2186
    %2188 = vst [vmem:[%s2187] sm:%s2185] %v2184
    %s2189 = scalar_lea.vmem [#allocation2], 1544
    %v2190 = vld [vmem:[%s2189] sm:%s1033]
    %s2191 = sshllo.u32 0, 2
    %s2192 = smul.addr 2, 193
    %s2193 = scalar_lea.vmem %s1, %s2192
    %2194 = vst [vmem:[%s2193] sm:%s2191] %v2190
    %s2195 = scalar_lea.vmem [#allocation2], 1552
    %v2196 = vld [vmem:[%s2195] sm:%s1033]
    %s2197 = sshllo.u32 0, 2
    %s2198 = smul.addr 2, 194
    %s2199 = scalar_lea.vmem %s1, %s2198
    %2200 = vst [vmem:[%s2199] sm:%s2197] %v2196
    %s2201 = scalar_lea.vmem [#allocation2], 1560
    %v2202 = vld [vmem:[%s2201] sm:%s1033]
    %s2203 = sshllo.u32 0, 2
    %s2204 = smul.addr 2, 195
    %s2205 = scalar_lea.vmem %s1, %s2204
    %2206 = vst [vmem:[%s2205] sm:%s2203] %v2202
    %s2207 = scalar_lea.vmem [#allocation2], 1568
    %v2208 = vld [vmem:[%s2207] sm:%s1033]
    %s2209 = sshllo.u32 0, 2
    %s2210 = smul.addr 2, 196
    %s2211 = scalar_lea.vmem %s1, %s2210
    %2212 = vst [vmem:[%s2211] sm:%s2209] %v2208
    %s2213 = scalar_lea.vmem [#allocation2], 1576
    %v2214 = vld [vmem:[%s2213] sm:%s1033]
    %s2215 = sshllo.u32 0, 2
    %s2216 = smul.addr 2, 197
    %s2217 = scalar_lea.vmem %s1, %s2216
    %2218 = vst [vmem:[%s2217] sm:%s2215] %v2214
    %s2219 = scalar_lea.vmem [#allocation2], 1584
    %v2220 = vld [vmem:[%s2219] sm:%s1033]
    %s2221 = sshllo.u32 0, 2
    %s2222 = smul.addr 2, 198
    %s2223 = scalar_lea.vmem %s1, %s2222
    %2224 = vst [vmem:[%s2223] sm:%s2221] %v2220
    %s2225 = scalar_lea.vmem [#allocation2], 1592
    %v2226 = vld [vmem:[%s2225] sm:%s1033]
    %s2227 = sshllo.u32 0, 2
    %s2228 = smul.addr 2, 199
    %s2229 = scalar_lea.vmem %s1, %s2228
    %2230 = vst [vmem:[%s2229] sm:%s2227] %v2226
    %s2231 = scalar_lea.vmem [#allocation2], 1600
    %v2232 = vld [vmem:[%s2231] sm:%s1033]
    %s2233 = sshllo.u32 0, 2
    %s2234 = smul.addr 2, 200
    %s2235 = scalar_lea.vmem %s1, %s2234
    %2236 = vst [vmem:[%s2235] sm:%s2233] %v2232
    %s2237 = scalar_lea.vmem [#allocation2], 1608
    %v2238 = vld [vmem:[%s2237] sm:%s1033]
    %s2239 = sshllo.u32 0, 2
    %s2240 = smul.addr 2, 201
    %s2241 = scalar_lea.vmem %s1, %s2240
    %2242 = vst [vmem:[%s2241] sm:%s2239] %v2238
    %s2243 = scalar_lea.vmem [#allocation2], 1616
    %v2244 = vld [vmem:[%s2243] sm:%s1033]
    %s2245 = sshllo.u32 0, 2
    %s2246 = smul.addr 2, 202
    %s2247 = scalar_lea.vmem %s1, %s2246
    %2248 = vst [vmem:[%s2247] sm:%s2245] %v2244
    %s2249 = scalar_lea.vmem [#allocation2], 1624
    %v2250 = vld [vmem:[%s2249] sm:%s1033]
    %s2251 = sshllo.u32 0, 2
    %s2252 = smul.addr 2, 203
    %s2253 = scalar_lea.vmem %s1, %s2252
    %2254 = vst [vmem:[%s2253] sm:%s2251] %v2250
    %s2255 = scalar_lea.vmem [#allocation2], 1632
    %v2256 = vld [vmem:[%s2255] sm:%s1033]
    %s2257 = sshllo.u32 0, 2
    %s2258 = smul.addr 2, 204
    %s2259 = scalar_lea.vmem %s1, %s2258
    %2260 = vst [vmem:[%s2259] sm:%s2257] %v2256
    %s2261 = scalar_lea.vmem [#allocation2], 1640
    %v2262 = vld [vmem:[%s2261] sm:%s1033]
    %s2263 = sshllo.u32 0, 2
    %s2264 = smul.addr 2, 205
    %s2265 = scalar_lea.vmem %s1, %s2264
    %2266 = vst [vmem:[%s2265] sm:%s2263] %v2262
    %s2267 = scalar_lea.vmem [#allocation2], 1648
    %v2268 = vld [vmem:[%s2267] sm:%s1033]
    %s2269 = sshllo.u32 0, 2
    %s2270 = smul.addr 2, 206
    %s2271 = scalar_lea.vmem %s1, %s2270
    %2272 = vst [vmem:[%s2271] sm:%s2269] %v2268
    %s2273 = scalar_lea.vmem [#allocation2], 1656
    %v2274 = vld [vmem:[%s2273] sm:%s1033]
    %s2275 = sshllo.u32 0, 2
    %s2276 = smul.addr 2, 207
    %s2277 = scalar_lea.vmem %s1, %s2276
    %2278 = vst [vmem:[%s2277] sm:%s2275] %v2274
    %s2279 = scalar_lea.vmem [#allocation2], 1664
    %v2280 = vld [vmem:[%s2279] sm:%s1033]
    %s2281 = sshllo.u32 0, 2
    %s2282 = smul.addr 2, 208
    %s2283 = scalar_lea.vmem %s1, %s2282
    %2284 = vst [vmem:[%s2283] sm:%s2281] %v2280
    %s2285 = scalar_lea.vmem [#allocation2], 1672
    %v2286 = vld [vmem:[%s2285] sm:%s1033]
    %s2287 = sshllo.u32 0, 2
    %s2288 = smul.addr 2, 209
    %s2289 = scalar_lea.vmem %s1, %s2288
    %2290 = vst [vmem:[%s2289] sm:%s2287] %v2286
    %s2291 = scalar_lea.vmem [#allocation2], 1680
    %v2292 = vld [vmem:[%s2291] sm:%s1033]
    %s2293 = sshllo.u32 0, 2
    %s2294 = smul.addr 2, 210
    %s2295 = scalar_lea.vmem %s1, %s2294
    %2296 = vst [vmem:[%s2295] sm:%s2293] %v2292
    %s2297 = scalar_lea.vmem [#allocation2], 1688
    %v2298 = vld [vmem:[%s2297] sm:%s1033]
    %s2299 = sshllo.u32 0, 2
    %s2300 = smul.addr 2, 211
    %s2301 = scalar_lea.vmem %s1, %s2300
    %2302 = vst [vmem:[%s2301] sm:%s2299] %v2298
    %s2303 = scalar_lea.vmem [#allocation2], 1696
    %v2304 = vld [vmem:[%s2303] sm:%s1033]
    %s2305 = sshllo.u32 0, 2
    %s2306 = smul.addr 2, 212
    %s2307 = scalar_lea.vmem %s1, %s2306
    %2308 = vst [vmem:[%s2307] sm:%s2305] %v2304
    %s2309 = scalar_lea.vmem [#allocation2], 1704
    %v2310 = vld [vmem:[%s2309] sm:%s1033]
    %s2311 = sshllo.u32 0, 2
    %s2312 = smul.addr 2, 213
    %s2313 = scalar_lea.vmem %s1, %s2312
    %2314 = vst [vmem:[%s2313] sm:%s2311] %v2310
    %s2315 = scalar_lea.vmem [#allocation2], 1712
    %v2316 = vld [vmem:[%s2315] sm:%s1033]
    %s2317 = sshllo.u32 0, 2
    %s2318 = smul.addr 2, 214
    %s2319 = scalar_lea.vmem %s1, %s2318
    %2320 = vst [vmem:[%s2319] sm:%s2317] %v2316
    %s2321 = scalar_lea.vmem [#allocation2], 1720
    %v2322 = vld [vmem:[%s2321] sm:%s1033]
    %s2323 = sshllo.u32 0, 2
    %s2324 = smul.addr 2, 215
    %s2325 = scalar_lea.vmem %s1, %s2324
    %2326 = vst [vmem:[%s2325] sm:%s2323] %v2322
    %s2327 = scalar_lea.vmem [#allocation2], 1728
    %v2328 = vld [vmem:[%s2327] sm:%s1033]
    %s2329 = sshllo.u32 0, 2
    %s2330 = smul.addr 2, 216
    %s2331 = scalar_lea.vmem %s1, %s2330
    %2332 = vst [vmem:[%s2331] sm:%s2329] %v2328
    %s2333 = scalar_lea.vmem [#allocation2], 1736
    %v2334 = vld [vmem:[%s2333] sm:%s1033]
    %s2335 = sshllo.u32 0, 2
    %s2336 = smul.addr 2, 217
    %s2337 = scalar_lea.vmem %s1, %s2336
    %2338 = vst [vmem:[%s2337] sm:%s2335] %v2334
    %s2339 = scalar_lea.vmem [#allocation2], 1744
    %v2340 = vld [vmem:[%s2339] sm:%s1033]
    %s2341 = sshllo.u32 0, 2
    %s2342 = smul.addr 2, 218
    %s2343 = scalar_lea.vmem %s1, %s2342
    %2344 = vst [vmem:[%s2343] sm:%s2341] %v2340
    %s2345 = scalar_lea.vmem [#allocation2], 1752
    %v2346 = vld [vmem:[%s2345] sm:%s1033]
    %s2347 = sshllo.u32 0, 2
    %s2348 = smul.addr 2, 219
    %s2349 = scalar_lea.vmem %s1, %s2348
    %2350 = vst [vmem:[%s2349] sm:%s2347] %v2346
    %s2351 = scalar_lea.vmem [#allocation2], 1760
    %v2352 = vld [vmem:[%s2351] sm:%s1033]
    %s2353 = sshllo.u32 0, 2
    %s2354 = smul.addr 2, 220
    %s2355 = scalar_lea.vmem %s1, %s2354
    %2356 = vst [vmem:[%s2355] sm:%s2353] %v2352
    %s2357 = scalar_lea.vmem [#allocation2], 1768
    %v2358 = vld [vmem:[%s2357] sm:%s1033]
    %s2359 = sshllo.u32 0, 2
    %s2360 = smul.addr 2, 221
    %s2361 = scalar_lea.vmem %s1, %s2360
    %2362 = vst [vmem:[%s2361] sm:%s2359] %v2358
    %s2363 = scalar_lea.vmem [#allocation2], 1776
    %v2364 = vld [vmem:[%s2363] sm:%s1033]
    %s2365 = sshllo.u32 0, 2
    %s2366 = smul.addr 2, 222
    %s2367 = scalar_lea.vmem %s1, %s2366
    %2368 = vst [vmem:[%s2367] sm:%s2365] %v2364
    %s2369 = scalar_lea.vmem [#allocation2], 1784
    %v2370 = vld [vmem:[%s2369] sm:%s1033]
    %s2371 = sshllo.u32 0, 2
    %s2372 = smul.addr 2, 223
    %s2373 = scalar_lea.vmem %s1, %s2372
    %2374 = vst [vmem:[%s2373] sm:%s2371] %v2370
    %s2375 = scalar_lea.vmem [#allocation2], 1792
    %v2376 = vld [vmem:[%s2375] sm:%s1033]
    %s2377 = sshllo.u32 0, 2
    %s2378 = smul.addr 2, 224
    %s2379 = scalar_lea.vmem %s1, %s2378
    %2380 = vst [vmem:[%s2379] sm:%s2377] %v2376
    %s2381 = scalar_lea.vmem [#allocation2], 1800
    %v2382 = vld [vmem:[%s2381] sm:%s1033]
    %s2383 = sshllo.u32 0, 2
    %s2384 = smul.addr 2, 225
    %s2385 = scalar_lea.vmem %s1, %s2384
    %2386 = vst [vmem:[%s2385] sm:%s2383] %v2382
    %s2387 = scalar_lea.vmem [#allocation2], 1808
    %v2388 = vld [vmem:[%s2387] sm:%s1033]
    %s2389 = sshllo.u32 0, 2
    %s2390 = smul.addr 2, 226
    %s2391 = scalar_lea.vmem %s1, %s2390
    %2392 = vst [vmem:[%s2391] sm:%s2389] %v2388
    %s2393 = scalar_lea.vmem [#allocation2], 1816
    %v2394 = vld [vmem:[%s2393] sm:%s1033]
    %s2395 = sshllo.u32 0, 2
    %s2396 = smul.addr 2, 227
    %s2397 = scalar_lea.vmem %s1, %s2396
    %2398 = vst [vmem:[%s2397] sm:%s2395] %v2394
    %s2399 = scalar_lea.vmem [#allocation2], 1824
    %v2400 = vld [vmem:[%s2399] sm:%s1033]
    %s2401 = sshllo.u32 0, 2
    %s2402 = smul.addr 2, 228
    %s2403 = scalar_lea.vmem %s1, %s2402
    %2404 = vst [vmem:[%s2403] sm:%s2401] %v2400
    %s2405 = scalar_lea.vmem [#allocation2], 1832
    %v2406 = vld [vmem:[%s2405] sm:%s1033]
    %s2407 = sshllo.u32 0, 2
    %s2408 = smul.addr 2, 229
    %s2409 = scalar_lea.vmem %s1, %s2408
    %2410 = vst [vmem:[%s2409] sm:%s2407] %v2406
    %s2411 = scalar_lea.vmem [#allocation2], 1840
    %v2412 = vld [vmem:[%s2411] sm:%s1033]
    %s2413 = sshllo.u32 0, 2
    %s2414 = smul.addr 2, 230
    %s2415 = scalar_lea.vmem %s1, %s2414
    %2416 = vst [vmem:[%s2415] sm:%s2413] %v2412
    %s2417 = scalar_lea.vmem [#allocation2], 1848
    %v2418 = vld [vmem:[%s2417] sm:%s1033]
    %s2419 = sshllo.u32 0, 2
    %s2420 = smul.addr 2, 231
    %s2421 = scalar_lea.vmem %s1, %s2420
    %2422 = vst [vmem:[%s2421] sm:%s2419] %v2418
    %s2423 = scalar_lea.vmem [#allocation2], 1856
    %v2424 = vld [vmem:[%s2423] sm:%s1033]
    %s2425 = sshllo.u32 0, 2
    %s2426 = smul.addr 2, 232
    %s2427 = scalar_lea.vmem %s1, %s2426
    %2428 = vst [vmem:[%s2427] sm:%s2425] %v2424
    %s2429 = scalar_lea.vmem [#allocation2], 1864
    %v2430 = vld [vmem:[%s2429] sm:%s1033]
    %s2431 = sshllo.u32 0, 2
    %s2432 = smul.addr 2, 233
    %s2433 = scalar_lea.vmem %s1, %s2432
    %2434 = vst [vmem:[%s2433] sm:%s2431] %v2430
    %s2435 = scalar_lea.vmem [#allocation2], 1872
    %v2436 = vld [vmem:[%s2435] sm:%s1033]
    %s2437 = sshllo.u32 0, 2
    %s2438 = smul.addr 2, 234
    %s2439 = scalar_lea.vmem %s1, %s2438
    %2440 = vst [vmem:[%s2439] sm:%s2437] %v2436
    %s2441 = scalar_lea.vmem [#allocation2], 1880
    %v2442 = vld [vmem:[%s2441] sm:%s1033]
    %s2443 = sshllo.u32 0, 2
    %s2444 = smul.addr 2, 235
    %s2445 = scalar_lea.vmem %s1, %s2444
    %2446 = vst [vmem:[%s2445] sm:%s2443] %v2442
    %s2447 = scalar_lea.vmem [#allocation2], 1888
    %v2448 = vld [vmem:[%s2447] sm:%s1033]
    %s2449 = sshllo.u32 0, 2
    %s2450 = smul.addr 2, 236
    %s2451 = scalar_lea.vmem %s1, %s2450
    %2452 = vst [vmem:[%s2451] sm:%s2449] %v2448
    %s2453 = scalar_lea.vmem [#allocation2], 1896
    %v2454 = vld [vmem:[%s2453] sm:%s1033]
    %s2455 = sshllo.u32 0, 2
    %s2456 = smul.addr 2, 237
    %s2457 = scalar_lea.vmem %s1, %s2456
    %2458 = vst [vmem:[%s2457] sm:%s2455] %v2454
    %s2459 = scalar_lea.vmem [#allocation2], 1904
    %v2460 = vld [vmem:[%s2459] sm:%s1033]
    %s2461 = sshllo.u32 0, 2
    %s2462 = smul.addr 2, 238
    %s2463 = scalar_lea.vmem %s1, %s2462
    %2464 = vst [vmem:[%s2463] sm:%s2461] %v2460
    %s2465 = scalar_lea.vmem [#allocation2], 1912
    %v2466 = vld [vmem:[%s2465] sm:%s1033]
    %s2467 = sshllo.u32 0, 2
    %s2468 = smul.addr 2, 239
    %s2469 = scalar_lea.vmem %s1, %s2468
    %2470 = vst [vmem:[%s2469] sm:%s2467] %v2466
    %s2471 = scalar_lea.vmem [#allocation2], 1920
    %v2472 = vld [vmem:[%s2471] sm:%s1033]
    %s2473 = sshllo.u32 0, 2
    %s2474 = smul.addr 2, 240
    %s2475 = scalar_lea.vmem %s1, %s2474
    %2476 = vst [vmem:[%s2475] sm:%s2473] %v2472
    %s2477 = scalar_lea.vmem [#allocation2], 1928
    %v2478 = vld [vmem:[%s2477] sm:%s1033]
    %s2479 = sshllo.u32 0, 2
    %s2480 = smul.addr 2, 241
    %s2481 = scalar_lea.vmem %s1, %s2480
    %2482 = vst [vmem:[%s2481] sm:%s2479] %v2478
    %s2483 = scalar_lea.vmem [#allocation2], 1936
    %v2484 = vld [vmem:[%s2483] sm:%s1033]
    %s2485 = sshllo.u32 0, 2
    %s2486 = smul.addr 2, 242
    %s2487 = scalar_lea.vmem %s1, %s2486
    %2488 = vst [vmem:[%s2487] sm:%s2485] %v2484
    %s2489 = scalar_lea.vmem [#allocation2], 1944
    %v2490 = vld [vmem:[%s2489] sm:%s1033]
    %s2491 = sshllo.u32 0, 2
    %s2492 = smul.addr 2, 243
    %s2493 = scalar_lea.vmem %s1, %s2492
    %2494 = vst [vmem:[%s2493] sm:%s2491] %v2490
    %s2495 = scalar_lea.vmem [#allocation2], 1952
    %v2496 = vld [vmem:[%s2495] sm:%s1033]
    %s2497 = sshllo.u32 0, 2
    %s2498 = smul.addr 2, 244
    %s2499 = scalar_lea.vmem %s1, %s2498
    %2500 = vst [vmem:[%s2499] sm:%s2497] %v2496
    %s2501 = scalar_lea.vmem [#allocation2], 1960
    %v2502 = vld [vmem:[%s2501] sm:%s1033]
    %s2503 = sshllo.u32 0, 2
    %s2504 = smul.addr 2, 245
    %s2505 = scalar_lea.vmem %s1, %s2504
    %2506 = vst [vmem:[%s2505] sm:%s2503] %v2502
    %s2507 = scalar_lea.vmem [#allocation2], 1968
    %v2508 = vld [vmem:[%s2507] sm:%s1033]
    %s2509 = sshllo.u32 0, 2
    %s2510 = smul.addr 2, 246
    %s2511 = scalar_lea.vmem %s1, %s2510
    %2512 = vst [vmem:[%s2511] sm:%s2509] %v2508
    %s2513 = scalar_lea.vmem [#allocation2], 1976
    %v2514 = vld [vmem:[%s2513] sm:%s1033]
    %s2515 = sshllo.u32 0, 2
    %s2516 = smul.addr 2, 247
    %s2517 = scalar_lea.vmem %s1, %s2516
    %2518 = vst [vmem:[%s2517] sm:%s2515] %v2514
    %s2519 = scalar_lea.vmem [#allocation2], 1984
    %v2520 = vld [vmem:[%s2519] sm:%s1033]
    %s2521 = sshllo.u32 0, 2
    %s2522 = smul.addr 2, 248
    %s2523 = scalar_lea.vmem %s1, %s2522
    %2524 = vst [vmem:[%s2523] sm:%s2521] %v2520
    %s2525 = scalar_lea.vmem [#allocation2], 1992
    %v2526 = vld [vmem:[%s2525] sm:%s1033]
    %s2527 = sshllo.u32 0, 2
    %s2528 = smul.addr 2, 249
    %s2529 = scalar_lea.vmem %s1, %s2528
    %2530 = vst [vmem:[%s2529] sm:%s2527] %v2526
    %s2531 = scalar_lea.vmem [#allocation2], 2000
    %v2532 = vld [vmem:[%s2531] sm:%s1033]
    %s2533 = sshllo.u32 0, 2
    %s2534 = smul.addr 2, 250
    %s2535 = scalar_lea.vmem %s1, %s2534
    %2536 = vst [vmem:[%s2535] sm:%s2533] %v2532
    %s2537 = scalar_lea.vmem [#allocation2], 2008
    %v2538 = vld [vmem:[%s2537] sm:%s1033]
    %s2539 = sshllo.u32 0, 2
    %s2540 = smul.addr 2, 251
    %s2541 = scalar_lea.vmem %s1, %s2540
    %2542 = vst [vmem:[%s2541] sm:%s2539] %v2538
    %s2543 = scalar_lea.vmem [#allocation2], 2016
    %v2544 = vld [vmem:[%s2543] sm:%s1033]
    %s2545 = sshllo.u32 0, 2
    %s2546 = smul.addr 2, 252
    %s2547 = scalar_lea.vmem %s1, %s2546
    %2548 = vst [vmem:[%s2547] sm:%s2545] %v2544
    %s2549 = scalar_lea.vmem [#allocation2], 2024
    %v2550 = vld [vmem:[%s2549] sm:%s1033]
    %s2551 = sshllo.u32 0, 2
    %s2552 = smul.addr 2, 253
    %s2553 = scalar_lea.vmem %s1, %s2552
    %2554 = vst [vmem:[%s2553] sm:%s2551] %v2550
    %s2555 = scalar_lea.vmem [#allocation2], 2032
    %v2556 = vld [vmem:[%s2555] sm:%s1033]
    %s2557 = sshllo.u32 0, 2
    %s2558 = smul.addr 2, 254
    %s2559 = scalar_lea.vmem %s1, %s2558
    %2560 = vst [vmem:[%s2559] sm:%s2557] %v2556
    %s2561 = scalar_lea.vmem [#allocation2], 2040
    %v2562 = vld [vmem:[%s2561] sm:%s1033]
    %s2563 = sshllo.u32 0, 2
    %s2564 = smul.addr 2, 255
    %s2565 = scalar_lea.vmem %s1, %s2564
    %2566 = vst [vmem:[%s2565] sm:%s2563] %v2562
    %s2567 = scalar_lea.vmem [#allocation2], 2048
    %v2568 = vld [vmem:[%s2567] sm:%s1033]
    %s2569 = sshllo.u32 0, 2
    %s2570 = smul.addr 2, 256
    %s2571 = scalar_lea.vmem %s1, %s2570
    %2572 = vst [vmem:[%s2571] sm:%s2569] %v2568
    %s2573 = scalar_lea.vmem [#allocation2], 2056
    %v2574 = vld [vmem:[%s2573] sm:%s1033]
    %s2575 = sshllo.u32 0, 2
    %s2576 = smul.addr 2, 257
    %s2577 = scalar_lea.vmem %s1, %s2576
    %2578 = vst [vmem:[%s2577] sm:%s2575] %v2574
    %s2579 = scalar_lea.vmem [#allocation2], 2064
    %v2580 = vld [vmem:[%s2579] sm:%s1033]
    %s2581 = sshllo.u32 0, 2
    %s2582 = smul.addr 2, 258
    %s2583 = scalar_lea.vmem %s1, %s2582
    %2584 = vst [vmem:[%s2583] sm:%s2581] %v2580
    %s2585 = scalar_lea.vmem [#allocation2], 2072
    %v2586 = vld [vmem:[%s2585] sm:%s1033]
    %s2587 = sshllo.u32 0, 2
    %s2588 = smul.addr 2, 259
    %s2589 = scalar_lea.vmem %s1, %s2588
    %2590 = vst [vmem:[%s2589] sm:%s2587] %v2586
    %s2591 = scalar_lea.vmem [#allocation2], 2080
    %v2592 = vld [vmem:[%s2591] sm:%s1033]
    %s2593 = sshllo.u32 0, 2
    %s2594 = smul.addr 2, 260
    %s2595 = scalar_lea.vmem %s1, %s2594
    %2596 = vst [vmem:[%s2595] sm:%s2593] %v2592
    %s2597 = scalar_lea.vmem [#allocation2], 2088
    %v2598 = vld [vmem:[%s2597] sm:%s1033]
    %s2599 = sshllo.u32 0, 2
    %s2600 = smul.addr 2, 261
    %s2601 = scalar_lea.vmem %s1, %s2600
    %2602 = vst [vmem:[%s2601] sm:%s2599] %v2598
    %s2603 = scalar_lea.vmem [#allocation2], 2096
    %v2604 = vld [vmem:[%s2603] sm:%s1033]
    %s2605 = sshllo.u32 0, 2
    %s2606 = smul.addr 2, 262
    %s2607 = scalar_lea.vmem %s1, %s2606
    %2608 = vst [vmem:[%s2607] sm:%s2605] %v2604
    %s2609 = scalar_lea.vmem [#allocation2], 2104
    %v2610 = vld [vmem:[%s2609] sm:%s1033]
    %s2611 = sshllo.u32 0, 2
    %s2612 = smul.addr 2, 263
    %s2613 = scalar_lea.vmem %s1, %s2612
    %2614 = vst [vmem:[%s2613] sm:%s2611] %v2610
    %s2615 = scalar_lea.vmem [#allocation2], 2112
    %v2616 = vld [vmem:[%s2615] sm:%s1033]
    %s2617 = sshllo.u32 0, 2
    %s2618 = smul.addr 2, 264
    %s2619 = scalar_lea.vmem %s1, %s2618
    %2620 = vst [vmem:[%s2619] sm:%s2617] %v2616
    %s2621 = scalar_lea.vmem [#allocation2], 2120
    %v2622 = vld [vmem:[%s2621] sm:%s1033]
    %s2623 = sshllo.u32 0, 2
    %s2624 = smul.addr 2, 265
    %s2625 = scalar_lea.vmem %s1, %s2624
    %2626 = vst [vmem:[%s2625] sm:%s2623] %v2622
    %s2627 = scalar_lea.vmem [#allocation2], 2128
    %v2628 = vld [vmem:[%s2627] sm:%s1033]
    %s2629 = sshllo.u32 0, 2
    %s2630 = smul.addr 2, 266
    %s2631 = scalar_lea.vmem %s1, %s2630
    %2632 = vst [vmem:[%s2631] sm:%s2629] %v2628
    %s2633 = scalar_lea.vmem [#allocation2], 2136
    %v2634 = vld [vmem:[%s2633] sm:%s1033]
    %s2635 = sshllo.u32 0, 2
    %s2636 = smul.addr 2, 267
    %s2637 = scalar_lea.vmem %s1, %s2636
    %2638 = vst [vmem:[%s2637] sm:%s2635] %v2634
    %s2639 = scalar_lea.vmem [#allocation2], 2144
    %v2640 = vld [vmem:[%s2639] sm:%s1033]
    %s2641 = sshllo.u32 0, 2
    %s2642 = smul.addr 2, 268
    %s2643 = scalar_lea.vmem %s1, %s2642
    %2644 = vst [vmem:[%s2643] sm:%s2641] %v2640
    %s2645 = scalar_lea.vmem [#allocation2], 2152
    %v2646 = vld [vmem:[%s2645] sm:%s1033]
    %s2647 = sshllo.u32 0, 2
    %s2648 = smul.addr 2, 269
    %s2649 = scalar_lea.vmem %s1, %s2648
    %2650 = vst [vmem:[%s2649] sm:%s2647] %v2646
    %s2651 = scalar_lea.vmem [#allocation2], 2160
    %v2652 = vld [vmem:[%s2651] sm:%s1033]
    %s2653 = sshllo.u32 0, 2
    %s2654 = smul.addr 2, 270
    %s2655 = scalar_lea.vmem %s1, %s2654
    %2656 = vst [vmem:[%s2655] sm:%s2653] %v2652
    %s2657 = scalar_lea.vmem [#allocation2], 2168
    %v2658 = vld [vmem:[%s2657] sm:%s1033]
    %s2659 = sshllo.u32 0, 2
    %s2660 = smul.addr 2, 271
    %s2661 = scalar_lea.vmem %s1, %s2660
    %2662 = vst [vmem:[%s2661] sm:%s2659] %v2658
    %s2663 = scalar_lea.vmem [#allocation2], 2176
    %v2664 = vld [vmem:[%s2663] sm:%s1033]
    %s2665 = sshllo.u32 0, 2
    %s2666 = smul.addr 2, 272
    %s2667 = scalar_lea.vmem %s1, %s2666
    %2668 = vst [vmem:[%s2667] sm:%s2665] %v2664
    %s2669 = scalar_lea.vmem [#allocation2], 2184
    %v2670 = vld [vmem:[%s2669] sm:%s1033]
    %s2671 = sshllo.u32 0, 2
    %s2672 = smul.addr 2, 273
    %s2673 = scalar_lea.vmem %s1, %s2672
    %2674 = vst [vmem:[%s2673] sm:%s2671] %v2670
    %s2675 = scalar_lea.vmem [#allocation2], 2192
    %v2676 = vld [vmem:[%s2675] sm:%s1033]
    %s2677 = sshllo.u32 0, 2
    %s2678 = smul.addr 2, 274
    %s2679 = scalar_lea.vmem %s1, %s2678
    %2680 = vst [vmem:[%s2679] sm:%s2677] %v2676
    %s2681 = scalar_lea.vmem [#allocation2], 2200
    %v2682 = vld [vmem:[%s2681] sm:%s1033]
    %s2683 = sshllo.u32 0, 2
    %s2684 = smul.addr 2, 275
    %s2685 = scalar_lea.vmem %s1, %s2684
    %2686 = vst [vmem:[%s2685] sm:%s2683] %v2682
    %s2687 = scalar_lea.vmem [#allocation2], 2208
    %v2688 = vld [vmem:[%s2687] sm:%s1033]
    %s2689 = sshllo.u32 0, 2
    %s2690 = smul.addr 2, 276
    %s2691 = scalar_lea.vmem %s1, %s2690
    %2692 = vst [vmem:[%s2691] sm:%s2689] %v2688
    %s2693 = scalar_lea.vmem [#allocation2], 2216
    %v2694 = vld [vmem:[%s2693] sm:%s1033]
    %s2695 = sshllo.u32 0, 2
    %s2696 = smul.addr 2, 277
    %s2697 = scalar_lea.vmem %s1, %s2696
    %2698 = vst [vmem:[%s2697] sm:%s2695] %v2694
    %s2699 = scalar_lea.vmem [#allocation2], 2224
    %v2700 = vld [vmem:[%s2699] sm:%s1033]
    %s2701 = sshllo.u32 0, 2
    %s2702 = smul.addr 2, 278
    %s2703 = scalar_lea.vmem %s1, %s2702
    %2704 = vst [vmem:[%s2703] sm:%s2701] %v2700
    %s2705 = scalar_lea.vmem [#allocation2], 2232
    %v2706 = vld [vmem:[%s2705] sm:%s1033]
    %s2707 = sshllo.u32 0, 2
    %s2708 = smul.addr 2, 279
    %s2709 = scalar_lea.vmem %s1, %s2708
    %2710 = vst [vmem:[%s2709] sm:%s2707] %v2706
    %s2711 = scalar_lea.vmem [#allocation2], 2240
    %v2712 = vld [vmem:[%s2711] sm:%s1033]
    %s2713 = sshllo.u32 0, 2
    %s2714 = smul.addr 2, 280
    %s2715 = scalar_lea.vmem %s1, %s2714
    %2716 = vst [vmem:[%s2715] sm:%s2713] %v2712
    %s2717 = scalar_lea.vmem [#allocation2], 2248
    %v2718 = vld [vmem:[%s2717] sm:%s1033]
    %s2719 = sshllo.u32 0, 2
    %s2720 = smul.addr 2, 281
    %s2721 = scalar_lea.vmem %s1, %s2720
    %2722 = vst [vmem:[%s2721] sm:%s2719] %v2718
    %s2723 = scalar_lea.vmem [#allocation2], 2256
    %v2724 = vld [vmem:[%s2723] sm:%s1033]
    %s2725 = sshllo.u32 0, 2
    %s2726 = smul.addr 2, 282
    %s2727 = scalar_lea.vmem %s1, %s2726
    %2728 = vst [vmem:[%s2727] sm:%s2725] %v2724
    %s2729 = scalar_lea.vmem [#allocation2], 2264
    %v2730 = vld [vmem:[%s2729] sm:%s1033]
    %s2731 = sshllo.u32 0, 2
    %s2732 = smul.addr 2, 283
    %s2733 = scalar_lea.vmem %s1, %s2732
    %2734 = vst [vmem:[%s2733] sm:%s2731] %v2730
    %s2735 = scalar_lea.vmem [#allocation2], 2272
    %v2736 = vld [vmem:[%s2735] sm:%s1033]
    %s2737 = sshllo.u32 0, 2
    %s2738 = smul.addr 2, 284
    %s2739 = scalar_lea.vmem %s1, %s2738
    %2740 = vst [vmem:[%s2739] sm:%s2737] %v2736
    %s2741 = scalar_lea.vmem [#allocation2], 2280
    %v2742 = vld [vmem:[%s2741] sm:%s1033]
    %s2743 = sshllo.u32 0, 2
    %s2744 = smul.addr 2, 285
    %s2745 = scalar_lea.vmem %s1, %s2744
    %2746 = vst [vmem:[%s2745] sm:%s2743] %v2742
    %s2747 = scalar_lea.vmem [#allocation2], 2288
    %v2748 = vld [vmem:[%s2747] sm:%s1033]
    %s2749 = sshllo.u32 0, 2
    %s2750 = smul.addr 2, 286
    %s2751 = scalar_lea.vmem %s1, %s2750
    %2752 = vst [vmem:[%s2751] sm:%s2749] %v2748
    %s2753 = scalar_lea.vmem [#allocation2], 2296
    %v2754 = vld [vmem:[%s2753] sm:%s1033]
    %s2755 = sshllo.u32 0, 2
    %s2756 = smul.addr 2, 287
    %s2757 = scalar_lea.vmem %s1, %s2756
    %2758 = vst [vmem:[%s2757] sm:%s2755] %v2754
    %s2759 = scalar_lea.vmem [#allocation2], 2304
    %v2760 = vld [vmem:[%s2759] sm:%s1033]
    %s2761 = sshllo.u32 0, 2
    %s2762 = smul.addr 2, 288
    %s2763 = scalar_lea.vmem %s1, %s2762
    %2764 = vst [vmem:[%s2763] sm:%s2761] %v2760
    %s2765 = scalar_lea.vmem [#allocation2], 2312
    %v2766 = vld [vmem:[%s2765] sm:%s1033]
    %s2767 = sshllo.u32 0, 2
    %s2768 = smul.addr 2, 289
    %s2769 = scalar_lea.vmem %s1, %s2768
    %2770 = vst [vmem:[%s2769] sm:%s2767] %v2766
    %s2771 = scalar_lea.vmem [#allocation2], 2320
    %v2772 = vld [vmem:[%s2771] sm:%s1033]
    %s2773 = sshllo.u32 0, 2
    %s2774 = smul.addr 2, 290
    %s2775 = scalar_lea.vmem %s1, %s2774
    %2776 = vst [vmem:[%s2775] sm:%s2773] %v2772
    %s2777 = scalar_lea.vmem [#allocation2], 2328
    %v2778 = vld [vmem:[%s2777] sm:%s1033]
    %s2779 = sshllo.u32 0, 2
    %s2780 = smul.addr 2, 291
    %s2781 = scalar_lea.vmem %s1, %s2780
    %2782 = vst [vmem:[%s2781] sm:%s2779] %v2778
    %s2783 = scalar_lea.vmem [#allocation2], 2336
    %v2784 = vld [vmem:[%s2783] sm:%s1033]
    %s2785 = sshllo.u32 0, 2
    %s2786 = smul.addr 2, 292
    %s2787 = scalar_lea.vmem %s1, %s2786
    %2788 = vst [vmem:[%s2787] sm:%s2785] %v2784
    %s2789 = scalar_lea.vmem [#allocation2], 2344
    %v2790 = vld [vmem:[%s2789] sm:%s1033]
    %s2791 = sshllo.u32 0, 2
    %s2792 = smul.addr 2, 293
    %s2793 = scalar_lea.vmem %s1, %s2792
    %2794 = vst [vmem:[%s2793] sm:%s2791] %v2790
    %s2795 = scalar_lea.vmem [#allocation2], 2352
    %v2796 = vld [vmem:[%s2795] sm:%s1033]
    %s2797 = sshllo.u32 0, 2
    %s2798 = smul.addr 2, 294
    %s2799 = scalar_lea.vmem %s1, %s2798
    %2800 = vst [vmem:[%s2799] sm:%s2797] %v2796
    %s2801 = scalar_lea.vmem [#allocation2], 2360
    %v2802 = vld [vmem:[%s2801] sm:%s1033]
    %s2803 = sshllo.u32 0, 2
    %s2804 = smul.addr 2, 295
    %s2805 = scalar_lea.vmem %s1, %s2804
    %2806 = vst [vmem:[%s2805] sm:%s2803] %v2802
    %s2807 = scalar_lea.vmem [#allocation2], 2368
    %v2808 = vld [vmem:[%s2807] sm:%s1033]
    %s2809 = sshllo.u32 0, 2
    %s2810 = smul.addr 2, 296
    %s2811 = scalar_lea.vmem %s1, %s2810
    %2812 = vst [vmem:[%s2811] sm:%s2809] %v2808
    %s2813 = scalar_lea.vmem [#allocation2], 2376
    %v2814 = vld [vmem:[%s2813] sm:%s1033]
    %s2815 = sshllo.u32 0, 2
    %s2816 = smul.addr 2, 297
    %s2817 = scalar_lea.vmem %s1, %s2816
    %2818 = vst [vmem:[%s2817] sm:%s2815] %v2814
    %s2819 = scalar_lea.vmem [#allocation2], 2384
    %v2820 = vld [vmem:[%s2819] sm:%s1033]
    %s2821 = sshllo.u32 0, 2
    %s2822 = smul.addr 2, 298
    %s2823 = scalar_lea.vmem %s1, %s2822
    %2824 = vst [vmem:[%s2823] sm:%s2821] %v2820
    %s2825 = scalar_lea.vmem [#allocation2], 2392
    %v2826 = vld [vmem:[%s2825] sm:%s1033]
    %s2827 = sshllo.u32 0, 2
    %s2828 = smul.addr 2, 299
    %s2829 = scalar_lea.vmem %s1, %s2828
    %2830 = vst [vmem:[%s2829] sm:%s2827] %v2826
    %s2831 = scalar_lea.vmem [#allocation2], 2400
    %v2832 = vld [vmem:[%s2831] sm:%s1033]
    %s2833 = sshllo.u32 0, 2
    %s2834 = smul.addr 2, 300
    %s2835 = scalar_lea.vmem %s1, %s2834
    %2836 = vst [vmem:[%s2835] sm:%s2833] %v2832
    %s2837 = scalar_lea.vmem [#allocation2], 2408
    %v2838 = vld [vmem:[%s2837] sm:%s1033]
    %s2839 = sshllo.u32 0, 2
    %s2840 = smul.addr 2, 301
    %s2841 = scalar_lea.vmem %s1, %s2840
    %2842 = vst [vmem:[%s2841] sm:%s2839] %v2838
    %s2843 = scalar_lea.vmem [#allocation2], 2416
    %v2844 = vld [vmem:[%s2843] sm:%s1033]
    %s2845 = sshllo.u32 0, 2
    %s2846 = smul.addr 2, 302
    %s2847 = scalar_lea.vmem %s1, %s2846
    %2848 = vst [vmem:[%s2847] sm:%s2845] %v2844
    %s2849 = scalar_lea.vmem [#allocation2], 2424
    %v2850 = vld [vmem:[%s2849] sm:%s1033]
    %s2851 = sshllo.u32 0, 2
    %s2852 = smul.addr 2, 303
    %s2853 = scalar_lea.vmem %s1, %s2852
    %2854 = vst [vmem:[%s2853] sm:%s2851] %v2850
    %s2855 = scalar_lea.vmem [#allocation2], 2432
    %v2856 = vld [vmem:[%s2855] sm:%s1033]
    %s2857 = sshllo.u32 0, 2
    %s2858 = smul.addr 2, 304
    %s2859 = scalar_lea.vmem %s1, %s2858
    %2860 = vst [vmem:[%s2859] sm:%s2857] %v2856
    %s2861 = scalar_lea.vmem [#allocation2], 2440
    %v2862 = vld [vmem:[%s2861] sm:%s1033]
    %s2863 = sshllo.u32 0, 2
    %s2864 = smul.addr 2, 305
    %s2865 = scalar_lea.vmem %s1, %s2864
    %2866 = vst [vmem:[%s2865] sm:%s2863] %v2862
    %s2867 = scalar_lea.vmem [#allocation2], 2448
    %v2868 = vld [vmem:[%s2867] sm:%s1033]
    %s2869 = sshllo.u32 0, 2
    %s2870 = smul.addr 2, 306
    %s2871 = scalar_lea.vmem %s1, %s2870
    %2872 = vst [vmem:[%s2871] sm:%s2869] %v2868
    %s2873 = scalar_lea.vmem [#allocation2], 2456
    %v2874 = vld [vmem:[%s2873] sm:%s1033]
    %s2875 = sshllo.u32 0, 2
    %s2876 = smul.addr 2, 307
    %s2877 = scalar_lea.vmem %s1, %s2876
    %2878 = vst [vmem:[%s2877] sm:%s2875] %v2874
    %s2879 = scalar_lea.vmem [#allocation2], 2464
    %v2880 = vld [vmem:[%s2879] sm:%s1033]
    %s2881 = sshllo.u32 0, 2
    %s2882 = smul.addr 2, 308
    %s2883 = scalar_lea.vmem %s1, %s2882
    %2884 = vst [vmem:[%s2883] sm:%s2881] %v2880
    %s2885 = scalar_lea.vmem [#allocation2], 2472
    %v2886 = vld [vmem:[%s2885] sm:%s1033]
    %s2887 = sshllo.u32 0, 2
    %s2888 = smul.addr 2, 309
    %s2889 = scalar_lea.vmem %s1, %s2888
    %2890 = vst [vmem:[%s2889] sm:%s2887] %v2886
    %s2891 = scalar_lea.vmem [#allocation2], 2480
    %v2892 = vld [vmem:[%s2891] sm:%s1033]
    %s2893 = sshllo.u32 0, 2
    %s2894 = smul.addr 2, 310
    %s2895 = scalar_lea.vmem %s1, %s2894
    %2896 = vst [vmem:[%s2895] sm:%s2893] %v2892
    %s2897 = scalar_lea.vmem [#allocation2], 2488
    %v2898 = vld [vmem:[%s2897] sm:%s1033]
    %s2899 = sshllo.u32 0, 2
    %s2900 = smul.addr 2, 311
    %s2901 = scalar_lea.vmem %s1, %s2900
    %2902 = vst [vmem:[%s2901] sm:%s2899] %v2898
    %s2903 = scalar_lea.vmem [#allocation2], 2496
    %v2904 = vld [vmem:[%s2903] sm:%s1033]
    %s2905 = sshllo.u32 0, 2
    %s2906 = smul.addr 2, 312
    %s2907 = scalar_lea.vmem %s1, %s2906
    %2908 = vst [vmem:[%s2907] sm:%s2905] %v2904
    %s2909 = scalar_lea.vmem [#allocation2], 2504
    %v2910 = vld [vmem:[%s2909] sm:%s1033]
    %s2911 = sshllo.u32 0, 2
    %s2912 = smul.addr 2, 313
    %s2913 = scalar_lea.vmem %s1, %s2912
    %2914 = vst [vmem:[%s2913] sm:%s2911] %v2910
    %s2915 = scalar_lea.vmem [#allocation2], 2512
    %v2916 = vld [vmem:[%s2915] sm:%s1033]
    %s2917 = sshllo.u32 0, 2
    %s2918 = smul.addr 2, 314
    %s2919 = scalar_lea.vmem %s1, %s2918
    %2920 = vst [vmem:[%s2919] sm:%s2917] %v2916
    %s2921 = scalar_lea.vmem [#allocation2], 2520
    %v2922 = vld [vmem:[%s2921] sm:%s1033]
    %s2923 = sshllo.u32 0, 2
    %s2924 = smul.addr 2, 315
    %s2925 = scalar_lea.vmem %s1, %s2924
    %2926 = vst [vmem:[%s2925] sm:%s2923] %v2922
    %s2927 = scalar_lea.vmem [#allocation2], 2528
    %v2928 = vld [vmem:[%s2927] sm:%s1033]
    %s2929 = sshllo.u32 0, 2
    %s2930 = smul.addr 2, 316
    %s2931 = scalar_lea.vmem %s1, %s2930
    %2932 = vst [vmem:[%s2931] sm:%s2929] %v2928
    %s2933 = scalar_lea.vmem [#allocation2], 2536
    %v2934 = vld [vmem:[%s2933] sm:%s1033]
    %s2935 = sshllo.u32 0, 2
    %s2936 = smul.addr 2, 317
    %s2937 = scalar_lea.vmem %s1, %s2936
    %2938 = vst [vmem:[%s2937] sm:%s2935] %v2934
    %s2939 = scalar_lea.vmem [#allocation2], 2544
    %v2940 = vld [vmem:[%s2939] sm:%s1033]
    %s2941 = sshllo.u32 0, 2
    %s2942 = smul.addr 2, 318
    %s2943 = scalar_lea.vmem %s1, %s2942
    %2944 = vst [vmem:[%s2943] sm:%s2941] %v2940
    %s2945 = scalar_lea.vmem [#allocation2], 2552
    %v2946 = vld [vmem:[%s2945] sm:%s1033]
    %s2947 = sshllo.u32 0, 2
    %s2948 = smul.addr 2, 319
    %s2949 = scalar_lea.vmem %s1, %s2948
    %2950 = vst [vmem:[%s2949] sm:%s2947] %v2946
    %s2951 = scalar_lea.vmem [#allocation2], 2560
    %v2952 = vld [vmem:[%s2951] sm:%s1033]
    %s2953 = sshllo.u32 0, 2
    %s2954 = smul.addr 2, 320
    %s2955 = scalar_lea.vmem %s1, %s2954
    %2956 = vst [vmem:[%s2955] sm:%s2953] %v2952
    %s2957 = scalar_lea.vmem [#allocation2], 2568
    %v2958 = vld [vmem:[%s2957] sm:%s1033]
    %s2959 = sshllo.u32 0, 2
    %s2960 = smul.addr 2, 321
    %s2961 = scalar_lea.vmem %s1, %s2960
    %2962 = vst [vmem:[%s2961] sm:%s2959] %v2958
    %s2963 = scalar_lea.vmem [#allocation2], 2576
    %v2964 = vld [vmem:[%s2963] sm:%s1033]
    %s2965 = sshllo.u32 0, 2
    %s2966 = smul.addr 2, 322
    %s2967 = scalar_lea.vmem %s1, %s2966
    %2968 = vst [vmem:[%s2967] sm:%s2965] %v2964
    %s2969 = scalar_lea.vmem [#allocation2], 2584
    %v2970 = vld [vmem:[%s2969] sm:%s1033]
    %s2971 = sshllo.u32 0, 2
    %s2972 = smul.addr 2, 323
    %s2973 = scalar_lea.vmem %s1, %s2972
    %2974 = vst [vmem:[%s2973] sm:%s2971] %v2970
    %s2975 = scalar_lea.vmem [#allocation2], 2592
    %v2976 = vld [vmem:[%s2975] sm:%s1033]
    %s2977 = sshllo.u32 0, 2
    %s2978 = smul.addr 2, 324
    %s2979 = scalar_lea.vmem %s1, %s2978
    %2980 = vst [vmem:[%s2979] sm:%s2977] %v2976
    %s2981 = scalar_lea.vmem [#allocation2], 2600
    %v2982 = vld [vmem:[%s2981] sm:%s1033]
    %s2983 = sshllo.u32 0, 2
    %s2984 = smul.addr 2, 325
    %s2985 = scalar_lea.vmem %s1, %s2984
    %2986 = vst [vmem:[%s2985] sm:%s2983] %v2982
    %s2987 = scalar_lea.vmem [#allocation2], 2608
    %v2988 = vld [vmem:[%s2987] sm:%s1033]
    %s2989 = sshllo.u32 0, 2
    %s2990 = smul.addr 2, 326
    %s2991 = scalar_lea.vmem %s1, %s2990
    %2992 = vst [vmem:[%s2991] sm:%s2989] %v2988
    %s2993 = scalar_lea.vmem [#allocation2], 2616
    %v2994 = vld [vmem:[%s2993] sm:%s1033]
    %s2995 = sshllo.u32 0, 2
    %s2996 = smul.addr 2, 327
    %s2997 = scalar_lea.vmem %s1, %s2996
    %2998 = vst [vmem:[%s2997] sm:%s2995] %v2994
    %s2999 = scalar_lea.vmem [#allocation2], 2624
    %v3000 = vld [vmem:[%s2999] sm:%s1033]
    %s3001 = sshllo.u32 0, 2
    %s3002 = smul.addr 2, 328
    %s3003 = scalar_lea.vmem %s1, %s3002
    %3004 = vst [vmem:[%s3003] sm:%s3001] %v3000
    %s3005 = scalar_lea.vmem [#allocation2], 2632
    %v3006 = vld [vmem:[%s3005] sm:%s1033]
    %s3007 = sshllo.u32 0, 2
    %s3008 = smul.addr 2, 329
    %s3009 = scalar_lea.vmem %s1, %s3008
    %3010 = vst [vmem:[%s3009] sm:%s3007] %v3006
    %s3011 = scalar_lea.vmem [#allocation2], 2640
    %v3012 = vld [vmem:[%s3011] sm:%s1033]
    %s3013 = sshllo.u32 0, 2
    %s3014 = smul.addr 2, 330
    %s3015 = scalar_lea.vmem %s1, %s3014
    %3016 = vst [vmem:[%s3015] sm:%s3013] %v3012
    %s3017 = scalar_lea.vmem [#allocation2], 2648
    %v3018 = vld [vmem:[%s3017] sm:%s1033]
    %s3019 = sshllo.u32 0, 2
    %s3020 = smul.addr 2, 331
    %s3021 = scalar_lea.vmem %s1, %s3020
    %3022 = vst [vmem:[%s3021] sm:%s3019] %v3018
    %s3023 = scalar_lea.vmem [#allocation2], 2656
    %v3024 = vld [vmem:[%s3023] sm:%s1033]
    %s3025 = sshllo.u32 0, 2
    %s3026 = smul.addr 2, 332
    %s3027 = scalar_lea.vmem %s1, %s3026
    %3028 = vst [vmem:[%s3027] sm:%s3025] %v3024
    %s3029 = scalar_lea.vmem [#allocation2], 2664
    %v3030 = vld [vmem:[%s3029] sm:%s1033]
    %s3031 = sshllo.u32 0, 2
    %s3032 = smul.addr 2, 333
    %s3033 = scalar_lea.vmem %s1, %s3032
    %3034 = vst [vmem:[%s3033] sm:%s3031] %v3030
    %s3035 = scalar_lea.vmem [#allocation2], 2672
    %v3036 = vld [vmem:[%s3035] sm:%s1033]
    %s3037 = sshllo.u32 0, 2
    %s3038 = smul.addr 2, 334
    %s3039 = scalar_lea.vmem %s1, %s3038
    %3040 = vst [vmem:[%s3039] sm:%s3037] %v3036
    %s3041 = scalar_lea.vmem [#allocation2], 2680
    %v3042 = vld [vmem:[%s3041] sm:%s1033]
    %s3043 = sshllo.u32 0, 2
    %s3044 = smul.addr 2, 335
    %s3045 = scalar_lea.vmem %s1, %s3044
    %3046 = vst [vmem:[%s3045] sm:%s3043] %v3042
    %s3047 = scalar_lea.vmem [#allocation2], 2688
    %v3048 = vld [vmem:[%s3047] sm:%s1033]
    %s3049 = sshllo.u32 0, 2
    %s3050 = smul.addr 2, 336
    %s3051 = scalar_lea.vmem %s1, %s3050
    %3052 = vst [vmem:[%s3051] sm:%s3049] %v3048
    %s3053 = scalar_lea.vmem [#allocation2], 2696
    %v3054 = vld [vmem:[%s3053] sm:%s1033]
    %s3055 = sshllo.u32 0, 2
    %s3056 = smul.addr 2, 337
    %s3057 = scalar_lea.vmem %s1, %s3056
    %3058 = vst [vmem:[%s3057] sm:%s3055] %v3054
    %s3059 = scalar_lea.vmem [#allocation2], 2704
    %v3060 = vld [vmem:[%s3059] sm:%s1033]
    %s3061 = sshllo.u32 0, 2
    %s3062 = smul.addr 2, 338
    %s3063 = scalar_lea.vmem %s1, %s3062
    %3064 = vst [vmem:[%s3063] sm:%s3061] %v3060
    %s3065 = scalar_lea.vmem [#allocation2], 2712
    %v3066 = vld [vmem:[%s3065] sm:%s1033]
    %s3067 = sshllo.u32 0, 2
    %s3068 = smul.addr 2, 339
    %s3069 = scalar_lea.vmem %s1, %s3068
    %3070 = vst [vmem:[%s3069] sm:%s3067] %v3066
    %s3071 = scalar_lea.vmem [#allocation2], 2720
    %v3072 = vld [vmem:[%s3071] sm:%s1033]
    %s3073 = sshllo.u32 0, 2
    %s3074 = smul.addr 2, 340
    %s3075 = scalar_lea.vmem %s1, %s3074
    %3076 = vst [vmem:[%s3075] sm:%s3073] %v3072
    %s3077 = scalar_lea.vmem [#allocation2], 2728
    %v3078 = vld [vmem:[%s3077] sm:%s1033]
    %s3079 = sshllo.u32 0, 2
    %s3080 = smul.addr 2, 341
    %s3081 = scalar_lea.vmem %s1, %s3080
    %3082 = vst [vmem:[%s3081] sm:%s3079] %v3078
    %s3083 = scalar_lea.vmem [#allocation2], 2736
    %v3084 = vld [vmem:[%s3083] sm:%s1033]
    %s3085 = sshllo.u32 0, 2
    %s3086 = smul.addr 2, 342
    %s3087 = scalar_lea.vmem %s1, %s3086
    %3088 = vst [vmem:[%s3087] sm:%s3085] %v3084
    %s3089 = scalar_lea.vmem [#allocation2], 2744
    %v3090 = vld [vmem:[%s3089] sm:%s1033]
    %s3091 = sshllo.u32 0, 2
    %s3092 = smul.addr 2, 343
    %s3093 = scalar_lea.vmem %s1, %s3092
    %3094 = vst [vmem:[%s3093] sm:%s3091] %v3090
    %s3095 = scalar_lea.vmem [#allocation2], 2752
    %v3096 = vld [vmem:[%s3095] sm:%s1033]
    %s3097 = sshllo.u32 0, 2
    %s3098 = smul.addr 2, 344
    %s3099 = scalar_lea.vmem %s1, %s3098
    %3100 = vst [vmem:[%s3099] sm:%s3097] %v3096
    %s3101 = scalar_lea.vmem [#allocation2], 2760
    %v3102 = vld [vmem:[%s3101] sm:%s1033]
    %s3103 = sshllo.u32 0, 2
    %s3104 = smul.addr 2, 345
    %s3105 = scalar_lea.vmem %s1, %s3104
    %3106 = vst [vmem:[%s3105] sm:%s3103] %v3102
    %s3107 = scalar_lea.vmem [#allocation2], 2768
    %v3108 = vld [vmem:[%s3107] sm:%s1033]
    %s3109 = sshllo.u32 0, 2
    %s3110 = smul.addr 2, 346
    %s3111 = scalar_lea.vmem %s1, %s3110
    %3112 = vst [vmem:[%s3111] sm:%s3109] %v3108
    %s3113 = scalar_lea.vmem [#allocation2], 2776
    %v3114 = vld [vmem:[%s3113] sm:%s1033]
    %s3115 = sshllo.u32 0, 2
    %s3116 = smul.addr 2, 347
    %s3117 = scalar_lea.vmem %s1, %s3116
    %3118 = vst [vmem:[%s3117] sm:%s3115] %v3114
    %s3119 = scalar_lea.vmem [#allocation2], 2784
    %v3120 = vld [vmem:[%s3119] sm:%s1033]
    %s3121 = sshllo.u32 0, 2
    %s3122 = smul.addr 2, 348
    %s3123 = scalar_lea.vmem %s1, %s3122
    %3124 = vst [vmem:[%s3123] sm:%s3121] %v3120
    %s3125 = scalar_lea.vmem [#allocation2], 2792
    %v3126 = vld [vmem:[%s3125] sm:%s1033]
    %s3127 = sshllo.u32 0, 2
    %s3128 = smul.addr 2, 349
    %s3129 = scalar_lea.vmem %s1, %s3128
    %3130 = vst [vmem:[%s3129] sm:%s3127] %v3126
    %s3131 = scalar_lea.vmem [#allocation2], 2800
    %v3132 = vld [vmem:[%s3131] sm:%s1033]
    %s3133 = sshllo.u32 0, 2
    %s3134 = smul.addr 2, 350
    %s3135 = scalar_lea.vmem %s1, %s3134
    %3136 = vst [vmem:[%s3135] sm:%s3133] %v3132
    %s3137 = scalar_lea.vmem [#allocation2], 2808
    %v3138 = vld [vmem:[%s3137] sm:%s1033]
    %s3139 = sshllo.u32 0, 2
    %s3140 = smul.addr 2, 351
    %s3141 = scalar_lea.vmem %s1, %s3140
    %3142 = vst [vmem:[%s3141] sm:%s3139] %v3138
    %s3143 = scalar_lea.vmem [#allocation2], 2816
    %v3144 = vld [vmem:[%s3143] sm:%s1033]
    %s3145 = sshllo.u32 0, 2
    %s3146 = smul.addr 2, 352
    %s3147 = scalar_lea.vmem %s1, %s3146
    %3148 = vst [vmem:[%s3147] sm:%s3145] %v3144
    %s3149 = scalar_lea.vmem [#allocation2], 2824
    %v3150 = vld [vmem:[%s3149] sm:%s1033]
    %s3151 = sshllo.u32 0, 2
    %s3152 = smul.addr 2, 353
    %s3153 = scalar_lea.vmem %s1, %s3152
    %3154 = vst [vmem:[%s3153] sm:%s3151] %v3150
    %s3155 = scalar_lea.vmem [#allocation2], 2832
    %v3156 = vld [vmem:[%s3155] sm:%s1033]
    %s3157 = sshllo.u32 0, 2
    %s3158 = smul.addr 2, 354
    %s3159 = scalar_lea.vmem %s1, %s3158
    %3160 = vst [vmem:[%s3159] sm:%s3157] %v3156
    %s3161 = scalar_lea.vmem [#allocation2], 2840
    %v3162 = vld [vmem:[%s3161] sm:%s1033]
    %s3163 = sshllo.u32 0, 2
    %s3164 = smul.addr 2, 355
    %s3165 = scalar_lea.vmem %s1, %s3164
    %3166 = vst [vmem:[%s3165] sm:%s3163] %v3162
    %s3167 = scalar_lea.vmem [#allocation2], 2848
    %v3168 = vld [vmem:[%s3167] sm:%s1033]
    %s3169 = sshllo.u32 0, 2
    %s3170 = smul.addr 2, 356
    %s3171 = scalar_lea.vmem %s1, %s3170
    %3172 = vst [vmem:[%s3171] sm:%s3169] %v3168
    %s3173 = scalar_lea.vmem [#allocation2], 2856
    %v3174 = vld [vmem:[%s3173] sm:%s1033]
    %s3175 = sshllo.u32 0, 2
    %s3176 = smul.addr 2, 357
    %s3177 = scalar_lea.vmem %s1, %s3176
    %3178 = vst [vmem:[%s3177] sm:%s3175] %v3174
    %s3179 = scalar_lea.vmem [#allocation2], 2864
    %v3180 = vld [vmem:[%s3179] sm:%s1033]
    %s3181 = sshllo.u32 0, 2
    %s3182 = smul.addr 2, 358
    %s3183 = scalar_lea.vmem %s1, %s3182
    %3184 = vst [vmem:[%s3183] sm:%s3181] %v3180
    %s3185 = scalar_lea.vmem [#allocation2], 2872
    %v3186 = vld [vmem:[%s3185] sm:%s1033]
    %s3187 = sshllo.u32 0, 2
    %s3188 = smul.addr 2, 359
    %s3189 = scalar_lea.vmem %s1, %s3188
    %3190 = vst [vmem:[%s3189] sm:%s3187] %v3186
    %s3191 = scalar_lea.vmem [#allocation2], 2880
    %v3192 = vld [vmem:[%s3191] sm:%s1033]
    %s3193 = sshllo.u32 0, 2
    %s3194 = smul.addr 2, 360
    %s3195 = scalar_lea.vmem %s1, %s3194
    %3196 = vst [vmem:[%s3195] sm:%s3193] %v3192
    %s3197 = scalar_lea.vmem [#allocation2], 2888
    %v3198 = vld [vmem:[%s3197] sm:%s1033]
    %s3199 = sshllo.u32 0, 2
    %s3200 = smul.addr 2, 361
    %s3201 = scalar_lea.vmem %s1, %s3200
    %3202 = vst [vmem:[%s3201] sm:%s3199] %v3198
    %s3203 = scalar_lea.vmem [#allocation2], 2896
    %v3204 = vld [vmem:[%s3203] sm:%s1033]
    %s3205 = sshllo.u32 0, 2
    %s3206 = smul.addr 2, 362
    %s3207 = scalar_lea.vmem %s1, %s3206
    %3208 = vst [vmem:[%s3207] sm:%s3205] %v3204
    %s3209 = scalar_lea.vmem [#allocation2], 2904
    %v3210 = vld [vmem:[%s3209] sm:%s1033]
    %s3211 = sshllo.u32 0, 2
    %s3212 = smul.addr 2, 363
    %s3213 = scalar_lea.vmem %s1, %s3212
    %3214 = vst [vmem:[%s3213] sm:%s3211] %v3210
    %s3215 = scalar_lea.vmem [#allocation2], 2912
    %v3216 = vld [vmem:[%s3215] sm:%s1033]
    %s3217 = sshllo.u32 0, 2
    %s3218 = smul.addr 2, 364
    %s3219 = scalar_lea.vmem %s1, %s3218
    %3220 = vst [vmem:[%s3219] sm:%s3217] %v3216
    %s3221 = scalar_lea.vmem [#allocation2], 2920
    %v3222 = vld [vmem:[%s3221] sm:%s1033]
    %s3223 = sshllo.u32 0, 2
    %s3224 = smul.addr 2, 365
    %s3225 = scalar_lea.vmem %s1, %s3224
    %3226 = vst [vmem:[%s3225] sm:%s3223] %v3222
    %s3227 = scalar_lea.vmem [#allocation2], 2928
    %v3228 = vld [vmem:[%s3227] sm:%s1033]
    %s3229 = sshllo.u32 0, 2
    %s3230 = smul.addr 2, 366
    %s3231 = scalar_lea.vmem %s1, %s3230
    %3232 = vst [vmem:[%s3231] sm:%s3229] %v3228
    %s3233 = scalar_lea.vmem [#allocation2], 2936
    %v3234 = vld [vmem:[%s3233] sm:%s1033]
    %s3235 = sshllo.u32 0, 2
    %s3236 = smul.addr 2, 367
    %s3237 = scalar_lea.vmem %s1, %s3236
    %3238 = vst [vmem:[%s3237] sm:%s3235] %v3234
    %s3239 = scalar_lea.vmem [#allocation2], 2944
    %v3240 = vld [vmem:[%s3239] sm:%s1033]
    %s3241 = sshllo.u32 0, 2
    %s3242 = smul.addr 2, 368
    %s3243 = scalar_lea.vmem %s1, %s3242
    %3244 = vst [vmem:[%s3243] sm:%s3241] %v3240
    %s3245 = scalar_lea.vmem [#allocation2], 2952
    %v3246 = vld [vmem:[%s3245] sm:%s1033]
    %s3247 = sshllo.u32 0, 2
    %s3248 = smul.addr 2, 369
    %s3249 = scalar_lea.vmem %s1, %s3248
    %3250 = vst [vmem:[%s3249] sm:%s3247] %v3246
    %s3251 = scalar_lea.vmem [#allocation2], 2960
    %v3252 = vld [vmem:[%s3251] sm:%s1033]
    %s3253 = sshllo.u32 0, 2
    %s3254 = smul.addr 2, 370
    %s3255 = scalar_lea.vmem %s1, %s3254
    %3256 = vst [vmem:[%s3255] sm:%s3253] %v3252
    %s3257 = scalar_lea.vmem [#allocation2], 2968
    %v3258 = vld [vmem:[%s3257] sm:%s1033]
    %s3259 = sshllo.u32 0, 2
    %s3260 = smul.addr 2, 371
    %s3261 = scalar_lea.vmem %s1, %s3260
    %3262 = vst [vmem:[%s3261] sm:%s3259] %v3258
    %s3263 = scalar_lea.vmem [#allocation2], 2976
    %v3264 = vld [vmem:[%s3263] sm:%s1033]
    %s3265 = sshllo.u32 0, 2
    %s3266 = smul.addr 2, 372
    %s3267 = scalar_lea.vmem %s1, %s3266
    %3268 = vst [vmem:[%s3267] sm:%s3265] %v3264
    %s3269 = scalar_lea.vmem [#allocation2], 2984
    %v3270 = vld [vmem:[%s3269] sm:%s1033]
    %s3271 = sshllo.u32 0, 2
    %s3272 = smul.addr 2, 373
    %s3273 = scalar_lea.vmem %s1, %s3272
    %3274 = vst [vmem:[%s3273] sm:%s3271] %v3270
    %s3275 = scalar_lea.vmem [#allocation2], 2992
    %v3276 = vld [vmem:[%s3275] sm:%s1033]
    %s3277 = sshllo.u32 0, 2
    %s3278 = smul.addr 2, 374
    %s3279 = scalar_lea.vmem %s1, %s3278
    %3280 = vst [vmem:[%s3279] sm:%s3277] %v3276
    %s3281 = scalar_lea.vmem [#allocation2], 3000
    %v3282 = vld [vmem:[%s3281] sm:%s1033]
    %s3283 = sshllo.u32 0, 2
    %s3284 = smul.addr 2, 375
    %s3285 = scalar_lea.vmem %s1, %s3284
    %3286 = vst [vmem:[%s3285] sm:%s3283] %v3282
    %s3287 = scalar_lea.vmem [#allocation2], 3008
    %v3288 = vld [vmem:[%s3287] sm:%s1033]
    %s3289 = sshllo.u32 0, 2
    %s3290 = smul.addr 2, 376
    %s3291 = scalar_lea.vmem %s1, %s3290
    %3292 = vst [vmem:[%s3291] sm:%s3289] %v3288
    %s3293 = scalar_lea.vmem [#allocation2], 3016
    %v3294 = vld [vmem:[%s3293] sm:%s1033]
    %s3295 = sshllo.u32 0, 2
    %s3296 = smul.addr 2, 377
    %s3297 = scalar_lea.vmem %s1, %s3296
    %3298 = vst [vmem:[%s3297] sm:%s3295] %v3294
    %s3299 = scalar_lea.vmem [#allocation2], 3024
    %v3300 = vld [vmem:[%s3299] sm:%s1033]
    %s3301 = sshllo.u32 0, 2
    %s3302 = smul.addr 2, 378
    %s3303 = scalar_lea.vmem %s1, %s3302
    %3304 = vst [vmem:[%s3303] sm:%s3301] %v3300
    %s3305 = scalar_lea.vmem [#allocation2], 3032
    %v3306 = vld [vmem:[%s3305] sm:%s1033]
    %s3307 = sshllo.u32 0, 2
    %s3308 = smul.addr 2, 379
    %s3309 = scalar_lea.vmem %s1, %s3308
    %3310 = vst [vmem:[%s3309] sm:%s3307] %v3306
    %s3311 = scalar_lea.vmem [#allocation2], 3040
    %v3312 = vld [vmem:[%s3311] sm:%s1033]
    %s3313 = sshllo.u32 0, 2
    %s3314 = smul.addr 2, 380
    %s3315 = scalar_lea.vmem %s1, %s3314
    %3316 = vst [vmem:[%s3315] sm:%s3313] %v3312
    %s3317 = scalar_lea.vmem [#allocation2], 3048
    %v3318 = vld [vmem:[%s3317] sm:%s1033]
    %s3319 = sshllo.u32 0, 2
    %s3320 = smul.addr 2, 381
    %s3321 = scalar_lea.vmem %s1, %s3320
    %3322 = vst [vmem:[%s3321] sm:%s3319] %v3318
    %s3323 = scalar_lea.vmem [#allocation2], 3056
    %v3324 = vld [vmem:[%s3323] sm:%s1033]
    %s3325 = sshllo.u32 0, 2
    %s3326 = smul.addr 2, 382
    %s3327 = scalar_lea.vmem %s1, %s3326
    %3328 = vst [vmem:[%s3327] sm:%s3325] %v3324
    %s3329 = scalar_lea.vmem [#allocation2], 3064
    %v3330 = vld [vmem:[%s3329] sm:%s1033]
    %s3331 = sshllo.u32 0, 2
    %s3332 = smul.addr 2, 383
    %s3333 = scalar_lea.vmem %s1, %s3332
    %3334 = vst [vmem:[%s3333] sm:%s3331] %v3330
    %s3335 = scalar_lea.vmem [#allocation2], 3072
    %v3336 = vld [vmem:[%s3335] sm:%s1033]
    %s3337 = sshllo.u32 0, 2
    %s3338 = smul.addr 2, 384
    %s3339 = scalar_lea.vmem %s1, %s3338
    %3340 = vst [vmem:[%s3339] sm:%s3337] %v3336
    %s3341 = scalar_lea.vmem [#allocation2], 3080
    %v3342 = vld [vmem:[%s3341] sm:%s1033]
    %s3343 = sshllo.u32 0, 2
    %s3344 = smul.addr 2, 385
    %s3345 = scalar_lea.vmem %s1, %s3344
    %3346 = vst [vmem:[%s3345] sm:%s3343] %v3342
    %s3347 = scalar_lea.vmem [#allocation2], 3088
    %v3348 = vld [vmem:[%s3347] sm:%s1033]
    %s3349 = sshllo.u32 0, 2
    %s3350 = smul.addr 2, 386
    %s3351 = scalar_lea.vmem %s1, %s3350
    %3352 = vst [vmem:[%s3351] sm:%s3349] %v3348
    %s3353 = scalar_lea.vmem [#allocation2], 3096
    %v3354 = vld [vmem:[%s3353] sm:%s1033]
    %s3355 = sshllo.u32 0, 2
    %s3356 = smul.addr 2, 387
    %s3357 = scalar_lea.vmem %s1, %s3356
    %3358 = vst [vmem:[%s3357] sm:%s3355] %v3354
    %s3359 = scalar_lea.vmem [#allocation2], 3104
    %v3360 = vld [vmem:[%s3359] sm:%s1033]
    %s3361 = sshllo.u32 0, 2
    %s3362 = smul.addr 2, 388
    %s3363 = scalar_lea.vmem %s1, %s3362
    %3364 = vst [vmem:[%s3363] sm:%s3361] %v3360
    %s3365 = scalar_lea.vmem [#allocation2], 3112
    %v3366 = vld [vmem:[%s3365] sm:%s1033]
    %s3367 = sshllo.u32 0, 2
    %s3368 = smul.addr 2, 389
    %s3369 = scalar_lea.vmem %s1, %s3368
    %3370 = vst [vmem:[%s3369] sm:%s3367] %v3366
    %s3371 = scalar_lea.vmem [#allocation2], 3120
    %v3372 = vld [vmem:[%s3371] sm:%s1033]
    %s3373 = sshllo.u32 0, 2
    %s3374 = smul.addr 2, 390
    %s3375 = scalar_lea.vmem %s1, %s3374
    %3376 = vst [vmem:[%s3375] sm:%s3373] %v3372
    %s3377 = scalar_lea.vmem [#allocation2], 3128
    %v3378 = vld [vmem:[%s3377] sm:%s1033]
    %s3379 = sshllo.u32 0, 2
    %s3380 = smul.addr 2, 391
    %s3381 = scalar_lea.vmem %s1, %s3380
    %3382 = vst [vmem:[%s3381] sm:%s3379] %v3378
    %s3383 = scalar_lea.vmem [#allocation2], 3136
    %v3384 = vld [vmem:[%s3383] sm:%s1033]
    %s3385 = sshllo.u32 0, 2
    %s3386 = smul.addr 2, 392
    %s3387 = scalar_lea.vmem %s1, %s3386
    %3388 = vst [vmem:[%s3387] sm:%s3385] %v3384
    %s3389 = scalar_lea.vmem [#allocation2], 3144
    %v3390 = vld [vmem:[%s3389] sm:%s1033]
    %s3391 = sshllo.u32 0, 2
    %s3392 = smul.addr 2, 393
    %s3393 = scalar_lea.vmem %s1, %s3392
    %3394 = vst [vmem:[%s3393] sm:%s3391] %v3390
    %s3395 = scalar_lea.vmem [#allocation2], 3152
    %v3396 = vld [vmem:[%s3395] sm:%s1033]
    %s3397 = sshllo.u32 0, 2
    %s3398 = smul.addr 2, 394
    %s3399 = scalar_lea.vmem %s1, %s3398
    %3400 = vst [vmem:[%s3399] sm:%s3397] %v3396
    %s3401 = scalar_lea.vmem [#allocation2], 3160
    %v3402 = vld [vmem:[%s3401] sm:%s1033]
    %s3403 = sshllo.u32 0, 2
    %s3404 = smul.addr 2, 395
    %s3405 = scalar_lea.vmem %s1, %s3404
    %3406 = vst [vmem:[%s3405] sm:%s3403] %v3402
    %s3407 = scalar_lea.vmem [#allocation2], 3168
    %v3408 = vld [vmem:[%s3407] sm:%s1033]
    %s3409 = sshllo.u32 0, 2
    %s3410 = smul.addr 2, 396
    %s3411 = scalar_lea.vmem %s1, %s3410
    %3412 = vst [vmem:[%s3411] sm:%s3409] %v3408
    %s3413 = scalar_lea.vmem [#allocation2], 3176
    %v3414 = vld [vmem:[%s3413] sm:%s1033]
    %s3415 = sshllo.u32 0, 2
    %s3416 = smul.addr 2, 397
    %s3417 = scalar_lea.vmem %s1, %s3416
    %3418 = vst [vmem:[%s3417] sm:%s3415] %v3414
    %s3419 = scalar_lea.vmem [#allocation2], 3184
    %v3420 = vld [vmem:[%s3419] sm:%s1033]
    %s3421 = sshllo.u32 0, 2
    %s3422 = smul.addr 2, 398
    %s3423 = scalar_lea.vmem %s1, %s3422
    %3424 = vst [vmem:[%s3423] sm:%s3421] %v3420
    %s3425 = scalar_lea.vmem [#allocation2], 3192
    %v3426 = vld [vmem:[%s3425] sm:%s1033]
    %s3427 = sshllo.u32 0, 2
    %s3428 = smul.addr 2, 399
    %s3429 = scalar_lea.vmem %s1, %s3428
    %3430 = vst [vmem:[%s3429] sm:%s3427] %v3426
    %s3431 = scalar_lea.vmem [#allocation2], 3200
    %v3432 = vld [vmem:[%s3431] sm:%s1033]
    %s3433 = sshllo.u32 0, 2
    %s3434 = smul.addr 2, 400
    %s3435 = scalar_lea.vmem %s1, %s3434
    %3436 = vst [vmem:[%s3435] sm:%s3433] %v3432
    %s3437 = scalar_lea.vmem [#allocation2], 3208
    %v3438 = vld [vmem:[%s3437] sm:%s1033]
    %s3439 = sshllo.u32 0, 2
    %s3440 = smul.addr 2, 401
    %s3441 = scalar_lea.vmem %s1, %s3440
    %3442 = vst [vmem:[%s3441] sm:%s3439] %v3438
    %s3443 = scalar_lea.vmem [#allocation2], 3216
    %v3444 = vld [vmem:[%s3443] sm:%s1033]
    %s3445 = sshllo.u32 0, 2
    %s3446 = smul.addr 2, 402
    %s3447 = scalar_lea.vmem %s1, %s3446
    %3448 = vst [vmem:[%s3447] sm:%s3445] %v3444
    %s3449 = scalar_lea.vmem [#allocation2], 3224
    %v3450 = vld [vmem:[%s3449] sm:%s1033]
    %s3451 = sshllo.u32 0, 2
    %s3452 = smul.addr 2, 403
    %s3453 = scalar_lea.vmem %s1, %s3452
    %3454 = vst [vmem:[%s3453] sm:%s3451] %v3450
    %s3455 = scalar_lea.vmem [#allocation2], 3232
    %v3456 = vld [vmem:[%s3455] sm:%s1033]
    %s3457 = sshllo.u32 0, 2
    %s3458 = smul.addr 2, 404
    %s3459 = scalar_lea.vmem %s1, %s3458
    %3460 = vst [vmem:[%s3459] sm:%s3457] %v3456
    %s3461 = scalar_lea.vmem [#allocation2], 3240
    %v3462 = vld [vmem:[%s3461] sm:%s1033]
    %s3463 = sshllo.u32 0, 2
    %s3464 = smul.addr 2, 405
    %s3465 = scalar_lea.vmem %s1, %s3464
    %3466 = vst [vmem:[%s3465] sm:%s3463] %v3462
    %s3467 = scalar_lea.vmem [#allocation2], 3248
    %v3468 = vld [vmem:[%s3467] sm:%s1033]
    %s3469 = sshllo.u32 0, 2
    %s3470 = smul.addr 2, 406
    %s3471 = scalar_lea.vmem %s1, %s3470
    %3472 = vst [vmem:[%s3471] sm:%s3469] %v3468
    %s3473 = scalar_lea.vmem [#allocation2], 3256
    %v3474 = vld [vmem:[%s3473] sm:%s1033]
    %s3475 = sshllo.u32 0, 2
    %s3476 = smul.addr 2, 407
    %s3477 = scalar_lea.vmem %s1, %s3476
    %3478 = vst [vmem:[%s3477] sm:%s3475] %v3474
    %s3479 = scalar_lea.vmem [#allocation2], 3264
    %v3480 = vld [vmem:[%s3479] sm:%s1033]
    %s3481 = sshllo.u32 0, 2
    %s3482 = smul.addr 2, 408
    %s3483 = scalar_lea.vmem %s1, %s3482
    %3484 = vst [vmem:[%s3483] sm:%s3481] %v3480
    %s3485 = scalar_lea.vmem [#allocation2], 3272
    %v3486 = vld [vmem:[%s3485] sm:%s1033]
    %s3487 = sshllo.u32 0, 2
    %s3488 = smul.addr 2, 409
    %s3489 = scalar_lea.vmem %s1, %s3488
    %3490 = vst [vmem:[%s3489] sm:%s3487] %v3486
    %s3491 = scalar_lea.vmem [#allocation2], 3280
    %v3492 = vld [vmem:[%s3491] sm:%s1033]
    %s3493 = sshllo.u32 0, 2
    %s3494 = smul.addr 2, 410
    %s3495 = scalar_lea.vmem %s1, %s3494
    %3496 = vst [vmem:[%s3495] sm:%s3493] %v3492
    %s3497 = scalar_lea.vmem [#allocation2], 3288
    %v3498 = vld [vmem:[%s3497] sm:%s1033]
    %s3499 = sshllo.u32 0, 2
    %s3500 = smul.addr 2, 411
    %s3501 = scalar_lea.vmem %s1, %s3500
    %3502 = vst [vmem:[%s3501] sm:%s3499] %v3498
    %s3503 = scalar_lea.vmem [#allocation2], 3296
    %v3504 = vld [vmem:[%s3503] sm:%s1033]
    %s3505 = sshllo.u32 0, 2
    %s3506 = smul.addr 2, 412
    %s3507 = scalar_lea.vmem %s1, %s3506
    %3508 = vst [vmem:[%s3507] sm:%s3505] %v3504
    %s3509 = scalar_lea.vmem [#allocation2], 3304
    %v3510 = vld [vmem:[%s3509] sm:%s1033]
    %s3511 = sshllo.u32 0, 2
    %s3512 = smul.addr 2, 413
    %s3513 = scalar_lea.vmem %s1, %s3512
    %3514 = vst [vmem:[%s3513] sm:%s3511] %v3510
    %s3515 = scalar_lea.vmem [#allocation2], 3312
    %v3516 = vld [vmem:[%s3515] sm:%s1033]
    %s3517 = sshllo.u32 0, 2
    %s3518 = smul.addr 2, 414
    %s3519 = scalar_lea.vmem %s1, %s3518
    %3520 = vst [vmem:[%s3519] sm:%s3517] %v3516
    %s3521 = scalar_lea.vmem [#allocation2], 3320
    %v3522 = vld [vmem:[%s3521] sm:%s1033]
    %s3523 = sshllo.u32 0, 2
    %s3524 = smul.addr 2, 415
    %s3525 = scalar_lea.vmem %s1, %s3524
    %3526 = vst [vmem:[%s3525] sm:%s3523] %v3522
    %s3527 = scalar_lea.vmem [#allocation2], 3328
    %v3528 = vld [vmem:[%s3527] sm:%s1033]
    %s3529 = sshllo.u32 0, 2
    %s3530 = smul.addr 2, 416
    %s3531 = scalar_lea.vmem %s1, %s3530
    %3532 = vst [vmem:[%s3531] sm:%s3529] %v3528
    %s3533 = scalar_lea.vmem [#allocation2], 3336
    %v3534 = vld [vmem:[%s3533] sm:%s1033]
    %s3535 = sshllo.u32 0, 2
    %s3536 = smul.addr 2, 417
    %s3537 = scalar_lea.vmem %s1, %s3536
    %3538 = vst [vmem:[%s3537] sm:%s3535] %v3534
    %s3539 = scalar_lea.vmem [#allocation2], 3344
    %v3540 = vld [vmem:[%s3539] sm:%s1033]
    %s3541 = sshllo.u32 0, 2
    %s3542 = smul.addr 2, 418
    %s3543 = scalar_lea.vmem %s1, %s3542
    %3544 = vst [vmem:[%s3543] sm:%s3541] %v3540
    %s3545 = scalar_lea.vmem [#allocation2], 3352
    %v3546 = vld [vmem:[%s3545] sm:%s1033]
    %s3547 = sshllo.u32 0, 2
    %s3548 = smul.addr 2, 419
    %s3549 = scalar_lea.vmem %s1, %s3548
    %3550 = vst [vmem:[%s3549] sm:%s3547] %v3546
    %s3551 = scalar_lea.vmem [#allocation2], 3360
    %v3552 = vld [vmem:[%s3551] sm:%s1033]
    %s3553 = sshllo.u32 0, 2
    %s3554 = smul.addr 2, 420
    %s3555 = scalar_lea.vmem %s1, %s3554
    %3556 = vst [vmem:[%s3555] sm:%s3553] %v3552
    %s3557 = scalar_lea.vmem [#allocation2], 3368
    %v3558 = vld [vmem:[%s3557] sm:%s1033]
    %s3559 = sshllo.u32 0, 2
    %s3560 = smul.addr 2, 421
    %s3561 = scalar_lea.vmem %s1, %s3560
    %3562 = vst [vmem:[%s3561] sm:%s3559] %v3558
    %s3563 = scalar_lea.vmem [#allocation2], 3376
    %v3564 = vld [vmem:[%s3563] sm:%s1033]
    %s3565 = sshllo.u32 0, 2
    %s3566 = smul.addr 2, 422
    %s3567 = scalar_lea.vmem %s1, %s3566
    %3568 = vst [vmem:[%s3567] sm:%s3565] %v3564
    %s3569 = scalar_lea.vmem [#allocation2], 3384
    %v3570 = vld [vmem:[%s3569] sm:%s1033]
    %s3571 = sshllo.u32 0, 2
    %s3572 = smul.addr 2, 423
    %s3573 = scalar_lea.vmem %s1, %s3572
    %3574 = vst [vmem:[%s3573] sm:%s3571] %v3570
    %s3575 = scalar_lea.vmem [#allocation2], 3392
    %v3576 = vld [vmem:[%s3575] sm:%s1033]
    %s3577 = sshllo.u32 0, 2
    %s3578 = smul.addr 2, 424
    %s3579 = scalar_lea.vmem %s1, %s3578
    %3580 = vst [vmem:[%s3579] sm:%s3577] %v3576
    %s3581 = scalar_lea.vmem [#allocation2], 3400
    %v3582 = vld [vmem:[%s3581] sm:%s1033]
    %s3583 = sshllo.u32 0, 2
    %s3584 = smul.addr 2, 425
    %s3585 = scalar_lea.vmem %s1, %s3584
    %3586 = vst [vmem:[%s3585] sm:%s3583] %v3582
    %s3587 = scalar_lea.vmem [#allocation2], 3408
    %v3588 = vld [vmem:[%s3587] sm:%s1033]
    %s3589 = sshllo.u32 0, 2
    %s3590 = smul.addr 2, 426
    %s3591 = scalar_lea.vmem %s1, %s3590
    %3592 = vst [vmem:[%s3591] sm:%s3589] %v3588
    %s3593 = scalar_lea.vmem [#allocation2], 3416
    %v3594 = vld [vmem:[%s3593] sm:%s1033]
    %s3595 = sshllo.u32 0, 2
    %s3596 = smul.addr 2, 427
    %s3597 = scalar_lea.vmem %s1, %s3596
    %3598 = vst [vmem:[%s3597] sm:%s3595] %v3594
    %s3599 = scalar_lea.vmem [#allocation2], 3424
    %v3600 = vld [vmem:[%s3599] sm:%s1033]
    %s3601 = sshllo.u32 0, 2
    %s3602 = smul.addr 2, 428
    %s3603 = scalar_lea.vmem %s1, %s3602
    %3604 = vst [vmem:[%s3603] sm:%s3601] %v3600
    %s3605 = scalar_lea.vmem [#allocation2], 3432
    %v3606 = vld [vmem:[%s3605] sm:%s1033]
    %s3607 = sshllo.u32 0, 2
    %s3608 = smul.addr 2, 429
    %s3609 = scalar_lea.vmem %s1, %s3608
    %3610 = vst [vmem:[%s3609] sm:%s3607] %v3606
    %s3611 = scalar_lea.vmem [#allocation2], 3440
    %v3612 = vld [vmem:[%s3611] sm:%s1033]
    %s3613 = sshllo.u32 0, 2
    %s3614 = smul.addr 2, 430
    %s3615 = scalar_lea.vmem %s1, %s3614
    %3616 = vst [vmem:[%s3615] sm:%s3613] %v3612
    %s3617 = scalar_lea.vmem [#allocation2], 3448
    %v3618 = vld [vmem:[%s3617] sm:%s1033]
    %s3619 = sshllo.u32 0, 2
    %s3620 = smul.addr 2, 431
    %s3621 = scalar_lea.vmem %s1, %s3620
    %3622 = vst [vmem:[%s3621] sm:%s3619] %v3618
    %s3623 = scalar_lea.vmem [#allocation2], 3456
    %v3624 = vld [vmem:[%s3623] sm:%s1033]
    %s3625 = sshllo.u32 0, 2
    %s3626 = smul.addr 2, 432
    %s3627 = scalar_lea.vmem %s1, %s3626
    %3628 = vst [vmem:[%s3627] sm:%s3625] %v3624
    %s3629 = scalar_lea.vmem [#allocation2], 3464
    %v3630 = vld [vmem:[%s3629] sm:%s1033]
    %s3631 = sshllo.u32 0, 2
    %s3632 = smul.addr 2, 433
    %s3633 = scalar_lea.vmem %s1, %s3632
    %3634 = vst [vmem:[%s3633] sm:%s3631] %v3630
    %s3635 = scalar_lea.vmem [#allocation2], 3472
    %v3636 = vld [vmem:[%s3635] sm:%s1033]
    %s3637 = sshllo.u32 0, 2
    %s3638 = smul.addr 2, 434
    %s3639 = scalar_lea.vmem %s1, %s3638
    %3640 = vst [vmem:[%s3639] sm:%s3637] %v3636
    %s3641 = scalar_lea.vmem [#allocation2], 3480
    %v3642 = vld [vmem:[%s3641] sm:%s1033]
    %s3643 = sshllo.u32 0, 2
    %s3644 = smul.addr 2, 435
    %s3645 = scalar_lea.vmem %s1, %s3644
    %3646 = vst [vmem:[%s3645] sm:%s3643] %v3642
    %s3647 = scalar_lea.vmem [#allocation2], 3488
    %v3648 = vld [vmem:[%s3647] sm:%s1033]
    %s3649 = sshllo.u32 0, 2
    %s3650 = smul.addr 2, 436
    %s3651 = scalar_lea.vmem %s1, %s3650
    %3652 = vst [vmem:[%s3651] sm:%s3649] %v3648
    %s3653 = scalar_lea.vmem [#allocation2], 3496
    %v3654 = vld [vmem:[%s3653] sm:%s1033]
    %s3655 = sshllo.u32 0, 2
    %s3656 = smul.addr 2, 437
    %s3657 = scalar_lea.vmem %s1, %s3656
    %3658 = vst [vmem:[%s3657] sm:%s3655] %v3654
    %s3659 = scalar_lea.vmem [#allocation2], 3504
    %v3660 = vld [vmem:[%s3659] sm:%s1033]
    %s3661 = sshllo.u32 0, 2
    %s3662 = smul.addr 2, 438
    %s3663 = scalar_lea.vmem %s1, %s3662
    %3664 = vst [vmem:[%s3663] sm:%s3661] %v3660
    %s3665 = scalar_lea.vmem [#allocation2], 3512
    %v3666 = vld [vmem:[%s3665] sm:%s1033]
    %s3667 = sshllo.u32 0, 2
    %s3668 = smul.addr 2, 439
    %s3669 = scalar_lea.vmem %s1, %s3668
    %3670 = vst [vmem:[%s3669] sm:%s3667] %v3666
    %s3671 = scalar_lea.vmem [#allocation2], 3520
    %v3672 = vld [vmem:[%s3671] sm:%s1033]
    %s3673 = sshllo.u32 0, 2
    %s3674 = smul.addr 2, 440
    %s3675 = scalar_lea.vmem %s1, %s3674
    %3676 = vst [vmem:[%s3675] sm:%s3673] %v3672
    %s3677 = scalar_lea.vmem [#allocation2], 3528
    %v3678 = vld [vmem:[%s3677] sm:%s1033]
    %s3679 = sshllo.u32 0, 2
    %s3680 = smul.addr 2, 441
    %s3681 = scalar_lea.vmem %s1, %s3680
    %3682 = vst [vmem:[%s3681] sm:%s3679] %v3678
    %s3683 = scalar_lea.vmem [#allocation2], 3536
    %v3684 = vld [vmem:[%s3683] sm:%s1033]
    %s3685 = sshllo.u32 0, 2
    %s3686 = smul.addr 2, 442
    %s3687 = scalar_lea.vmem %s1, %s3686
    %3688 = vst [vmem:[%s3687] sm:%s3685] %v3684
    %s3689 = scalar_lea.vmem [#allocation2], 3544
    %v3690 = vld [vmem:[%s3689] sm:%s1033]
    %s3691 = sshllo.u32 0, 2
    %s3692 = smul.addr 2, 443
    %s3693 = scalar_lea.vmem %s1, %s3692
    %3694 = vst [vmem:[%s3693] sm:%s3691] %v3690
    %s3695 = scalar_lea.vmem [#allocation2], 3552
    %v3696 = vld [vmem:[%s3695] sm:%s1033]
    %s3697 = sshllo.u32 0, 2
    %s3698 = smul.addr 2, 444
    %s3699 = scalar_lea.vmem %s1, %s3698
    %3700 = vst [vmem:[%s3699] sm:%s3697] %v3696
    %s3701 = scalar_lea.vmem [#allocation2], 3560
    %v3702 = vld [vmem:[%s3701] sm:%s1033]
    %s3703 = sshllo.u32 0, 2
    %s3704 = smul.addr 2, 445
    %s3705 = scalar_lea.vmem %s1, %s3704
    %3706 = vst [vmem:[%s3705] sm:%s3703] %v3702
    %s3707 = scalar_lea.vmem [#allocation2], 3568
    %v3708 = vld [vmem:[%s3707] sm:%s1033]
    %s3709 = sshllo.u32 0, 2
    %s3710 = smul.addr 2, 446
    %s3711 = scalar_lea.vmem %s1, %s3710
    %3712 = vst [vmem:[%s3711] sm:%s3709] %v3708
    %s3713 = scalar_lea.vmem [#allocation2], 3576
    %v3714 = vld [vmem:[%s3713] sm:%s1033]
    %s3715 = sshllo.u32 0, 2
    %s3716 = smul.addr 2, 447
    %s3717 = scalar_lea.vmem %s1, %s3716
    %3718 = vst [vmem:[%s3717] sm:%s3715] %v3714
    %s3719 = scalar_lea.vmem [#allocation2], 3584
    %v3720 = vld [vmem:[%s3719] sm:%s1033]
    %s3721 = sshllo.u32 0, 2
    %s3722 = smul.addr 2, 448
    %s3723 = scalar_lea.vmem %s1, %s3722
    %3724 = vst [vmem:[%s3723] sm:%s3721] %v3720
    %s3725 = scalar_lea.vmem [#allocation2], 3592
    %v3726 = vld [vmem:[%s3725] sm:%s1033]
    %s3727 = sshllo.u32 0, 2
    %s3728 = smul.addr 2, 449
    %s3729 = scalar_lea.vmem %s1, %s3728
    %3730 = vst [vmem:[%s3729] sm:%s3727] %v3726
    %s3731 = scalar_lea.vmem [#allocation2], 3600
    %v3732 = vld [vmem:[%s3731] sm:%s1033]
    %s3733 = sshllo.u32 0, 2
    %s3734 = smul.addr 2, 450
    %s3735 = scalar_lea.vmem %s1, %s3734
    %3736 = vst [vmem:[%s3735] sm:%s3733] %v3732
    %s3737 = scalar_lea.vmem [#allocation2], 3608
    %v3738 = vld [vmem:[%s3737] sm:%s1033]
    %s3739 = sshllo.u32 0, 2
    %s3740 = smul.addr 2, 451
    %s3741 = scalar_lea.vmem %s1, %s3740
    %3742 = vst [vmem:[%s3741] sm:%s3739] %v3738
    %s3743 = scalar_lea.vmem [#allocation2], 3616
    %v3744 = vld [vmem:[%s3743] sm:%s1033]
    %s3745 = sshllo.u32 0, 2
    %s3746 = smul.addr 2, 452
    %s3747 = scalar_lea.vmem %s1, %s3746
    %3748 = vst [vmem:[%s3747] sm:%s3745] %v3744
    %s3749 = scalar_lea.vmem [#allocation2], 3624
    %v3750 = vld [vmem:[%s3749] sm:%s1033]
    %s3751 = sshllo.u32 0, 2
    %s3752 = smul.addr 2, 453
    %s3753 = scalar_lea.vmem %s1, %s3752
    %3754 = vst [vmem:[%s3753] sm:%s3751] %v3750
    %s3755 = scalar_lea.vmem [#allocation2], 3632
    %v3756 = vld [vmem:[%s3755] sm:%s1033]
    %s3757 = sshllo.u32 0, 2
    %s3758 = smul.addr 2, 454
    %s3759 = scalar_lea.vmem %s1, %s3758
    %3760 = vst [vmem:[%s3759] sm:%s3757] %v3756
    %s3761 = scalar_lea.vmem [#allocation2], 3640
    %v3762 = vld [vmem:[%s3761] sm:%s1033]
    %s3763 = sshllo.u32 0, 2
    %s3764 = smul.addr 2, 455
    %s3765 = scalar_lea.vmem %s1, %s3764
    %3766 = vst [vmem:[%s3765] sm:%s3763] %v3762
    %s3767 = scalar_lea.vmem [#allocation2], 3648
    %v3768 = vld [vmem:[%s3767] sm:%s1033]
    %s3769 = sshllo.u32 0, 2
    %s3770 = smul.addr 2, 456
    %s3771 = scalar_lea.vmem %s1, %s3770
    %3772 = vst [vmem:[%s3771] sm:%s3769] %v3768
    %s3773 = scalar_lea.vmem [#allocation2], 3656
    %v3774 = vld [vmem:[%s3773] sm:%s1033]
    %s3775 = sshllo.u32 0, 2
    %s3776 = smul.addr 2, 457
    %s3777 = scalar_lea.vmem %s1, %s3776
    %3778 = vst [vmem:[%s3777] sm:%s3775] %v3774
    %s3779 = scalar_lea.vmem [#allocation2], 3664
    %v3780 = vld [vmem:[%s3779] sm:%s1033]
    %s3781 = sshllo.u32 0, 2
    %s3782 = smul.addr 2, 458
    %s3783 = scalar_lea.vmem %s1, %s3782
    %3784 = vst [vmem:[%s3783] sm:%s3781] %v3780
    %s3785 = scalar_lea.vmem [#allocation2], 3672
    %v3786 = vld [vmem:[%s3785] sm:%s1033]
    %s3787 = sshllo.u32 0, 2
    %s3788 = smul.addr 2, 459
    %s3789 = scalar_lea.vmem %s1, %s3788
    %3790 = vst [vmem:[%s3789] sm:%s3787] %v3786
    %s3791 = scalar_lea.vmem [#allocation2], 3680
    %v3792 = vld [vmem:[%s3791] sm:%s1033]
    %s3793 = sshllo.u32 0, 2
    %s3794 = smul.addr 2, 460
    %s3795 = scalar_lea.vmem %s1, %s3794
    %3796 = vst [vmem:[%s3795] sm:%s3793] %v3792
    %s3797 = scalar_lea.vmem [#allocation2], 3688
    %v3798 = vld [vmem:[%s3797] sm:%s1033]
    %s3799 = sshllo.u32 0, 2
    %s3800 = smul.addr 2, 461
    %s3801 = scalar_lea.vmem %s1, %s3800
    %3802 = vst [vmem:[%s3801] sm:%s3799] %v3798
    %s3803 = scalar_lea.vmem [#allocation2], 3696
    %v3804 = vld [vmem:[%s3803] sm:%s1033]
    %s3805 = sshllo.u32 0, 2
    %s3806 = smul.addr 2, 462
    %s3807 = scalar_lea.vmem %s1, %s3806
    %3808 = vst [vmem:[%s3807] sm:%s3805] %v3804
    %s3809 = scalar_lea.vmem [#allocation2], 3704
    %v3810 = vld [vmem:[%s3809] sm:%s1033]
    %s3811 = sshllo.u32 0, 2
    %s3812 = smul.addr 2, 463
    %s3813 = scalar_lea.vmem %s1, %s3812
    %3814 = vst [vmem:[%s3813] sm:%s3811] %v3810
    %s3815 = scalar_lea.vmem [#allocation2], 3712
    %v3816 = vld [vmem:[%s3815] sm:%s1033]
    %s3817 = sshllo.u32 0, 2
    %s3818 = smul.addr 2, 464
    %s3819 = scalar_lea.vmem %s1, %s3818
    %3820 = vst [vmem:[%s3819] sm:%s3817] %v3816
    %s3821 = scalar_lea.vmem [#allocation2], 3720
    %v3822 = vld [vmem:[%s3821] sm:%s1033]
    %s3823 = sshllo.u32 0, 2
    %s3824 = smul.addr 2, 465
    %s3825 = scalar_lea.vmem %s1, %s3824
    %3826 = vst [vmem:[%s3825] sm:%s3823] %v3822
    %s3827 = scalar_lea.vmem [#allocation2], 3728
    %v3828 = vld [vmem:[%s3827] sm:%s1033]
    %s3829 = sshllo.u32 0, 2
    %s3830 = smul.addr 2, 466
    %s3831 = scalar_lea.vmem %s1, %s3830
    %3832 = vst [vmem:[%s3831] sm:%s3829] %v3828
    %s3833 = scalar_lea.vmem [#allocation2], 3736
    %v3834 = vld [vmem:[%s3833] sm:%s1033]
    %s3835 = sshllo.u32 0, 2
    %s3836 = smul.addr 2, 467
    %s3837 = scalar_lea.vmem %s1, %s3836
    %3838 = vst [vmem:[%s3837] sm:%s3835] %v3834
    %s3839 = scalar_lea.vmem [#allocation2], 3744
    %v3840 = vld [vmem:[%s3839] sm:%s1033]
    %s3841 = sshllo.u32 0, 2
    %s3842 = smul.addr 2, 468
    %s3843 = scalar_lea.vmem %s1, %s3842
    %3844 = vst [vmem:[%s3843] sm:%s3841] %v3840
    %s3845 = scalar_lea.vmem [#allocation2], 3752
    %v3846 = vld [vmem:[%s3845] sm:%s1033]
    %s3847 = sshllo.u32 0, 2
    %s3848 = smul.addr 2, 469
    %s3849 = scalar_lea.vmem %s1, %s3848
    %3850 = vst [vmem:[%s3849] sm:%s3847] %v3846
    %s3851 = scalar_lea.vmem [#allocation2], 3760
    %v3852 = vld [vmem:[%s3851] sm:%s1033]
    %s3853 = sshllo.u32 0, 2
    %s3854 = smul.addr 2, 470
    %s3855 = scalar_lea.vmem %s1, %s3854
    %3856 = vst [vmem:[%s3855] sm:%s3853] %v3852
    %s3857 = scalar_lea.vmem [#allocation2], 3768
    %v3858 = vld [vmem:[%s3857] sm:%s1033]
    %s3859 = sshllo.u32 0, 2
    %s3860 = smul.addr 2, 471
    %s3861 = scalar_lea.vmem %s1, %s3860
    %3862 = vst [vmem:[%s3861] sm:%s3859] %v3858
    %s3863 = scalar_lea.vmem [#allocation2], 3776
    %v3864 = vld [vmem:[%s3863] sm:%s1033]
    %s3865 = sshllo.u32 0, 2
    %s3866 = smul.addr 2, 472
    %s3867 = scalar_lea.vmem %s1, %s3866
    %3868 = vst [vmem:[%s3867] sm:%s3865] %v3864
    %s3869 = scalar_lea.vmem [#allocation2], 3784
    %v3870 = vld [vmem:[%s3869] sm:%s1033]
    %s3871 = sshllo.u32 0, 2
    %s3872 = smul.addr 2, 473
    %s3873 = scalar_lea.vmem %s1, %s3872
    %3874 = vst [vmem:[%s3873] sm:%s3871] %v3870
    %s3875 = scalar_lea.vmem [#allocation2], 3792
    %v3876 = vld [vmem:[%s3875] sm:%s1033]
    %s3877 = sshllo.u32 0, 2
    %s3878 = smul.addr 2, 474
    %s3879 = scalar_lea.vmem %s1, %s3878
    %3880 = vst [vmem:[%s3879] sm:%s3877] %v3876
    %s3881 = scalar_lea.vmem [#allocation2], 3800
    %v3882 = vld [vmem:[%s3881] sm:%s1033]
    %s3883 = sshllo.u32 0, 2
    %s3884 = smul.addr 2, 475
    %s3885 = scalar_lea.vmem %s1, %s3884
    %3886 = vst [vmem:[%s3885] sm:%s3883] %v3882
    %s3887 = scalar_lea.vmem [#allocation2], 3808
    %v3888 = vld [vmem:[%s3887] sm:%s1033]
    %s3889 = sshllo.u32 0, 2
    %s3890 = smul.addr 2, 476
    %s3891 = scalar_lea.vmem %s1, %s3890
    %3892 = vst [vmem:[%s3891] sm:%s3889] %v3888
    %s3893 = scalar_lea.vmem [#allocation2], 3816
    %v3894 = vld [vmem:[%s3893] sm:%s1033]
    %s3895 = sshllo.u32 0, 2
    %s3896 = smul.addr 2, 477
    %s3897 = scalar_lea.vmem %s1, %s3896
    %3898 = vst [vmem:[%s3897] sm:%s3895] %v3894
    %s3899 = scalar_lea.vmem [#allocation2], 3824
    %v3900 = vld [vmem:[%s3899] sm:%s1033]
    %s3901 = sshllo.u32 0, 2
    %s3902 = smul.addr 2, 478
    %s3903 = scalar_lea.vmem %s1, %s3902
    %3904 = vst [vmem:[%s3903] sm:%s3901] %v3900
    %s3905 = scalar_lea.vmem [#allocation2], 3832
    %v3906 = vld [vmem:[%s3905] sm:%s1033]
    %s3907 = sshllo.u32 0, 2
    %s3908 = smul.addr 2, 479
    %s3909 = scalar_lea.vmem %s1, %s3908
    %3910 = vst [vmem:[%s3909] sm:%s3907] %v3906
    %s3911 = scalar_lea.vmem [#allocation2], 3840
    %v3912 = vld [vmem:[%s3911] sm:%s1033]
    %s3913 = sshllo.u32 0, 2
    %s3914 = smul.addr 2, 480
    %s3915 = scalar_lea.vmem %s1, %s3914
    %3916 = vst [vmem:[%s3915] sm:%s3913] %v3912
    %s3917 = scalar_lea.vmem [#allocation2], 3848
    %v3918 = vld [vmem:[%s3917] sm:%s1033]
    %s3919 = sshllo.u32 0, 2
    %s3920 = smul.addr 2, 481
    %s3921 = scalar_lea.vmem %s1, %s3920
    %3922 = vst [vmem:[%s3921] sm:%s3919] %v3918
    %s3923 = scalar_lea.vmem [#allocation2], 3856
    %v3924 = vld [vmem:[%s3923] sm:%s1033]
    %s3925 = sshllo.u32 0, 2
    %s3926 = smul.addr 2, 482
    %s3927 = scalar_lea.vmem %s1, %s3926
    %3928 = vst [vmem:[%s3927] sm:%s3925] %v3924
    %s3929 = scalar_lea.vmem [#allocation2], 3864
    %v3930 = vld [vmem:[%s3929] sm:%s1033]
    %s3931 = sshllo.u32 0, 2
    %s3932 = smul.addr 2, 483
    %s3933 = scalar_lea.vmem %s1, %s3932
    %3934 = vst [vmem:[%s3933] sm:%s3931] %v3930
    %s3935 = scalar_lea.vmem [#allocation2], 3872
    %v3936 = vld [vmem:[%s3935] sm:%s1033]
    %s3937 = sshllo.u32 0, 2
    %s3938 = smul.addr 2, 484
    %s3939 = scalar_lea.vmem %s1, %s3938
    %3940 = vst [vmem:[%s3939] sm:%s3937] %v3936
    %s3941 = scalar_lea.vmem [#allocation2], 3880
    %v3942 = vld [vmem:[%s3941] sm:%s1033]
    %s3943 = sshllo.u32 0, 2
    %s3944 = smul.addr 2, 485
    %s3945 = scalar_lea.vmem %s1, %s3944
    %3946 = vst [vmem:[%s3945] sm:%s3943] %v3942
    %s3947 = scalar_lea.vmem [#allocation2], 3888
    %v3948 = vld [vmem:[%s3947] sm:%s1033]
    %s3949 = sshllo.u32 0, 2
    %s3950 = smul.addr 2, 486
    %s3951 = scalar_lea.vmem %s1, %s3950
    %3952 = vst [vmem:[%s3951] sm:%s3949] %v3948
    %s3953 = scalar_lea.vmem [#allocation2], 3896
    %v3954 = vld [vmem:[%s3953] sm:%s1033]
    %s3955 = sshllo.u32 0, 2
    %s3956 = smul.addr 2, 487
    %s3957 = scalar_lea.vmem %s1, %s3956
    %3958 = vst [vmem:[%s3957] sm:%s3955] %v3954
    %s3959 = scalar_lea.vmem [#allocation2], 3904
    %v3960 = vld [vmem:[%s3959] sm:%s1033]
    %s3961 = sshllo.u32 0, 2
    %s3962 = smul.addr 2, 488
    %s3963 = scalar_lea.vmem %s1, %s3962
    %3964 = vst [vmem:[%s3963] sm:%s3961] %v3960
    %s3965 = scalar_lea.vmem [#allocation2], 3912
    %v3966 = vld [vmem:[%s3965] sm:%s1033]
    %s3967 = sshllo.u32 0, 2
    %s3968 = smul.addr 2, 489
    %s3969 = scalar_lea.vmem %s1, %s3968
    %3970 = vst [vmem:[%s3969] sm:%s3967] %v3966
    %s3971 = scalar_lea.vmem [#allocation2], 3920
    %v3972 = vld [vmem:[%s3971] sm:%s1033]
    %s3973 = sshllo.u32 0, 2
    %s3974 = smul.addr 2, 490
    %s3975 = scalar_lea.vmem %s1, %s3974
    %3976 = vst [vmem:[%s3975] sm:%s3973] %v3972
    %s3977 = scalar_lea.vmem [#allocation2], 3928
    %v3978 = vld [vmem:[%s3977] sm:%s1033]
    %s3979 = sshllo.u32 0, 2
    %s3980 = smul.addr 2, 491
    %s3981 = scalar_lea.vmem %s1, %s3980
    %3982 = vst [vmem:[%s3981] sm:%s3979] %v3978
    %s3983 = scalar_lea.vmem [#allocation2], 3936
    %v3984 = vld [vmem:[%s3983] sm:%s1033]
    %s3985 = sshllo.u32 0, 2
    %s3986 = smul.addr 2, 492
    %s3987 = scalar_lea.vmem %s1, %s3986
    %3988 = vst [vmem:[%s3987] sm:%s3985] %v3984
    %s3989 = scalar_lea.vmem [#allocation2], 3944
    %v3990 = vld [vmem:[%s3989] sm:%s1033]
    %s3991 = sshllo.u32 0, 2
    %s3992 = smul.addr 2, 493
    %s3993 = scalar_lea.vmem %s1, %s3992
    %3994 = vst [vmem:[%s3993] sm:%s3991] %v3990
    %s3995 = scalar_lea.vmem [#allocation2], 3952
    %v3996 = vld [vmem:[%s3995] sm:%s1033]
    %s3997 = sshllo.u32 0, 2
    %s3998 = smul.addr 2, 494
    %s3999 = scalar_lea.vmem %s1, %s3998
    %4000 = vst [vmem:[%s3999] sm:%s3997] %v3996
    %s4001 = scalar_lea.vmem [#allocation2], 3960
    %v4002 = vld [vmem:[%s4001] sm:%s1033]
    %s4003 = sshllo.u32 0, 2
    %s4004 = smul.addr 2, 495
    %s4005 = scalar_lea.vmem %s1, %s4004
    %4006 = vst [vmem:[%s4005] sm:%s4003] %v4002
    %s4007 = scalar_lea.vmem [#allocation2], 3968
    %v4008 = vld [vmem:[%s4007] sm:%s1033]
    %s4009 = sshllo.u32 0, 2
    %s4010 = smul.addr 2, 496
    %s4011 = scalar_lea.vmem %s1, %s4010
    %4012 = vst [vmem:[%s4011] sm:%s4009] %v4008
    %s4013 = scalar_lea.vmem [#allocation2], 3976
    %v4014 = vld [vmem:[%s4013] sm:%s1033]
    %s4015 = sshllo.u32 0, 2
    %s4016 = smul.addr 2, 497
    %s4017 = scalar_lea.vmem %s1, %s4016
    %4018 = vst [vmem:[%s4017] sm:%s4015] %v4014
    %s4019 = scalar_lea.vmem [#allocation2], 3984
    %v4020 = vld [vmem:[%s4019] sm:%s1033]
    %s4021 = sshllo.u32 0, 2
    %s4022 = smul.addr 2, 498
    %s4023 = scalar_lea.vmem %s1, %s4022
    %4024 = vst [vmem:[%s4023] sm:%s4021] %v4020
    %s4025 = scalar_lea.vmem [#allocation2], 3992
    %v4026 = vld [vmem:[%s4025] sm:%s1033]
    %s4027 = sshllo.u32 0, 2
    %s4028 = smul.addr 2, 499
    %s4029 = scalar_lea.vmem %s1, %s4028
    %4030 = vst [vmem:[%s4029] sm:%s4027] %v4026
    %s4031 = scalar_lea.vmem [#allocation2], 4000
    %v4032 = vld [vmem:[%s4031] sm:%s1033]
    %s4033 = sshllo.u32 0, 2
    %s4034 = smul.addr 2, 500
    %s4035 = scalar_lea.vmem %s1, %s4034
    %4036 = vst [vmem:[%s4035] sm:%s4033] %v4032
    %s4037 = scalar_lea.vmem [#allocation2], 4008
    %v4038 = vld [vmem:[%s4037] sm:%s1033]
    %s4039 = sshllo.u32 0, 2
    %s4040 = smul.addr 2, 501
    %s4041 = scalar_lea.vmem %s1, %s4040
    %4042 = vst [vmem:[%s4041] sm:%s4039] %v4038
    %s4043 = scalar_lea.vmem [#allocation2], 4016
    %v4044 = vld [vmem:[%s4043] sm:%s1033]
    %s4045 = sshllo.u32 0, 2
    %s4046 = smul.addr 2, 502
    %s4047 = scalar_lea.vmem %s1, %s4046
    %4048 = vst [vmem:[%s4047] sm:%s4045] %v4044
    %s4049 = scalar_lea.vmem [#allocation2], 4024
    %v4050 = vld [vmem:[%s4049] sm:%s1033]
    %s4051 = sshllo.u32 0, 2
    %s4052 = smul.addr 2, 503
    %s4053 = scalar_lea.vmem %s1, %s4052
    %4054 = vst [vmem:[%s4053] sm:%s4051] %v4050
    %s4055 = scalar_lea.vmem [#allocation2], 4032
    %v4056 = vld [vmem:[%s4055] sm:%s1033]
    %s4057 = sshllo.u32 0, 2
    %s4058 = smul.addr 2, 504
    %s4059 = scalar_lea.vmem %s1, %s4058
    %4060 = vst [vmem:[%s4059] sm:%s4057] %v4056
    %s4061 = scalar_lea.vmem [#allocation2], 4040
    %v4062 = vld [vmem:[%s4061] sm:%s1033]
    %s4063 = sshllo.u32 0, 2
    %s4064 = smul.addr 2, 505
    %s4065 = scalar_lea.vmem %s1, %s4064
    %4066 = vst [vmem:[%s4065] sm:%s4063] %v4062
    %s4067 = scalar_lea.vmem [#allocation2], 4048
    %v4068 = vld [vmem:[%s4067] sm:%s1033]
    %s4069 = sshllo.u32 0, 2
    %s4070 = smul.addr 2, 506
    %s4071 = scalar_lea.vmem %s1, %s4070
    %4072 = vst [vmem:[%s4071] sm:%s4069] %v4068
    %s4073 = scalar_lea.vmem [#allocation2], 4056
    %v4074 = vld [vmem:[%s4073] sm:%s1033]
    %s4075 = sshllo.u32 0, 2
    %s4076 = smul.addr 2, 507
    %s4077 = scalar_lea.vmem %s1, %s4076
    %4078 = vst [vmem:[%s4077] sm:%s4075] %v4074
    %s4079 = scalar_lea.vmem [#allocation2], 4064
    %v4080 = vld [vmem:[%s4079] sm:%s1033]
    %s4081 = sshllo.u32 0, 2
    %s4082 = smul.addr 2, 508
    %s4083 = scalar_lea.vmem %s1, %s4082
    %4084 = vst [vmem:[%s4083] sm:%s4081] %v4080
    %s4085 = scalar_lea.vmem [#allocation2], 4072
    %v4086 = vld [vmem:[%s4085] sm:%s1033]
    %s4087 = sshllo.u32 0, 2
    %s4088 = smul.addr 2, 509
    %s4089 = scalar_lea.vmem %s1, %s4088
    %4090 = vst [vmem:[%s4089] sm:%s4087] %v4086
    %s4091 = scalar_lea.vmem [#allocation2], 4080
    %v4092 = vld [vmem:[%s4091] sm:%s1033]
    %s4093 = sshllo.u32 0, 2
    %s4094 = smul.addr 2, 510
    %s4095 = scalar_lea.vmem %s1, %s4094
    %4096 = vst [vmem:[%s4095] sm:%s4093] %v4092
    %s4097 = scalar_lea.vmem [#allocation2], 4088
    %v4098 = vld [vmem:[%s4097] sm:%s1033]
    %s4099 = sshllo.u32 0, 2
    %s4100 = smul.addr 2, 511
    %s4101 = scalar_lea.vmem %s1, %s4100
    %4102 = vst [vmem:[%s4101] sm:%s4099] %v4098
    %4103 = vsyncpa [#allocation1], 1

// kernel: tile.9
$region0: #{tile.9}
  %s0 = inlined_call_operand.vmem [shape: f32[2,9,64], index: 0, kind: input, shape index: {}]
  %s1 = inlined_call_operand.vmem [shape: f32[18,64], index: 1, kind: output, shape index: {}]
  %v2 = vld [vmem:[%s0] sm:$0xff]
  %vm3 = vcmask 523264
  %4 = vst.msk [vmem:[%s1] sm:$0xff] %vm3, %v2
  %s5 = scalar_lea.vmem %s0, 8
  %s6 = smov 3
  %v7 = vld [vmem:[%s5] ss:$8 sm:%s6]
  %vm8 = vcmask 523264
  %s9 = scalar_lea.vmem %s1, 8
  %10 = vst.msk [vmem:[%s9] sm:$0x3] %vm8, %v7
  %s11 = scalar_lea.vmem %s0, 17
  %v12 = vld [vmem:[%s11] sm:$0xff]
  %vm13 = vcmask 523264
  %s14 = scalar_lea.vmem %s1, 10
  %15 = vst.msk [vmem:[%s14] sm:$0xff] %vm13, %v12

// kernel: vit3d_forward.1
$region0: #{vit3d_forward.1}
  #allocation0 [shape = 'u32[]', space=smem, size = 0x4, offset = 0x4, fixed_abs, tag = 'smem constant byte address 0x4 - core index']
  #allocation1 [shape = 'u32[144,128]{1,0:T(1,128)}', space=vmem, size = 0x12000, scoped, tag = 'internal scratch']
  %s0 = inlined_call_operand.vmem [shape: f32[24,512], index: 0, kind: input, shape index: {}]
  %s1 = inlined_call_operand.vmem [shape: f32[24,64], index: 1, kind: input, shape index: {}]
  %s2 = inlined_call_operand.vmem [shape: f32[24,24], index: 2, kind: input, shape index: {}]
  %s3 = inlined_call_operand.vmem [shape: f32[512,64], index: 3, kind: input, shape index: {}]
  %s4 = inlined_call_operand.vmem [shape: f32[2,1,64], index: 4, kind: input, shape index: {}, may-alias: {4,14}]
  %s5 = inlined_call_operand.vmem [shape: f32[2,1,64], index: 5, kind: input, shape index: {}, may-alias: {5,15}]
  %s6 = inlined_call_operand.vmem [shape: f32[2,64,64], index: 6, kind: input, shape index: {}]
  %s7 = inlined_call_operand.vmem [shape: f32[2,1,64], index: 7, kind: input, shape index: {}]
  %s8 = inlined_call_operand.vmem [shape: f32[2,64,64], index: 8, kind: input, shape index: {}]
  %s9 = inlined_call_operand.vmem [shape: f32[2,1,64], index: 9, kind: input, shape index: {}]
  %s10 = inlined_call_operand.vmem [shape: f32[2,64,64], index: 10, kind: input, shape index: {}]
  %s11 = inlined_call_operand.vmem [shape: f32[2,1,64], index: 11, kind: input, shape index: {}]
  %s12 = inlined_call_operand.vmem [shape: f32[2,64,64], index: 12, kind: input, shape index: {}]
  %s13 = inlined_call_operand.vmem [shape: f32[2,1,64], index: 13, kind: input, shape index: {}]
  %s14 = inlined_call_operand.vmem [shape: f32[2,1,64], index: 14, kind: input, shape index: {}, may-alias: {4,14}]
  %s15 = inlined_call_operand.vmem [shape: f32[2,1,64], index: 15, kind: input, shape index: {}, may-alias: {5,15}]
  %s16 = inlined_call_operand.vmem [shape: f32[2,64,256], index: 16, kind: input, shape index: {}]
  %s17 = inlined_call_operand.vmem [shape: f32[2,1,256], index: 17, kind: input, shape index: {}]
  %s18 = inlined_call_operand.vmem [shape: f32[2,256,64], index: 18, kind: input, shape index: {}]
  %s19 = inlined_call_operand.vmem [shape: f32[2,1,64], index: 19, kind: input, shape index: {}]
  %s20 = inlined_call_operand.vmem [shape: f32[1,64], index: 20, kind: input, shape index: {}]
  %s21 = inlined_call_operand.vmem [shape: f32[1,64], index: 21, kind: input, shape index: {}]
  %s22 = inlined_call_operand.vmem [shape: f32[64,128], index: 22, kind: input, shape index: {}]
  %s23 = inlined_call_operand.vmem [shape: f32[1,128], index: 23, kind: input, shape index: {}]
  %s24 = inlined_call_operand.vmem [shape: f32[24,128], index: 24, kind: output, shape index: {}]
  %s25 = sld [smem:[#allocation0]]
  $region106: #{vit3d_forward.1} parent=0
    _
  %s27 = ssub.s32 1, %s25
  %s28 = scalar_select 0, %s27, %s25
  // Predicated region
  $region2: #{vit3d_forward.1} parent=0 // pred_check
    _
  $region3: #{vit3d_forward.1} parent=0 // pred_check_branch
    %30 = sbr.rel (0) target = $region5
  $region4: #{vit3d_forward.1} parent=0 // pred_region
    _
  $region5: #{vit3d_forward.1} parent=0 // pred_fallthru
    _
  // Predicated region
  $region6: #{vit3d_forward.1} parent=0 // pred_check
    _
  $region7: #{vit3d_forward.1} parent=0 // pred_check_branch
    %32 = sbr.rel (0) target = $region9
  $region8: #{vit3d_forward.1} parent=0 // pred_region
    _
  $region9: #{vit3d_forward.1} parent=0 // pred_fallthru
    _
  // Predicated region
  $region10: #{vit3d_forward.1} parent=0 // pred_check
    _
  $region11: #{vit3d_forward.1} parent=0 // pred_check_branch
    %34 = sbr.rel (0) target = $region13
  $region12: #{vit3d_forward.1} parent=0 // pred_region
    _
  $region13: #{vit3d_forward.1} parent=0 // pred_fallthru
    _
  // Predicated region
  $region14: #{vit3d_forward.1} parent=0 // pred_check
    _
  $region15: #{vit3d_forward.1} parent=0 // pred_check_branch
    %36 = sbr.rel (0) target = $region17
  $region16: #{vit3d_forward.1} parent=0 // pred_region
    _
  $region17: #{vit3d_forward.1} parent=0 // pred_fallthru
    _
  // Predicated region
  $region18: #{vit3d_forward.1} parent=0 // pred_check
    _
  $region19: #{vit3d_forward.1} parent=0 // pred_check_branch
    %38 = sbr.rel (0) target = $region21
  $region20: #{vit3d_forward.1} parent=0 // pred_region
    _
  $region21: #{vit3d_forward.1} parent=0 // pred_fallthru
    _
  // Predicated region
  $region22: #{vit3d_forward.1} parent=0 // pred_check
    _
  $region23: #{vit3d_forward.1} parent=0 // pred_check_branch
    %40 = sbr.rel (0) target = $region25
  $region24: #{vit3d_forward.1} parent=0 // pred_region
    _
  $region25: #{vit3d_forward.1} parent=0 // pred_fallthru
    _
  // Predicated region
  $region26: #{vit3d_forward.1} parent=0 // pred_check
    _
  $region27: #{vit3d_forward.1} parent=0 // pred_check_branch
    %42 = sbr.rel (0) target = $region29
  $region28: #{vit3d_forward.1} parent=0 // pred_region
    _
  $region29: #{vit3d_forward.1} parent=0 // pred_fallthru
    _
  // Predicated region
  $region30: #{vit3d_forward.1} parent=0 // pred_check
    _
  $region31: #{vit3d_forward.1} parent=0 // pred_check_branch
    %44 = sbr.rel (0) target = $region33
  $region32: #{vit3d_forward.1} parent=0 // pred_region
    _
  $region33: #{vit3d_forward.1} parent=0 // pred_fallthru
    _
  // Predicated region
  $region34: #{vit3d_forward.1} parent=0 // pred_check
    _
  $region35: #{vit3d_forward.1} parent=0 // pred_check_branch
    %46 = sbr.rel (0) target = $region37
  $region36: #{vit3d_forward.1} parent=0 // pred_region
    _
  $region37: #{vit3d_forward.1} parent=0 // pred_fallthru
    _
  // Predicated region
  $region38: #{vit3d_forward.1} parent=0 // pred_check
    _
  $region39: #{vit3d_forward.1} parent=0 // pred_check_branch
    %48 = sbr.rel (0) target = $region41
  $region40: #{vit3d_forward.1} parent=0 // pred_region
    _
  $region41: #{vit3d_forward.1} parent=0 // pred_fallthru
    _
  // Predicated region
  $region42: #{vit3d_forward.1} parent=0 // pred_check
    _
  $region43: #{vit3d_forward.1} parent=0 // pred_check_branch
    %50 = sbr.rel (0) target = $region45
  $region44: #{vit3d_forward.1} parent=0 // pred_region
    _
  $region45: #{vit3d_forward.1} parent=0 // pred_fallthru
    _
  // Predicated region
  $region46: #{vit3d_forward.1} parent=0 // pred_check
    _
  $region47: #{vit3d_forward.1} parent=0 // pred_check_branch
    %52 = sbr.rel (0) target = $region49
  $region48: #{vit3d_forward.1} parent=0 // pred_region
    _
  $region49: #{vit3d_forward.1} parent=0 // pred_fallthru
    _
  // Predicated region
  $region50: #{vit3d_forward.1} parent=0 // pred_check
    _
  $region51: #{vit3d_forward.1} parent=0 // pred_check_branch
    %54 = sbr.rel (0) target = $region53
  $region52: #{vit3d_forward.1} parent=0 // pred_region
    _
  $region53: #{vit3d_forward.1} parent=0 // pred_fallthru
    _
  // Predicated region
  $region54: #{vit3d_forward.1} parent=0 // pred_check
    _
  $region55: #{vit3d_forward.1} parent=0 // pred_check_branch
    %56 = sbr.rel (0) target = $region57
  $region56: #{vit3d_forward.1} parent=0 // pred_region
    _
  $region57: #{vit3d_forward.1} parent=0 // pred_fallthru
    _
  // Predicated region
  $region58: #{vit3d_forward.1} parent=0 // pred_check
    _
  $region59: #{vit3d_forward.1} parent=0 // pred_check_branch
    %58 = sbr.rel (0) target = $region61
  $region60: #{vit3d_forward.1} parent=0 // pred_region
    _
  $region61: #{vit3d_forward.1} parent=0 // pred_fallthru
    _
  // Predicated region
  $region62: #{vit3d_forward.1} parent=0 // pred_check
    _
  $region63: #{vit3d_forward.1} parent=0 // pred_check_branch
    %60 = sbr.rel (0) target = $region65
  $region64: #{vit3d_forward.1} parent=0 // pred_region
    _
  $region65: #{vit3d_forward.1} parent=0 // pred_fallthru
    _
  // Predicated region
  $region66: #{vit3d_forward.1} parent=0 // pred_check
    _
  $region67: #{vit3d_forward.1} parent=0 // pred_check_branch
    %62 = sbr.rel (0) target = $region69
  $region68: #{vit3d_forward.1} parent=0 // pred_region
    _
  $region69: #{vit3d_forward.1} parent=0 // pred_fallthru
    _
  // Predicated region
  $region70: #{vit3d_forward.1} parent=0 // pred_check
    _
  $region71: #{vit3d_forward.1} parent=0 // pred_check_branch
    %64 = sbr.rel (0) target = $region73
  $region72: #{vit3d_forward.1} parent=0 // pred_region
    _
  $region73: #{vit3d_forward.1} parent=0 // pred_fallthru
    _
  // Predicated region
  $region74: #{vit3d_forward.1} parent=0 // pred_check
    _
  $region75: #{vit3d_forward.1} parent=0 // pred_check_branch
    %66 = sbr.rel (0) target = $region77
  $region76: #{vit3d_forward.1} parent=0 // pred_region
    _
  $region77: #{vit3d_forward.1} parent=0 // pred_fallthru
    _
  // Predicated region
  $region78: #{vit3d_forward.1} parent=0 // pred_check
    _
  $region79: #{vit3d_forward.1} parent=0 // pred_check_branch
    %68 = sbr.rel (0) target = $region81
  $region80: #{vit3d_forward.1} parent=0 // pred_region
    _
  $region81: #{vit3d_forward.1} parent=0 // pred_fallthru
    _
  // Predicated region
  $region82: #{vit3d_forward.1} parent=0 // pred_check
    _
  $region83: #{vit3d_forward.1} parent=0 // pred_check_branch
    %70 = sbr.rel (0) target = $region85
  $region84: #{vit3d_forward.1} parent=0 // pred_region
    _
  $region85: #{vit3d_forward.1} parent=0 // pred_fallthru
    _
  // Predicated region
  $region86: #{vit3d_forward.1} parent=0 // pred_check
    _
  $region87: #{vit3d_forward.1} parent=0 // pred_check_branch
    %72 = sbr.rel (0) target = $region89
  $region88: #{vit3d_forward.1} parent=0 // pred_region
    _
  $region89: #{vit3d_forward.1} parent=0 // pred_fallthru
    _
  // Predicated region
  $region90: #{vit3d_forward.1} parent=0 // pred_check
    _
  $region91: #{vit3d_forward.1} parent=0 // pred_check_branch
    %74 = sbr.rel (0) target = $region93
  $region92: #{vit3d_forward.1} parent=0 // pred_region
    _
  $region93: #{vit3d_forward.1} parent=0 // pred_fallthru
    _
  // Predicated region
  $region94: #{vit3d_forward.1} parent=0 // pred_check
    _
  $region95: #{vit3d_forward.1} parent=0 // pred_check_branch
    %76 = sbr.rel (0) target = $region97
  $region96: #{vit3d_forward.1} parent=0 // pred_region
    _
  $region97: #{vit3d_forward.1} parent=0 // pred_fallthru
    _
  %v77 = vld [vmem:[%s2] sm:$0xff]
  %v78 = vld [vmem:[%s2 + $0x8] sm:$0xff]
  %v79 = vld [vmem:[%s2 + $0x10] sm:$0xff]
  %v80 = vld [vmem:[%s0] sm:$0xff]
  %v81 = vld [vmem:[%s0 + $0x8] sm:$0xff]
  %v82 = vld [vmem:[%s0 + $0x10] sm:$0xff]
  %v83 = vld [vmem:[%s0 + $0x18] sm:$0xff]
  %v84 = vld [vmem:[%s0 + $0x20] sm:$0xff]
  %v85 = vld [vmem:[%s0 + $0x28] sm:$0xff]
  %v86 = vld [vmem:[%s0 + $0x30] sm:$0xff]
  %v87 = vld [vmem:[%s0 + $0x38] sm:$0xff]
  %v88 = vld [vmem:[%s0 + $0x40] sm:$0xff]
  %v89 = vld [vmem:[%s0 + $0x48] sm:$0xff]
  %v90 = vld [vmem:[%s0 + $0x50] sm:$0xff]
  %v91 = vld [vmem:[%s0 + $0x58] sm:$0xff]
  %v92 = vld [vmem:[%s3] sm:$0xff]
  %v93 = vld [vmem:[%s3 + $0x8] sm:$0xff]
  %v94 = vld [vmem:[%s3 + $0x10] sm:$0xff]
  %v95 = vld [vmem:[%s3 + $0x18] sm:$0xff]
  %v96 = vld [vmem:[%s3 + $0x20] sm:$0xff]
  %v97 = vld [vmem:[%s3 + $0x28] sm:$0xff]
  %v98 = vld [vmem:[%s3 + $0x30] sm:$0xff]
  %v99 = vld [vmem:[%s3 + $0x38] sm:$0xff]
  %v100 = vld [vmem:[%s3 + $0x40] sm:$0xff]
  %v101 = vld [vmem:[%s3 + $0x48] sm:$0xff]
  %v102 = vld [vmem:[%s3 + $0x50] sm:$0xff]
  %v103 = vld [vmem:[%s3 + $0x58] sm:$0xff]
  %v104 = vld [vmem:[%s3 + $0x60] sm:$0xff]
  %v105 = vld [vmem:[%s3 + $0x68] sm:$0xff]
  %v106 = vld [vmem:[%s3 + $0x70] sm:$0xff]
  %v107 = vld [vmem:[%s3 + $0x78] sm:$0xff]
  %v108 = vld [vmem:[%s3 + $0x80] sm:$0xff]
  %v109 = vld [vmem:[%s3 + $0x88] sm:$0xff]
  %v110 = vld [vmem:[%s3 + $0x90] sm:$0xff]
  %v111 = vld [vmem:[%s3 + $0x98] sm:$0xff]
  %v112 = vld [vmem:[%s3 + $0xa0] sm:$0xff]
  %v113 = vld [vmem:[%s3 + $0xa8] sm:$0xff]
  %v114 = vld [vmem:[%s3 + $0xb0] sm:$0xff]
  %v115 = vld [vmem:[%s3 + $0xb8] sm:$0xff]
  %v116 = vld [vmem:[%s3 + $0xc0] sm:$0xff]
  %v117 = vld [vmem:[%s3 + $0xc8] sm:$0xff]
  %v118 = vld [vmem:[%s3 + $0xd0] sm:$0xff]
  %v119 = vld [vmem:[%s3 + $0xd8] sm:$0xff]
  %v120 = vld [vmem:[%s3 + $0xe0] sm:$0xff]
  %v121 = vld [vmem:[%s3 + $0xe8] sm:$0xff]
  %v122 = vld [vmem:[%s3 + $0xf0] sm:$0xff]
  %v123 = vld [vmem:[%s3 + $0xf8] sm:$0xff]
  %v124 = vld [vmem:[%s3 + $0x100] sm:$0xff]
  %v125 = vld [vmem:[%s3 + $0x108] sm:$0xff]
  %v126 = vld [vmem:[%s3 + $0x110] sm:$0xff]
  %v127 = vld [vmem:[%s3 + $0x118] sm:$0xff]
  %v128 = vld [vmem:[%s3 + $0x120] sm:$0xff]
  %v129 = vld [vmem:[%s3 + $0x128] sm:$0xff]
  %v130 = vld [vmem:[%s3 + $0x130] sm:$0xff]
  %v131 = vld [vmem:[%s3 + $0x138] sm:$0xff]
  %v132 = vld [vmem:[%s3 + $0x140] sm:$0xff]
  %v133 = vld [vmem:[%s3 + $0x148] sm:$0xff]
  %v134 = vld [vmem:[%s3 + $0x150] sm:$0xff]
  %v135 = vld [vmem:[%s3 + $0x158] sm:$0xff]
  %v136 = vld [vmem:[%s3 + $0x160] sm:$0xff]
  %v137 = vld [vmem:[%s3 + $0x168] sm:$0xff]
  %v138 = vld [vmem:[%s3 + $0x170] sm:$0xff]
  %v139 = vld [vmem:[%s3 + $0x178] sm:$0xff]
  %v140 = vld [vmem:[%s3 + $0x180] sm:$0xff]
  %v141 = vld [vmem:[%s3 + $0x188] sm:$0xff]
  %v142 = vld [vmem:[%s3 + $0x190] sm:$0xff]
  %v143 = vld [vmem:[%s3 + $0x198] sm:$0xff]
  %v144 = vld [vmem:[%s3 + $0x1a0] sm:$0xff]
  %v145 = vld [vmem:[%s3 + $0x1a8] sm:$0xff]
  %v146 = vld [vmem:[%s3 + $0x1b0] sm:$0xff]
  %v147 = vld [vmem:[%s3 + $0x1b8] sm:$0xff]
  %v148 = vld [vmem:[%s3 + $0x1c0] sm:$0xff]
  %v149 = vld [vmem:[%s3 + $0x1c8] sm:$0xff]
  %v150 = vld [vmem:[%s3 + $0x1d0] sm:$0xff]
  %v151 = vld [vmem:[%s3 + $0x1d8] sm:$0xff]
  %v152 = vld [vmem:[%s3 + $0x1e0] sm:$0xff]
  %v153 = vld [vmem:[%s3 + $0x1e8] sm:$0xff]
  %v154 = vld [vmem:[%s3 + $0x1f0] sm:$0xff]
  %v155 = vld [vmem:[%s3 + $0x1f8] sm:$0xff]
  %v156 = vld [vmem:[%s1] sm:$0xff]
  %v157 = vld [vmem:[%s1 + $0x8] sm:$0xff]
  %v158 = vld [vmem:[%s1 + $0x10] sm:$0xff]
  %159 = vmatprep.subr.mxu0 0.0
  %160 = vmatpush1.msra.mxu0 %v92
  %161 = vmatprep.subr.mxu0 0.0
  %162 = vmatpush1.msra.mxu0 %v93
  %163 = vmatprep.subr.mxu0 0.0
  %164 = vmatpush1.msra.mxu0 %v94
  %165 = vmatprep.subr.mxu0 0.0
  %166 = vmatpush1.msra.mxu0 %v95
  %167 = vmatprep.subr.mxu0 0.0
  %168 = vmatpush1.msra.mxu0 %v96
  %169 = vmatprep.subr.mxu0 0.0
  %170 = vmatpush1.msra.mxu0 %v97
  %171 = vmatprep.subr.mxu0 0.0
  %172 = vmatpush1.msra.mxu0 %v98
  %173 = vmatprep.subr.mxu0 0.0
  %174 = vmatpush1.msra.mxu0 %v99
  %175 = vmatprep.subr.mxu0 0.0
  %176 = vmatpush1.msra.mxu0 %v100
  %177 = vmatprep.subr.mxu0 0.0
  %178 = vmatpush1.msra.mxu0 %v101
  %179 = vmatprep.subr.mxu0 0.0
  %180 = vmatpush1.msra.mxu0 %v102
  %181 = vmatprep.subr.mxu0 0.0
  %182 = vmatpush1.msra.mxu0 %v103
  %183 = vmatprep.subr.mxu0 0.0
  %184 = vmatpush1.msra.mxu0 %v104
  %185 = vmatprep.subr.mxu0 0.0
  %186 = vmatpush1.msra.mxu0 %v105
  %187 = vmatprep.subr.mxu0 0.0
  %188 = vmatpush1.msra.mxu0 %v106
  %189 = vmatprep.subr.mxu0 0.0
  %190 = vmatpush1.msra.mxu0 %v107
  %191 = vmatprep.subr.mxu0 0.0
  %192 = vmatpush1.msra.mxu0 %v108
  %193 = vmatprep.subr.mxu0 0.0
  %194 = vmatpush1.msra.mxu0 %v109
  %195 = vmatprep.subr.mxu0 0.0
  %196 = vmatpush1.msra.mxu0 %v110
  %197 = vmatprep.subr.mxu0 0.0
  %198 = vmatpush1.msra.mxu0 %v111
  %199 = vmatprep.subr.mxu0 0.0
  %200 = vmatpush1.msra.mxu0 %v112
  %201 = vmatprep.subr.mxu0 0.0
  %202 = vmatpush1.msra.mxu0 %v113
  %203 = vmatprep.subr.mxu0 0.0
  %204 = vmatpush1.msra.mxu0 %v114
  %205 = vmatprep.subr.mxu0 0.0
  %206 = vmatpush1.msra.mxu0 %v115
  %207 = vmatprep.subr.mxu0 0.0
  %208 = vmatpush1.msra.mxu0 %v116
  %209 = vmatprep.subr.mxu0 0.0
  %210 = vmatpush1.msra.mxu0 %v117
  %211 = vmatprep.subr.mxu0 0.0
  %212 = vmatpush1.msra.mxu0 %v118
  %213 = vmatprep.subr.mxu0 0.0
  %214 = vmatpush1.msra.mxu0 %v119
  %215 = vmatprep.subr.mxu0 0.0
  %216 = vmatpush1.msra.mxu0 %v120
  %217 = vmatprep.subr.mxu0 0.0
  %218 = vmatpush1.msra.mxu0 %v121
  %219 = vmatprep.subr.mxu0 0.0
  %220 = vmatpush1.msra.mxu0 %v122
  %221 = vmatprep.subr.mxu0 0.0
  %222 = vmatpush1.msra.mxu0 %v123
  %223 = vmatprep.mubr.f32.mxu0 %v81
  %224 = vmatmul.mubr.f32.gmra.mrb[0].mxu0 %v80
  %v225 = vpop.f32.mrb[0].mxu0
  %v226 = vadd.f32 %v156, %v225
  %v227 = vpop.f32.mrb[0].mxu0
  %228 = vmatprep.mubr.f32.mxu0 %v85
  %229 = vmatmul.mubr.f32.gmra.mrb[0].mxu0 %v84
  %v230 = vpop.f32.mrb[0].mxu0
  %v231 = vadd.f32 %v157, %v230
  %v232 = vpop.f32.mrb[0].mxu0
  %233 = vmatprep.mubr.f32.mxu0 %v89
  %234 = vmatmul.mubr.f32.gmra.mrb[0].mxu0 %v88
  %v235 = vpop.f32.mrb[0].mxu0
  %v236 = vadd.f32 %v158, %v235
  %v237 = vpop.f32.mrb[0].mxu0
  %238 = vdwg.mxu0
  %239 = vmatprep.subr.mxu0 0.0
  %240 = vmatpush1.msra.mxu0 %v124
  %241 = vmatprep.subr.mxu0 0.0
  %242 = vmatpush1.msra.mxu0 %v125
  %243 = vmatprep.subr.mxu0 0.0
  %244 = vmatpush1.msra.mxu0 %v126
  %245 = vmatprep.subr.mxu0 0.0
  %246 = vmatpush1.msra.mxu0 %v127
  %247 = vmatprep.subr.mxu0 0.0
  %248 = vmatpush1.msra.mxu0 %v128
  %249 = vmatprep.subr.mxu0 0.0
  %250 = vmatpush1.msra.mxu0 %v129
  %251 = vmatprep.subr.mxu0 0.0
  %252 = vmatpush1.msra.mxu0 %v130
  %253 = vmatprep.subr.mxu0 0.0
  %254 = vmatpush1.msra.mxu0 %v131
  %255 = vmatprep.subr.mxu0 0.0
  %256 = vmatpush1.msra.mxu0 %v132
  %257 = vmatprep.subr.mxu0 0.0
  %258 = vmatpush1.msra.mxu0 %v133
  %259 = vmatprep.subr.mxu0 0.0
  %260 = vmatpush1.msra.mxu0 %v134
  %261 = vmatprep.subr.mxu0 0.0
  %262 = vmatpush1.msra.mxu0 %v135
  %263 = vmatprep.subr.mxu0 0.0
  %264 = vmatpush1.msra.mxu0 %v136
  %265 = vmatprep.subr.mxu0 0.0
  %266 = vmatpush1.msra.mxu0 %v137
  %267 = vmatprep.subr.mxu0 0.0
  %268 = vmatpush1.msra.mxu0 %v138
  %269 = vmatprep.subr.mxu0 0.0
  %270 = vmatpush1.msra.mxu0 %v139
  %271 = vmatprep.subr.mxu0 0.0
  %272 = vmatpush1.msra.mxu0 %v140
  %273 = vmatprep.subr.mxu0 0.0
  %274 = vmatpush1.msra.mxu0 %v141
  %275 = vmatprep.subr.mxu0 0.0
  %276 = vmatpush1.msra.mxu0 %v142
  %277 = vmatprep.subr.mxu0 0.0
  %278 = vmatpush1.msra.mxu0 %v143
  %279 = vmatprep.subr.mxu0 0.0
  %280 = vmatpush1.msra.mxu0 %v144
  %281 = vmatprep.subr.mxu0 0.0
  %282 = vmatpush1.msra.mxu0 %v145
  %283 = vmatprep.subr.mxu0 0.0
  %284 = vmatpush1.msra.mxu0 %v146
  %285 = vmatprep.subr.mxu0 0.0
  %286 = vmatpush1.msra.mxu0 %v147
  %287 = vmatprep.subr.mxu0 0.0
  %288 = vmatpush1.msra.mxu0 %v148
  %289 = vmatprep.subr.mxu0 0.0
  %290 = vmatpush1.msra.mxu0 %v149
  %291 = vmatprep.subr.mxu0 0.0
  %292 = vmatpush1.msra.mxu0 %v150
  %293 = vmatprep.subr.mxu0 0.0
  %294 = vmatpush1.msra.mxu0 %v151
  %295 = vmatprep.subr.mxu0 0.0
  %296 = vmatpush1.msra.mxu0 %v152
  %297 = vmatprep.subr.mxu0 0.0
  %298 = vmatpush1.msra.mxu0 %v153
  %299 = vmatprep.subr.mxu0 0.0
  %300 = vmatpush1.msra.mxu0 %v154
  %301 = vmatprep.subr.mxu0 0.0
  %302 = vmatpush1.msra.mxu0 %v155
  %303 = vmatprep.mubr.f32.mxu0 %v83
  %304 = vmatmul.mubr.f32.gmra.mrb[0].mxu0 %v82
  %v305 = vpop.f32.mrb[0].mxu0
  %v306 = vadd.f32 %v226, %v305
  %v307 = vpop.f32.mrb[0].mxu0
  %308 = vmatprep.mubr.f32.mxu0 %v87
  %309 = vmatmul.mubr.f32.gmra.mrb[0].mxu0 %v86
  %v310 = vpop.f32.mrb[0].mxu0
  %v311 = vadd.f32 %v231, %v310
  %v312 = vpop.f32.mrb[0].mxu0
  %313 = vmatprep.mubr.f32.mxu0 %v91
  %314 = vmatmul.mubr.f32.gmra.mrb[0].mxu0 %v90
  %v315 = vpop.f32.mrb[0].mxu0
  %v316 = vadd.f32 %v236, %v315
  %v317 = vpop.f32.mrb[0].mxu0
  %318 = vdwg.mxu0
  %v319 = vld [vmem:[%s4] sm:$0x1]
  %v320 = vld [vmem:[%s5] sm:$0x1]
  %vm321 = vcmask 523264
  %v322 = vsel %vm321, %v306, 0.0
  %323 = vadd.xlane.f32.xlu0 %v322
  %v324 = vpop.xlane.xlu0 %323
  %v325 = vsel %vm321, %v311, 0.0
  %326 = vadd.xlane.f32.xlu0 %v325
  %v327 = vpop.xlane.xlu0 %326
  %v328 = vsel %vm321, %v316, 0.0
  %329 = vadd.xlane.f32.xlu0 %v328
  %v330 = vpop.xlane.xlu0 %329
  %v331 = vrcp.pop 64.0
  %v332 = vmul.f32 %v324, %v331
  %v333 = vmul.f32 %v327, %v331
  %v334 = vmul.f32 %v330, %v331
  %v335 = vsub.f32 %v306, %v332
  %v336 = vsub.f32 %v311, %v333
  %v337 = vsub.f32 %v316, %v334
  %v338 = vmul.f32 %v335, %v335
  %v339 = vmul.f32 %v336, %v336
  %v340 = vmul.f32 %v337, %v337
  %v341 = vsel %vm321, %v338, 0.0
  %342 = vadd.xlane.f32.xlu0 %v341
  %v343 = vpop.xlane.xlu0 %342
  %v344 = vsel %vm321, %v339, 0.0
  %345 = vadd.xlane.f32.xlu0 %v344
  %v346 = vpop.xlane.xlu0 %345
  %v347 = vsel %vm321, %v340, 0.0
  %348 = vadd.xlane.f32.xlu0 %v347
  %v349 = vpop.xlane.xlu0 %348
  %v350 = vmul.f32 %v343, %v331
  %v351 = vmul.f32 %v346, %v331
  %v352 = vmul.f32 %v349, %v331
  %v353 = vadd.f32 %v350, 1e-06
  %v354 = vadd.f32 %v351, 1e-06
  %v355 = vadd.f32 %v352, 1e-06
  %v356 = vrsqrt.pop %v353
  %v357 = vrsqrt.pop %v354
  %v358 = vrsqrt.pop %v355
  %v359 = vmul.f32 %v335, %v356
  %v360 = vmul.f32 %v336, %v357
  %v361 = vmul.f32 %v337, %v358
  %v363 = vlaneseq
  %v364 = vshrl.u32 %v363, 7
  %v365 = vsub.s32 0, %v364
  %v366 = vrot.slane %v319, %v365
  %v368 = vmul.f32 %v359, %v366
  %v369 = vmul.f32 %v360, %v366
  %v370 = vmul.f32 %v361, %v366
  %v372 = vlaneseq
  %v373 = vshrl.u32 %v372, 7
  %v374 = vsub.s32 0, %v373
  %v375 = vrot.slane %v320, %v374
  %v377 = vadd.f32 %v368, %v375
  %v378 = vadd.f32 %v369, %v375
  %v379 = vadd.f32 %v370, %v375
  %v380 = vld [vmem:[%s6] sm:$0xff]
  %v381 = vld [vmem:[%s6 + $0x8] sm:$0xff]
  %v382 = vld [vmem:[%s6 + $0x10] sm:$0xff]
  %v383 = vld [vmem:[%s6 + $0x18] sm:$0xff]
  %v384 = vld [vmem:[%s6 + $0x20] sm:$0xff]
  %v385 = vld [vmem:[%s6 + $0x28] sm:$0xff]
  %v386 = vld [vmem:[%s6 + $0x30] sm:$0xff]
  %v387 = vld [vmem:[%s6 + $0x38] sm:$0xff]
  %v388 = vld [vmem:[%s7] sm:$0x1]
  %v390 = vlaneseq
  %v391 = vshrl.u32 %v390, 7
  %v392 = vsub.s32 0, %v391
  %v393 = vrot.slane %v388, %v392
  %v396 = vsel %vm321, %v377, 0
  %v399 = vsel %vm321, %v378, 0
  %v402 = vsel %vm321, %v379, 0
  %404 = vmatprep.subr.mxu0 0.0
  %405 = vmatpush1.msra.mxu0 %v380
  %406 = vmatprep.subr.mxu0 0.0
  %407 = vmatpush1.msra.mxu0 %v381
  %408 = vmatprep.subr.mxu0 0.0
  %409 = vmatpush1.msra.mxu0 %v382
  %410 = vmatprep.subr.mxu0 0.0
  %411 = vmatpush1.msra.mxu0 %v383
  %412 = vmatprep.subr.mxu0 0.0
  %413 = vmatpush1.msra.mxu0 %v384
  %414 = vmatprep.subr.mxu0 0.0
  %415 = vmatpush1.msra.mxu0 %v385
  %416 = vmatprep.subr.mxu0 0.0
  %417 = vmatpush1.msra.mxu0 %v386
  %418 = vmatprep.subr.mxu0 0.0
  %419 = vmatpush1.msra.mxu0 %v387
  %420 = vmatprep.subr.mxu0 0.0
  %421 = vmatpush1.msra.mxu0 0.0
  %422 = vmatprep.subr.mxu0 0.0
  %423 = vmatpush1.msra.mxu0 0.0
  %424 = vmatprep.subr.mxu0 0.0
  %425 = vmatpush1.msra.mxu0 0.0
  %426 = vmatprep.subr.mxu0 0.0
  %427 = vmatpush1.msra.mxu0 0.0
  %428 = vmatprep.subr.mxu0 0.0
  %429 = vmatpush1.msra.mxu0 0.0
  %430 = vmatprep.subr.mxu0 0.0
  %431 = vmatpush1.msra.mxu0 0.0
  %432 = vmatprep.subr.mxu0 0.0
  %433 = vmatpush1.msra.mxu0 0.0
  %434 = vmatprep.subr.mxu0 0.0
  %435 = vmatpush1.msra.mxu0 0.0
  %436 = vmatprep.subr.mxu0 0.0
  %437 = vmatpush1.msra.mxu0 0.0
  %438 = vmatprep.subr.mxu0 0.0
  %439 = vmatpush1.msra.mxu0 0.0
  %440 = vmatprep.subr.mxu0 0.0
  %441 = vmatpush1.msra.mxu0 0.0
  %442 = vmatprep.subr.mxu0 0.0
  %443 = vmatpush1.msra.mxu0 0.0
  %444 = vmatprep.subr.mxu0 0.0
  %445 = vmatpush1.msra.mxu0 0.0
  %446 = vmatprep.subr.mxu0 0.0
  %447 = vmatpush1.msra.mxu0 0.0
  %448 = vmatprep.subr.mxu0 0.0
  %449 = vmatpush1.msra.mxu0 0.0
  %450 = vmatprep.subr.mxu0 0.0
  %451 = vmatpush1.msra.mxu0 0.0
  %452 = vmatprep.subr.mxu0 0.0
  %453 = vmatpush1.msra.mxu0 0.0
  %454 = vmatprep.subr.mxu0 0.0
  %455 = vmatpush1.msra.mxu0 0.0
  %456 = vmatprep.subr.mxu0 0.0
  %457 = vmatpush1.msra.mxu0 0.0
  %458 = vmatprep.subr.mxu0 0.0
  %459 = vmatpush1.msra.mxu0 0.0
  %460 = vmatprep.subr.mxu0 0.0
  %461 = vmatpush1.msra.mxu0 0.0
  %462 = vmatprep.subr.mxu0 0.0
  %463 = vmatpush1.msra.mxu0 0.0
  %464 = vmatprep.subr.mxu0 0.0
  %465 = vmatpush1.msra.mxu0 0.0
  %466 = vmatprep.subr.mxu0 0.0
  %467 = vmatpush1.msra.mxu0 0.0
  %468 = vmatprep.mubr.f32.mxu0 0.0
  %469 = vmatmul.mubr.f32.gmra.mrb[0].mxu0 %v396
  %v470 = vpop.f32.mrb[0].mxu0
  %v471 = vadd.f32 %v393, %v470
  %v472 = vpop.f32.mrb[0].mxu0
  %473 = vmatprep.mubr.f32.mxu0 0.0
  %474 = vmatmul.mubr.f32.gmra.mrb[0].mxu0 %v399
  %v475 = vpop.f32.mrb[0].mxu0
  %v476 = vadd.f32 %v393, %v475
  %v477 = vpop.f32.mrb[0].mxu0
  %478 = vmatprep.mubr.f32.mxu0 0.0
  %479 = vmatmul.mubr.f32.gmra.mrb[0].mxu0 %v402
  %v480 = vpop.f32.mrb[0].mxu0
  %v481 = vadd.f32 %v393, %v480
  %v482 = vpop.f32.mrb[0].mxu0
  %483 = vdwg.mxu0
  %v484 = vld [vmem:[%s8] sm:$0xff]
  %v485 = vld [vmem:[%s8 + $0x8] sm:$0xff]
  %v486 = vld [vmem:[%s8 + $0x10] sm:$0xff]
  %v487 = vld [vmem:[%s8 + $0x18] sm:$0xff]
  %v488 = vld [vmem:[%s8 + $0x20] sm:$0xff]
  %v489 = vld [vmem:[%s8 + $0x28] sm:$0xff]
  %v490 = vld [vmem:[%s8 + $0x30] sm:$0xff]
  %v491 = vld [vmem:[%s8 + $0x38] sm:$0xff]
  %v492 = vld [vmem:[%s9] sm:$0x1]
  %v494 = vlaneseq
  %v495 = vshrl.u32 %v494, 7
  %v496 = vsub.s32 0, %v495
  %v497 = vrot.slane %v492, %v496
  %499 = vmatprep.subr.mxu0 0.0
  %500 = vmatpush1.msra.mxu0 %v484
  %501 = vmatprep.subr.mxu0 0.0
  %502 = vmatpush1.msra.mxu0 %v485
  %503 = vmatprep.subr.mxu0 0.0
  %504 = vmatpush1.msra.mxu0 %v486
  %505 = vmatprep.subr.mxu0 0.0
  %506 = vmatpush1.msra.mxu0 %v487
  %507 = vmatprep.subr.mxu0 0.0
  %508 = vmatpush1.msra.mxu0 %v488
  %509 = vmatprep.subr.mxu0 0.0
  %510 = vmatpush1.msra.mxu0 %v489
  %511 = vmatprep.subr.mxu0 0.0
  %512 = vmatpush1.msra.mxu0 %v490
  %513 = vmatprep.subr.mxu0 0.0
  %514 = vmatpush1.msra.mxu0 %v491
  %515 = vmatprep.subr.mxu0 0.0
  %516 = vmatpush1.msra.mxu0 0.0
  %517 = vmatprep.subr.mxu0 0.0
  %518 = vmatpush1.msra.mxu0 0.0
  %519 = vmatprep.subr.mxu0 0.0
  %520 = vmatpush1.msra.mxu0 0.0
  %521 = vmatprep.subr.mxu0 0.0
  %522 = vmatpush1.msra.mxu0 0.0
  %523 = vmatprep.subr.mxu0 0.0
  %524 = vmatpush1.msra.mxu0 0.0
  %525 = vmatprep.subr.mxu0 0.0
  %526 = vmatpush1.msra.mxu0 0.0
  %527 = vmatprep.subr.mxu0 0.0
  %528 = vmatpush1.msra.mxu0 0.0
  %529 = vmatprep.subr.mxu0 0.0
  %530 = vmatpush1.msra.mxu0 0.0
  %531 = vmatprep.subr.mxu0 0.0
  %532 = vmatpush1.msra.mxu0 0.0
  %533 = vmatprep.subr.mxu0 0.0
  %534 = vmatpush1.msra.mxu0 0.0
  %535 = vmatprep.subr.mxu0 0.0
  %536 = vmatpush1.msra.mxu0 0.0
  %537 = vmatprep.subr.mxu0 0.0
  %538 = vmatpush1.msra.mxu0 0.0
  %539 = vmatprep.subr.mxu0 0.0
  %540 = vmatpush1.msra.mxu0 0.0
  %541 = vmatprep.subr.mxu0 0.0
  %542 = vmatpush1.msra.mxu0 0.0
  %543 = vmatprep.subr.mxu0 0.0
  %544 = vmatpush1.msra.mxu0 0.0
  %545 = vmatprep.subr.mxu0 0.0
  %546 = vmatpush1.msra.mxu0 0.0
  %547 = vmatprep.subr.mxu0 0.0
  %548 = vmatpush1.msra.mxu0 0.0
  %549 = vmatprep.subr.mxu0 0.0
  %550 = vmatpush1.msra.mxu0 0.0
  %551 = vmatprep.subr.mxu0 0.0
  %552 = vmatpush1.msra.mxu0 0.0
  %553 = vmatprep.subr.mxu0 0.0
  %554 = vmatpush1.msra.mxu0 0.0
  %555 = vmatprep.subr.mxu0 0.0
  %556 = vmatpush1.msra.mxu0 0.0
  %557 = vmatprep.subr.mxu0 0.0
  %558 = vmatpush1.msra.mxu0 0.0
  %559 = vmatprep.subr.mxu0 0.0
  %560 = vmatpush1.msra.mxu0 0.0
  %561 = vmatprep.subr.mxu0 0.0
  %562 = vmatpush1.msra.mxu0 0.0
  %563 = vmatprep.mubr.f32.mxu0 0.0
  %564 = vmatmul.mubr.f32.gmra.mrb[0].mxu0 %v396
  %v565 = vpop.f32.mrb[0].mxu0
  %v566 = vadd.f32 %v497, %v565
  %v567 = vpop.f32.mrb[0].mxu0
  %568 = vmatprep.mubr.f32.mxu0 0.0
  %569 = vmatmul.mubr.f32.gmra.mrb[0].mxu0 %v399
  %v570 = vpop.f32.mrb[0].mxu0
  %v571 = vadd.f32 %v497, %v570
  %v572 = vpop.f32.mrb[0].mxu0
  %573 = vmatprep.mubr.f32.mxu0 0.0
  %574 = vmatmul.mubr.f32.gmra.mrb[0].mxu0 %v402
  %v575 = vpop.f32.mrb[0].mxu0
  %v576 = vadd.f32 %v497, %v575
  %v577 = vpop.f32.mrb[0].mxu0
  %578 = vdwg.mxu0
  %v579 = vld [vmem:[%s10] sm:$0xff]
  %v580 = vld [vmem:[%s10 + $0x8] sm:$0xff]
  %v581 = vld [vmem:[%s10 + $0x10] sm:$0xff]
  %v582 = vld [vmem:[%s10 + $0x18] sm:$0xff]
  %v583 = vld [vmem:[%s10 + $0x20] sm:$0xff]
  %v584 = vld [vmem:[%s10 + $0x28] sm:$0xff]
  %v585 = vld [vmem:[%s10 + $0x30] sm:$0xff]
  %v586 = vld [vmem:[%s10 + $0x38] sm:$0xff]
  %v587 = vld [vmem:[%s11] sm:$0x1]
  %v589 = vlaneseq
  %v590 = vshrl.u32 %v589, 7
  %v591 = vsub.s32 0, %v590
  %v592 = vrot.slane %v587, %v591
  %594 = vmatprep.subr.mxu0 0.0
  %595 = vmatpush1.msra.mxu0 %v579
  %596 = vmatprep.subr.mxu0 0.0
  %597 = vmatpush1.msra.mxu0 %v580
  %598 = vmatprep.subr.mxu0 0.0
  %599 = vmatpush1.msra.mxu0 %v581
  %600 = vmatprep.subr.mxu0 0.0
  %601 = vmatpush1.msra.mxu0 %v582
  %602 = vmatprep.subr.mxu0 0.0
  %603 = vmatpush1.msra.mxu0 %v583
  %604 = vmatprep.subr.mxu0 0.0
  %605 = vmatpush1.msra.mxu0 %v584
  %606 = vmatprep.subr.mxu0 0.0
  %607 = vmatpush1.msra.mxu0 %v585
  %608 = vmatprep.subr.mxu0 0.0
  %609 = vmatpush1.msra.mxu0 %v586
  %610 = vmatprep.subr.mxu0 0.0
  %611 = vmatpush1.msra.mxu0 0.0
  %612 = vmatprep.subr.mxu0 0.0
  %613 = vmatpush1.msra.mxu0 0.0
  %614 = vmatprep.subr.mxu0 0.0
  %615 = vmatpush1.msra.mxu0 0.0
  %616 = vmatprep.subr.mxu0 0.0
  %617 = vmatpush1.msra.mxu0 0.0
  %618 = vmatprep.subr.mxu0 0.0
  %619 = vmatpush1.msra.mxu0 0.0
  %620 = vmatprep.subr.mxu0 0.0
  %621 = vmatpush1.msra.mxu0 0.0
  %622 = vmatprep.subr.mxu0 0.0
  %623 = vmatpush1.msra.mxu0 0.0
  %624 = vmatprep.subr.mxu0 0.0
  %625 = vmatpush1.msra.mxu0 0.0
  %626 = vmatprep.subr.mxu0 0.0
  %627 = vmatpush1.msra.mxu0 0.0
  %628 = vmatprep.subr.mxu0 0.0
  %629 = vmatpush1.msra.mxu0 0.0
  %630 = vmatprep.subr.mxu0 0.0
  %631 = vmatpush1.msra.mxu0 0.0
  %632 = vmatprep.subr.mxu0 0.0
  %633 = vmatpush1.msra.mxu0 0.0
  %634 = vmatprep.subr.mxu0 0.0
  %635 = vmatpush1.msra.mxu0 0.0
  %636 = vmatprep.subr.mxu0 0.0
  %637 = vmatpush1.msra.mxu0 0.0
  %638 = vmatprep.subr.mxu0 0.0
  %639 = vmatpush1.msra.mxu0 0.0
  %640 = vmatprep.subr.mxu0 0.0
  %641 = vmatpush1.msra.mxu0 0.0
  %642 = vmatprep.subr.mxu0 0.0
  %643 = vmatpush1.msra.mxu0 0.0
  %644 = vmatprep.subr.mxu0 0.0
  %645 = vmatpush1.msra.mxu0 0.0
  %646 = vmatprep.subr.mxu0 0.0
  %647 = vmatpush1.msra.mxu0 0.0
  %648 = vmatprep.subr.mxu0 0.0
  %649 = vmatpush1.msra.mxu0 0.0
  %650 = vmatprep.subr.mxu0 0.0
  %651 = vmatpush1.msra.mxu0 0.0
  %652 = vmatprep.subr.mxu0 0.0
  %653 = vmatpush1.msra.mxu0 0.0
  %654 = vmatprep.subr.mxu0 0.0
  %655 = vmatpush1.msra.mxu0 0.0
  %656 = vmatprep.subr.mxu0 0.0
  %657 = vmatpush1.msra.mxu0 0.0
  %658 = vmatprep.mubr.f32.mxu0 0.0
  %659 = vmatmul.mubr.f32.gmra.mrb[0].mxu0 %v396
  %v660 = vpop.f32.mrb[0].mxu0
  %v661 = vadd.f32 %v592, %v660
  %v662 = vpop.f32.mrb[0].mxu0
  %663 = vmatprep.mubr.f32.mxu0 0.0
  %664 = vmatmul.mubr.f32.gmra.mrb[0].mxu0 %v399
  %v665 = vpop.f32.mrb[0].mxu0
  %v666 = vadd.f32 %v592, %v665
  %v667 = vpop.f32.mrb[0].mxu0
  %668 = vmatprep.mubr.f32.mxu0 0.0
  %669 = vmatmul.mubr.f32.gmra.mrb[0].mxu0 %v402
  %v670 = vpop.f32.mrb[0].mxu0
  %v671 = vadd.f32 %v592, %v670
  %v672 = vpop.f32.mrb[0].mxu0
  %673 = vdwg.mxu0
  %v674 = vld [vmem:[%s12] sm:$0xff]
  %v675 = vld [vmem:[%s12 + $0x8] sm:$0xff]
  %v676 = vld [vmem:[%s12 + $0x10] sm:$0xff]
  %v677 = vld [vmem:[%s12 + $0x18] sm:$0xff]
  %v678 = vld [vmem:[%s12 + $0x20] sm:$0xff]
  %v679 = vld [vmem:[%s12 + $0x28] sm:$0xff]
  %v680 = vld [vmem:[%s12 + $0x30] sm:$0xff]
  %v681 = vld [vmem:[%s12 + $0x38] sm:$0xff]
  %vm682 = vcmask 130048
  %v684 = vsel %vm682, %v471, 0
  %v687 = vsel %vm682, %v476, 0
  %v690 = vsel %vm682, %v481, 0
  %v693 = vsel %vm682, %v566, 0
  %v696 = vsel %vm682, %v571, 0
  %v699 = vsel %vm682, %v576, 0
  %701 = vmatprep.subr.mxu0 0.0
  %702 = vmatpush1.xpose.msra.mxu0 %v693
  %703 = vmatprep.subr.mxu0 0.0
  %704 = vmatpush1.xpose.msra.mxu0 %v696
  %705 = vmatprep.subr.mxu0 0.0
  %706 = vmatpush1.xpose.msra.mxu0 %v699
  %707 = vmatprep.subr.mxu0 0.0
  %708 = vmatpush1.xpose.msra.mxu0 0.0
  %709 = vmatprep.subr.mxu0 0.0
  %710 = vmatpush1.xpose.msra.mxu0 0.0
  %711 = vmatprep.subr.mxu0 0.0
  %712 = vmatpush1.xpose.msra.mxu0 0.0
  %713 = vmatprep.subr.mxu0 0.0
  %714 = vmatpush1.xpose.msra.mxu0 0.0
  %715 = vmatprep.subr.mxu0 0.0
  %716 = vmatpush1.xpose.msra.mxu0 0.0
  %717 = vmatprep.subr.mxu0 0.0
  %718 = vmatpush1.xpose.msra.mxu0 0.0
  %719 = vmatprep.subr.mxu0 0.0
  %720 = vmatpush1.xpose.msra.mxu0 0.0
  %721 = vmatprep.subr.mxu0 0.0
  %722 = vmatpush1.xpose.msra.mxu0 0.0
  %723 = vmatprep.subr.mxu0 0.0
  %724 = vmatpush1.xpose.msra.mxu0 0.0
  %725 = vmatprep.subr.mxu0 0.0
  %726 = vmatpush1.xpose.msra.mxu0 0.0
  %727 = vmatprep.subr.mxu0 0.0
  %728 = vmatpush1.xpose.msra.mxu0 0.0
  %729 = vmatprep.subr.mxu0 0.0
  %730 = vmatpush1.xpose.msra.mxu0 0.0
  %731 = vmatprep.subr.mxu0 0.0
  %732 = vmatpush1.xpose.msra.mxu0 0.0
  %733 = vmatprep.subr.mxu0 0.0
  %734 = vmatpush1.xpose.msra.mxu0 0.0
  %735 = vmatprep.subr.mxu0 0.0
  %736 = vmatpush1.xpose.msra.mxu0 0.0
  %737 = vmatprep.subr.mxu0 0.0
  %738 = vmatpush1.xpose.msra.mxu0 0.0
  %739 = vmatprep.subr.mxu0 0.0
  %740 = vmatpush1.xpose.msra.mxu0 0.0
  %741 = vmatprep.subr.mxu0 0.0
  %742 = vmatpush1.xpose.msra.mxu0 0.0
  %743 = vmatprep.subr.mxu0 0.0
  %744 = vmatpush1.xpose.msra.mxu0 0.0
  %745 = vmatprep.subr.mxu0 0.0
  %746 = vmatpush1.xpose.msra.mxu0 0.0
  %747 = vmatprep.subr.mxu0 0.0
  %748 = vmatpush1.xpose.msra.mxu0 0.0
  %749 = vmatprep.subr.mxu0 0.0
  %750 = vmatpush1.xpose.msra.mxu0 0.0
  %751 = vmatprep.subr.mxu0 0.0
  %752 = vmatpush1.xpose.msra.mxu0 0.0
  %753 = vmatprep.subr.mxu0 0.0
  %754 = vmatpush1.xpose.msra.mxu0 0.0
  %755 = vmatprep.subr.mxu0 0.0
  %756 = vmatpush1.xpose.msra.mxu0 0.0
  %757 = vmatprep.subr.mxu0 0.0
  %758 = vmatpush1.xpose.msra.mxu0 0.0
  %759 = vmatprep.subr.mxu0 0.0
  %760 = vmatpush1.xpose.msra.mxu0 0.0
  %761 = vmatprep.subr.mxu0 0.0
  %762 = vmatpush1.xpose.msra.mxu0 0.0
  %763 = vmatprep.subr.mxu0 0.0
  %764 = vmatpush1.xpose.msra.mxu0 0.0
  %765 = vmatprep.mubr.f32.mxu0 0.0
  %766 = vmatmul.mubr.f32.gmra.mrb[0].mxu0 %v684
  %v767 = vpop.f32.mrb[0].mxu0
  %v768 = vadd.f32 %v77, %v767
  %v769 = vpop.f32.mrb[0].mxu0
  %770 = vmatprep.mubr.f32.mxu0 0.0
  %771 = vmatmul.mubr.f32.gmra.mrb[0].mxu0 %v687
  %v772 = vpop.f32.mrb[0].mxu0
  %v773 = vadd.f32 %v78, %v772
  %v774 = vpop.f32.mrb[0].mxu0
  %775 = vmatprep.mubr.f32.mxu0 0.0
  %776 = vmatmul.mubr.f32.gmra.mrb[0].mxu0 %v690
  %v777 = vpop.f32.mrb[0].mxu0
  %v778 = vadd.f32 %v79, %v777
  %v779 = vpop.f32.mrb[0].mxu0
  %780 = vdwg.mxu0
  %vm781 = vcmask 195584
  %v782 = vsel %vm781, %v768, -inf
  %783 = vmax.xlane.f32.xlu0 %v782
  %v784 = vpop.xlane.xlu0 %783
  %v785 = vsel %vm781, %v773, -inf
  %786 = vmax.xlane.f32.xlu0 %v785
  %v787 = vpop.xlane.xlu0 %786
  %v788 = vsel %vm781, %v778, -inf
  %789 = vmax.xlane.f32.xlu0 %v788
  %v790 = vpop.xlane.xlu0 %789
  %v791 = vsub.f32 %v768, %v784
  %v792 = vsub.f32 %v773, %v787
  %v793 = vsub.f32 %v778, %v790
  %v794 = vmul.f32 %v791, 1.442695
  %v795 = vpow.pop %v794
  %v796 = vmul.f32 %v792, 1.442695
  %v797 = vpow.pop %v796
  %v798 = vmul.f32 %v793, 1.442695
  %v799 = vpow.pop %v798
  %v800 = vsel %vm781, %v795, 0.0
  %801 = vadd.xlane.f32.xlu0 %v800
  %v802 = vpop.xlane.xlu0 %801
  %v803 = vsel %vm781, %v797, 0.0
  %804 = vadd.xlane.f32.xlu0 %v803
  %v805 = vpop.xlane.xlu0 %804
  %v806 = vsel %vm781, %v799, 0.0
  %807 = vadd.xlane.f32.xlu0 %v806
  %v808 = vpop.xlane.xlu0 %807
  %v809 = vrcp.pop %v802
  %v810 = vmul.f32 %v795, %v809
  %v811 = vrcp.pop %v805
  %v812 = vmul.f32 %v797, %v811
  %v813 = vrcp.pop %v808
  %v814 = vmul.f32 %v799, %v813
  %v816 = vsel %vm781, %v810, 0
  %v819 = vsel %vm781, %v812, 0
  %v822 = vsel %vm781, %v814, 0
  %824 = vmatprep.subr.mxu0 0.0
  %825 = vmatpush1.msra.mxu0 %v661
  %826 = vmatprep.subr.mxu0 0.0
  %827 = vmatpush1.msra.mxu0 %v666
  %828 = vmatprep.subr.mxu0 0.0
  %829 = vmatpush1.msra.mxu0 %v671
  %830 = vmatprep.subr.mxu0 0.0
  %831 = vmatpush1.msra.mxu0 0.0
  %832 = vmatprep.subr.mxu0 0.0
  %833 = vmatpush1.msra.mxu0 0.0
  %834 = vmatprep.subr.mxu0 0.0
  %835 = vmatpush1.msra.mxu0 0.0
  %836 = vmatprep.subr.mxu0 0.0
  %837 = vmatpush1.msra.mxu0 0.0
  %838 = vmatprep.subr.mxu0 0.0
  %839 = vmatpush1.msra.mxu0 0.0
  %840 = vmatprep.subr.mxu0 0.0
  %841 = vmatpush1.msra.mxu0 0.0
  %842 = vmatprep.subr.mxu0 0.0
  %843 = vmatpush1.msra.mxu0 0.0
  %844 = vmatprep.subr.mxu0 0.0
  %845 = vmatpush1.msra.mxu0 0.0
  %846 = vmatprep.subr.mxu0 0.0
  %847 = vmatpush1.msra.mxu0 0.0
  %848 = vmatprep.subr.mxu0 0.0
  %849 = vmatpush1.msra.mxu0 0.0
  %850 = vmatprep.subr.mxu0 0.0
  %851 = vmatpush1.msra.mxu0 0.0
  %852 = vmatprep.subr.mxu0 0.0
  %853 = vmatpush1.msra.mxu0 0.0
  %854 = vmatprep.subr.mxu0 0.0
  %855 = vmatpush1.msra.mxu0 0.0
  %856 = vmatprep.subr.mxu0 0.0
  %857 = vmatpush1.msra.mxu0 0.0
  %858 = vmatprep.subr.mxu0 0.0
  %859 = vmatpush1.msra.mxu0 0.0
  %860 = vmatprep.subr.mxu0 0.0
  %861 = vmatpush1.msra.mxu0 0.0
  %862 = vmatprep.subr.mxu0 0.0
  %863 = vmatpush1.msra.mxu0 0.0
  %864 = vmatprep.subr.mxu0 0.0
  %865 = vmatpush1.msra.mxu0 0.0
  %866 = vmatprep.subr.mxu0 0.0
  %867 = vmatpush1.msra.mxu0 0.0
  %868 = vmatprep.subr.mxu0 0.0
  %869 = vmatpush1.msra.mxu0 0.0
  %870 = vmatprep.subr.mxu0 0.0
  %871 = vmatpush1.msra.mxu0 0.0
  %872 = vmatprep.subr.mxu0 0.0
  %873 = vmatpush1.msra.mxu0 0.0
  %874 = vmatprep.subr.mxu0 0.0
  %875 = vmatpush1.msra.mxu0 0.0
  %876 = vmatprep.subr.mxu0 0.0
  %877 = vmatpush1.msra.mxu0 0.0
  %878 = vmatprep.subr.mxu0 0.0
  %879 = vmatpush1.msra.mxu0 0.0
  %880 = vmatprep.subr.mxu0 0.0
  %881 = vmatpush1.msra.mxu0 0.0
  %882 = vmatprep.subr.mxu0 0.0
  %883 = vmatpush1.msra.mxu0 0.0
  %884 = vmatprep.subr.mxu0 0.0
  %885 = vmatpush1.msra.mxu0 0.0
  %886 = vmatprep.subr.mxu0 0.0
  %887 = vmatpush1.msra.mxu0 0.0
  %888 = vmatprep.mubr.f32.mxu0 0.0
  %889 = vmatmul.mubr.f32.gmra.mrb[0].mxu0 %v816
  %v890 = vpop.f32.mrb[0].mxu0
  %v891 = vadd.f32 0.0, %v890
  %v892 = vpop.f32.mrb[0].mxu0
  %893 = vmatprep.mubr.f32.mxu0 0.0
  %894 = vmatmul.mubr.f32.gmra.mrb[0].mxu0 %v819
  %v895 = vpop.f32.mrb[0].mxu0
  %v896 = vadd.f32 0.0, %v895
  %v897 = vpop.f32.mrb[0].mxu0
  %898 = vmatprep.mubr.f32.mxu0 0.0
  %899 = vmatmul.mubr.f32.gmra.mrb[0].mxu0 %v822
  %v900 = vpop.f32.mrb[0].mxu0
  %v901 = vadd.f32 0.0, %v900
  %v902 = vpop.f32.mrb[0].mxu0
  %903 = vdwg.mxu0
  %v904 = vld [vmem:[%s13] sm:$0x1]
  %v906 = vlaneseq
  %v907 = vshrl.u32 %v906, 7
  %v908 = vsub.s32 0, %v907
  %v909 = vrot.slane %v904, %v908
  %v912 = vsel %vm682, %v891, 0
  %v915 = vsel %vm682, %v896, 0
  %v918 = vsel %vm682, %v901, 0
  %920 = vmatprep.subr.mxu0 0.0
  %921 = vmatpush1.msra.mxu0 %v674
  %922 = vmatprep.subr.mxu0 0.0
  %923 = vmatpush1.msra.mxu0 %v675
  %924 = vmatprep.subr.mxu0 0.0
  %925 = vmatpush1.msra.mxu0 0.0
  %926 = vmatprep.subr.mxu0 0.0
  %927 = vmatpush1.msra.mxu0 0.0
  %928 = vmatprep.subr.mxu0 0.0
  %929 = vmatpush1.msra.mxu0 0.0
  %930 = vmatprep.subr.mxu0 0.0
  %931 = vmatpush1.msra.mxu0 0.0
  %932 = vmatprep.subr.mxu0 0.0
  %933 = vmatpush1.msra.mxu0 0.0
  %934 = vmatprep.subr.mxu0 0.0
  %935 = vmatpush1.msra.mxu0 0.0
  %936 = vmatprep.subr.mxu0 0.0
  %937 = vmatpush1.msra.mxu0 0.0
  %938 = vmatprep.subr.mxu0 0.0
  %939 = vmatpush1.msra.mxu0 0.0
  %940 = vmatprep.subr.mxu0 0.0
  %941 = vmatpush1.msra.mxu0 0.0
  %942 = vmatprep.subr.mxu0 0.0
  %943 = vmatpush1.msra.mxu0 0.0
  %944 = vmatprep.subr.mxu0 0.0
  %945 = vmatpush1.msra.mxu0 0.0
  %946 = vmatprep.subr.mxu0 0.0
  %947 = vmatpush1.msra.mxu0 0.0
  %948 = vmatprep.subr.mxu0 0.0
  %949 = vmatpush1.msra.mxu0 0.0
  %950 = vmatprep.subr.mxu0 0.0
  %951 = vmatpush1.msra.mxu0 0.0
  %952 = vmatprep.subr.mxu0 0.0
  %953 = vmatpush1.msra.mxu0 0.0
  %954 = vmatprep.subr.mxu0 0.0
  %955 = vmatpush1.msra.mxu0 0.0
  %956 = vmatprep.subr.mxu0 0.0
  %957 = vmatpush1.msra.mxu0 0.0
  %958 = vmatprep.subr.mxu0 0.0
  %959 = vmatpush1.msra.mxu0 0.0
  %960 = vmatprep.subr.mxu0 0.0
  %961 = vmatpush1.msra.mxu0 0.0
  %962 = vmatprep.subr.mxu0 0.0
  %963 = vmatpush1.msra.mxu0 0.0
  %964 = vmatprep.subr.mxu0 0.0
  %965 = vmatpush1.msra.mxu0 0.0
  %966 = vmatprep.subr.mxu0 0.0
  %967 = vmatpush1.msra.mxu0 0.0
  %968 = vmatprep.subr.mxu0 0.0
  %969 = vmatpush1.msra.mxu0 0.0
  %970 = vmatprep.subr.mxu0 0.0
  %971 = vmatpush1.msra.mxu0 0.0
  %972 = vmatprep.subr.mxu0 0.0
  %973 = vmatpush1.msra.mxu0 0.0
  %974 = vmatprep.subr.mxu0 0.0
  %975 = vmatpush1.msra.mxu0 0.0
  %976 = vmatprep.subr.mxu0 0.0
  %977 = vmatpush1.msra.mxu0 0.0
  %978 = vmatprep.subr.mxu0 0.0
  %979 = vmatpush1.msra.mxu0 0.0
  %980 = vmatprep.subr.mxu0 0.0
  %981 = vmatpush1.msra.mxu0 0.0
  %982 = vmatprep.subr.mxu0 0.0
  %983 = vmatpush1.msra.mxu0 0.0
  %984 = vmatprep.mubr.f32.mxu0 0.0
  %985 = vmatmul.mubr.f32.gmra.mrb[0].mxu0 %v912
  %v986 = vpop.f32.mrb[0].mxu0
  %v987 = vadd.f32 %v909, %v986
  %v988 = vpop.f32.mrb[0].mxu0
  %989 = vmatprep.mubr.f32.mxu0 0.0
  %990 = vmatmul.mubr.f32.gmra.mrb[0].mxu0 %v915
  %v991 = vpop.f32.mrb[0].mxu0
  %v992 = vadd.f32 %v909, %v991
  %v993 = vpop.f32.mrb[0].mxu0
  %994 = vmatprep.mubr.f32.mxu0 0.0
  %995 = vmatmul.mubr.f32.gmra.mrb[0].mxu0 %v918
  %v996 = vpop.f32.mrb[0].mxu0
  %v997 = vadd.f32 %v909, %v996
  %v998 = vpop.f32.mrb[0].mxu0
  %999 = vdwg.mxu0
  %1000 = vrot.lane.b32.xlu0 %v471, 112
  %v1001 = vpop.permute.xlu0 %1000
  %1002 = vrot.lane.b32.xlu0 %v476, 112
  %v1003 = vpop.permute.xlu0 %1002
  %1004 = vrot.lane.b32.xlu0 %v481, 112
  %v1005 = vpop.permute.xlu0 %1004
  %1006 = vrot.lane.b32.xlu0 %v566, 112
  %v1007 = vpop.permute.xlu0 %1006
  %1008 = vrot.lane.b32.xlu0 %v571, 112
  %v1009 = vpop.permute.xlu0 %1008
  %1010 = vrot.lane.b32.xlu0 %v576, 112
  %v1011 = vpop.permute.xlu0 %1010
  %v1012 = vsel %vm682, %v1001, 0
  %v1014 = vsel %vm682, %v1003, 0
  %v1016 = vsel %vm682, %v1005, 0
  %v1018 = vsel %vm682, %v1007, 0
  %v1020 = vsel %vm682, %v1009, 0
  %v1022 = vsel %vm682, %v1011, 0
  %1024 = vmatprep.subr.mxu0 0.0
  %1025 = vmatpush1.xpose.msra.mxu0 %v1018
  %1026 = vmatprep.subr.mxu0 0.0
  %1027 = vmatpush1.xpose.msra.mxu0 %v1020
  %1028 = vmatprep.subr.mxu0 0.0
  %1029 = vmatpush1.xpose.msra.mxu0 %v1022
  %1030 = vmatprep.subr.mxu0 0.0
  %1031 = vmatpush1.xpose.msra.mxu0 0.0
  %1032 = vmatprep.subr.mxu0 0.0
  %1033 = vmatpush1.xpose.msra.mxu0 0.0
  %1034 = vmatprep.subr.mxu0 0.0
  %1035 = vmatpush1.xpose.msra.mxu0 0.0
  %1036 = vmatprep.subr.mxu0 0.0
  %1037 = vmatpush1.xpose.msra.mxu0 0.0
  %1038 = vmatprep.subr.mxu0 0.0
  %1039 = vmatpush1.xpose.msra.mxu0 0.0
  %1040 = vmatprep.subr.mxu0 0.0
  %1041 = vmatpush1.xpose.msra.mxu0 0.0
  %1042 = vmatprep.subr.mxu0 0.0
  %1043 = vmatpush1.xpose.msra.mxu0 0.0
  %1044 = vmatprep.subr.mxu0 0.0
  %1045 = vmatpush1.xpose.msra.mxu0 0.0
  %1046 = vmatprep.subr.mxu0 0.0
  %1047 = vmatpush1.xpose.msra.mxu0 0.0
  %1048 = vmatprep.subr.mxu0 0.0
  %1049 = vmatpush1.xpose.msra.mxu0 0.0
  %1050 = vmatprep.subr.mxu0 0.0
  %1051 = vmatpush1.xpose.msra.mxu0 0.0
  %1052 = vmatprep.subr.mxu0 0.0
  %1053 = vmatpush1.xpose.msra.mxu0 0.0
  %1054 = vmatprep.subr.mxu0 0.0
  %1055 = vmatpush1.xpose.msra.mxu0 0.0
  %1056 = vmatprep.subr.mxu0 0.0
  %1057 = vmatpush1.xpose.msra.mxu0 0.0
  %1058 = vmatprep.subr.mxu0 0.0
  %1059 = vmatpush1.xpose.msra.mxu0 0.0
  %1060 = vmatprep.subr.mxu0 0.0
  %1061 = vmatpush1.xpose.msra.mxu0 0.0
  %1062 = vmatprep.subr.mxu0 0.0
  %1063 = vmatpush1.xpose.msra.mxu0 0.0
  %1064 = vmatprep.subr.mxu0 0.0
  %1065 = vmatpush1.xpose.msra.mxu0 0.0
  %1066 = vmatprep.subr.mxu0 0.0
  %1067 = vmatpush1.xpose.msra.mxu0 0.0
  %1068 = vmatprep.subr.mxu0 0.0
  %1069 = vmatpush1.xpose.msra.mxu0 0.0
  %1070 = vmatprep.subr.mxu0 0.0
  %1071 = vmatpush1.xpose.msra.mxu0 0.0
  %1072 = vmatprep.subr.mxu0 0.0
  %1073 = vmatpush1.xpose.msra.mxu0 0.0
  %1074 = vmatprep.subr.mxu0 0.0
  %1075 = vmatpush1.xpose.msra.mxu0 0.0
  %1076 = vmatprep.subr.mxu0 0.0
  %1077 = vmatpush1.xpose.msra.mxu0 0.0
  %1078 = vmatprep.subr.mxu0 0.0
  %1079 = vmatpush1.xpose.msra.mxu0 0.0
  %1080 = vmatprep.subr.mxu0 0.0
  %1081 = vmatpush1.xpose.msra.mxu0 0.0
  %1082 = vmatprep.subr.mxu0 0.0
  %1083 = vmatpush1.xpose.msra.mxu0 0.0
  %1084 = vmatprep.subr.mxu0 0.0
  %1085 = vmatpush1.xpose.msra.mxu0 0.0
  %1086 = vmatprep.subr.mxu0 0.0
  %1087 = vmatpush1.xpose.msra.mxu0 0.0
  %1088 = vmatprep.mubr.f32.mxu0 0.0
  %1089 = vmatmul.mubr.f32.gmra.mrb[0].mxu0 %v1012
  %v1090 = vpop.f32.mrb[0].mxu0
  %v1091 = vadd.f32 %v77, %v1090
  %v1092 = vpop.f32.mrb[0].mxu0
  %1093 = vmatprep.mubr.f32.mxu0 0.0
  %1094 = vmatmul.mubr.f32.gmra.mrb[0].mxu0 %v1014
  %v1095 = vpop.f32.mrb[0].mxu0
  %v1096 = vadd.f32 %v78, %v1095
  %v1097 = vpop.f32.mrb[0].mxu0
  %1098 = vmatprep.mubr.f32.mxu0 0.0
  %1099 = vmatmul.mubr.f32.gmra.mrb[0].mxu0 %v1016
  %v1100 = vpop.f32.mrb[0].mxu0
  %v1101 = vadd.f32 %v79, %v1100
  %v1102 = vpop.f32.mrb[0].mxu0
  %1103 = vdwg.mxu0
  %v1104 = vsel %vm781, %v1091, -inf
  %1105 = vmax.xlane.f32.xlu0 %v1104
  %v1106 = vpop.xlane.xlu0 %1105
  %v1107 = vsel %vm781, %v1096, -inf
  %1108 = vmax.xlane.f32.xlu0 %v1107
  %v1109 = vpop.xlane.xlu0 %1108
  %v1110 = vsel %vm781, %v1101, -inf
  %1111 = vmax.xlane.f32.xlu0 %v1110
  %v1112 = vpop.xlane.xlu0 %1111
  %v1113 = vsub.f32 %v1091, %v1106
  %v1114 = vsub.f32 %v1096, %v1109
  %v1115 = vsub.f32 %v1101, %v1112
  %v1116 = vmul.f32 %v1113, 1.442695
  %v1117 = vpow.pop %v1116
  %v1118 = vmul.f32 %v1114, 1.442695
  %v1119 = vpow.pop %v1118
  %v1120 = vmul.f32 %v1115, 1.442695
  %v1121 = vpow.pop %v1120
  %v1122 = vsel %vm781, %v1117, 0.0
  %1123 = vadd.xlane.f32.xlu0 %v1122
  %v1124 = vpop.xlane.xlu0 %1123
  %v1125 = vsel %vm781, %v1119, 0.0
  %1126 = vadd.xlane.f32.xlu0 %v1125
  %v1127 = vpop.xlane.xlu0 %1126
  %v1128 = vsel %vm781, %v1121, 0.0
  %1129 = vadd.xlane.f32.xlu0 %v1128
  %v1130 = vpop.xlane.xlu0 %1129
  %v1131 = vrcp.pop %v1124
  %v1132 = vmul.f32 %v1117, %v1131
  %v1133 = vrcp.pop %v1127
  %v1134 = vmul.f32 %v1119, %v1133
  %v1135 = vrcp.pop %v1130
  %v1136 = vmul.f32 %v1121, %v1135
  %1140 = vrot.lane.b32.xlu0 %v661, 112
  %v1141 = vpop.permute.xlu0 %1140
  %1142 = vrot.lane.b32.xlu0 %v666, 112
  %v1143 = vpop.permute.xlu0 %1142
  %1144 = vrot.lane.b32.xlu0 %v671, 112
  %v1145 = vpop.permute.xlu0 %1144
  %v1150 = vsel %vm781, %v1132, 0
  %v1153 = vsel %vm781, %v1134, 0
  %v1156 = vsel %vm781, %v1136, 0
  %1158 = vmatprep.subr.mxu0 0.0
  %1159 = vmatpush1.msra.mxu0 %v1141
  %1160 = vmatprep.subr.mxu0 0.0
  %1161 = vmatpush1.msra.mxu0 %v1143
  %1162 = vmatprep.subr.mxu0 0.0
  %1163 = vmatpush1.msra.mxu0 %v1145
  %1164 = vmatprep.subr.mxu0 0.0
  %1165 = vmatpush1.msra.mxu0 0.0
  %1166 = vmatprep.subr.mxu0 0.0
  %1167 = vmatpush1.msra.mxu0 0.0
  %1168 = vmatprep.subr.mxu0 0.0
  %1169 = vmatpush1.msra.mxu0 0.0
  %1170 = vmatprep.subr.mxu0 0.0
  %1171 = vmatpush1.msra.mxu0 0.0
  %1172 = vmatprep.subr.mxu0 0.0
  %1173 = vmatpush1.msra.mxu0 0.0
  %1174 = vmatprep.subr.mxu0 0.0
  %1175 = vmatpush1.msra.mxu0 0.0
  %1176 = vmatprep.subr.mxu0 0.0
  %1177 = vmatpush1.msra.mxu0 0.0
  %1178 = vmatprep.subr.mxu0 0.0
  %1179 = vmatpush1.msra.mxu0 0.0
  %1180 = vmatprep.subr.mxu0 0.0
  %1181 = vmatpush1.msra.mxu0 0.0
  %1182 = vmatprep.subr.mxu0 0.0
  %1183 = vmatpush1.msra.mxu0 0.0
  %1184 = vmatprep.subr.mxu0 0.0
  %1185 = vmatpush1.msra.mxu0 0.0
  %1186 = vmatprep.subr.mxu0 0.0
  %1187 = vmatpush1.msra.mxu0 0.0
  %1188 = vmatprep.subr.mxu0 0.0
  %1189 = vmatpush1.msra.mxu0 0.0
  %1190 = vmatprep.subr.mxu0 0.0
  %1191 = vmatpush1.msra.mxu0 0.0
  %1192 = vmatprep.subr.mxu0 0.0
  %1193 = vmatpush1.msra.mxu0 0.0
  %1194 = vmatprep.subr.mxu0 0.0
  %1195 = vmatpush1.msra.mxu0 0.0
  %1196 = vmatprep.subr.mxu0 0.0
  %1197 = vmatpush1.msra.mxu0 0.0
  %1198 = vmatprep.subr.mxu0 0.0
  %1199 = vmatpush1.msra.mxu0 0.0
  %1200 = vmatprep.subr.mxu0 0.0
  %1201 = vmatpush1.msra.mxu0 0.0
  %1202 = vmatprep.subr.mxu0 0.0
  %1203 = vmatpush1.msra.mxu0 0.0
  %1204 = vmatprep.subr.mxu0 0.0
  %1205 = vmatpush1.msra.mxu0 0.0
  %1206 = vmatprep.subr.mxu0 0.0
  %1207 = vmatpush1.msra.mxu0 0.0
  %1208 = vmatprep.subr.mxu0 0.0
  %1209 = vmatpush1.msra.mxu0 0.0
  %1210 = vmatprep.subr.mxu0 0.0
  %1211 = vmatpush1.msra.mxu0 0.0
  %1212 = vmatprep.subr.mxu0 0.0
  %1213 = vmatpush1.msra.mxu0 0.0
  %1214 = vmatprep.subr.mxu0 0.0
  %1215 = vmatpush1.msra.mxu0 0.0
  %1216 = vmatprep.subr.mxu0 0.0
  %1217 = vmatpush1.msra.mxu0 0.0
  %1218 = vmatprep.subr.mxu0 0.0
  %1219 = vmatpush1.msra.mxu0 0.0
  %1220 = vmatprep.subr.mxu0 0.0
  %1221 = vmatpush1.msra.mxu0 0.0
  %1222 = vmatprep.mubr.f32.mxu0 0.0
  %1223 = vmatmul.mubr.f32.gmra.mrb[0].mxu0 %v1150
  %v1224 = vpop.f32.mrb[0].mxu0
  %v1225 = vadd.f32 0.0, %v1224
  %v1226 = vpop.f32.mrb[0].mxu0
  %1227 = vmatprep.mubr.f32.mxu0 0.0
  %1228 = vmatmul.mubr.f32.gmra.mrb[0].mxu0 %v1153
  %v1229 = vpop.f32.mrb[0].mxu0
  %v1230 = vadd.f32 0.0, %v1229
  %v1231 = vpop.f32.mrb[0].mxu0
  %1232 = vmatprep.mubr.f32.mxu0 0.0
  %1233 = vmatmul.mubr.f32.gmra.mrb[0].mxu0 %v1156
  %v1234 = vpop.f32.mrb[0].mxu0
  %v1235 = vadd.f32 0.0, %v1234
  %v1236 = vpop.f32.mrb[0].mxu0
  %1237 = vdwg.mxu0
  %v1239 = vsel %vm682, %v1225, 0
  %v1242 = vsel %vm682, %v1230, 0
  %v1245 = vsel %vm682, %v1235, 0
  %1247 = vmatprep.subr.mxu0 0.0
  %1248 = vmatpush1.msra.mxu0 %v676
  %1249 = vmatprep.subr.mxu0 0.0
  %1250 = vmatpush1.msra.mxu0 %v677
  %1251 = vmatprep.subr.mxu0 0.0
  %1252 = vmatpush1.msra.mxu0 0.0
  %1253 = vmatprep.subr.mxu0 0.0
  %1254 = vmatpush1.msra.mxu0 0.0
  %1255 = vmatprep.subr.mxu0 0.0
  %1256 = vmatpush1.msra.mxu0 0.0
  %1257 = vmatprep.subr.mxu0 0.0
  %1258 = vmatpush1.msra.mxu0 0.0
  %1259 = vmatprep.subr.mxu0 0.0
  %1260 = vmatpush1.msra.mxu0 0.0
  %1261 = vmatprep.subr.mxu0 0.0
  %1262 = vmatpush1.msra.mxu0 0.0
  %1263 = vmatprep.subr.mxu0 0.0
  %1264 = vmatpush1.msra.mxu0 0.0
  %1265 = vmatprep.subr.mxu0 0.0
  %1266 = vmatpush1.msra.mxu0 0.0
  %1267 = vmatprep.subr.mxu0 0.0
  %1268 = vmatpush1.msra.mxu0 0.0
  %1269 = vmatprep.subr.mxu0 0.0
  %1270 = vmatpush1.msra.mxu0 0.0
  %1271 = vmatprep.subr.mxu0 0.0
  %1272 = vmatpush1.msra.mxu0 0.0
  %1273 = vmatprep.subr.mxu0 0.0
  %1274 = vmatpush1.msra.mxu0 0.0
  %1275 = vmatprep.subr.mxu0 0.0
  %1276 = vmatpush1.msra.mxu0 0.0
  %1277 = vmatprep.subr.mxu0 0.0
  %1278 = vmatpush1.msra.mxu0 0.0
  %1279 = vmatprep.subr.mxu0 0.0
  %1280 = vmatpush1.msra.mxu0 0.0
  %1281 = vmatprep.subr.mxu0 0.0
  %1282 = vmatpush1.msra.mxu0 0.0
  %1283 = vmatprep.subr.mxu0 0.0
  %1284 = vmatpush1.msra.mxu0 0.0
  %1285 = vmatprep.subr.mxu0 0.0
  %1286 = vmatpush1.msra.mxu0 0.0
  %1287 = vmatprep.subr.mxu0 0.0
  %1288 = vmatpush1.msra.mxu0 0.0
  %1289 = vmatprep.subr.mxu0 0.0
  %1290 = vmatpush1.msra.mxu0 0.0
  %1291 = vmatprep.subr.mxu0 0.0
  %1292 = vmatpush1.msra.mxu0 0.0
  %1293 = vmatprep.subr.mxu0 0.0
  %1294 = vmatpush1.msra.mxu0 0.0
  %1295 = vmatprep.subr.mxu0 0.0
  %1296 = vmatpush1.msra.mxu0 0.0
  %1297 = vmatprep.subr.mxu0 0.0
  %1298 = vmatpush1.msra.mxu0 0.0
  %1299 = vmatprep.subr.mxu0 0.0
  %1300 = vmatpush1.msra.mxu0 0.0
  %1301 = vmatprep.subr.mxu0 0.0
  %1302 = vmatpush1.msra.mxu0 0.0
  %1303 = vmatprep.subr.mxu0 0.0
  %1304 = vmatpush1.msra.mxu0 0.0
  %1305 = vmatprep.subr.mxu0 0.0
  %1306 = vmatpush1.msra.mxu0 0.0
  %1307 = vmatprep.subr.mxu0 0.0
  %1308 = vmatpush1.msra.mxu0 0.0
  %1309 = vmatprep.subr.mxu0 0.0
  %1310 = vmatpush1.msra.mxu0 0.0
  %1311 = vmatprep.mubr.f32.mxu0 0.0
  %1312 = vmatmul.mubr.f32.gmra.mrb[0].mxu0 %v1239
  %v1313 = vpop.f32.mrb[0].mxu0
  %v1314 = vadd.f32 0.0, %v1313
  %v1315 = vpop.f32.mrb[0].mxu0
  %1316 = vmatprep.mubr.f32.mxu0 0.0
  %1317 = vmatmul.mubr.f32.gmra.mrb[0].mxu0 %v1242
  %v1318 = vpop.f32.mrb[0].mxu0
  %v1319 = vadd.f32 0.0, %v1318
  %v1320 = vpop.f32.mrb[0].mxu0
  %1321 = vmatprep.mubr.f32.mxu0 0.0
  %1322 = vmatmul.mubr.f32.gmra.mrb[0].mxu0 %v1245
  %v1323 = vpop.f32.mrb[0].mxu0
  %v1324 = vadd.f32 0.0, %v1323
  %v1325 = vpop.f32.mrb[0].mxu0
  %1326 = vdwg.mxu0
  %v1327 = vadd.f32 %v987, %v1314
  %v1328 = vadd.f32 %v992, %v1319
  %v1329 = vadd.f32 %v997, %v1324
  %1330 = vrot.lane.b32.xlu0 %v471, 96
  %v1331 = vpop.permute.xlu0 %1330
  %1332 = vrot.lane.b32.xlu0 %v476, 96
  %v1333 = vpop.permute.xlu0 %1332
  %1334 = vrot.lane.b32.xlu0 %v481, 96
  %v1335 = vpop.permute.xlu0 %1334
  %1336 = vrot.lane.b32.xlu0 %v566, 96
  %v1337 = vpop.permute.xlu0 %1336
  %1338 = vrot.lane.b32.xlu0 %v571, 96
  %v1339 = vpop.permute.xlu0 %1338
  %1340 = vrot.lane.b32.xlu0 %v576, 96
  %v1341 = vpop.permute.xlu0 %1340
  %v1342 = vsel %vm682, %v1331, 0
  %v1344 = vsel %vm682, %v1333, 0
  %v1346 = vsel %vm682, %v1335, 0
  %v1348 = vsel %vm682, %v1337, 0
  %v1350 = vsel %vm682, %v1339, 0
  %v1352 = vsel %vm682, %v1341, 0
  %1354 = vmatprep.subr.mxu0 0.0
  %1355 = vmatpush1.xpose.msra.mxu0 %v1348
  %1356 = vmatprep.subr.mxu0 0.0
  %1357 = vmatpush1.xpose.msra.mxu0 %v1350
  %1358 = vmatprep.subr.mxu0 0.0
  %1359 = vmatpush1.xpose.msra.mxu0 %v1352
  %1360 = vmatprep.subr.mxu0 0.0
  %1361 = vmatpush1.xpose.msra.mxu0 0.0
  %1362 = vmatprep.subr.mxu0 0.0
  %1363 = vmatpush1.xpose.msra.mxu0 0.0
  %1364 = vmatprep.subr.mxu0 0.0
  %1365 = vmatpush1.xpose.msra.mxu0 0.0
  %1366 = vmatprep.subr.mxu0 0.0
  %1367 = vmatpush1.xpose.msra.mxu0 0.0
  %1368 = vmatprep.subr.mxu0 0.0
  %1369 = vmatpush1.xpose.msra.mxu0 0.0
  %1370 = vmatprep.subr.mxu0 0.0
  %1371 = vmatpush1.xpose.msra.mxu0 0.0
  %1372 = vmatprep.subr.mxu0 0.0
  %1373 = vmatpush1.xpose.msra.mxu0 0.0
  %1374 = vmatprep.subr.mxu0 0.0
  %1375 = vmatpush1.xpose.msra.mxu0 0.0
  %1376 = vmatprep.subr.mxu0 0.0
  %1377 = vmatpush1.xpose.msra.mxu0 0.0
  %1378 = vmatprep.subr.mxu0 0.0
  %1379 = vmatpush1.xpose.msra.mxu0 0.0
  %1380 = vmatprep.subr.mxu0 0.0
  %1381 = vmatpush1.xpose.msra.mxu0 0.0
  %1382 = vmatprep.subr.mxu0 0.0
  %1383 = vmatpush1.xpose.msra.mxu0 0.0
  %1384 = vmatprep.subr.mxu0 0.0
  %1385 = vmatpush1.xpose.msra.mxu0 0.0
  %1386 = vmatprep.subr.mxu0 0.0
  %1387 = vmatpush1.xpose.msra.mxu0 0.0
  %1388 = vmatprep.subr.mxu0 0.0
  %1389 = vmatpush1.xpose.msra.mxu0 0.0
  %1390 = vmatprep.subr.mxu0 0.0
  %1391 = vmatpush1.xpose.msra.mxu0 0.0
  %1392 = vmatprep.subr.mxu0 0.0
  %1393 = vmatpush1.xpose.msra.mxu0 0.0
  %1394 = vmatprep.subr.mxu0 0.0
  %1395 = vmatpush1.xpose.msra.mxu0 0.0
  %1396 = vmatprep.subr.mxu0 0.0
  %1397 = vmatpush1.xpose.msra.mxu0 0.0
  %1398 = vmatprep.subr.mxu0 0.0
  %1399 = vmatpush1.xpose.msra.mxu0 0.0
  %1400 = vmatprep.subr.mxu0 0.0
  %1401 = vmatpush1.xpose.msra.mxu0 0.0
  %1402 = vmatprep.subr.mxu0 0.0
  %1403 = vmatpush1.xpose.msra.mxu0 0.0
  %1404 = vmatprep.subr.mxu0 0.0
  %1405 = vmatpush1.xpose.msra.mxu0 0.0
  %1406 = vmatprep.subr.mxu0 0.0
  %1407 = vmatpush1.xpose.msra.mxu0 0.0
  %1408 = vmatprep.subr.mxu0 0.0
  %1409 = vmatpush1.xpose.msra.mxu0 0.0
  %1410 = vmatprep.subr.mxu0 0.0
  %1411 = vmatpush1.xpose.msra.mxu0 0.0
  %1412 = vmatprep.subr.mxu0 0.0
  %1413 = vmatpush1.xpose.msra.mxu0 0.0
  %1414 = vmatprep.subr.mxu0 0.0
  %1415 = vmatpush1.xpose.msra.mxu0 0.0
  %1416 = vmatprep.subr.mxu0 0.0
  %1417 = vmatpush1.xpose.msra.mxu0 0.0
  %1418 = vmatprep.mubr.f32.mxu0 0.0
  %1419 = vmatmul.mubr.f32.gmra.mrb[0].mxu0 %v1342
  %v1420 = vpop.f32.mrb[0].mxu0
  %v1421 = vadd.f32 %v77, %v1420
  %v1422 = vpop.f32.mrb[0].mxu0
  %1423 = vmatprep.mubr.f32.mxu0 0.0
  %1424 = vmatmul.mubr.f32.gmra.mrb[0].mxu0 %v1344
  %v1425 = vpop.f32.mrb[0].mxu0
  %v1426 = vadd.f32 %v78, %v1425
  %v1427 = vpop.f32.mrb[0].mxu0
  %1428 = vmatprep.mubr.f32.mxu0 0.0
  %1429 = vmatmul.mubr.f32.gmra.mrb[0].mxu0 %v1346
  %v1430 = vpop.f32.mrb[0].mxu0
  %v1431 = vadd.f32 %v79, %v1430
  %v1432 = vpop.f32.mrb[0].mxu0
  %1433 = vdwg.mxu0
  %v1434 = vsel %vm781, %v1421, -inf
  %1435 = vmax.xlane.f32.xlu0 %v1434
  %v1436 = vpop.xlane.xlu0 %1435
  %v1437 = vsel %vm781, %v1426, -inf
  %1438 = vmax.xlane.f32.xlu0 %v1437
  %v1439 = vpop.xlane.xlu0 %1438
  %v1440 = vsel %vm781, %v1431, -inf
  %1441 = vmax.xlane.f32.xlu0 %v1440
  %v1442 = vpop.xlane.xlu0 %1441
  %v1443 = vsub.f32 %v1421, %v1436
  %v1444 = vsub.f32 %v1426, %v1439
  %v1445 = vsub.f32 %v1431, %v1442
  %v1446 = vmul.f32 %v1443, 1.442695
  %v1447 = vpow.pop %v1446
  %v1448 = vmul.f32 %v1444, 1.442695
  %v1449 = vpow.pop %v1448
  %v1450 = vmul.f32 %v1445, 1.442695
  %v1451 = vpow.pop %v1450
  %v1452 = vsel %vm781, %v1447, 0.0
  %1453 = vadd.xlane.f32.xlu0 %v1452
  %v1454 = vpop.xlane.xlu0 %1453
  %v1455 = vsel %vm781, %v1449, 0.0
  %1456 = vadd.xlane.f32.xlu0 %v1455
  %v1457 = vpop.xlane.xlu0 %1456
  %v1458 = vsel %vm781, %v1451, 0.0
  %1459 = vadd.xlane.f32.xlu0 %v1458
  %v1460 = vpop.xlane.xlu0 %1459
  %v1461 = vrcp.pop %v1454
  %v1462 = vmul.f32 %v1447, %v1461
  %v1463 = vrcp.pop %v1457
  %v1464 = vmul.f32 %v1449, %v1463
  %v1465 = vrcp.pop %v1460
  %v1466 = vmul.f32 %v1451, %v1465
  %1467 = vrot.lane.b32.xlu0 %v661, 96
  %v1468 = vpop.permute.xlu0 %1467
  %1469 = vrot.lane.b32.xlu0 %v666, 96
  %v1470 = vpop.permute.xlu0 %1469
  %1471 = vrot.lane.b32.xlu0 %v671, 96
  %v1472 = vpop.permute.xlu0 %1471
  %v1477 = vsel %vm781, %v1462, 0
  %v1480 = vsel %vm781, %v1464, 0
  %v1483 = vsel %vm781, %v1466, 0
  %1485 = vmatprep.subr.mxu0 0.0
  %1486 = vmatpush1.msra.mxu0 %v1468
  %1487 = vmatprep.subr.mxu0 0.0
  %1488 = vmatpush1.msra.mxu0 %v1470
  %1489 = vmatprep.subr.mxu0 0.0
  %1490 = vmatpush1.msra.mxu0 %v1472
  %1491 = vmatprep.subr.mxu0 0.0
  %1492 = vmatpush1.msra.mxu0 0.0
  %1493 = vmatprep.subr.mxu0 0.0
  %1494 = vmatpush1.msra.mxu0 0.0
  %1495 = vmatprep.subr.mxu0 0.0
  %1496 = vmatpush1.msra.mxu0 0.0
  %1497 = vmatprep.subr.mxu0 0.0
  %1498 = vmatpush1.msra.mxu0 0.0
  %1499 = vmatprep.subr.mxu0 0.0
  %1500 = vmatpush1.msra.mxu0 0.0
  %1501 = vmatprep.subr.mxu0 0.0
  %1502 = vmatpush1.msra.mxu0 0.0
  %1503 = vmatprep.subr.mxu0 0.0
  %1504 = vmatpush1.msra.mxu0 0.0
  %1505 = vmatprep.subr.mxu0 0.0
  %1506 = vmatpush1.msra.mxu0 0.0
  %1507 = vmatprep.subr.mxu0 0.0
  %1508 = vmatpush1.msra.mxu0 0.0
  %1509 = vmatprep.subr.mxu0 0.0
  %1510 = vmatpush1.msra.mxu0 0.0
  %1511 = vmatprep.subr.mxu0 0.0
  %1512 = vmatpush1.msra.mxu0 0.0
  %1513 = vmatprep.subr.mxu0 0.0
  %1514 = vmatpush1.msra.mxu0 0.0
  %1515 = vmatprep.subr.mxu0 0.0
  %1516 = vmatpush1.msra.mxu0 0.0
  %1517 = vmatprep.subr.mxu0 0.0
  %1518 = vmatpush1.msra.mxu0 0.0
  %1519 = vmatprep.subr.mxu0 0.0
  %1520 = vmatpush1.msra.mxu0 0.0
  %1521 = vmatprep.subr.mxu0 0.0
  %1522 = vmatpush1.msra.mxu0 0.0
  %1523 = vmatprep.subr.mxu0 0.0
  %1524 = vmatpush1.msra.mxu0 0.0
  %1525 = vmatprep.subr.mxu0 0.0
  %1526 = vmatpush1.msra.mxu0 0.0
  %1527 = vmatprep.subr.mxu0 0.0
  %1528 = vmatpush1.msra.mxu0 0.0
  %1529 = vmatprep.subr.mxu0 0.0
  %1530 = vmatpush1.msra.mxu0 0.0
  %1531 = vmatprep.subr.mxu0 0.0
  %1532 = vmatpush1.msra.mxu0 0.0
  %1533 = vmatprep.subr.mxu0 0.0
  %1534 = vmatpush1.msra.mxu0 0.0
  %1535 = vmatprep.subr.mxu0 0.0
  %1536 = vmatpush1.msra.mxu0 0.0
  %1537 = vmatprep.subr.mxu0 0.0
  %1538 = vmatpush1.msra.mxu0 0.0
  %1539 = vmatprep.subr.mxu0 0.0
  %1540 = vmatpush1.msra.mxu0 0.0
  %1541 = vmatprep.subr.mxu0 0.0
  %1542 = vmatpush1.msra.mxu0 0.0
  %1543 = vmatprep.subr.mxu0 0.0
  %1544 = vmatpush1.msra.mxu0 0.0
  %1545 = vmatprep.subr.mxu0 0.0
  %1546 = vmatpush1.msra.mxu0 0.0
  %1547 = vmatprep.subr.mxu0 0.0
  %1548 = vmatpush1.msra.mxu0 0.0
  %1549 = vmatprep.mubr.f32.mxu0 0.0
  %1550 = vmatmul.mubr.f32.gmra.mrb[0].mxu0 %v1477
  %v1551 = vpop.f32.mrb[0].mxu0
  %v1552 = vadd.f32 0.0, %v1551
  %v1553 = vpop.f32.mrb[0].mxu0
  %1554 = vmatprep.mubr.f32.mxu0 0.0
  %1555 = vmatmul.mubr.f32.gmra.mrb[0].mxu0 %v1480
  %v1556 = vpop.f32.mrb[0].mxu0
  %v1557 = vadd.f32 0.0, %v1556
  %v1558 = vpop.f32.mrb[0].mxu0
  %1559 = vmatprep.mubr.f32.mxu0 0.0
  %1560 = vmatmul.mubr.f32.gmra.mrb[0].mxu0 %v1483
  %v1561 = vpop.f32.mrb[0].mxu0
  %v1562 = vadd.f32 0.0, %v1561
  %v1563 = vpop.f32.mrb[0].mxu0
  %1564 = vdwg.mxu0
  %v1566 = vsel %vm682, %v1552, 0
  %v1569 = vsel %vm682, %v1557, 0
  %v1572 = vsel %vm682, %v1562, 0
  %1574 = vmatprep.subr.mxu0 0.0
  %1575 = vmatpush1.msra.mxu0 %v678
  %1576 = vmatprep.subr.mxu0 0.0
  %1577 = vmatpush1.msra.mxu0 %v679
  %1578 = vmatprep.subr.mxu0 0.0
  %1579 = vmatpush1.msra.mxu0 0.0
  %1580 = vmatprep.subr.mxu0 0.0
  %1581 = vmatpush1.msra.mxu0 0.0
  %1582 = vmatprep.subr.mxu0 0.0
  %1583 = vmatpush1.msra.mxu0 0.0
  %1584 = vmatprep.subr.mxu0 0.0
  %1585 = vmatpush1.msra.mxu0 0.0
  %1586 = vmatprep.subr.mxu0 0.0
  %1587 = vmatpush1.msra.mxu0 0.0
  %1588 = vmatprep.subr.mxu0 0.0
  %1589 = vmatpush1.msra.mxu0 0.0
  %1590 = vmatprep.subr.mxu0 0.0
  %1591 = vmatpush1.msra.mxu0 0.0
  %1592 = vmatprep.subr.mxu0 0.0
  %1593 = vmatpush1.msra.mxu0 0.0
  %1594 = vmatprep.subr.mxu0 0.0
  %1595 = vmatpush1.msra.mxu0 0.0
  %1596 = vmatprep.subr.mxu0 0.0
  %1597 = vmatpush1.msra.mxu0 0.0
  %1598 = vmatprep.subr.mxu0 0.0
  %1599 = vmatpush1.msra.mxu0 0.0
  %1600 = vmatprep.subr.mxu0 0.0
  %1601 = vmatpush1.msra.mxu0 0.0
  %1602 = vmatprep.subr.mxu0 0.0
  %1603 = vmatpush1.msra.mxu0 0.0
  %1604 = vmatprep.subr.mxu0 0.0
  %1605 = vmatpush1.msra.mxu0 0.0
  %1606 = vmatprep.subr.mxu0 0.0
  %1607 = vmatpush1.msra.mxu0 0.0
  %1608 = vmatprep.subr.mxu0 0.0
  %1609 = vmatpush1.msra.mxu0 0.0
  %1610 = vmatprep.subr.mxu0 0.0
  %1611 = vmatpush1.msra.mxu0 0.0
  %1612 = vmatprep.subr.mxu0 0.0
  %1613 = vmatpush1.msra.mxu0 0.0
  %1614 = vmatprep.subr.mxu0 0.0
  %1615 = vmatpush1.msra.mxu0 0.0
  %1616 = vmatprep.subr.mxu0 0.0
  %1617 = vmatpush1.msra.mxu0 0.0
  %1618 = vmatprep.subr.mxu0 0.0
  %1619 = vmatpush1.msra.mxu0 0.0
  %1620 = vmatprep.subr.mxu0 0.0
  %1621 = vmatpush1.msra.mxu0 0.0
  %1622 = vmatprep.subr.mxu0 0.0
  %1623 = vmatpush1.msra.mxu0 0.0
  %1624 = vmatprep.subr.mxu0 0.0
  %1625 = vmatpush1.msra.mxu0 0.0
  %1626 = vmatprep.subr.mxu0 0.0
  %1627 = vmatpush1.msra.mxu0 0.0
  %1628 = vmatprep.subr.mxu0 0.0
  %1629 = vmatpush1.msra.mxu0 0.0
  %1630 = vmatprep.subr.mxu0 0.0
  %1631 = vmatpush1.msra.mxu0 0.0
  %1632 = vmatprep.subr.mxu0 0.0
  %1633 = vmatpush1.msra.mxu0 0.0
  %1634 = vmatprep.subr.mxu0 0.0
  %1635 = vmatpush1.msra.mxu0 0.0
  %1636 = vmatprep.subr.mxu0 0.0
  %1637 = vmatpush1.msra.mxu0 0.0
  %1638 = vmatprep.mubr.f32.mxu0 0.0
  %1639 = vmatmul.mubr.f32.gmra.mrb[0].mxu0 %v1566
  %v1640 = vpop.f32.mrb[0].mxu0
  %v1641 = vadd.f32 0.0, %v1640
  %v1642 = vpop.f32.mrb[0].mxu0
  %1643 = vmatprep.mubr.f32.mxu0 0.0
  %1644 = vmatmul.mubr.f32.gmra.mrb[0].mxu0 %v1569
  %v1645 = vpop.f32.mrb[0].mxu0
  %v1646 = vadd.f32 0.0, %v1645
  %v1647 = vpop.f32.mrb[0].mxu0
  %1648 = vmatprep.mubr.f32.mxu0 0.0
  %1649 = vmatmul.mubr.f32.gmra.mrb[0].mxu0 %v1572
  %v1650 = vpop.f32.mrb[0].mxu0
  %v1651 = vadd.f32 0.0, %v1650
  %v1652 = vpop.f32.mrb[0].mxu0
  %1653 = vdwg.mxu0
  %v1654 = vadd.f32 %v1327, %v1641
  %v1655 = vadd.f32 %v1328, %v1646
  %v1656 = vadd.f32 %v1329, %v1651
  %1657 = vrot.lane.b32.xlu0 %v471, 80
  %v1658 = vpop.permute.xlu0 %1657
  %1659 = vrot.lane.b32.xlu0 %v476, 80
  %v1660 = vpop.permute.xlu0 %1659
  %1661 = vrot.lane.b32.xlu0 %v481, 80
  %v1662 = vpop.permute.xlu0 %1661
  %1663 = vrot.lane.b32.xlu0 %v566, 80
  %v1664 = vpop.permute.xlu0 %1663
  %1665 = vrot.lane.b32.xlu0 %v571, 80
  %v1666 = vpop.permute.xlu0 %1665
  %1667 = vrot.lane.b32.xlu0 %v576, 80
  %v1668 = vpop.permute.xlu0 %1667
  %v1669 = vsel %vm682, %v1658, 0
  %v1671 = vsel %vm682, %v1660, 0
  %v1673 = vsel %vm682, %v1662, 0
  %v1675 = vsel %vm682, %v1664, 0
  %v1677 = vsel %vm682, %v1666, 0
  %v1679 = vsel %vm682, %v1668, 0
  %1681 = vmatprep.subr.mxu0 0.0
  %1682 = vmatpush1.xpose.msra.mxu0 %v1675
  %1683 = vmatprep.subr.mxu0 0.0
  %1684 = vmatpush1.xpose.msra.mxu0 %v1677
  %1685 = vmatprep.subr.mxu0 0.0
  %1686 = vmatpush1.xpose.msra.mxu0 %v1679
  %1687 = vmatprep.subr.mxu0 0.0
  %1688 = vmatpush1.xpose.msra.mxu0 0.0
  %1689 = vmatprep.subr.mxu0 0.0
  %1690 = vmatpush1.xpose.msra.mxu0 0.0
  %1691 = vmatprep.subr.mxu0 0.0
  %1692 = vmatpush1.xpose.msra.mxu0 0.0
  %1693 = vmatprep.subr.mxu0 0.0
  %1694 = vmatpush1.xpose.msra.mxu0 0.0
  %1695 = vmatprep.subr.mxu0 0.0
  %1696 = vmatpush1.xpose.msra.mxu0 0.0
  %1697 = vmatprep.subr.mxu0 0.0
  %1698 = vmatpush1.xpose.msra.mxu0 0.0
  %1699 = vmatprep.subr.mxu0 0.0
  %1700 = vmatpush1.xpose.msra.mxu0 0.0
  %1701 = vmatprep.subr.mxu0 0.0
  %1702 = vmatpush1.xpose.msra.mxu0 0.0
  %1703 = vmatprep.subr.mxu0 0.0
  %1704 = vmatpush1.xpose.msra.mxu0 0.0
  %1705 = vmatprep.subr.mxu0 0.0
  %1706 = vmatpush1.xpose.msra.mxu0 0.0
  %1707 = vmatprep.subr.mxu0 0.0
  %1708 = vmatpush1.xpose.msra.mxu0 0.0
  %1709 = vmatprep.subr.mxu0 0.0
  %1710 = vmatpush1.xpose.msra.mxu0 0.0
  %1711 = vmatprep.subr.mxu0 0.0
  %1712 = vmatpush1.xpose.msra.mxu0 0.0
  %1713 = vmatprep.subr.mxu0 0.0
  %1714 = vmatpush1.xpose.msra.mxu0 0.0
  %1715 = vmatprep.subr.mxu0 0.0
  %1716 = vmatpush1.xpose.msra.mxu0 0.0
  %1717 = vmatprep.subr.mxu0 0.0
  %1718 = vmatpush1.xpose.msra.mxu0 0.0
  %1719 = vmatprep.subr.mxu0 0.0
  %1720 = vmatpush1.xpose.msra.mxu0 0.0
  %1721 = vmatprep.subr.mxu0 0.0
  %1722 = vmatpush1.xpose.msra.mxu0 0.0
  %1723 = vmatprep.subr.mxu0 0.0
  %1724 = vmatpush1.xpose.msra.mxu0 0.0
  %1725 = vmatprep.subr.mxu0 0.0
  %1726 = vmatpush1.xpose.msra.mxu0 0.0
  %1727 = vmatprep.subr.mxu0 0.0
  %1728 = vmatpush1.xpose.msra.mxu0 0.0
  %1729 = vmatprep.subr.mxu0 0.0
  %1730 = vmatpush1.xpose.msra.mxu0 0.0
  %1731 = vmatprep.subr.mxu0 0.0
  %1732 = vmatpush1.xpose.msra.mxu0 0.0
  %1733 = vmatprep.subr.mxu0 0.0
  %1734 = vmatpush1.xpose.msra.mxu0 0.0
  %1735 = vmatprep.subr.mxu0 0.0
  %1736 = vmatpush1.xpose.msra.mxu0 0.0
  %1737 = vmatprep.subr.mxu0 0.0
  %1738 = vmatpush1.xpose.msra.mxu0 0.0
  %1739 = vmatprep.subr.mxu0 0.0
  %1740 = vmatpush1.xpose.msra.mxu0 0.0
  %1741 = vmatprep.subr.mxu0 0.0
  %1742 = vmatpush1.xpose.msra.mxu0 0.0
  %1743 = vmatprep.subr.mxu0 0.0
  %1744 = vmatpush1.xpose.msra.mxu0 0.0
  %1745 = vmatprep.mubr.f32.mxu0 0.0
  %1746 = vmatmul.mubr.f32.gmra.mrb[0].mxu0 %v1669
  %v1747 = vpop.f32.mrb[0].mxu0
  %v1748 = vadd.f32 %v77, %v1747
  %v1749 = vpop.f32.mrb[0].mxu0
  %1750 = vmatprep.mubr.f32.mxu0 0.0
  %1751 = vmatmul.mubr.f32.gmra.mrb[0].mxu0 %v1671
  %v1752 = vpop.f32.mrb[0].mxu0
  %v1753 = vadd.f32 %v78, %v1752
  %v1754 = vpop.f32.mrb[0].mxu0
  %1755 = vmatprep.mubr.f32.mxu0 0.0
  %1756 = vmatmul.mubr.f32.gmra.mrb[0].mxu0 %v1673
  %v1757 = vpop.f32.mrb[0].mxu0
  %v1758 = vadd.f32 %v79, %v1757
  %v1759 = vpop.f32.mrb[0].mxu0
  %1760 = vdwg.mxu0
  %v1761 = vsel %vm781, %v1748, -inf
  %1762 = vmax.xlane.f32.xlu0 %v1761
  %v1763 = vpop.xlane.xlu0 %1762
  %v1764 = vsel %vm781, %v1753, -inf
  %1765 = vmax.xlane.f32.xlu0 %v1764
  %v1766 = vpop.xlane.xlu0 %1765
  %v1767 = vsel %vm781, %v1758, -inf
  %1768 = vmax.xlane.f32.xlu0 %v1767
  %v1769 = vpop.xlane.xlu0 %1768
  %v1770 = vsub.f32 %v1748, %v1763
  %v1771 = vsub.f32 %v1753, %v1766
  %v1772 = vsub.f32 %v1758, %v1769
  %v1773 = vmul.f32 %v1770, 1.442695
  %v1774 = vpow.pop %v1773
  %v1775 = vmul.f32 %v1771, 1.442695
  %v1776 = vpow.pop %v1775
  %v1777 = vmul.f32 %v1772, 1.442695
  %v1778 = vpow.pop %v1777
  %v1779 = vsel %vm781, %v1774, 0.0
  %1780 = vadd.xlane.f32.xlu0 %v1779
  %v1781 = vpop.xlane.xlu0 %1780
  %v1782 = vsel %vm781, %v1776, 0.0
  %1783 = vadd.xlane.f32.xlu0 %v1782
  %v1784 = vpop.xlane.xlu0 %1783
  %v1785 = vsel %vm781, %v1778, 0.0
  %1786 = vadd.xlane.f32.xlu0 %v1785
  %v1787 = vpop.xlane.xlu0 %1786
  %v1788 = vrcp.pop %v1781
  %v1789 = vmul.f32 %v1774, %v1788
  %v1790 = vrcp.pop %v1784
  %v1791 = vmul.f32 %v1776, %v1790
  %v1792 = vrcp.pop %v1787
  %v1793 = vmul.f32 %v1778, %v1792
  %1794 = vrot.lane.b32.xlu0 %v661, 80
  %v1795 = vpop.permute.xlu0 %1794
  %1796 = vrot.lane.b32.xlu0 %v666, 80
  %v1797 = vpop.permute.xlu0 %1796
  %1798 = vrot.lane.b32.xlu0 %v671, 80
  %v1799 = vpop.permute.xlu0 %1798
  %v1804 = vsel %vm781, %v1789, 0
  %v1807 = vsel %vm781, %v1791, 0
  %v1810 = vsel %vm781, %v1793, 0
  %1812 = vmatprep.subr.mxu0 0.0
  %1813 = vmatpush1.msra.mxu0 %v1795
  %1814 = vmatprep.subr.mxu0 0.0
  %1815 = vmatpush1.msra.mxu0 %v1797
  %1816 = vmatprep.subr.mxu0 0.0
  %1817 = vmatpush1.msra.mxu0 %v1799
  %1818 = vmatprep.subr.mxu0 0.0
  %1819 = vmatpush1.msra.mxu0 0.0
  %1820 = vmatprep.subr.mxu0 0.0
  %1821 = vmatpush1.msra.mxu0 0.0
  %1822 = vmatprep.subr.mxu0 0.0
  %1823 = vmatpush1.msra.mxu0 0.0
  %1824 = vmatprep.subr.mxu0 0.0
  %1825 = vmatpush1.msra.mxu0 0.0
  %1826 = vmatprep.subr.mxu0 0.0
  %1827 = vmatpush1.msra.mxu0 0.0
  %1828 = vmatprep.subr.mxu0 0.0
  %1829 = vmatpush1.msra.mxu0 0.0
  %1830 = vmatprep.subr.mxu0 0.0
  %1831 = vmatpush1.msra.mxu0 0.0
  %1832 = vmatprep.subr.mxu0 0.0
  %1833 = vmatpush1.msra.mxu0 0.0
  %1834 = vmatprep.subr.mxu0 0.0
  %1835 = vmatpush1.msra.mxu0 0.0
  %1836 = vmatprep.subr.mxu0 0.0
  %1837 = vmatpush1.msra.mxu0 0.0
  %1838 = vmatprep.subr.mxu0 0.0
  %1839 = vmatpush1.msra.mxu0 0.0
  %1840 = vmatprep.subr.mxu0 0.0
  %1841 = vmatpush1.msra.mxu0 0.0
  %1842 = vmatprep.subr.mxu0 0.0
  %1843 = vmatpush1.msra.mxu0 0.0
  %1844 = vmatprep.subr.mxu0 0.0
  %1845 = vmatpush1.msra.mxu0 0.0
  %1846 = vmatprep.subr.mxu0 0.0
  %1847 = vmatpush1.msra.mxu0 0.0
  %1848 = vmatprep.subr.mxu0 0.0
  %1849 = vmatpush1.msra.mxu0 0.0
  %1850 = vmatprep.subr.mxu0 0.0
  %1851 = vmatpush1.msra.mxu0 0.0
  %1852 = vmatprep.subr.mxu0 0.0
  %1853 = vmatpush1.msra.mxu0 0.0
  %1854 = vmatprep.subr.mxu0 0.0
  %1855 = vmatpush1.msra.mxu0 0.0
  %1856 = vmatprep.subr.mxu0 0.0
  %1857 = vmatpush1.msra.mxu0 0.0
  %1858 = vmatprep.subr.mxu0 0.0
  %1859 = vmatpush1.msra.mxu0 0.0
  %1860 = vmatprep.subr.mxu0 0.0
  %1861 = vmatpush1.msra.mxu0 0.0
  %1862 = vmatprep.subr.mxu0 0.0
  %1863 = vmatpush1.msra.mxu0 0.0
  %1864 = vmatprep.subr.mxu0 0.0
  %1865 = vmatpush1.msra.mxu0 0.0
  %1866 = vmatprep.subr.mxu0 0.0
  %1867 = vmatpush1.msra.mxu0 0.0
  %1868 = vmatprep.subr.mxu0 0.0
  %1869 = vmatpush1.msra.mxu0 0.0
  %1870 = vmatprep.subr.mxu0 0.0
  %1871 = vmatpush1.msra.mxu0 0.0
  %1872 = vmatprep.subr.mxu0 0.0
  %1873 = vmatpush1.msra.mxu0 0.0
  %1874 = vmatprep.subr.mxu0 0.0
  %1875 = vmatpush1.msra.mxu0 0.0
  %1876 = vmatprep.mubr.f32.mxu0 0.0
  %1877 = vmatmul.mubr.f32.gmra.mrb[0].mxu0 %v1804
  %v1878 = vpop.f32.mrb[0].mxu0
  %v1879 = vadd.f32 0.0, %v1878
  %v1880 = vpop.f32.mrb[0].mxu0
  %1881 = vmatprep.mubr.f32.mxu0 0.0
  %1882 = vmatmul.mubr.f32.gmra.mrb[0].mxu0 %v1807
  %v1883 = vpop.f32.mrb[0].mxu0
  %v1884 = vadd.f32 0.0, %v1883
  %v1885 = vpop.f32.mrb[0].mxu0
  %1886 = vmatprep.mubr.f32.mxu0 0.0
  %1887 = vmatmul.mubr.f32.gmra.mrb[0].mxu0 %v1810
  %v1888 = vpop.f32.mrb[0].mxu0
  %v1889 = vadd.f32 0.0, %v1888
  %v1890 = vpop.f32.mrb[0].mxu0
  %1891 = vdwg.mxu0
  %v1893 = vsel %vm682, %v1879, 0
  %v1896 = vsel %vm682, %v1884, 0
  %v1899 = vsel %vm682, %v1889, 0
  %1901 = vmatprep.subr.mxu0 0.0
  %1902 = vmatpush1.msra.mxu0 %v680
  %1903 = vmatprep.subr.mxu0 0.0
  %1904 = vmatpush1.msra.mxu0 %v681
  %1905 = vmatprep.subr.mxu0 0.0
  %1906 = vmatpush1.msra.mxu0 0.0
  %1907 = vmatprep.subr.mxu0 0.0
  %1908 = vmatpush1.msra.mxu0 0.0
  %1909 = vmatprep.subr.mxu0 0.0
  %1910 = vmatpush1.msra.mxu0 0.0
  %1911 = vmatprep.subr.mxu0 0.0
  %1912 = vmatpush1.msra.mxu0 0.0
  %1913 = vmatprep.subr.mxu0 0.0
  %1914 = vmatpush1.msra.mxu0 0.0
  %1915 = vmatprep.subr.mxu0 0.0
  %1916 = vmatpush1.msra.mxu0 0.0
  %1917 = vmatprep.subr.mxu0 0.0
  %1918 = vmatpush1.msra.mxu0 0.0
  %1919 = vmatprep.subr.mxu0 0.0
  %1920 = vmatpush1.msra.mxu0 0.0
  %1921 = vmatprep.subr.mxu0 0.0
  %1922 = vmatpush1.msra.mxu0 0.0
  %1923 = vmatprep.subr.mxu0 0.0
  %1924 = vmatpush1.msra.mxu0 0.0
  %1925 = vmatprep.subr.mxu0 0.0
  %1926 = vmatpush1.msra.mxu0 0.0
  %1927 = vmatprep.subr.mxu0 0.0
  %1928 = vmatpush1.msra.mxu0 0.0
  %1929 = vmatprep.subr.mxu0 0.0
  %1930 = vmatpush1.msra.mxu0 0.0
  %1931 = vmatprep.subr.mxu0 0.0
  %1932 = vmatpush1.msra.mxu0 0.0
  %1933 = vmatprep.subr.mxu0 0.0
  %1934 = vmatpush1.msra.mxu0 0.0
  %1935 = vmatprep.subr.mxu0 0.0
  %1936 = vmatpush1.msra.mxu0 0.0
  %1937 = vmatprep.subr.mxu0 0.0
  %1938 = vmatpush1.msra.mxu0 0.0
  %1939 = vmatprep.subr.mxu0 0.0
  %1940 = vmatpush1.msra.mxu0 0.0
  %1941 = vmatprep.subr.mxu0 0.0
  %1942 = vmatpush1.msra.mxu0 0.0
  %1943 = vmatprep.subr.mxu0 0.0
  %1944 = vmatpush1.msra.mxu0 0.0
  %1945 = vmatprep.subr.mxu0 0.0
  %1946 = vmatpush1.msra.mxu0 0.0
  %1947 = vmatprep.subr.mxu0 0.0
  %1948 = vmatpush1.msra.mxu0 0.0
  %1949 = vmatprep.subr.mxu0 0.0
  %1950 = vmatpush1.msra.mxu0 0.0
  %1951 = vmatprep.subr.mxu0 0.0
  %1952 = vmatpush1.msra.mxu0 0.0
  %1953 = vmatprep.subr.mxu0 0.0
  %1954 = vmatpush1.msra.mxu0 0.0
  %1955 = vmatprep.subr.mxu0 0.0
  %1956 = vmatpush1.msra.mxu0 0.0
  %1957 = vmatprep.subr.mxu0 0.0
  %1958 = vmatpush1.msra.mxu0 0.0
  %1959 = vmatprep.subr.mxu0 0.0
  %1960 = vmatpush1.msra.mxu0 0.0
  %1961 = vmatprep.subr.mxu0 0.0
  %1962 = vmatpush1.msra.mxu0 0.0
  %1963 = vmatprep.subr.mxu0 0.0
  %1964 = vmatpush1.msra.mxu0 0.0
  %1965 = vmatprep.mubr.f32.mxu0 0.0
  %1966 = vmatmul.mubr.f32.gmra.mrb[0].mxu0 %v1893
  %v1967 = vpop.f32.mrb[0].mxu0
  %v1968 = vadd.f32 0.0, %v1967
  %v1969 = vpop.f32.mrb[0].mxu0
  %1970 = vmatprep.mubr.f32.mxu0 0.0
  %1971 = vmatmul.mubr.f32.gmra.mrb[0].mxu0 %v1896
  %v1972 = vpop.f32.mrb[0].mxu0
  %v1973 = vadd.f32 0.0, %v1972
  %v1974 = vpop.f32.mrb[0].mxu0
  %1975 = vmatprep.mubr.f32.mxu0 0.0
  %1976 = vmatmul.mubr.f32.gmra.mrb[0].mxu0 %v1899
  %v1977 = vpop.f32.mrb[0].mxu0
  %v1978 = vadd.f32 0.0, %v1977
  %v1979 = vpop.f32.mrb[0].mxu0
  %1980 = vdwg.mxu0
  %v1981 = vadd.f32 %v1654, %v1968
  %v1982 = vadd.f32 %v1655, %v1973
  %v1983 = vadd.f32 %v1656, %v1978
  %v1984 = vadd.f32 %v306, %v1981
  %v1985 = vadd.f32 %v311, %v1982
  %v1986 = vadd.f32 %v316, %v1983
  %v1987 = vld [vmem:[%s14] sm:$0x1]
  %v1988 = vld [vmem:[%s15] sm:$0x1]
  %v1989 = vsel %vm321, %v1984, 0.0
  %1990 = vadd.xlane.f32.xlu0 %v1989
  %v1991 = vpop.xlane.xlu0 %1990
  %v1992 = vsel %vm321, %v1985, 0.0
  %1993 = vadd.xlane.f32.xlu0 %v1992
  %v1994 = vpop.xlane.xlu0 %1993
  %v1995 = vsel %vm321, %v1986, 0.0
  %1996 = vadd.xlane.f32.xlu0 %v1995
  %v1997 = vpop.xlane.xlu0 %1996
  %v1998 = vmul.f32 %v1991, %v331
  %v1999 = vmul.f32 %v1994, %v331
  %v2000 = vmul.f32 %v1997, %v331
  %v2001 = vsub.f32 %v1984, %v1998
  %v2002 = vsub.f32 %v1985, %v1999
  %v2003 = vsub.f32 %v1986, %v2000
  %v2004 = vmul.f32 %v2001, %v2001
  %v2005 = vmul.f32 %v2002, %v2002
  %v2006 = vmul.f32 %v2003, %v2003
  %v2007 = vsel %vm321, %v2004, 0.0
  %2008 = vadd.xlane.f32.xlu0 %v2007
  %v2009 = vpop.xlane.xlu0 %2008
  %v2010 = vsel %vm321, %v2005, 0.0
  %2011 = vadd.xlane.f32.xlu0 %v2010
  %v2012 = vpop.xlane.xlu0 %2011
  %v2013 = vsel %vm321, %v2006, 0.0
  %2014 = vadd.xlane.f32.xlu0 %v2013
  %v2015 = vpop.xlane.xlu0 %2014
  %v2016 = vmul.f32 %v2009, %v331
  %v2017 = vmul.f32 %v2012, %v331
  %v2018 = vmul.f32 %v2015, %v331
  %v2019 = vadd.f32 %v2016, 1e-06
  %v2020 = vadd.f32 %v2017, 1e-06
  %v2021 = vadd.f32 %v2018, 1e-06
  %v2022 = vrsqrt.pop %v2019
  %v2023 = vrsqrt.pop %v2020
  %v2024 = vrsqrt.pop %v2021
  %v2025 = vmul.f32 %v2001, %v2022
  %v2026 = vmul.f32 %v2002, %v2023
  %v2027 = vmul.f32 %v2003, %v2024
  %v2029 = vlaneseq
  %v2030 = vshrl.u32 %v2029, 7
  %v2031 = vsub.s32 0, %v2030
  %v2032 = vrot.slane %v1987, %v2031
  %v2034 = vmul.f32 %v2025, %v2032
  %v2035 = vmul.f32 %v2026, %v2032
  %v2036 = vmul.f32 %v2027, %v2032
  %v2038 = vlaneseq
  %v2039 = vshrl.u32 %v2038, 7
  %v2040 = vsub.s32 0, %v2039
  %v2041 = vrot.slane %v1988, %v2040
  %v2043 = vadd.f32 %v2034, %v2041
  %v2044 = vadd.f32 %v2035, %v2041
  %v2045 = vadd.f32 %v2036, %v2041
  %v2046 = vld [vmem:[%s16] sm:$0xff]
  %v2047 = vld [vmem:[%s16 + $0x8] sm:$0xff]
  %v2048 = vld [vmem:[%s16 + $0x10] sm:$0xff]
  %v2049 = vld [vmem:[%s16 + $0x18] sm:$0xff]
  %v2050 = vld [vmem:[%s16 + $0x20] sm:$0xff]
  %v2051 = vld [vmem:[%s16 + $0x28] sm:$0xff]
  %v2052 = vld [vmem:[%s16 + $0x30] sm:$0xff]
  %v2053 = vld [vmem:[%s16 + $0x38] sm:$0xff]
  %v2054 = vld [vmem:[%s16 + $0x40] sm:$0xff]
  %v2055 = vld [vmem:[%s16 + $0x48] sm:$0xff]
  %v2056 = vld [vmem:[%s16 + $0x50] sm:$0xff]
  %v2057 = vld [vmem:[%s16 + $0x58] sm:$0xff]
  %v2058 = vld [vmem:[%s16 + $0x60] sm:$0xff]
  %v2059 = vld [vmem:[%s16 + $0x68] sm:$0xff]
  %v2060 = vld [vmem:[%s16 + $0x70] sm:$0xff]
  %v2061 = vld [vmem:[%s16 + $0x78] sm:$0xff]
  %v2062 = vld [vmem:[%s17] sm:$0x3]
  %v2064 = vlaneseq
  %v2065 = vshrl.u32 %v2064, 7
  %v2066 = vsub.s32 0, %v2065
  %v2067 = vrot.slane %v2062, %v2066
  %v2068 = vlaneseq
  %v2069 = vshrl.u32 %v2068, 7
  %v2070 = vsub.s32 1, %v2069
  %v2071 = vrot.slane %v2062, %v2070
  %v2075 = vsel %vm321, %v2043, 0
  %v2078 = vsel %vm321, %v2044, 0
  %v2081 = vsel %vm321, %v2045, 0
  %2083 = vmatprep.subr.mxu0 %v2047
  %2084 = vmatpush1.msra.mxu0 %v2046
  %2085 = vmatprep.subr.mxu0 %v2049
  %2086 = vmatpush1.msra.mxu0 %v2048
  %2087 = vmatprep.subr.mxu0 %v2051
  %2088 = vmatpush1.msra.mxu0 %v2050
  %2089 = vmatprep.subr.mxu0 %v2053
  %2090 = vmatpush1.msra.mxu0 %v2052
  %2091 = vmatprep.subr.mxu0 %v2055
  %2092 = vmatpush1.msra.mxu0 %v2054
  %2093 = vmatprep.subr.mxu0 %v2057
  %2094 = vmatpush1.msra.mxu0 %v2056
  %2095 = vmatprep.subr.mxu0 %v2059
  %2096 = vmatpush1.msra.mxu0 %v2058
  %2097 = vmatprep.subr.mxu0 %v2061
  %2098 = vmatpush1.msra.mxu0 %v2060
  %2099 = vmatprep.subr.mxu0 0.0
  %2100 = vmatpush1.msra.mxu0 0.0
  %2101 = vmatprep.subr.mxu0 0.0
  %2102 = vmatpush1.msra.mxu0 0.0
  %2103 = vmatprep.subr.mxu0 0.0
  %2104 = vmatpush1.msra.mxu0 0.0
  %2105 = vmatprep.subr.mxu0 0.0
  %2106 = vmatpush1.msra.mxu0 0.0
  %2107 = vmatprep.subr.mxu0 0.0
  %2108 = vmatpush1.msra.mxu0 0.0
  %2109 = vmatprep.subr.mxu0 0.0
  %2110 = vmatpush1.msra.mxu0 0.0
  %2111 = vmatprep.subr.mxu0 0.0
  %2112 = vmatpush1.msra.mxu0 0.0
  %2113 = vmatprep.subr.mxu0 0.0
  %2114 = vmatpush1.msra.mxu0 0.0
  %2115 = vmatprep.subr.mxu0 0.0
  %2116 = vmatpush1.msra.mxu0 0.0
  %2117 = vmatprep.subr.mxu0 0.0
  %2118 = vmatpush1.msra.mxu0 0.0
  %2119 = vmatprep.subr.mxu0 0.0
  %2120 = vmatpush1.msra.mxu0 0.0
  %2121 = vmatprep.subr.mxu0 0.0
  %2122 = vmatpush1.msra.mxu0 0.0
  %2123 = vmatprep.subr.mxu0 0.0
  %2124 = vmatpush1.msra.mxu0 0.0
  %2125 = vmatprep.subr.mxu0 0.0
  %2126 = vmatpush1.msra.mxu0 0.0
  %2127 = vmatprep.subr.mxu0 0.0
  %2128 = vmatpush1.msra.mxu0 0.0
  %2129 = vmatprep.subr.mxu0 0.0
  %2130 = vmatpush1.msra.mxu0 0.0
  %2131 = vmatprep.subr.mxu0 0.0
  %2132 = vmatpush1.msra.mxu0 0.0
  %2133 = vmatprep.subr.mxu0 0.0
  %2134 = vmatpush1.msra.mxu0 0.0
  %2135 = vmatprep.subr.mxu0 0.0
  %2136 = vmatpush1.msra.mxu0 0.0
  %2137 = vmatprep.subr.mxu0 0.0
  %2138 = vmatpush1.msra.mxu0 0.0
  %2139 = vmatprep.subr.mxu0 0.0
  %2140 = vmatpush1.msra.mxu0 0.0
  %2141 = vmatprep.subr.mxu0 0.0
  %2142 = vmatpush1.msra.mxu0 0.0
  %2143 = vmatprep.subr.mxu0 0.0
  %2144 = vmatpush1.msra.mxu0 0.0
  %2145 = vmatprep.subr.mxu0 0.0
  %2146 = vmatpush1.msra.mxu0 0.0
  %2147 = vmatprep.mubr.f32.mxu0 0.0
  %2148 = vmatmul.mubr.f32.gmra.mrb[0].mxu0 %v2075
  %v2149 = vpop.f32.mrb[0].mxu0
  %v2150 = vadd.f32 %v2067, %v2149
  %v2151 = vpop.f32.mrb[0].mxu0
  %v2152 = vadd.f32 %v2071, %v2151
  %2153 = vmatprep.mubr.f32.mxu0 0.0
  %2154 = vmatmul.mubr.f32.gmra.mrb[0].mxu0 %v2078
  %v2155 = vpop.f32.mrb[0].mxu0
  %v2156 = vadd.f32 %v2067, %v2155
  %v2157 = vpop.f32.mrb[0].mxu0
  %v2158 = vadd.f32 %v2071, %v2157
  %2159 = vmatprep.mubr.f32.mxu0 0.0
  %2160 = vmatmul.mubr.f32.gmra.mrb[0].mxu0 %v2081
  %v2161 = vpop.f32.mrb[0].mxu0
  %v2162 = vadd.f32 %v2067, %v2161
  %v2163 = vpop.f32.mrb[0].mxu0
  %v2164 = vadd.f32 %v2071, %v2163
  %2165 = vdwg.mxu0
  %v2166 = vmul.f32 %v2150, 0.5
  %v2167 = vmul.f32 %v2152, 0.5
  %v2168 = vmul.f32 %v2156, 0.5
  %v2169 = vmul.f32 %v2158, 0.5
  %v2170 = vmul.f32 %v2162, 0.5
  %v2171 = vmul.f32 %v2164, 0.5
  %v2172 = vmul.f32 %v2150, 0.70710677
  %v2173 = vmul.f32 %v2152, 0.70710677
  %v2174 = vmul.f32 %v2156, 0.70710677
  %v2175 = vmul.f32 %v2158, 0.70710677
  %v2176 = vmul.f32 %v2162, 0.70710677
  %v2177 = vmul.f32 %v2164, 0.70710677
  %v2178 = vand.u32 2147483647, %v2172
  %v2179 = vand.u32 2147483647, %v2173
  %v2180 = vand.u32 2147483647, %v2174
  %v2181 = vand.u32 2147483647, %v2175
  %v2182 = vand.u32 2147483647, %v2176
  %v2183 = vand.u32 2147483647, %v2177
  %v2184 = vmul.f32 %v2178, 0.3275911
  %v2185 = vmul.f32 %v2179, 0.3275911
  %v2186 = vmul.f32 %v2180, 0.3275911
  %v2187 = vmul.f32 %v2181, 0.3275911
  %v2188 = vmul.f32 %v2182, 0.3275911
  %v2189 = vmul.f32 %v2183, 0.3275911
  %v2190 = vadd.f32 %v2184, 1.0
  %v2191 = vadd.f32 %v2185, 1.0
  %v2192 = vadd.f32 %v2186, 1.0
  %v2193 = vadd.f32 %v2187, 1.0
  %v2194 = vadd.f32 %v2188, 1.0
  %v2195 = vadd.f32 %v2189, 1.0
  %v2196 = vrcp.pop %v2190
  %v2197 = vmul.f32 1.0, %v2196
  %v2198 = vrcp.pop %v2191
  %v2199 = vmul.f32 1.0, %v2198
  %v2200 = vrcp.pop %v2192
  %v2201 = vmul.f32 1.0, %v2200
  %v2202 = vrcp.pop %v2193
  %v2203 = vmul.f32 1.0, %v2202
  %v2204 = vrcp.pop %v2194
  %v2205 = vmul.f32 1.0, %v2204
  %v2206 = vrcp.pop %v2195
  %v2207 = vmul.f32 1.0, %v2206
  %v2208 = vmul.f32 %v2197, 1.0614054
  %v2209 = vmul.f32 %v2199, 1.0614054
  %v2210 = vmul.f32 %v2201, 1.0614054
  %v2211 = vmul.f32 %v2203, 1.0614054
  %v2212 = vmul.f32 %v2205, 1.0614054
  %v2213 = vmul.f32 %v2207, 1.0614054
  %v2214 = vadd.f32 %v2208, -1.4531521
  %v2215 = vadd.f32 %v2209, -1.4531521
  %v2216 = vadd.f32 %v2210, -1.4531521
  %v2217 = vadd.f32 %v2211, -1.4531521
  %v2218 = vadd.f32 %v2212, -1.4531521
  %v2219 = vadd.f32 %v2213, -1.4531521
  %v2220 = vmul.f32 %v2197, %v2214
  %v2221 = vmul.f32 %v2199, %v2215
  %v2222 = vmul.f32 %v2201, %v2216
  %v2223 = vmul.f32 %v2203, %v2217
  %v2224 = vmul.f32 %v2205, %v2218
  %v2225 = vmul.f32 %v2207, %v2219
  %v2226 = vadd.f32 %v2220, 1.4214138
  %v2227 = vadd.f32 %v2221, 1.4214138
  %v2228 = vadd.f32 %v2222, 1.4214138
  %v2229 = vadd.f32 %v2223, 1.4214138
  %v2230 = vadd.f32 %v2224, 1.4214138
  %v2231 = vadd.f32 %v2225, 1.4214138
  %v2232 = vmul.f32 %v2197, %v2226
  %v2233 = vmul.f32 %v2199, %v2227
  %v2234 = vmul.f32 %v2201, %v2228
  %v2235 = vmul.f32 %v2203, %v2229
  %v2236 = vmul.f32 %v2205, %v2230
  %v2237 = vmul.f32 %v2207, %v2231
  %v2238 = vadd.f32 %v2232, -0.28449672
  %v2239 = vadd.f32 %v2233, -0.28449672
  %v2240 = vadd.f32 %v2234, -0.28449672
  %v2241 = vadd.f32 %v2235, -0.28449672
  %v2242 = vadd.f32 %v2236, -0.28449672
  %v2243 = vadd.f32 %v2237, -0.28449672
  %v2244 = vmul.f32 %v2197, %v2238
  %v2245 = vmul.f32 %v2199, %v2239
  %v2246 = vmul.f32 %v2201, %v2240
  %v2247 = vmul.f32 %v2203, %v2241
  %v2248 = vmul.f32 %v2205, %v2242
  %v2249 = vmul.f32 %v2207, %v2243
  %v2250 = vadd.f32 %v2244, 0.2548296
  %v2251 = vadd.f32 %v2245, 0.2548296
  %v2252 = vadd.f32 %v2246, 0.2548296
  %v2253 = vadd.f32 %v2247, 0.2548296
  %v2254 = vadd.f32 %v2248, 0.2548296
  %v2255 = vadd.f32 %v2249, 0.2548296
  %v2256 = vmul.f32 %v2197, %v2250
  %v2257 = vmul.f32 %v2199, %v2251
  %v2258 = vmul.f32 %v2201, %v2252
  %v2259 = vmul.f32 %v2203, %v2253
  %v2260 = vmul.f32 %v2205, %v2254
  %v2261 = vmul.f32 %v2207, %v2255
  %v2262 = vsub.f32 0.0, %v2178
  %v2263 = vsub.f32 0.0, %v2179
  %v2264 = vsub.f32 0.0, %v2180
  %v2265 = vsub.f32 0.0, %v2181
  %v2266 = vsub.f32 0.0, %v2182
  %v2267 = vsub.f32 0.0, %v2183
  %v2268 = vmul.f32 %v2262, %v2178
  %v2269 = vmul.f32 %v2263, %v2179
  %v2270 = vmul.f32 %v2264, %v2180
  %v2271 = vmul.f32 %v2265, %v2181
  %v2272 = vmul.f32 %v2266, %v2182
  %v2273 = vmul.f32 %v2267, %v2183
  %v2274 = vmul.f32 %v2268, 1.442695
  %v2275 = vpow.pop %v2274
  %v2276 = vmul.f32 %v2269, 1.442695
  %v2277 = vpow.pop %v2276
  %v2278 = vmul.f32 %v2270, 1.442695
  %v2279 = vpow.pop %v2278
  %v2280 = vmul.f32 %v2271, 1.442695
  %v2281 = vpow.pop %v2280
  %v2282 = vmul.f32 %v2272, 1.442695
  %v2283 = vpow.pop %v2282
  %v2284 = vmul.f32 %v2273, 1.442695
  %v2285 = vpow.pop %v2284
  %v2286 = vmul.f32 %v2256, %v2275
  %v2287 = vmul.f32 %v2257, %v2277
  %v2288 = vmul.f32 %v2258, %v2279
  %v2289 = vmul.f32 %v2259, %v2281
  %v2290 = vmul.f32 %v2260, %v2283
  %v2291 = vmul.f32 %v2261, %v2285
  %v2292 = vsub.f32 1.0, %v2286
  %v2293 = vsub.f32 1.0, %v2287
  %v2294 = vsub.f32 1.0, %v2288
  %v2295 = vsub.f32 1.0, %v2289
  %v2296 = vsub.f32 1.0, %v2290
  %v2297 = vsub.f32 1.0, %v2291
  %vm2298 = vcmp.ge.f32.partialorder %v2172, 0.0
  %vm2299 = vcmp.ge.f32.partialorder %v2173, 0.0
  %vm2300 = vcmp.ge.f32.partialorder %v2174, 0.0
  %vm2301 = vcmp.ge.f32.partialorder %v2175, 0.0
  %vm2302 = vcmp.ge.f32.partialorder %v2176, 0.0
  %vm2303 = vcmp.ge.f32.partialorder %v2177, 0.0
  %v2304 = vsub.f32 0.0, %v2292
  %v2305 = vsub.f32 0.0, %v2293
  %v2306 = vsub.f32 0.0, %v2294
  %v2307 = vsub.f32 0.0, %v2295
  %v2308 = vsub.f32 0.0, %v2296
  %v2309 = vsub.f32 0.0, %v2297
  %v2310 = vsel %vm2298, %v2292, %v2304
  %v2311 = vsel %vm2299, %v2293, %v2305
  %v2312 = vsel %vm2300, %v2294, %v2306
  %v2313 = vsel %vm2301, %v2295, %v2307
  %v2314 = vsel %vm2302, %v2296, %v2308
  %v2315 = vsel %vm2303, %v2297, %v2309
  %v2316 = vadd.f32 %v2310, 1.0
  %v2317 = vadd.f32 %v2311, 1.0
  %v2318 = vadd.f32 %v2312, 1.0
  %v2319 = vadd.f32 %v2313, 1.0
  %v2320 = vadd.f32 %v2314, 1.0
  %v2321 = vadd.f32 %v2315, 1.0
  %v2322 = vmul.f32 %v2166, %v2316
  %v2323 = vmul.f32 %v2167, %v2317
  %v2324 = vmul.f32 %v2168, %v2318
  %v2325 = vmul.f32 %v2169, %v2319
  %v2326 = vmul.f32 %v2170, %v2320
  %v2327 = vmul.f32 %v2171, %v2321
  %v2328 = vld [vmem:[%s18] sm:$0xff]
  %v2329 = vld [vmem:[%s18 + $0x8] sm:$0xff]
  %v2330 = vld [vmem:[%s18 + $0x10] sm:$0xff]
  %v2331 = vld [vmem:[%s18 + $0x18] sm:$0xff]
  %v2332 = vld [vmem:[%s18 + $0x20] sm:$0xff]
  %v2333 = vld [vmem:[%s18 + $0x28] sm:$0xff]
  %v2334 = vld [vmem:[%s18 + $0x30] sm:$0xff]
  %v2335 = vld [vmem:[%s18 + $0x38] sm:$0xff]
  %v2336 = vld [vmem:[%s18 + $0x40] sm:$0xff]
  %v2337 = vld [vmem:[%s18 + $0x48] sm:$0xff]
  %v2338 = vld [vmem:[%s18 + $0x50] sm:$0xff]
  %v2339 = vld [vmem:[%s18 + $0x58] sm:$0xff]
  %v2340 = vld [vmem:[%s18 + $0x60] sm:$0xff]
  %v2341 = vld [vmem:[%s18 + $0x68] sm:$0xff]
  %v2342 = vld [vmem:[%s18 + $0x70] sm:$0xff]
  %v2343 = vld [vmem:[%s18 + $0x78] sm:$0xff]
  %v2344 = vld [vmem:[%s18 + $0x80] sm:$0xff]
  %v2345 = vld [vmem:[%s18 + $0x88] sm:$0xff]
  %v2346 = vld [vmem:[%s18 + $0x90] sm:$0xff]
  %v2347 = vld [vmem:[%s18 + $0x98] sm:$0xff]
  %v2348 = vld [vmem:[%s18 + $0xa0] sm:$0xff]
  %v2349 = vld [vmem:[%s18 + $0xa8] sm:$0xff]
  %v2350 = vld [vmem:[%s18 + $0xb0] sm:$0xff]
  %v2351 = vld [vmem:[%s18 + $0xb8] sm:$0xff]
  %v2352 = vld [vmem:[%s18 + $0xc0] sm:$0xff]
  %v2353 = vld [vmem:[%s18 + $0xc8] sm:$0xff]
  %v2354 = vld [vmem:[%s18 + $0xd0] sm:$0xff]
  %v2355 = vld [vmem:[%s18 + $0xd8] sm:$0xff]
  %v2356 = vld [vmem:[%s18 + $0xe0] sm:$0xff]
  %v2357 = vld [vmem:[%s18 + $0xe8] sm:$0xff]
  %v2358 = vld [vmem:[%s18 + $0xf0] sm:$0xff]
  %v2359 = vld [vmem:[%s18 + $0xf8] sm:$0xff]
  %v2360 = vld [vmem:[%s19] sm:$0x1]
  %v2362 = vlaneseq
  %v2363 = vshrl.u32 %v2362, 7
  %v2364 = vsub.s32 0, %v2363
  %v2365 = vrot.slane %v2360, %v2364
  %2367 = vmatprep.subr.mxu0 0.0
  %2368 = vmatpush1.msra.mxu0 %v2328
  %2369 = vmatprep.subr.mxu0 0.0
  %2370 = vmatpush1.msra.mxu0 %v2329
  %2371 = vmatprep.subr.mxu0 0.0
  %2372 = vmatpush1.msra.mxu0 %v2330
  %2373 = vmatprep.subr.mxu0 0.0
  %2374 = vmatpush1.msra.mxu0 %v2331
  %2375 = vmatprep.subr.mxu0 0.0
  %2376 = vmatpush1.msra.mxu0 %v2332
  %2377 = vmatprep.subr.mxu0 0.0
  %2378 = vmatpush1.msra.mxu0 %v2333
  %2379 = vmatprep.subr.mxu0 0.0
  %2380 = vmatpush1.msra.mxu0 %v2334
  %2381 = vmatprep.subr.mxu0 0.0
  %2382 = vmatpush1.msra.mxu0 %v2335
  %2383 = vmatprep.subr.mxu0 0.0
  %2384 = vmatpush1.msra.mxu0 %v2336
  %2385 = vmatprep.subr.mxu0 0.0
  %2386 = vmatpush1.msra.mxu0 %v2337
  %2387 = vmatprep.subr.mxu0 0.0
  %2388 = vmatpush1.msra.mxu0 %v2338
  %2389 = vmatprep.subr.mxu0 0.0
  %2390 = vmatpush1.msra.mxu0 %v2339
  %2391 = vmatprep.subr.mxu0 0.0
  %2392 = vmatpush1.msra.mxu0 %v2340
  %2393 = vmatprep.subr.mxu0 0.0
  %2394 = vmatpush1.msra.mxu0 %v2341
  %2395 = vmatprep.subr.mxu0 0.0
  %2396 = vmatpush1.msra.mxu0 %v2342
  %2397 = vmatprep.subr.mxu0 0.0
  %2398 = vmatpush1.msra.mxu0 %v2343
  %2399 = vmatprep.subr.mxu0 0.0
  %2400 = vmatpush1.msra.mxu0 %v2344
  %2401 = vmatprep.subr.mxu0 0.0
  %2402 = vmatpush1.msra.mxu0 %v2345
  %2403 = vmatprep.subr.mxu0 0.0
  %2404 = vmatpush1.msra.mxu0 %v2346
  %2405 = vmatprep.subr.mxu0 0.0
  %2406 = vmatpush1.msra.mxu0 %v2347
  %2407 = vmatprep.subr.mxu0 0.0
  %2408 = vmatpush1.msra.mxu0 %v2348
  %2409 = vmatprep.subr.mxu0 0.0
  %2410 = vmatpush1.msra.mxu0 %v2349
  %2411 = vmatprep.subr.mxu0 0.0
  %2412 = vmatpush1.msra.mxu0 %v2350
  %2413 = vmatprep.subr.mxu0 0.0
  %2414 = vmatpush1.msra.mxu0 %v2351
  %2415 = vmatprep.subr.mxu0 0.0
  %2416 = vmatpush1.msra.mxu0 %v2352
  %2417 = vmatprep.subr.mxu0 0.0
  %2418 = vmatpush1.msra.mxu0 %v2353
  %2419 = vmatprep.subr.mxu0 0.0
  %2420 = vmatpush1.msra.mxu0 %v2354
  %2421 = vmatprep.subr.mxu0 0.0
  %2422 = vmatpush1.msra.mxu0 %v2355
  %2423 = vmatprep.subr.mxu0 0.0
  %2424 = vmatpush1.msra.mxu0 %v2356
  %2425 = vmatprep.subr.mxu0 0.0
  %2426 = vmatpush1.msra.mxu0 %v2357
  %2427 = vmatprep.subr.mxu0 0.0
  %2428 = vmatpush1.msra.mxu0 %v2358
  %2429 = vmatprep.subr.mxu0 0.0
  %2430 = vmatpush1.msra.mxu0 %v2359
  %2431 = vmatprep.mubr.f32.mxu0 %v2323
  %2432 = vmatmul.mubr.f32.gmra.mrb[0].mxu0 %v2322
  %v2433 = vpop.f32.mrb[0].mxu0
  %v2434 = vadd.f32 %v2365, %v2433
  %v2435 = vpop.f32.mrb[0].mxu0
  %2436 = vmatprep.mubr.f32.mxu0 %v2325
  %2437 = vmatmul.mubr.f32.gmra.mrb[0].mxu0 %v2324
  %v2438 = vpop.f32.mrb[0].mxu0
  %v2439 = vadd.f32 %v2365, %v2438
  %v2440 = vpop.f32.mrb[0].mxu0
  %2441 = vmatprep.mubr.f32.mxu0 %v2327
  %2442 = vmatmul.mubr.f32.gmra.mrb[0].mxu0 %v2326
  %v2443 = vpop.f32.mrb[0].mxu0
  %v2444 = vadd.f32 %v2365, %v2443
  %v2445 = vpop.f32.mrb[0].mxu0
  %2446 = vdwg.mxu0
  %v2447 = vadd.f32 %v1984, %v2434
  %v2448 = vadd.f32 %v1985, %v2439
  %v2449 = vadd.f32 %v1986, %v2444
  %s2450 = scalar_lea.vmem %s4, 1
  %v2451 = vld [vmem:[%s2450] sm:$0x1]
  %s2452 = scalar_lea.vmem %s5, 1
  %v2453 = vld [vmem:[%s2452] sm:$0x1]
  %v2454 = vsel %vm321, %v2447, 0.0
  %2455 = vadd.xlane.f32.xlu0 %v2454
  %v2456 = vpop.xlane.xlu0 %2455
  %v2457 = vsel %vm321, %v2448, 0.0
  %2458 = vadd.xlane.f32.xlu0 %v2457
  %v2459 = vpop.xlane.xlu0 %2458
  %v2460 = vsel %vm321, %v2449, 0.0
  %2461 = vadd.xlane.f32.xlu0 %v2460
  %v2462 = vpop.xlane.xlu0 %2461
  %v2463 = vmul.f32 %v2456, %v331
  %v2464 = vmul.f32 %v2459, %v331
  %v2465 = vmul.f32 %v2462, %v331
  %v2466 = vsub.f32 %v2447, %v2463
  %v2467 = vsub.f32 %v2448, %v2464
  %v2468 = vsub.f32 %v2449, %v2465
  %v2469 = vmul.f32 %v2466, %v2466
  %v2470 = vmul.f32 %v2467, %v2467
  %v2471 = vmul.f32 %v2468, %v2468
  %v2472 = vsel %vm321, %v2469, 0.0
  %2473 = vadd.xlane.f32.xlu0 %v2472
  %v2474 = vpop.xlane.xlu0 %2473
  %v2475 = vsel %vm321, %v2470, 0.0
  %2476 = vadd.xlane.f32.xlu0 %v2475
  %v2477 = vpop.xlane.xlu0 %2476
  %v2478 = vsel %vm321, %v2471, 0.0
  %2479 = vadd.xlane.f32.xlu0 %v2478
  %v2480 = vpop.xlane.xlu0 %2479
  %v2481 = vmul.f32 %v2474, %v331
  %v2482 = vmul.f32 %v2477, %v331
  %v2483 = vmul.f32 %v2480, %v331
  %v2484 = vadd.f32 %v2481, 1e-06
  %v2485 = vadd.f32 %v2482, 1e-06
  %v2486 = vadd.f32 %v2483, 1e-06
  %v2487 = vrsqrt.pop %v2484
  %v2488 = vrsqrt.pop %v2485
  %v2489 = vrsqrt.pop %v2486
  %v2490 = vmul.f32 %v2466, %v2487
  %v2491 = vmul.f32 %v2467, %v2488
  %v2492 = vmul.f32 %v2468, %v2489
  %v2494 = vlaneseq
  %v2495 = vshrl.u32 %v2494, 7
  %v2496 = vsub.s32 0, %v2495
  %v2497 = vrot.slane %v2451, %v2496
  %v2499 = vmul.f32 %v2490, %v2497
  %v2500 = vmul.f32 %v2491, %v2497
  %v2501 = vmul.f32 %v2492, %v2497
  %v2503 = vlaneseq
  %v2504 = vshrl.u32 %v2503, 7
  %v2505 = vsub.s32 0, %v2504
  %v2506 = vrot.slane %v2453, %v2505
  %v2508 = vadd.f32 %v2499, %v2506
  %v2509 = vadd.f32 %v2500, %v2506
  %v2510 = vadd.f32 %v2501, %v2506
  %s2511 = scalar_lea.vmem %s6, 64
  %v2512 = vld [vmem:[%s2511] sm:$0xff]
  %v2513 = vld [vmem:[%s2511 + $0x8] sm:$0xff]
  %v2514 = vld [vmem:[%s2511 + $0x10] sm:$0xff]
  %v2515 = vld [vmem:[%s2511 + $0x18] sm:$0xff]
  %v2516 = vld [vmem:[%s2511 + $0x20] sm:$0xff]
  %v2517 = vld [vmem:[%s2511 + $0x28] sm:$0xff]
  %v2518 = vld [vmem:[%s2511 + $0x30] sm:$0xff]
  %v2519 = vld [vmem:[%s2511 + $0x38] sm:$0xff]
  %s2520 = scalar_lea.vmem %s7, 1
  %v2521 = vld [vmem:[%s2520] sm:$0x1]
  %v2523 = vlaneseq
  %v2524 = vshrl.u32 %v2523, 7
  %v2525 = vsub.s32 0, %v2524
  %v2526 = vrot.slane %v2521, %v2525
  %v2529 = vsel %vm321, %v2508, 0
  %v2532 = vsel %vm321, %v2509, 0
  %v2535 = vsel %vm321, %v2510, 0
  %2537 = vmatprep.subr.mxu0 0.0
  %2538 = vmatpush1.msra.mxu0 %v2512
  %2539 = vmatprep.subr.mxu0 0.0
  %2540 = vmatpush1.msra.mxu0 %v2513
  %2541 = vmatprep.subr.mxu0 0.0
  %2542 = vmatpush1.msra.mxu0 %v2514
  %2543 = vmatprep.subr.mxu0 0.0
  %2544 = vmatpush1.msra.mxu0 %v2515
  %2545 = vmatprep.subr.mxu0 0.0
  %2546 = vmatpush1.msra.mxu0 %v2516
  %2547 = vmatprep.subr.mxu0 0.0
  %2548 = vmatpush1.msra.mxu0 %v2517
  %2549 = vmatprep.subr.mxu0 0.0
  %2550 = vmatpush1.msra.mxu0 %v2518
  %2551 = vmatprep.subr.mxu0 0.0
  %2552 = vmatpush1.msra.mxu0 %v2519
  %2553 = vmatprep.subr.mxu0 0.0
  %2554 = vmatpush1.msra.mxu0 0.0
  %2555 = vmatprep.subr.mxu0 0.0
  %2556 = vmatpush1.msra.mxu0 0.0
  %2557 = vmatprep.subr.mxu0 0.0
  %2558 = vmatpush1.msra.mxu0 0.0
  %2559 = vmatprep.subr.mxu0 0.0
  %2560 = vmatpush1.msra.mxu0 0.0
  %2561 = vmatprep.subr.mxu0 0.0
  %2562 = vmatpush1.msra.mxu0 0.0
  %2563 = vmatprep.subr.mxu0 0.0
  %2564 = vmatpush1.msra.mxu0 0.0
  %2565 = vmatprep.subr.mxu0 0.0
  %2566 = vmatpush1.msra.mxu0 0.0
  %2567 = vmatprep.subr.mxu0 0.0
  %2568 = vmatpush1.msra.mxu0 0.0
  %2569 = vmatprep.subr.mxu0 0.0
  %2570 = vmatpush1.msra.mxu0 0.0
  %2571 = vmatprep.subr.mxu0 0.0
  %2572 = vmatpush1.msra.mxu0 0.0
  %2573 = vmatprep.subr.mxu0 0.0
  %2574 = vmatpush1.msra.mxu0 0.0
  %2575 = vmatprep.subr.mxu0 0.0
  %2576 = vmatpush1.msra.mxu0 0.0
  %2577 = vmatprep.subr.mxu0 0.0
  %2578 = vmatpush1.msra.mxu0 0.0
  %2579 = vmatprep.subr.mxu0 0.0
  %2580 = vmatpush1.msra.mxu0 0.0
  %2581 = vmatprep.subr.mxu0 0.0
  %2582 = vmatpush1.msra.mxu0 0.0
  %2583 = vmatprep.subr.mxu0 0.0
  %2584 = vmatpush1.msra.mxu0 0.0
  %2585 = vmatprep.subr.mxu0 0.0
  %2586 = vmatpush1.msra.mxu0 0.0
  %2587 = vmatprep.subr.mxu0 0.0
  %2588 = vmatpush1.msra.mxu0 0.0
  %2589 = vmatprep.subr.mxu0 0.0
  %2590 = vmatpush1.msra.mxu0 0.0
  %2591 = vmatprep.subr.mxu0 0.0
  %2592 = vmatpush1.msra.mxu0 0.0
  %2593 = vmatprep.subr.mxu0 0.0
  %2594 = vmatpush1.msra.mxu0 0.0
  %2595 = vmatprep.subr.mxu0 0.0
  %2596 = vmatpush1.msra.mxu0 0.0
  %2597 = vmatprep.subr.mxu0 0.0
  %2598 = vmatpush1.msra.mxu0 0.0
  %2599 = vmatprep.subr.mxu0 0.0
  %2600 = vmatpush1.msra.mxu0 0.0
  %2601 = vmatprep.mubr.f32.mxu0 0.0
  %2602 = vmatmul.mubr.f32.gmra.mrb[0].mxu0 %v2529
  %v2603 = vpop.f32.mrb[0].mxu0
  %v2604 = vadd.f32 %v2526, %v2603
  %v2605 = vpop.f32.mrb[0].mxu0
  %2606 = vmatprep.mubr.f32.mxu0 0.0
  %2607 = vmatmul.mubr.f32.gmra.mrb[0].mxu0 %v2532
  %v2608 = vpop.f32.mrb[0].mxu0
  %v2609 = vadd.f32 %v2526, %v2608
  %v2610 = vpop.f32.mrb[0].mxu0
  %2611 = vmatprep.mubr.f32.mxu0 0.0
  %2612 = vmatmul.mubr.f32.gmra.mrb[0].mxu0 %v2535
  %v2613 = vpop.f32.mrb[0].mxu0
  %v2614 = vadd.f32 %v2526, %v2613
  %v2615 = vpop.f32.mrb[0].mxu0
  %2616 = vdwg.mxu0
  %s2617 = scalar_lea.vmem %s8, 64
  %v2618 = vld [vmem:[%s2617] sm:$0xff]
  %v2619 = vld [vmem:[%s2617 + $0x8] sm:$0xff]
  %v2620 = vld [vmem:[%s2617 + $0x10] sm:$0xff]
  %v2621 = vld [vmem:[%s2617 + $0x18] sm:$0xff]
  %v2622 = vld [vmem:[%s2617 + $0x20] sm:$0xff]
  %v2623 = vld [vmem:[%s2617 + $0x28] sm:$0xff]
  %v2624 = vld [vmem:[%s2617 + $0x30] sm:$0xff]
  %v2625 = vld [vmem:[%s2617 + $0x38] sm:$0xff]
  %s2626 = scalar_lea.vmem %s9, 1
  %v2627 = vld [vmem:[%s2626] sm:$0x1]
  %v2629 = vlaneseq
  %v2630 = vshrl.u32 %v2629, 7
  %v2631 = vsub.s32 0, %v2630
  %v2632 = vrot.slane %v2627, %v2631
  %2634 = vmatprep.subr.mxu0 0.0
  %2635 = vmatpush1.msra.mxu0 %v2618
  %2636 = vmatprep.subr.mxu0 0.0
  %2637 = vmatpush1.msra.mxu0 %v2619
  %2638 = vmatprep.subr.mxu0 0.0
  %2639 = vmatpush1.msra.mxu0 %v2620
  %2640 = vmatprep.subr.mxu0 0.0
  %2641 = vmatpush1.msra.mxu0 %v2621
  %2642 = vmatprep.subr.mxu0 0.0
  %2643 = vmatpush1.msra.mxu0 %v2622
  %2644 = vmatprep.subr.mxu0 0.0
  %2645 = vmatpush1.msra.mxu0 %v2623
  %2646 = vmatprep.subr.mxu0 0.0
  %2647 = vmatpush1.msra.mxu0 %v2624
  %2648 = vmatprep.subr.mxu0 0.0
  %2649 = vmatpush1.msra.mxu0 %v2625
  %2650 = vmatprep.subr.mxu0 0.0
  %2651 = vmatpush1.msra.mxu0 0.0
  %2652 = vmatprep.subr.mxu0 0.0
  %2653 = vmatpush1.msra.mxu0 0.0
  %2654 = vmatprep.subr.mxu0 0.0
  %2655 = vmatpush1.msra.mxu0 0.0
  %2656 = vmatprep.subr.mxu0 0.0
  %2657 = vmatpush1.msra.mxu0 0.0
  %2658 = vmatprep.subr.mxu0 0.0
  %2659 = vmatpush1.msra.mxu0 0.0
  %2660 = vmatprep.subr.mxu0 0.0
  %2661 = vmatpush1.msra.mxu0 0.0
  %2662 = vmatprep.subr.mxu0 0.0
  %2663 = vmatpush1.msra.mxu0 0.0
  %2664 = vmatprep.subr.mxu0 0.0
  %2665 = vmatpush1.msra.mxu0 0.0
  %2666 = vmatprep.subr.mxu0 0.0
  %2667 = vmatpush1.msra.mxu0 0.0
  %2668 = vmatprep.subr.mxu0 0.0
  %2669 = vmatpush1.msra.mxu0 0.0
  %2670 = vmatprep.subr.mxu0 0.0
  %2671 = vmatpush1.msra.mxu0 0.0
  %2672 = vmatprep.subr.mxu0 0.0
  %2673 = vmatpush1.msra.mxu0 0.0
  %2674 = vmatprep.subr.mxu0 0.0
  %2675 = vmatpush1.msra.mxu0 0.0
  %2676 = vmatprep.subr.mxu0 0.0
  %2677 = vmatpush1.msra.mxu0 0.0
  %2678 = vmatprep.subr.mxu0 0.0
  %2679 = vmatpush1.msra.mxu0 0.0
  %2680 = vmatprep.subr.mxu0 0.0
  %2681 = vmatpush1.msra.mxu0 0.0
  %2682 = vmatprep.subr.mxu0 0.0
  %2683 = vmatpush1.msra.mxu0 0.0
  %2684 = vmatprep.subr.mxu0 0.0
  %2685 = vmatpush1.msra.mxu0 0.0
  %2686 = vmatprep.subr.mxu0 0.0
  %2687 = vmatpush1.msra.mxu0 0.0
  %2688 = vmatprep.subr.mxu0 0.0
  %2689 = vmatpush1.msra.mxu0 0.0
  %2690 = vmatprep.subr.mxu0 0.0
  %2691 = vmatpush1.msra.mxu0 0.0
  %2692 = vmatprep.subr.mxu0 0.0
  %2693 = vmatpush1.msra.mxu0 0.0
  %2694 = vmatprep.subr.mxu0 0.0
  %2695 = vmatpush1.msra.mxu0 0.0
  %2696 = vmatprep.subr.mxu0 0.0
  %2697 = vmatpush1.msra.mxu0 0.0
  %2698 = vmatprep.mubr.f32.mxu0 0.0
  %2699 = vmatmul.mubr.f32.gmra.mrb[0].mxu0 %v2529
  %v2700 = vpop.f32.mrb[0].mxu0
  %v2701 = vadd.f32 %v2632, %v2700
  %v2702 = vpop.f32.mrb[0].mxu0
  %2703 = vmatprep.mubr.f32.mxu0 0.0
  %2704 = vmatmul.mubr.f32.gmra.mrb[0].mxu0 %v2532
  %v2705 = vpop.f32.mrb[0].mxu0
  %v2706 = vadd.f32 %v2632, %v2705
  %v2707 = vpop.f32.mrb[0].mxu0
  %2708 = vmatprep.mubr.f32.mxu0 0.0
  %2709 = vmatmul.mubr.f32.gmra.mrb[0].mxu0 %v2535
  %v2710 = vpop.f32.mrb[0].mxu0
  %v2711 = vadd.f32 %v2632, %v2710
  %v2712 = vpop.f32.mrb[0].mxu0
  %2713 = vdwg.mxu0
  %s2714 = scalar_lea.vmem %s10, 64
  %v2715 = vld [vmem:[%s2714] sm:$0xff]
  %v2716 = vld [vmem:[%s2714 + $0x8] sm:$0xff]
  %v2717 = vld [vmem:[%s2714 + $0x10] sm:$0xff]
  %v2718 = vld [vmem:[%s2714 + $0x18] sm:$0xff]
  %v2719 = vld [vmem:[%s2714 + $0x20] sm:$0xff]
  %v2720 = vld [vmem:[%s2714 + $0x28] sm:$0xff]
  %v2721 = vld [vmem:[%s2714 + $0x30] sm:$0xff]
  %v2722 = vld [vmem:[%s2714 + $0x38] sm:$0xff]
  %s2723 = scalar_lea.vmem %s11, 1
  %v2724 = vld [vmem:[%s2723] sm:$0x1]
  %v2726 = vlaneseq
  %v2727 = vshrl.u32 %v2726, 7
  %v2728 = vsub.s32 0, %v2727
  %v2729 = vrot.slane %v2724, %v2728
  %2731 = vmatprep.subr.mxu0 0.0
  %2732 = vmatpush1.msra.mxu0 %v2715
  %2733 = vmatprep.subr.mxu0 0.0
  %2734 = vmatpush1.msra.mxu0 %v2716
  %2735 = vmatprep.subr.mxu0 0.0
  %2736 = vmatpush1.msra.mxu0 %v2717
  %2737 = vmatprep.subr.mxu0 0.0
  %2738 = vmatpush1.msra.mxu0 %v2718
  %2739 = vmatprep.subr.mxu0 0.0
  %2740 = vmatpush1.msra.mxu0 %v2719
  %2741 = vmatprep.subr.mxu0 0.0
  %2742 = vmatpush1.msra.mxu0 %v2720
  %2743 = vmatprep.subr.mxu0 0.0
  %2744 = vmatpush1.msra.mxu0 %v2721
  %2745 = vmatprep.subr.mxu0 0.0
  %2746 = vmatpush1.msra.mxu0 %v2722
  %2747 = vmatprep.subr.mxu0 0.0
  %2748 = vmatpush1.msra.mxu0 0.0
  %2749 = vmatprep.subr.mxu0 0.0
  %2750 = vmatpush1.msra.mxu0 0.0
  %2751 = vmatprep.subr.mxu0 0.0
  %2752 = vmatpush1.msra.mxu0 0.0
  %2753 = vmatprep.subr.mxu0 0.0
  %2754 = vmatpush1.msra.mxu0 0.0
  %2755 = vmatprep.subr.mxu0 0.0
  %2756 = vmatpush1.msra.mxu0 0.0
  %2757 = vmatprep.subr.mxu0 0.0
  %2758 = vmatpush1.msra.mxu0 0.0
  %2759 = vmatprep.subr.mxu0 0.0
  %2760 = vmatpush1.msra.mxu0 0.0
  %2761 = vmatprep.subr.mxu0 0.0
  %2762 = vmatpush1.msra.mxu0 0.0
  %2763 = vmatprep.subr.mxu0 0.0
  %2764 = vmatpush1.msra.mxu0 0.0
  %2765 = vmatprep.subr.mxu0 0.0
  %2766 = vmatpush1.msra.mxu0 0.0
  %2767 = vmatprep.subr.mxu0 0.0
  %2768 = vmatpush1.msra.mxu0 0.0
  %2769 = vmatprep.subr.mxu0 0.0
  %2770 = vmatpush1.msra.mxu0 0.0
  %2771 = vmatprep.subr.mxu0 0.0
  %2772 = vmatpush1.msra.mxu0 0.0
  %2773 = vmatprep.subr.mxu0 0.0
  %2774 = vmatpush1.msra.mxu0 0.0
  %2775 = vmatprep.subr.mxu0 0.0
  %2776 = vmatpush1.msra.mxu0 0.0
  %2777 = vmatprep.subr.mxu0 0.0
  %2778 = vmatpush1.msra.mxu0 0.0
  %2779 = vmatprep.subr.mxu0 0.0
  %2780 = vmatpush1.msra.mxu0 0.0
  %2781 = vmatprep.subr.mxu0 0.0
  %2782 = vmatpush1.msra.mxu0 0.0
  %2783 = vmatprep.subr.mxu0 0.0
  %2784 = vmatpush1.msra.mxu0 0.0
  %2785 = vmatprep.subr.mxu0 0.0
  %2786 = vmatpush1.msra.mxu0 0.0
  %2787 = vmatprep.subr.mxu0 0.0
  %2788 = vmatpush1.msra.mxu0 0.0
  %2789 = vmatprep.subr.mxu0 0.0
  %2790 = vmatpush1.msra.mxu0 0.0
  %2791 = vmatprep.subr.mxu0 0.0
  %2792 = vmatpush1.msra.mxu0 0.0
  %2793 = vmatprep.subr.mxu0 0.0
  %2794 = vmatpush1.msra.mxu0 0.0
  %2795 = vmatprep.mubr.f32.mxu0 0.0
  %2796 = vmatmul.mubr.f32.gmra.mrb[0].mxu0 %v2529
  %v2797 = vpop.f32.mrb[0].mxu0
  %v2798 = vadd.f32 %v2729, %v2797
  %v2799 = vpop.f32.mrb[0].mxu0
  %2800 = vmatprep.mubr.f32.mxu0 0.0
  %2801 = vmatmul.mubr.f32.gmra.mrb[0].mxu0 %v2532
  %v2802 = vpop.f32.mrb[0].mxu0
  %v2803 = vadd.f32 %v2729, %v2802
  %v2804 = vpop.f32.mrb[0].mxu0
  %2805 = vmatprep.mubr.f32.mxu0 0.0
  %2806 = vmatmul.mubr.f32.gmra.mrb[0].mxu0 %v2535
  %v2807 = vpop.f32.mrb[0].mxu0
  %v2808 = vadd.f32 %v2729, %v2807
  %v2809 = vpop.f32.mrb[0].mxu0
  %2810 = vdwg.mxu0
  %s2811 = scalar_lea.vmem %s12, 64
  %v2812 = vld [vmem:[%s2811] sm:$0xff]
  %v2813 = vld [vmem:[%s2811 + $0x8] sm:$0xff]
  %v2814 = vld [vmem:[%s2811 + $0x10] sm:$0xff]
  %v2815 = vld [vmem:[%s2811 + $0x18] sm:$0xff]
  %v2816 = vld [vmem:[%s2811 + $0x20] sm:$0xff]
  %v2817 = vld [vmem:[%s2811 + $0x28] sm:$0xff]
  %v2818 = vld [vmem:[%s2811 + $0x30] sm:$0xff]
  %v2819 = vld [vmem:[%s2811 + $0x38] sm:$0xff]
  %v2821 = vsel %vm682, %v2604, 0
  %v2824 = vsel %vm682, %v2609, 0
  %v2827 = vsel %vm682, %v2614, 0
  %v2830 = vsel %vm682, %v2701, 0
  %v2833 = vsel %vm682, %v2706, 0
  %v2836 = vsel %vm682, %v2711, 0
  %2838 = vmatprep.subr.mxu0 0.0
  %2839 = vmatpush1.xpose.msra.mxu0 %v2830
  %2840 = vmatprep.subr.mxu0 0.0
  %2841 = vmatpush1.xpose.msra.mxu0 %v2833
  %2842 = vmatprep.subr.mxu0 0.0
  %2843 = vmatpush1.xpose.msra.mxu0 %v2836
  %2844 = vmatprep.subr.mxu0 0.0
  %2845 = vmatpush1.xpose.msra.mxu0 0.0
  %2846 = vmatprep.subr.mxu0 0.0
  %2847 = vmatpush1.xpose.msra.mxu0 0.0
  %2848 = vmatprep.subr.mxu0 0.0
  %2849 = vmatpush1.xpose.msra.mxu0 0.0
  %2850 = vmatprep.subr.mxu0 0.0
  %2851 = vmatpush1.xpose.msra.mxu0 0.0
  %2852 = vmatprep.subr.mxu0 0.0
  %2853 = vmatpush1.xpose.msra.mxu0 0.0
  %2854 = vmatprep.subr.mxu0 0.0
  %2855 = vmatpush1.xpose.msra.mxu0 0.0
  %2856 = vmatprep.subr.mxu0 0.0
  %2857 = vmatpush1.xpose.msra.mxu0 0.0
  %2858 = vmatprep.subr.mxu0 0.0
  %2859 = vmatpush1.xpose.msra.mxu0 0.0
  %2860 = vmatprep.subr.mxu0 0.0
  %2861 = vmatpush1.xpose.msra.mxu0 0.0
  %2862 = vmatprep.subr.mxu0 0.0
  %2863 = vmatpush1.xpose.msra.mxu0 0.0
  %2864 = vmatprep.subr.mxu0 0.0
  %2865 = vmatpush1.xpose.msra.mxu0 0.0
  %2866 = vmatprep.subr.mxu0 0.0
  %2867 = vmatpush1.xpose.msra.mxu0 0.0
  %2868 = vmatprep.subr.mxu0 0.0
  %2869 = vmatpush1.xpose.msra.mxu0 0.0
  %2870 = vmatprep.subr.mxu0 0.0
  %2871 = vmatpush1.xpose.msra.mxu0 0.0
  %2872 = vmatprep.subr.mxu0 0.0
  %2873 = vmatpush1.xpose.msra.mxu0 0.0
  %2874 = vmatprep.subr.mxu0 0.0
  %2875 = vmatpush1.xpose.msra.mxu0 0.0
  %2876 = vmatprep.subr.mxu0 0.0
  %2877 = vmatpush1.xpose.msra.mxu0 0.0
  %2878 = vmatprep.subr.mxu0 0.0
  %2879 = vmatpush1.xpose.msra.mxu0 0.0
  %2880 = vmatprep.subr.mxu0 0.0
  %2881 = vmatpush1.xpose.msra.mxu0 0.0
  %2882 = vmatprep.subr.mxu0 0.0
  %2883 = vmatpush1.xpose.msra.mxu0 0.0
  %2884 = vmatprep.subr.mxu0 0.0
  %2885 = vmatpush1.xpose.msra.mxu0 0.0
  %2886 = vmatprep.subr.mxu0 0.0
  %2887 = vmatpush1.xpose.msra.mxu0 0.0
  %2888 = vmatprep.subr.mxu0 0.0
  %2889 = vmatpush1.xpose.msra.mxu0 0.0
  %2890 = vmatprep.subr.mxu0 0.0
  %2891 = vmatpush1.xpose.msra.mxu0 0.0
  %2892 = vmatprep.subr.mxu0 0.0
  %2893 = vmatpush1.xpose.msra.mxu0 0.0
  %2894 = vmatprep.subr.mxu0 0.0
  %2895 = vmatpush1.xpose.msra.mxu0 0.0
  %2896 = vmatprep.subr.mxu0 0.0
  %2897 = vmatpush1.xpose.msra.mxu0 0.0
  %2898 = vmatprep.subr.mxu0 0.0
  %2899 = vmatpush1.xpose.msra.mxu0 0.0
  %2900 = vmatprep.subr.mxu0 0.0
  %2901 = vmatpush1.xpose.msra.mxu0 0.0
  %2902 = vmatprep.mubr.f32.mxu0 0.0
  %2903 = vmatmul.mubr.f32.gmra.mrb[0].mxu0 %v2821
  %v2904 = vpop.f32.mrb[0].mxu0
  %v2905 = vadd.f32 %v77, %v2904
  %v2906 = vpop.f32.mrb[0].mxu0
  %2907 = vmatprep.mubr.f32.mxu0 0.0
  %2908 = vmatmul.mubr.f32.gmra.mrb[0].mxu0 %v2824
  %v2909 = vpop.f32.mrb[0].mxu0
  %v2910 = vadd.f32 %v78, %v2909
  %v2911 = vpop.f32.mrb[0].mxu0
  %2912 = vmatprep.mubr.f32.mxu0 0.0
  %2913 = vmatmul.mubr.f32.gmra.mrb[0].mxu0 %v2827
  %v2914 = vpop.f32.mrb[0].mxu0
  %v2915 = vadd.f32 %v79, %v2914
  %v2916 = vpop.f32.mrb[0].mxu0
  %2917 = vdwg.mxu0
  %v2918 = vsel %vm781, %v2905, -inf
  %2919 = vmax.xlane.f32.xlu0 %v2918
  %v2920 = vpop.xlane.xlu0 %2919
  %v2921 = vsel %vm781, %v2910, -inf
  %2922 = vmax.xlane.f32.xlu0 %v2921
  %v2923 = vpop.xlane.xlu0 %2922
  %v2924 = vsel %vm781, %v2915, -inf
  %2925 = vmax.xlane.f32.xlu0 %v2924
  %v2926 = vpop.xlane.xlu0 %2925
  %v2927 = vsub.f32 %v2905, %v2920
  %v2928 = vsub.f32 %v2910, %v2923
  %v2929 = vsub.f32 %v2915, %v2926
  %v2930 = vmul.f32 %v2927, 1.442695
  %v2931 = vpow.pop %v2930
  %v2932 = vmul.f32 %v2928, 1.442695
  %v2933 = vpow.pop %v2932
  %v2934 = vmul.f32 %v2929, 1.442695
  %v2935 = vpow.pop %v2934
  %v2936 = vsel %vm781, %v2931, 0.0
  %2937 = vadd.xlane.f32.xlu0 %v2936
  %v2938 = vpop.xlane.xlu0 %2937
  %v2939 = vsel %vm781, %v2933, 0.0
  %2940 = vadd.xlane.f32.xlu0 %v2939
  %v2941 = vpop.xlane.xlu0 %2940
  %v2942 = vsel %vm781, %v2935, 0.0
  %2943 = vadd.xlane.f32.xlu0 %v2942
  %v2944 = vpop.xlane.xlu0 %2943
  %v2945 = vrcp.pop %v2938
  %v2946 = vmul.f32 %v2931, %v2945
  %v2947 = vrcp.pop %v2941
  %v2948 = vmul.f32 %v2933, %v2947
  %v2949 = vrcp.pop %v2944
  %v2950 = vmul.f32 %v2935, %v2949
  %v2952 = vsel %vm781, %v2946, 0
  %v2955 = vsel %vm781, %v2948, 0
  %v2958 = vsel %vm781, %v2950, 0
  %2960 = vmatprep.subr.mxu0 0.0
  %2961 = vmatpush1.msra.mxu0 %v2798
  %2962 = vmatprep.subr.mxu0 0.0
  %2963 = vmatpush1.msra.mxu0 %v2803
  %2964 = vmatprep.subr.mxu0 0.0
  %2965 = vmatpush1.msra.mxu0 %v2808
  %2966 = vmatprep.subr.mxu0 0.0
  %2967 = vmatpush1.msra.mxu0 0.0
  %2968 = vmatprep.subr.mxu0 0.0
  %2969 = vmatpush1.msra.mxu0 0.0
  %2970 = vmatprep.subr.mxu0 0.0
  %2971 = vmatpush1.msra.mxu0 0.0
  %2972 = vmatprep.subr.mxu0 0.0
  %2973 = vmatpush1.msra.mxu0 0.0
  %2974 = vmatprep.subr.mxu0 0.0
  %2975 = vmatpush1.msra.mxu0 0.0
  %2976 = vmatprep.subr.mxu0 0.0
  %2977 = vmatpush1.msra.mxu0 0.0
  %2978 = vmatprep.subr.mxu0 0.0
  %2979 = vmatpush1.msra.mxu0 0.0
  %2980 = vmatprep.subr.mxu0 0.0
  %2981 = vmatpush1.msra.mxu0 0.0
  %2982 = vmatprep.subr.mxu0 0.0
  %2983 = vmatpush1.msra.mxu0 0.0
  %2984 = vmatprep.subr.mxu0 0.0
  %2985 = vmatpush1.msra.mxu0 0.0
  %2986 = vmatprep.subr.mxu0 0.0
  %2987 = vmatpush1.msra.mxu0 0.0
  %2988 = vmatprep.subr.mxu0 0.0
  %2989 = vmatpush1.msra.mxu0 0.0
  %2990 = vmatprep.subr.mxu0 0.0
  %2991 = vmatpush1.msra.mxu0 0.0
  %2992 = vmatprep.subr.mxu0 0.0
  %2993 = vmatpush1.msra.mxu0 0.0
  %2994 = vmatprep.subr.mxu0 0.0
  %2995 = vmatpush1.msra.mxu0 0.0
  %2996 = vmatprep.subr.mxu0 0.0
  %2997 = vmatpush1.msra.mxu0 0.0
  %2998 = vmatprep.subr.mxu0 0.0
  %2999 = vmatpush1.msra.mxu0 0.0
  %3000 = vmatprep.subr.mxu0 0.0
  %3001 = vmatpush1.msra.mxu0 0.0
  %3002 = vmatprep.subr.mxu0 0.0
  %3003 = vmatpush1.msra.mxu0 0.0
  %3004 = vmatprep.subr.mxu0 0.0
  %3005 = vmatpush1.msra.mxu0 0.0
  %3006 = vmatprep.subr.mxu0 0.0
  %3007 = vmatpush1.msra.mxu0 0.0
  %3008 = vmatprep.subr.mxu0 0.0
  %3009 = vmatpush1.msra.mxu0 0.0
  %3010 = vmatprep.subr.mxu0 0.0
  %3011 = vmatpush1.msra.mxu0 0.0
  %3012 = vmatprep.subr.mxu0 0.0
  %3013 = vmatpush1.msra.mxu0 0.0
  %3014 = vmatprep.subr.mxu0 0.0
  %3015 = vmatpush1.msra.mxu0 0.0
  %3016 = vmatprep.subr.mxu0 0.0
  %3017 = vmatpush1.msra.mxu0 0.0
  %3018 = vmatprep.subr.mxu0 0.0
  %3019 = vmatpush1.msra.mxu0 0.0
  %3020 = vmatprep.subr.mxu0 0.0
  %3021 = vmatpush1.msra.mxu0 0.0
  %3022 = vmatprep.subr.mxu0 0.0
  %3023 = vmatpush1.msra.mxu0 0.0
  %3024 = vmatprep.mubr.f32.mxu0 0.0
  %3025 = vmatmul.mubr.f32.gmra.mrb[0].mxu0 %v2952
  %v3026 = vpop.f32.mrb[0].mxu0
  %v3027 = vadd.f32 0.0, %v3026
  %v3028 = vpop.f32.mrb[0].mxu0
  %3029 = vmatprep.mubr.f32.mxu0 0.0
  %3030 = vmatmul.mubr.f32.gmra.mrb[0].mxu0 %v2955
  %v3031 = vpop.f32.mrb[0].mxu0
  %v3032 = vadd.f32 0.0, %v3031
  %v3033 = vpop.f32.mrb[0].mxu0
  %3034 = vmatprep.mubr.f32.mxu0 0.0
  %3035 = vmatmul.mubr.f32.gmra.mrb[0].mxu0 %v2958
  %v3036 = vpop.f32.mrb[0].mxu0
  %v3037 = vadd.f32 0.0, %v3036
  %v3038 = vpop.f32.mrb[0].mxu0
  %3039 = vdwg.mxu0
  %s3040 = scalar_lea.vmem %s13, 1
  %v3041 = vld [vmem:[%s3040] sm:$0x1]
  %v3043 = vlaneseq
  %v3044 = vshrl.u32 %v3043, 7
  %v3045 = vsub.s32 0, %v3044
  %v3046 = vrot.slane %v3041, %v3045
  %v3049 = vsel %vm682, %v3027, 0
  %v3052 = vsel %vm682, %v3032, 0
  %v3055 = vsel %vm682, %v3037, 0
  %3057 = vmatprep.subr.mxu0 0.0
  %3058 = vmatpush1.msra.mxu0 %v2812
  %3059 = vmatprep.subr.mxu0 0.0
  %3060 = vmatpush1.msra.mxu0 %v2813
  %3061 = vmatprep.subr.mxu0 0.0
  %3062 = vmatpush1.msra.mxu0 0.0
  %3063 = vmatprep.subr.mxu0 0.0
  %3064 = vmatpush1.msra.mxu0 0.0
  %3065 = vmatprep.subr.mxu0 0.0
  %3066 = vmatpush1.msra.mxu0 0.0
  %3067 = vmatprep.subr.mxu0 0.0
  %3068 = vmatpush1.msra.mxu0 0.0
  %3069 = vmatprep.subr.mxu0 0.0
  %3070 = vmatpush1.msra.mxu0 0.0
  %3071 = vmatprep.subr.mxu0 0.0
  %3072 = vmatpush1.msra.mxu0 0.0
  %3073 = vmatprep.subr.mxu0 0.0
  %3074 = vmatpush1.msra.mxu0 0.0
  %3075 = vmatprep.subr.mxu0 0.0
  %3076 = vmatpush1.msra.mxu0 0.0
  %3077 = vmatprep.subr.mxu0 0.0
  %3078 = vmatpush1.msra.mxu0 0.0
  %3079 = vmatprep.subr.mxu0 0.0
  %3080 = vmatpush1.msra.mxu0 0.0
  %3081 = vmatprep.subr.mxu0 0.0
  %3082 = vmatpush1.msra.mxu0 0.0
  %3083 = vmatprep.subr.mxu0 0.0
  %3084 = vmatpush1.msra.mxu0 0.0
  %3085 = vmatprep.subr.mxu0 0.0
  %3086 = vmatpush1.msra.mxu0 0.0
  %3087 = vmatprep.subr.mxu0 0.0
  %3088 = vmatpush1.msra.mxu0 0.0
  %3089 = vmatprep.subr.mxu0 0.0
  %3090 = vmatpush1.msra.mxu0 0.0
  %3091 = vmatprep.subr.mxu0 0.0
  %3092 = vmatpush1.msra.mxu0 0.0
  %3093 = vmatprep.subr.mxu0 0.0
  %3094 = vmatpush1.msra.mxu0 0.0
  %3095 = vmatprep.subr.mxu0 0.0
  %3096 = vmatpush1.msra.mxu0 0.0
  %3097 = vmatprep.subr.mxu0 0.0
  %3098 = vmatpush1.msra.mxu0 0.0
  %3099 = vmatprep.subr.mxu0 0.0
  %3100 = vmatpush1.msra.mxu0 0.0
  %3101 = vmatprep.subr.mxu0 0.0
  %3102 = vmatpush1.msra.mxu0 0.0
  %3103 = vmatprep.subr.mxu0 0.0
  %3104 = vmatpush1.msra.mxu0 0.0
  %3105 = vmatprep.subr.mxu0 0.0
  %3106 = vmatpush1.msra.mxu0 0.0
  %3107 = vmatprep.subr.mxu0 0.0
  %3108 = vmatpush1.msra.mxu0 0.0
  %3109 = vmatprep.subr.mxu0 0.0
  %3110 = vmatpush1.msra.mxu0 0.0
  %3111 = vmatprep.subr.mxu0 0.0
  %3112 = vmatpush1.msra.mxu0 0.0
  %3113 = vmatprep.subr.mxu0 0.0
  %3114 = vmatpush1.msra.mxu0 0.0
  %3115 = vmatprep.subr.mxu0 0.0
  %3116 = vmatpush1.msra.mxu0 0.0
  %3117 = vmatprep.subr.mxu0 0.0
  %3118 = vmatpush1.msra.mxu0 0.0
  %3119 = vmatprep.subr.mxu0 0.0
  %3120 = vmatpush1.msra.mxu0 0.0
  %3121 = vmatprep.mubr.f32.mxu0 0.0
  %3122 = vmatmul.mubr.f32.gmra.mrb[0].mxu0 %v3049
  %v3123 = vpop.f32.mrb[0].mxu0
  %v3124 = vadd.f32 %v3046, %v3123
  %v3125 = vpop.f32.mrb[0].mxu0
  %3126 = vmatprep.mubr.f32.mxu0 0.0
  %3127 = vmatmul.mubr.f32.gmra.mrb[0].mxu0 %v3052
  %v3128 = vpop.f32.mrb[0].mxu0
  %v3129 = vadd.f32 %v3046, %v3128
  %v3130 = vpop.f32.mrb[0].mxu0
  %3131 = vmatprep.mubr.f32.mxu0 0.0
  %3132 = vmatmul.mubr.f32.gmra.mrb[0].mxu0 %v3055
  %v3133 = vpop.f32.mrb[0].mxu0
  %v3134 = vadd.f32 %v3046, %v3133
  %v3135 = vpop.f32.mrb[0].mxu0
  %3136 = vdwg.mxu0
  %3137 = vrot.lane.b32.xlu0 %v2604, 112
  %v3138 = vpop.permute.xlu0 %3137
  %3139 = vrot.lane.b32.xlu0 %v2609, 112
  %v3140 = vpop.permute.xlu0 %3139
  %3141 = vrot.lane.b32.xlu0 %v2614, 112
  %v3142 = vpop.permute.xlu0 %3141
  %3143 = vrot.lane.b32.xlu0 %v2701, 112
  %v3144 = vpop.permute.xlu0 %3143
  %3145 = vrot.lane.b32.xlu0 %v2706, 112
  %v3146 = vpop.permute.xlu0 %3145
  %3147 = vrot.lane.b32.xlu0 %v2711, 112
  %v3148 = vpop.permute.xlu0 %3147
  %v3149 = vsel %vm682, %v3138, 0
  %v3151 = vsel %vm682, %v3140, 0
  %v3153 = vsel %vm682, %v3142, 0
  %v3155 = vsel %vm682, %v3144, 0
  %v3157 = vsel %vm682, %v3146, 0
  %v3159 = vsel %vm682, %v3148, 0
  %3161 = vmatprep.subr.mxu0 0.0
  %3162 = vmatpush1.xpose.msra.mxu0 %v3155
  %3163 = vmatprep.subr.mxu0 0.0
  %3164 = vmatpush1.xpose.msra.mxu0 %v3157
  %3165 = vmatprep.subr.mxu0 0.0
  %3166 = vmatpush1.xpose.msra.mxu0 %v3159
  %3167 = vmatprep.subr.mxu0 0.0
  %3168 = vmatpush1.xpose.msra.mxu0 0.0
  %3169 = vmatprep.subr.mxu0 0.0
  %3170 = vmatpush1.xpose.msra.mxu0 0.0
  %3171 = vmatprep.subr.mxu0 0.0
  %3172 = vmatpush1.xpose.msra.mxu0 0.0
  %3173 = vmatprep.subr.mxu0 0.0
  %3174 = vmatpush1.xpose.msra.mxu0 0.0
  %3175 = vmatprep.subr.mxu0 0.0
  %3176 = vmatpush1.xpose.msra.mxu0 0.0
  %3177 = vmatprep.subr.mxu0 0.0
  %3178 = vmatpush1.xpose.msra.mxu0 0.0
  %3179 = vmatprep.subr.mxu0 0.0
  %3180 = vmatpush1.xpose.msra.mxu0 0.0
  %3181 = vmatprep.subr.mxu0 0.0
  %3182 = vmatpush1.xpose.msra.mxu0 0.0
  %3183 = vmatprep.subr.mxu0 0.0
  %3184 = vmatpush1.xpose.msra.mxu0 0.0
  %3185 = vmatprep.subr.mxu0 0.0
  %3186 = vmatpush1.xpose.msra.mxu0 0.0
  %3187 = vmatprep.subr.mxu0 0.0
  %3188 = vmatpush1.xpose.msra.mxu0 0.0
  %3189 = vmatprep.subr.mxu0 0.0
  %3190 = vmatpush1.xpose.msra.mxu0 0.0
  %3191 = vmatprep.subr.mxu0 0.0
  %3192 = vmatpush1.xpose.msra.mxu0 0.0
  %3193 = vmatprep.subr.mxu0 0.0
  %3194 = vmatpush1.xpose.msra.mxu0 0.0
  %3195 = vmatprep.subr.mxu0 0.0
  %3196 = vmatpush1.xpose.msra.mxu0 0.0
  %3197 = vmatprep.subr.mxu0 0.0
  %3198 = vmatpush1.xpose.msra.mxu0 0.0
  %3199 = vmatprep.subr.mxu0 0.0
  %3200 = vmatpush1.xpose.msra.mxu0 0.0
  %3201 = vmatprep.subr.mxu0 0.0
  %3202 = vmatpush1.xpose.msra.mxu0 0.0
  %3203 = vmatprep.subr.mxu0 0.0
  %3204 = vmatpush1.xpose.msra.mxu0 0.0
  %3205 = vmatprep.subr.mxu0 0.0
  %3206 = vmatpush1.xpose.msra.mxu0 0.0
  %3207 = vmatprep.subr.mxu0 0.0
  %3208 = vmatpush1.xpose.msra.mxu0 0.0
  %3209 = vmatprep.subr.mxu0 0.0
  %3210 = vmatpush1.xpose.msra.mxu0 0.0
  %3211 = vmatprep.subr.mxu0 0.0
  %3212 = vmatpush1.xpose.msra.mxu0 0.0
  %3213 = vmatprep.subr.mxu0 0.0
  %3214 = vmatpush1.xpose.msra.mxu0 0.0
  %3215 = vmatprep.subr.mxu0 0.0
  %3216 = vmatpush1.xpose.msra.mxu0 0.0
  %3217 = vmatprep.subr.mxu0 0.0
  %3218 = vmatpush1.xpose.msra.mxu0 0.0
  %3219 = vmatprep.subr.mxu0 0.0
  %3220 = vmatpush1.xpose.msra.mxu0 0.0
  %3221 = vmatprep.subr.mxu0 0.0
  %3222 = vmatpush1.xpose.msra.mxu0 0.0
  %3223 = vmatprep.subr.mxu0 0.0
  %3224 = vmatpush1.xpose.msra.mxu0 0.0
  %3225 = vmatprep.mubr.f32.mxu0 0.0
  %3226 = vmatmul.mubr.f32.gmra.mrb[0].mxu0 %v3149
  %v3227 = vpop.f32.mrb[0].mxu0
  %v3228 = vadd.f32 %v77, %v3227
  %v3229 = vpop.f32.mrb[0].mxu0
  %3230 = vmatprep.mubr.f32.mxu0 0.0
  %3231 = vmatmul.mubr.f32.gmra.mrb[0].mxu0 %v3151
  %v3232 = vpop.f32.mrb[0].mxu0
  %v3233 = vadd.f32 %v78, %v3232
  %v3234 = vpop.f32.mrb[0].mxu0
  %3235 = vmatprep.mubr.f32.mxu0 0.0
  %3236 = vmatmul.mubr.f32.gmra.mrb[0].mxu0 %v3153
  %v3237 = vpop.f32.mrb[0].mxu0
  %v3238 = vadd.f32 %v79, %v3237
  %v3239 = vpop.f32.mrb[0].mxu0
  %3240 = vdwg.mxu0
  %v3241 = vsel %vm781, %v3228, -inf
  %3242 = vmax.xlane.f32.xlu0 %v3241
  %v3243 = vpop.xlane.xlu0 %3242
  %v3244 = vsel %vm781, %v3233, -inf
  %3245 = vmax.xlane.f32.xlu0 %v3244
  %v3246 = vpop.xlane.xlu0 %3245
  %v3247 = vsel %vm781, %v3238, -inf
  %3248 = vmax.xlane.f32.xlu0 %v3247
  %v3249 = vpop.xlane.xlu0 %3248
  %v3250 = vsub.f32 %v3228, %v3243
  %v3251 = vsub.f32 %v3233, %v3246
  %v3252 = vsub.f32 %v3238, %v3249
  %v3253 = vmul.f32 %v3250, 1.442695
  %v3254 = vpow.pop %v3253
  %v3255 = vmul.f32 %v3251, 1.442695
  %v3256 = vpow.pop %v3255
  %v3257 = vmul.f32 %v3252, 1.442695
  %v3258 = vpow.pop %v3257
  %v3259 = vsel %vm781, %v3254, 0.0
  %3260 = vadd.xlane.f32.xlu0 %v3259
  %v3261 = vpop.xlane.xlu0 %3260
  %v3262 = vsel %vm781, %v3256, 0.0
  %3263 = vadd.xlane.f32.xlu0 %v3262
  %v3264 = vpop.xlane.xlu0 %3263
  %v3265 = vsel %vm781, %v3258, 0.0
  %3266 = vadd.xlane.f32.xlu0 %v3265
  %v3267 = vpop.xlane.xlu0 %3266
  %v3268 = vrcp.pop %v3261
  %v3269 = vmul.f32 %v3254, %v3268
  %v3270 = vrcp.pop %v3264
  %v3271 = vmul.f32 %v3256, %v3270
  %v3272 = vrcp.pop %v3267
  %v3273 = vmul.f32 %v3258, %v3272
  %3277 = vrot.lane.b32.xlu0 %v2798, 112
  %v3278 = vpop.permute.xlu0 %3277
  %3279 = vrot.lane.b32.xlu0 %v2803, 112
  %v3280 = vpop.permute.xlu0 %3279
  %3281 = vrot.lane.b32.xlu0 %v2808, 112
  %v3282 = vpop.permute.xlu0 %3281
  %v3287 = vsel %vm781, %v3269, 0
  %v3290 = vsel %vm781, %v3271, 0
  %v3293 = vsel %vm781, %v3273, 0
  %3295 = vmatprep.subr.mxu0 0.0
  %3296 = vmatpush1.msra.mxu0 %v3278
  %3297 = vmatprep.subr.mxu0 0.0
  %3298 = vmatpush1.msra.mxu0 %v3280
  %3299 = vmatprep.subr.mxu0 0.0
  %3300 = vmatpush1.msra.mxu0 %v3282
  %3301 = vmatprep.subr.mxu0 0.0
  %3302 = vmatpush1.msra.mxu0 0.0
  %3303 = vmatprep.subr.mxu0 0.0
  %3304 = vmatpush1.msra.mxu0 0.0
  %3305 = vmatprep.subr.mxu0 0.0
  %3306 = vmatpush1.msra.mxu0 0.0
  %3307 = vmatprep.subr.mxu0 0.0
  %3308 = vmatpush1.msra.mxu0 0.0
  %3309 = vmatprep.subr.mxu0 0.0
  %3310 = vmatpush1.msra.mxu0 0.0
  %3311 = vmatprep.subr.mxu0 0.0
  %3312 = vmatpush1.msra.mxu0 0.0
  %3313 = vmatprep.subr.mxu0 0.0
  %3314 = vmatpush1.msra.mxu0 0.0
  %3315 = vmatprep.subr.mxu0 0.0
  %3316 = vmatpush1.msra.mxu0 0.0
  %3317 = vmatprep.subr.mxu0 0.0
  %3318 = vmatpush1.msra.mxu0 0.0
  %3319 = vmatprep.subr.mxu0 0.0
  %3320 = vmatpush1.msra.mxu0 0.0
  %3321 = vmatprep.subr.mxu0 0.0
  %3322 = vmatpush1.msra.mxu0 0.0
  %3323 = vmatprep.subr.mxu0 0.0
  %3324 = vmatpush1.msra.mxu0 0.0
  %3325 = vmatprep.subr.mxu0 0.0
  %3326 = vmatpush1.msra.mxu0 0.0
  %3327 = vmatprep.subr.mxu0 0.0
  %3328 = vmatpush1.msra.mxu0 0.0
  %3329 = vmatprep.subr.mxu0 0.0
  %3330 = vmatpush1.msra.mxu0 0.0
  %3331 = vmatprep.subr.mxu0 0.0
  %3332 = vmatpush1.msra.mxu0 0.0
  %3333 = vmatprep.subr.mxu0 0.0
  %3334 = vmatpush1.msra.mxu0 0.0
  %3335 = vmatprep.subr.mxu0 0.0
  %3336 = vmatpush1.msra.mxu0 0.0
  %3337 = vmatprep.subr.mxu0 0.0
  %3338 = vmatpush1.msra.mxu0 0.0
  %3339 = vmatprep.subr.mxu0 0.0
  %3340 = vmatpush1.msra.mxu0 0.0
  %3341 = vmatprep.subr.mxu0 0.0
  %3342 = vmatpush1.msra.mxu0 0.0
  %3343 = vmatprep.subr.mxu0 0.0
  %3344 = vmatpush1.msra.mxu0 0.0
  %3345 = vmatprep.subr.mxu0 0.0
  %3346 = vmatpush1.msra.mxu0 0.0
  %3347 = vmatprep.subr.mxu0 0.0
  %3348 = vmatpush1.msra.mxu0 0.0
  %3349 = vmatprep.subr.mxu0 0.0
  %3350 = vmatpush1.msra.mxu0 0.0
  %3351 = vmatprep.subr.mxu0 0.0
  %3352 = vmatpush1.msra.mxu0 0.0
  %3353 = vmatprep.subr.mxu0 0.0
  %3354 = vmatpush1.msra.mxu0 0.0
  %3355 = vmatprep.subr.mxu0 0.0
  %3356 = vmatpush1.msra.mxu0 0.0
  %3357 = vmatprep.subr.mxu0 0.0
  %3358 = vmatpush1.msra.mxu0 0.0
  %3359 = vmatprep.mubr.f32.mxu0 0.0
  %3360 = vmatmul.mubr.f32.gmra.mrb[0].mxu0 %v3287
  %v3361 = vpop.f32.mrb[0].mxu0
  %v3362 = vadd.f32 0.0, %v3361
  %v3363 = vpop.f32.mrb[0].mxu0
  %3364 = vmatprep.mubr.f32.mxu0 0.0
  %3365 = vmatmul.mubr.f32.gmra.mrb[0].mxu0 %v3290
  %v3366 = vpop.f32.mrb[0].mxu0
  %v3367 = vadd.f32 0.0, %v3366
  %v3368 = vpop.f32.mrb[0].mxu0
  %3369 = vmatprep.mubr.f32.mxu0 0.0
  %3370 = vmatmul.mubr.f32.gmra.mrb[0].mxu0 %v3293
  %v3371 = vpop.f32.mrb[0].mxu0
  %v3372 = vadd.f32 0.0, %v3371
  %v3373 = vpop.f32.mrb[0].mxu0
  %3374 = vdwg.mxu0
  %v3376 = vsel %vm682, %v3362, 0
  %v3379 = vsel %vm682, %v3367, 0
  %v3382 = vsel %vm682, %v3372, 0
  %3384 = vmatprep.subr.mxu0 0.0
  %3385 = vmatpush1.msra.mxu0 %v2814
  %3386 = vmatprep.subr.mxu0 0.0
  %3387 = vmatpush1.msra.mxu0 %v2815
  %3388 = vmatprep.subr.mxu0 0.0
  %3389 = vmatpush1.msra.mxu0 0.0
  %3390 = vmatprep.subr.mxu0 0.0
  %3391 = vmatpush1.msra.mxu0 0.0
  %3392 = vmatprep.subr.mxu0 0.0
  %3393 = vmatpush1.msra.mxu0 0.0
  %3394 = vmatprep.subr.mxu0 0.0
  %3395 = vmatpush1.msra.mxu0 0.0
  %3396 = vmatprep.subr.mxu0 0.0
  %3397 = vmatpush1.msra.mxu0 0.0
  %3398 = vmatprep.subr.mxu0 0.0
  %3399 = vmatpush1.msra.mxu0 0.0
  %3400 = vmatprep.subr.mxu0 0.0
  %3401 = vmatpush1.msra.mxu0 0.0
  %3402 = vmatprep.subr.mxu0 0.0
  %3403 = vmatpush1.msra.mxu0 0.0
  %3404 = vmatprep.subr.mxu0 0.0
  %3405 = vmatpush1.msra.mxu0 0.0
  %3406 = vmatprep.subr.mxu0 0.0
  %3407 = vmatpush1.msra.mxu0 0.0
  %3408 = vmatprep.subr.mxu0 0.0
  %3409 = vmatpush1.msra.mxu0 0.0
  %3410 = vmatprep.subr.mxu0 0.0
  %3411 = vmatpush1.msra.mxu0 0.0
  %3412 = vmatprep.subr.mxu0 0.0
  %3413 = vmatpush1.msra.mxu0 0.0
  %3414 = vmatprep.subr.mxu0 0.0
  %3415 = vmatpush1.msra.mxu0 0.0
  %3416 = vmatprep.subr.mxu0 0.0
  %3417 = vmatpush1.msra.mxu0 0.0
  %3418 = vmatprep.subr.mxu0 0.0
  %3419 = vmatpush1.msra.mxu0 0.0
  %3420 = vmatprep.subr.mxu0 0.0
  %3421 = vmatpush1.msra.mxu0 0.0
  %3422 = vmatprep.subr.mxu0 0.0
  %3423 = vmatpush1.msra.mxu0 0.0
  %3424 = vmatprep.subr.mxu0 0.0
  %3425 = vmatpush1.msra.mxu0 0.0
  %3426 = vmatprep.subr.mxu0 0.0
  %3427 = vmatpush1.msra.mxu0 0.0
  %3428 = vmatprep.subr.mxu0 0.0
  %3429 = vmatpush1.msra.mxu0 0.0
  %3430 = vmatprep.subr.mxu0 0.0
  %3431 = vmatpush1.msra.mxu0 0.0
  %3432 = vmatprep.subr.mxu0 0.0
  %3433 = vmatpush1.msra.mxu0 0.0
  %3434 = vmatprep.subr.mxu0 0.0
  %3435 = vmatpush1.msra.mxu0 0.0
  %3436 = vmatprep.subr.mxu0 0.0
  %3437 = vmatpush1.msra.mxu0 0.0
  %3438 = vmatprep.subr.mxu0 0.0
  %3439 = vmatpush1.msra.mxu0 0.0
  %3440 = vmatprep.subr.mxu0 0.0
  %3441 = vmatpush1.msra.mxu0 0.0
  %3442 = vmatprep.subr.mxu0 0.0
  %3443 = vmatpush1.msra.mxu0 0.0
  %3444 = vmatprep.subr.mxu0 0.0
  %3445 = vmatpush1.msra.mxu0 0.0
  %3446 = vmatprep.subr.mxu0 0.0
  %3447 = vmatpush1.msra.mxu0 0.0
  %3448 = vmatprep.mubr.f32.mxu0 0.0
  %3449 = vmatmul.mubr.f32.gmra.mrb[0].mxu0 %v3376
  %v3450 = vpop.f32.mrb[0].mxu0
  %v3451 = vadd.f32 0.0, %v3450
  %v3452 = vpop.f32.mrb[0].mxu0
  %3453 = vmatprep.mubr.f32.mxu0 0.0
  %3454 = vmatmul.mubr.f32.gmra.mrb[0].mxu0 %v3379
  %v3455 = vpop.f32.mrb[0].mxu0
  %v3456 = vadd.f32 0.0, %v3455
  %v3457 = vpop.f32.mrb[0].mxu0
  %3458 = vmatprep.mubr.f32.mxu0 0.0
  %3459 = vmatmul.mubr.f32.gmra.mrb[0].mxu0 %v3382
  %v3460 = vpop.f32.mrb[0].mxu0
  %v3461 = vadd.f32 0.0, %v3460
  %v3462 = vpop.f32.mrb[0].mxu0
  %3463 = vdwg.mxu0
  %v3464 = vadd.f32 %v3124, %v3451
  %v3465 = vadd.f32 %v3129, %v3456
  %v3466 = vadd.f32 %v3134, %v3461
  %3467 = vrot.lane.b32.xlu0 %v2604, 96
  %v3468 = vpop.permute.xlu0 %3467
  %3469 = vrot.lane.b32.xlu0 %v2609, 96
  %v3470 = vpop.permute.xlu0 %3469
  %3471 = vrot.lane.b32.xlu0 %v2614, 96
  %v3472 = vpop.permute.xlu0 %3471
  %3473 = vrot.lane.b32.xlu0 %v2701, 96
  %v3474 = vpop.permute.xlu0 %3473
  %3475 = vrot.lane.b32.xlu0 %v2706, 96
  %v3476 = vpop.permute.xlu0 %3475
  %3477 = vrot.lane.b32.xlu0 %v2711, 96
  %v3478 = vpop.permute.xlu0 %3477
  %v3479 = vsel %vm682, %v3468, 0
  %v3481 = vsel %vm682, %v3470, 0
  %v3483 = vsel %vm682, %v3472, 0
  %v3485 = vsel %vm682, %v3474, 0
  %v3487 = vsel %vm682, %v3476, 0
  %v3489 = vsel %vm682, %v3478, 0
  %3491 = vmatprep.subr.mxu0 0.0
  %3492 = vmatpush1.xpose.msra.mxu0 %v3485
  %3493 = vmatprep.subr.mxu0 0.0
  %3494 = vmatpush1.xpose.msra.mxu0 %v3487
  %3495 = vmatprep.subr.mxu0 0.0
  %3496 = vmatpush1.xpose.msra.mxu0 %v3489
  %3497 = vmatprep.subr.mxu0 0.0
  %3498 = vmatpush1.xpose.msra.mxu0 0.0
  %3499 = vmatprep.subr.mxu0 0.0
  %3500 = vmatpush1.xpose.msra.mxu0 0.0
  %3501 = vmatprep.subr.mxu0 0.0
  %3502 = vmatpush1.xpose.msra.mxu0 0.0
  %3503 = vmatprep.subr.mxu0 0.0
  %3504 = vmatpush1.xpose.msra.mxu0 0.0
  %3505 = vmatprep.subr.mxu0 0.0
  %3506 = vmatpush1.xpose.msra.mxu0 0.0
  %3507 = vmatprep.subr.mxu0 0.0
  %3508 = vmatpush1.xpose.msra.mxu0 0.0
  %3509 = vmatprep.subr.mxu0 0.0
  %3510 = vmatpush1.xpose.msra.mxu0 0.0
  %3511 = vmatprep.subr.mxu0 0.0
  %3512 = vmatpush1.xpose.msra.mxu0 0.0
  %3513 = vmatprep.subr.mxu0 0.0
  %3514 = vmatpush1.xpose.msra.mxu0 0.0
  %3515 = vmatprep.subr.mxu0 0.0
  %3516 = vmatpush1.xpose.msra.mxu0 0.0
  %3517 = vmatprep.subr.mxu0 0.0
  %3518 = vmatpush1.xpose.msra.mxu0 0.0
  %3519 = vmatprep.subr.mxu0 0.0
  %3520 = vmatpush1.xpose.msra.mxu0 0.0
  %3521 = vmatprep.subr.mxu0 0.0
  %3522 = vmatpush1.xpose.msra.mxu0 0.0
  %3523 = vmatprep.subr.mxu0 0.0
  %3524 = vmatpush1.xpose.msra.mxu0 0.0
  %3525 = vmatprep.subr.mxu0 0.0
  %3526 = vmatpush1.xpose.msra.mxu0 0.0
  %3527 = vmatprep.subr.mxu0 0.0
  %3528 = vmatpush1.xpose.msra.mxu0 0.0
  %3529 = vmatprep.subr.mxu0 0.0
  %3530 = vmatpush1.xpose.msra.mxu0 0.0
  %3531 = vmatprep.subr.mxu0 0.0
  %3532 = vmatpush1.xpose.msra.mxu0 0.0
  %3533 = vmatprep.subr.mxu0 0.0
  %3534 = vmatpush1.xpose.msra.mxu0 0.0
  %3535 = vmatprep.subr.mxu0 0.0
  %3536 = vmatpush1.xpose.msra.mxu0 0.0
  %3537 = vmatprep.subr.mxu0 0.0
  %3538 = vmatpush1.xpose.msra.mxu0 0.0
  %3539 = vmatprep.subr.mxu0 0.0
  %3540 = vmatpush1.xpose.msra.mxu0 0.0
  %3541 = vmatprep.subr.mxu0 0.0
  %3542 = vmatpush1.xpose.msra.mxu0 0.0
  %3543 = vmatprep.subr.mxu0 0.0
  %3544 = vmatpush1.xpose.msra.mxu0 0.0
  %3545 = vmatprep.subr.mxu0 0.0
  %3546 = vmatpush1.xpose.msra.mxu0 0.0
  %3547 = vmatprep.subr.mxu0 0.0
  %3548 = vmatpush1.xpose.msra.mxu0 0.0
  %3549 = vmatprep.subr.mxu0 0.0
  %3550 = vmatpush1.xpose.msra.mxu0 0.0
  %3551 = vmatprep.subr.mxu0 0.0
  %3552 = vmatpush1.xpose.msra.mxu0 0.0
  %3553 = vmatprep.subr.mxu0 0.0
  %3554 = vmatpush1.xpose.msra.mxu0 0.0
  %3555 = vmatprep.mubr.f32.mxu0 0.0
  %3556 = vmatmul.mubr.f32.gmra.mrb[0].mxu0 %v3479
  %v3557 = vpop.f32.mrb[0].mxu0
  %v3558 = vadd.f32 %v77, %v3557
  %v3559 = vpop.f32.mrb[0].mxu0
  %3560 = vmatprep.mubr.f32.mxu0 0.0
  %3561 = vmatmul.mubr.f32.gmra.mrb[0].mxu0 %v3481
  %v3562 = vpop.f32.mrb[0].mxu0
  %v3563 = vadd.f32 %v78, %v3562
  %v3564 = vpop.f32.mrb[0].mxu0
  %3565 = vmatprep.mubr.f32.mxu0 0.0
  %3566 = vmatmul.mubr.f32.gmra.mrb[0].mxu0 %v3483
  %v3567 = vpop.f32.mrb[0].mxu0
  %v3568 = vadd.f32 %v79, %v3567
  %v3569 = vpop.f32.mrb[0].mxu0
  %3570 = vdwg.mxu0
  %v3571 = vsel %vm781, %v3558, -inf
  %3572 = vmax.xlane.f32.xlu0 %v3571
  %v3573 = vpop.xlane.xlu0 %3572
  %v3574 = vsel %vm781, %v3563, -inf
  %3575 = vmax.xlane.f32.xlu0 %v3574
  %v3576 = vpop.xlane.xlu0 %3575
  %v3577 = vsel %vm781, %v3568, -inf
  %3578 = vmax.xlane.f32.xlu0 %v3577
  %v3579 = vpop.xlane.xlu0 %3578
  %v3580 = vsub.f32 %v3558, %v3573
  %v3581 = vsub.f32 %v3563, %v3576
  %v3582 = vsub.f32 %v3568, %v3579
  %v3583 = vmul.f32 %v3580, 1.442695
  %v3584 = vpow.pop %v3583
  %v3585 = vmul.f32 %v3581, 1.442695
  %v3586 = vpow.pop %v3585
  %v3587 = vmul.f32 %v3582, 1.442695
  %v3588 = vpow.pop %v3587
  %v3589 = vsel %vm781, %v3584, 0.0
  %3590 = vadd.xlane.f32.xlu0 %v3589
  %v3591 = vpop.xlane.xlu0 %3590
  %v3592 = vsel %vm781, %v3586, 0.0
  %3593 = vadd.xlane.f32.xlu0 %v3592
  %v3594 = vpop.xlane.xlu0 %3593
  %v3595 = vsel %vm781, %v3588, 0.0
  %3596 = vadd.xlane.f32.xlu0 %v3595
  %v3597 = vpop.xlane.xlu0 %3596
  %v3598 = vrcp.pop %v3591
  %v3599 = vmul.f32 %v3584, %v3598
  %v3600 = vrcp.pop %v3594
  %v3601 = vmul.f32 %v3586, %v3600
  %v3602 = vrcp.pop %v3597
  %v3603 = vmul.f32 %v3588, %v3602
  %3604 = vrot.lane.b32.xlu0 %v2798, 96
  %v3605 = vpop.permute.xlu0 %3604
  %3606 = vrot.lane.b32.xlu0 %v2803, 96
  %v3607 = vpop.permute.xlu0 %3606
  %3608 = vrot.lane.b32.xlu0 %v2808, 96
  %v3609 = vpop.permute.xlu0 %3608
  %v3614 = vsel %vm781, %v3599, 0
  %v3617 = vsel %vm781, %v3601, 0
  %v3620 = vsel %vm781, %v3603, 0
  %3622 = vmatprep.subr.mxu0 0.0
  %3623 = vmatpush1.msra.mxu0 %v3605
  %3624 = vmatprep.subr.mxu0 0.0
  %3625 = vmatpush1.msra.mxu0 %v3607
  %3626 = vmatprep.subr.mxu0 0.0
  %3627 = vmatpush1.msra.mxu0 %v3609
  %3628 = vmatprep.subr.mxu0 0.0
  %3629 = vmatpush1.msra.mxu0 0.0
  %3630 = vmatprep.subr.mxu0 0.0
  %3631 = vmatpush1.msra.mxu0 0.0
  %3632 = vmatprep.subr.mxu0 0.0
  %3633 = vmatpush1.msra.mxu0 0.0
  %3634 = vmatprep.subr.mxu0 0.0
  %3635 = vmatpush1.msra.mxu0 0.0
  %3636 = vmatprep.subr.mxu0 0.0
  %3637 = vmatpush1.msra.mxu0 0.0
  %3638 = vmatprep.subr.mxu0 0.0
  %3639 = vmatpush1.msra.mxu0 0.0
  %3640 = vmatprep.subr.mxu0 0.0
  %3641 = vmatpush1.msra.mxu0 0.0
  %3642 = vmatprep.subr.mxu0 0.0
  %3643 = vmatpush1.msra.mxu0 0.0
  %3644 = vmatprep.subr.mxu0 0.0
  %3645 = vmatpush1.msra.mxu0 0.0
  %3646 = vmatprep.subr.mxu0 0.0
  %3647 = vmatpush1.msra.mxu0 0.0
  %3648 = vmatprep.subr.mxu0 0.0
  %3649 = vmatpush1.msra.mxu0 0.0
  %3650 = vmatprep.subr.mxu0 0.0
  %3651 = vmatpush1.msra.mxu0 0.0
  %3652 = vmatprep.subr.mxu0 0.0
  %3653 = vmatpush1.msra.mxu0 0.0
  %3654 = vmatprep.subr.mxu0 0.0
  %3655 = vmatpush1.msra.mxu0 0.0
  %3656 = vmatprep.subr.mxu0 0.0
  %3657 = vmatpush1.msra.mxu0 0.0
  %3658 = vmatprep.subr.mxu0 0.0
  %3659 = vmatpush1.msra.mxu0 0.0
  %3660 = vmatprep.subr.mxu0 0.0
  %3661 = vmatpush1.msra.mxu0 0.0
  %3662 = vmatprep.subr.mxu0 0.0
  %3663 = vmatpush1.msra.mxu0 0.0
  %3664 = vmatprep.subr.mxu0 0.0
  %3665 = vmatpush1.msra.mxu0 0.0
  %3666 = vmatprep.subr.mxu0 0.0
  %3667 = vmatpush1.msra.mxu0 0.0
  %3668 = vmatprep.subr.mxu0 0.0
  %3669 = vmatpush1.msra.mxu0 0.0
  %3670 = vmatprep.subr.mxu0 0.0
  %3671 = vmatpush1.msra.mxu0 0.0
  %3672 = vmatprep.subr.mxu0 0.0
  %3673 = vmatpush1.msra.mxu0 0.0
  %3674 = vmatprep.subr.mxu0 0.0
  %3675 = vmatpush1.msra.mxu0 0.0
  %3676 = vmatprep.subr.mxu0 0.0
  %3677 = vmatpush1.msra.mxu0 0.0
  %3678 = vmatprep.subr.mxu0 0.0
  %3679 = vmatpush1.msra.mxu0 0.0
  %3680 = vmatprep.subr.mxu0 0.0
  %3681 = vmatpush1.msra.mxu0 0.0
  %3682 = vmatprep.subr.mxu0 0.0
  %3683 = vmatpush1.msra.mxu0 0.0
  %3684 = vmatprep.subr.mxu0 0.0
  %3685 = vmatpush1.msra.mxu0 0.0
  %3686 = vmatprep.mubr.f32.mxu0 0.0
  %3687 = vmatmul.mubr.f32.gmra.mrb[0].mxu0 %v3614
  %v3688 = vpop.f32.mrb[0].mxu0
  %v3689 = vadd.f32 0.0, %v3688
  %v3690 = vpop.f32.mrb[0].mxu0
  %3691 = vmatprep.mubr.f32.mxu0 0.0
  %3692 = vmatmul.mubr.f32.gmra.mrb[0].mxu0 %v3617
  %v3693 = vpop.f32.mrb[0].mxu0
  %v3694 = vadd.f32 0.0, %v3693
  %v3695 = vpop.f32.mrb[0].mxu0
  %3696 = vmatprep.mubr.f32.mxu0 0.0
  %3697 = vmatmul.mubr.f32.gmra.mrb[0].mxu0 %v3620
  %v3698 = vpop.f32.mrb[0].mxu0
  %v3699 = vadd.f32 0.0, %v3698
  %v3700 = vpop.f32.mrb[0].mxu0
  %3701 = vdwg.mxu0
  %v3703 = vsel %vm682, %v3689, 0
  %v3706 = vsel %vm682, %v3694, 0
  %v3709 = vsel %vm682, %v3699, 0
  %3711 = vmatprep.subr.mxu0 0.0
  %3712 = vmatpush1.msra.mxu0 %v2816
  %3713 = vmatprep.subr.mxu0 0.0
  %3714 = vmatpush1.msra.mxu0 %v2817
  %3715 = vmatprep.subr.mxu0 0.0
  %3716 = vmatpush1.msra.mxu0 0.0
  %3717 = vmatprep.subr.mxu0 0.0
  %3718 = vmatpush1.msra.mxu0 0.0
  %3719 = vmatprep.subr.mxu0 0.0
  %3720 = vmatpush1.msra.mxu0 0.0
  %3721 = vmatprep.subr.mxu0 0.0
  %3722 = vmatpush1.msra.mxu0 0.0
  %3723 = vmatprep.subr.mxu0 0.0
  %3724 = vmatpush1.msra.mxu0 0.0
  %3725 = vmatprep.subr.mxu0 0.0
  %3726 = vmatpush1.msra.mxu0 0.0
  %3727 = vmatprep.subr.mxu0 0.0
  %3728 = vmatpush1.msra.mxu0 0.0
  %3729 = vmatprep.subr.mxu0 0.0
  %3730 = vmatpush1.msra.mxu0 0.0
  %3731 = vmatprep.subr.mxu0 0.0
  %3732 = vmatpush1.msra.mxu0 0.0
  %3733 = vmatprep.subr.mxu0 0.0
  %3734 = vmatpush1.msra.mxu0 0.0
  %3735 = vmatprep.subr.mxu0 0.0
  %3736 = vmatpush1.msra.mxu0 0.0
  %3737 = vmatprep.subr.mxu0 0.0
  %3738 = vmatpush1.msra.mxu0 0.0
  %3739 = vmatprep.subr.mxu0 0.0
  %3740 = vmatpush1.msra.mxu0 0.0
  %3741 = vmatprep.subr.mxu0 0.0
  %3742 = vmatpush1.msra.mxu0 0.0
  %3743 = vmatprep.subr.mxu0 0.0
  %3744 = vmatpush1.msra.mxu0 0.0
  %3745 = vmatprep.subr.mxu0 0.0
  %3746 = vmatpush1.msra.mxu0 0.0
  %3747 = vmatprep.subr.mxu0 0.0
  %3748 = vmatpush1.msra.mxu0 0.0
  %3749 = vmatprep.subr.mxu0 0.0
  %3750 = vmatpush1.msra.mxu0 0.0
  %3751 = vmatprep.subr.mxu0 0.0
  %3752 = vmatpush1.msra.mxu0 0.0
  %3753 = vmatprep.subr.mxu0 0.0
  %3754 = vmatpush1.msra.mxu0 0.0
  %3755 = vmatprep.subr.mxu0 0.0
  %3756 = vmatpush1.msra.mxu0 0.0
  %3757 = vmatprep.subr.mxu0 0.0
  %3758 = vmatpush1.msra.mxu0 0.0
  %3759 = vmatprep.subr.mxu0 0.0
  %3760 = vmatpush1.msra.mxu0 0.0
  %3761 = vmatprep.subr.mxu0 0.0
  %3762 = vmatpush1.msra.mxu0 0.0
  %3763 = vmatprep.subr.mxu0 0.0
  %3764 = vmatpush1.msra.mxu0 0.0
  %3765 = vmatprep.subr.mxu0 0.0
  %3766 = vmatpush1.msra.mxu0 0.0
  %3767 = vmatprep.subr.mxu0 0.0
  %3768 = vmatpush1.msra.mxu0 0.0
  %3769 = vmatprep.subr.mxu0 0.0
  %3770 = vmatpush1.msra.mxu0 0.0
  %3771 = vmatprep.subr.mxu0 0.0
  %3772 = vmatpush1.msra.mxu0 0.0
  %3773 = vmatprep.subr.mxu0 0.0
  %3774 = vmatpush1.msra.mxu0 0.0
  %3775 = vmatprep.mubr.f32.mxu0 0.0
  %3776 = vmatmul.mubr.f32.gmra.mrb[0].mxu0 %v3703
  %v3777 = vpop.f32.mrb[0].mxu0
  %v3778 = vadd.f32 0.0, %v3777
  %v3779 = vpop.f32.mrb[0].mxu0
  %3780 = vmatprep.mubr.f32.mxu0 0.0
  %3781 = vmatmul.mubr.f32.gmra.mrb[0].mxu0 %v3706
  %v3782 = vpop.f32.mrb[0].mxu0
  %v3783 = vadd.f32 0.0, %v3782
  %v3784 = vpop.f32.mrb[0].mxu0
  %3785 = vmatprep.mubr.f32.mxu0 0.0
  %3786 = vmatmul.mubr.f32.gmra.mrb[0].mxu0 %v3709
  %v3787 = vpop.f32.mrb[0].mxu0
  %v3788 = vadd.f32 0.0, %v3787
  %v3789 = vpop.f32.mrb[0].mxu0
  %3790 = vdwg.mxu0
  %v3791 = vadd.f32 %v3464, %v3778
  %v3792 = vadd.f32 %v3465, %v3783
  %v3793 = vadd.f32 %v3466, %v3788
  %3794 = vrot.lane.b32.xlu0 %v2604, 80
  %v3795 = vpop.permute.xlu0 %3794
  %3796 = vrot.lane.b32.xlu0 %v2609, 80
  %v3797 = vpop.permute.xlu0 %3796
  %3798 = vrot.lane.b32.xlu0 %v2614, 80
  %v3799 = vpop.permute.xlu0 %3798
  %3800 = vrot.lane.b32.xlu0 %v2701, 80
  %v3801 = vpop.permute.xlu0 %3800
  %3802 = vrot.lane.b32.xlu0 %v2706, 80
  %v3803 = vpop.permute.xlu0 %3802
  %3804 = vrot.lane.b32.xlu0 %v2711, 80
  %v3805 = vpop.permute.xlu0 %3804
  %v3806 = vsel %vm682, %v3795, 0
  %v3808 = vsel %vm682, %v3797, 0
  %v3810 = vsel %vm682, %v3799, 0
  %v3812 = vsel %vm682, %v3801, 0
  %v3814 = vsel %vm682, %v3803, 0
  %v3816 = vsel %vm682, %v3805, 0
  %3818 = vmatprep.subr.mxu0 0.0
  %3819 = vmatpush1.xpose.msra.mxu0 %v3812
  %3820 = vmatprep.subr.mxu0 0.0
  %3821 = vmatpush1.xpose.msra.mxu0 %v3814
  %3822 = vmatprep.subr.mxu0 0.0
  %3823 = vmatpush1.xpose.msra.mxu0 %v3816
  %3824 = vmatprep.subr.mxu0 0.0
  %3825 = vmatpush1.xpose.msra.mxu0 0.0
  %3826 = vmatprep.subr.mxu0 0.0
  %3827 = vmatpush1.xpose.msra.mxu0 0.0
  %3828 = vmatprep.subr.mxu0 0.0
  %3829 = vmatpush1.xpose.msra.mxu0 0.0
  %3830 = vmatprep.subr.mxu0 0.0
  %3831 = vmatpush1.xpose.msra.mxu0 0.0
  %3832 = vmatprep.subr.mxu0 0.0
  %3833 = vmatpush1.xpose.msra.mxu0 0.0
  %3834 = vmatprep.subr.mxu0 0.0
  %3835 = vmatpush1.xpose.msra.mxu0 0.0
  %3836 = vmatprep.subr.mxu0 0.0
  %3837 = vmatpush1.xpose.msra.mxu0 0.0
  %3838 = vmatprep.subr.mxu0 0.0
  %3839 = vmatpush1.xpose.msra.mxu0 0.0
  %3840 = vmatprep.subr.mxu0 0.0
  %3841 = vmatpush1.xpose.msra.mxu0 0.0
  %3842 = vmatprep.subr.mxu0 0.0
  %3843 = vmatpush1.xpose.msra.mxu0 0.0
  %3844 = vmatprep.subr.mxu0 0.0
  %3845 = vmatpush1.xpose.msra.mxu0 0.0
  %3846 = vmatprep.subr.mxu0 0.0
  %3847 = vmatpush1.xpose.msra.mxu0 0.0
  %3848 = vmatprep.subr.mxu0 0.0
  %3849 = vmatpush1.xpose.msra.mxu0 0.0
  %3850 = vmatprep.subr.mxu0 0.0
  %3851 = vmatpush1.xpose.msra.mxu0 0.0
  %3852 = vmatprep.subr.mxu0 0.0
  %3853 = vmatpush1.xpose.msra.mxu0 0.0
  %3854 = vmatprep.subr.mxu0 0.0
  %3855 = vmatpush1.xpose.msra.mxu0 0.0
  %3856 = vmatprep.subr.mxu0 0.0
  %3857 = vmatpush1.xpose.msra.mxu0 0.0
  %3858 = vmatprep.subr.mxu0 0.0
  %3859 = vmatpush1.xpose.msra.mxu0 0.0
  %3860 = vmatprep.subr.mxu0 0.0
  %3861 = vmatpush1.xpose.msra.mxu0 0.0
  %3862 = vmatprep.subr.mxu0 0.0
  %3863 = vmatpush1.xpose.msra.mxu0 0.0
  %3864 = vmatprep.subr.mxu0 0.0
  %3865 = vmatpush1.xpose.msra.mxu0 0.0
  %3866 = vmatprep.subr.mxu0 0.0
  %3867 = vmatpush1.xpose.msra.mxu0 0.0
  %3868 = vmatprep.subr.mxu0 0.0
  %3869 = vmatpush1.xpose.msra.mxu0 0.0
  %3870 = vmatprep.subr.mxu0 0.0
  %3871 = vmatpush1.xpose.msra.mxu0 0.0
  %3872 = vmatprep.subr.mxu0 0.0
  %3873 = vmatpush1.xpose.msra.mxu0 0.0
  %3874 = vmatprep.subr.mxu0 0.0
  %3875 = vmatpush1.xpose.msra.mxu0 0.0
  %3876 = vmatprep.subr.mxu0 0.0
  %3877 = vmatpush1.xpose.msra.mxu0 0.0
  %3878 = vmatprep.subr.mxu0 0.0
  %3879 = vmatpush1.xpose.msra.mxu0 0.0
  %3880 = vmatprep.subr.mxu0 0.0
  %3881 = vmatpush1.xpose.msra.mxu0 0.0
  %3882 = vmatprep.mubr.f32.mxu0 0.0
  %3883 = vmatmul.mubr.f32.gmra.mrb[0].mxu0 %v3806
  %v3884 = vpop.f32.mrb[0].mxu0
  %v3885 = vadd.f32 %v77, %v3884
  %v3886 = vpop.f32.mrb[0].mxu0
  %3887 = vmatprep.mubr.f32.mxu0 0.0
  %3888 = vmatmul.mubr.f32.gmra.mrb[0].mxu0 %v3808
  %v3889 = vpop.f32.mrb[0].mxu0
  %v3890 = vadd.f32 %v78, %v3889
  %v3891 = vpop.f32.mrb[0].mxu0
  %3892 = vmatprep.mubr.f32.mxu0 0.0
  %3893 = vmatmul.mubr.f32.gmra.mrb[0].mxu0 %v3810
  %v3894 = vpop.f32.mrb[0].mxu0
  %v3895 = vadd.f32 %v79, %v3894
  %v3896 = vpop.f32.mrb[0].mxu0
  %3897 = vdwg.mxu0
  %v3898 = vsel %vm781, %v3885, -inf
  %3899 = vmax.xlane.f32.xlu0 %v3898
  %v3900 = vpop.xlane.xlu0 %3899
  %v3901 = vsel %vm781, %v3890, -inf
  %3902 = vmax.xlane.f32.xlu0 %v3901
  %v3903 = vpop.xlane.xlu0 %3902
  %v3904 = vsel %vm781, %v3895, -inf
  %3905 = vmax.xlane.f32.xlu0 %v3904
  %v3906 = vpop.xlane.xlu0 %3905
  %v3907 = vsub.f32 %v3885, %v3900
  %v3908 = vsub.f32 %v3890, %v3903
  %v3909 = vsub.f32 %v3895, %v3906
  %v3910 = vmul.f32 %v3907, 1.442695
  %v3911 = vpow.pop %v3910
  %v3912 = vmul.f32 %v3908, 1.442695
  %v3913 = vpow.pop %v3912
  %v3914 = vmul.f32 %v3909, 1.442695
  %v3915 = vpow.pop %v3914
  %v3916 = vsel %vm781, %v3911, 0.0
  %3917 = vadd.xlane.f32.xlu0 %v3916
  %v3918 = vpop.xlane.xlu0 %3917
  %v3919 = vsel %vm781, %v3913, 0.0
  %3920 = vadd.xlane.f32.xlu0 %v3919
  %v3921 = vpop.xlane.xlu0 %3920
  %v3922 = vsel %vm781, %v3915, 0.0
  %3923 = vadd.xlane.f32.xlu0 %v3922
  %v3924 = vpop.xlane.xlu0 %3923
  %v3925 = vrcp.pop %v3918
  %v3926 = vmul.f32 %v3911, %v3925
  %v3927 = vrcp.pop %v3921
  %v3928 = vmul.f32 %v3913, %v3927
  %v3929 = vrcp.pop %v3924
  %v3930 = vmul.f32 %v3915, %v3929
  %3931 = vrot.lane.b32.xlu0 %v2798, 80
  %v3932 = vpop.permute.xlu0 %3931
  %3933 = vrot.lane.b32.xlu0 %v2803, 80
  %v3934 = vpop.permute.xlu0 %3933
  %3935 = vrot.lane.b32.xlu0 %v2808, 80
  %v3936 = vpop.permute.xlu0 %3935
  %v3941 = vsel %vm781, %v3926, 0
  %v3944 = vsel %vm781, %v3928, 0
  %v3947 = vsel %vm781, %v3930, 0
  %3949 = vmatprep.subr.mxu0 0.0
  %3950 = vmatpush1.msra.mxu0 %v3932
  %3951 = vmatprep.subr.mxu0 0.0
  %3952 = vmatpush1.msra.mxu0 %v3934
  %3953 = vmatprep.subr.mxu0 0.0
  %3954 = vmatpush1.msra.mxu0 %v3936
  %3955 = vmatprep.subr.mxu0 0.0
  %3956 = vmatpush1.msra.mxu0 0.0
  %3957 = vmatprep.subr.mxu0 0.0
  %3958 = vmatpush1.msra.mxu0 0.0
  %3959 = vmatprep.subr.mxu0 0.0
  %3960 = vmatpush1.msra.mxu0 0.0
  %3961 = vmatprep.subr.mxu0 0.0
  %3962 = vmatpush1.msra.mxu0 0.0
  %3963 = vmatprep.subr.mxu0 0.0
  %3964 = vmatpush1.msra.mxu0 0.0
  %3965 = vmatprep.subr.mxu0 0.0
  %3966 = vmatpush1.msra.mxu0 0.0
  %3967 = vmatprep.subr.mxu0 0.0
  %3968 = vmatpush1.msra.mxu0 0.0
  %3969 = vmatprep.subr.mxu0 0.0
  %3970 = vmatpush1.msra.mxu0 0.0
  %3971 = vmatprep.subr.mxu0 0.0
  %3972 = vmatpush1.msra.mxu0 0.0
  %3973 = vmatprep.subr.mxu0 0.0
  %3974 = vmatpush1.msra.mxu0 0.0
  %3975 = vmatprep.subr.mxu0 0.0
  %3976 = vmatpush1.msra.mxu0 0.0
  %3977 = vmatprep.subr.mxu0 0.0
  %3978 = vmatpush1.msra.mxu0 0.0
  %3979 = vmatprep.subr.mxu0 0.0
  %3980 = vmatpush1.msra.mxu0 0.0
  %3981 = vmatprep.subr.mxu0 0.0
  %3982 = vmatpush1.msra.mxu0 0.0
  %3983 = vmatprep.subr.mxu0 0.0
  %3984 = vmatpush1.msra.mxu0 0.0
  %3985 = vmatprep.subr.mxu0 0.0
  %3986 = vmatpush1.msra.mxu0 0.0
  %3987 = vmatprep.subr.mxu0 0.0
  %3988 = vmatpush1.msra.mxu0 0.0
  %3989 = vmatprep.subr.mxu0 0.0
  %3990 = vmatpush1.msra.mxu0 0.0
  %3991 = vmatprep.subr.mxu0 0.0
  %3992 = vmatpush1.msra.mxu0 0.0
  %3993 = vmatprep.subr.mxu0 0.0
  %3994 = vmatpush1.msra.mxu0 0.0
  %3995 = vmatprep.subr.mxu0 0.0
  %3996 = vmatpush1.msra.mxu0 0.0
  %3997 = vmatprep.subr.mxu0 0.0
  %3998 = vmatpush1.msra.mxu0 0.0
  %3999 = vmatprep.subr.mxu0 0.0
  %4000 = vmatpush1.msra.mxu0 0.0
  %4001 = vmatprep.subr.mxu0 0.0
  %4002 = vmatpush1.msra.mxu0 0.0
  %4003 = vmatprep.subr.mxu0 0.0
  %4004 = vmatpush1.msra.mxu0 0.0
  %4005 = vmatprep.subr.mxu0 0.0
  %4006 = vmatpush1.msra.mxu0 0.0
  %4007 = vmatprep.subr.mxu0 0.0
  %4008 = vmatpush1.msra.mxu0 0.0
  %4009 = vmatprep.subr.mxu0 0.0
  %4010 = vmatpush1.msra.mxu0 0.0
  %4011 = vmatprep.subr.mxu0 0.0
  %4012 = vmatpush1.msra.mxu0 0.0
  %4013 = vmatprep.mubr.f32.mxu0 0.0
  %4014 = vmatmul.mubr.f32.gmra.mrb[0].mxu0 %v3941
  %v4015 = vpop.f32.mrb[0].mxu0
  %v4016 = vadd.f32 0.0, %v4015
  %v4017 = vpop.f32.mrb[0].mxu0
  %4018 = vmatprep.mubr.f32.mxu0 0.0
  %4019 = vmatmul.mubr.f32.gmra.mrb[0].mxu0 %v3944
  %v4020 = vpop.f32.mrb[0].mxu0
  %v4021 = vadd.f32 0.0, %v4020
  %v4022 = vpop.f32.mrb[0].mxu0
  %4023 = vmatprep.mubr.f32.mxu0 0.0
  %4024 = vmatmul.mubr.f32.gmra.mrb[0].mxu0 %v3947
  %v4025 = vpop.f32.mrb[0].mxu0
  %v4026 = vadd.f32 0.0, %v4025
  %v4027 = vpop.f32.mrb[0].mxu0
  %4028 = vdwg.mxu0
  %v4030 = vsel %vm682, %v4016, 0
  %v4033 = vsel %vm682, %v4021, 0
  %v4036 = vsel %vm682, %v4026, 0
  %4038 = vmatprep.subr.mxu0 0.0
  %4039 = vmatpush1.msra.mxu0 %v2818
  %4040 = vmatprep.subr.mxu0 0.0
  %4041 = vmatpush1.msra.mxu0 %v2819
  %4042 = vmatprep.subr.mxu0 0.0
  %4043 = vmatpush1.msra.mxu0 0.0
  %4044 = vmatprep.subr.mxu0 0.0
  %4045 = vmatpush1.msra.mxu0 0.0
  %4046 = vmatprep.subr.mxu0 0.0
  %4047 = vmatpush1.msra.mxu0 0.0
  %4048 = vmatprep.subr.mxu0 0.0
  %4049 = vmatpush1.msra.mxu0 0.0
  %4050 = vmatprep.subr.mxu0 0.0
  %4051 = vmatpush1.msra.mxu0 0.0
  %4052 = vmatprep.subr.mxu0 0.0
  %4053 = vmatpush1.msra.mxu0 0.0
  %4054 = vmatprep.subr.mxu0 0.0
  %4055 = vmatpush1.msra.mxu0 0.0
  %4056 = vmatprep.subr.mxu0 0.0
  %4057 = vmatpush1.msra.mxu0 0.0
  %4058 = vmatprep.subr.mxu0 0.0
  %4059 = vmatpush1.msra.mxu0 0.0
  %4060 = vmatprep.subr.mxu0 0.0
  %4061 = vmatpush1.msra.mxu0 0.0
  %4062 = vmatprep.subr.mxu0 0.0
  %4063 = vmatpush1.msra.mxu0 0.0
  %4064 = vmatprep.subr.mxu0 0.0
  %4065 = vmatpush1.msra.mxu0 0.0
  %4066 = vmatprep.subr.mxu0 0.0
  %4067 = vmatpush1.msra.mxu0 0.0
  %4068 = vmatprep.subr.mxu0 0.0
  %4069 = vmatpush1.msra.mxu0 0.0
  %4070 = vmatprep.subr.mxu0 0.0
  %4071 = vmatpush1.msra.mxu0 0.0
  %4072 = vmatprep.subr.mxu0 0.0
  %4073 = vmatpush1.msra.mxu0 0.0
  %4074 = vmatprep.subr.mxu0 0.0
  %4075 = vmatpush1.msra.mxu0 0.0
  %4076 = vmatprep.subr.mxu0 0.0
  %4077 = vmatpush1.msra.mxu0 0.0
  %4078 = vmatprep.subr.mxu0 0.0
  %4079 = vmatpush1.msra.mxu0 0.0
  %4080 = vmatprep.subr.mxu0 0.0
  %4081 = vmatpush1.msra.mxu0 0.0
  %4082 = vmatprep.subr.mxu0 0.0
  %4083 = vmatpush1.msra.mxu0 0.0
  %4084 = vmatprep.subr.mxu0 0.0
  %4085 = vmatpush1.msra.mxu0 0.0
  %4086 = vmatprep.subr.mxu0 0.0
  %4087 = vmatpush1.msra.mxu0 0.0
  %4088 = vmatprep.subr.mxu0 0.0
  %4089 = vmatpush1.msra.mxu0 0.0
  %4090 = vmatprep.subr.mxu0 0.0
  %4091 = vmatpush1.msra.mxu0 0.0
  %4092 = vmatprep.subr.mxu0 0.0
  %4093 = vmatpush1.msra.mxu0 0.0
  %4094 = vmatprep.subr.mxu0 0.0
  %4095 = vmatpush1.msra.mxu0 0.0
  %4096 = vmatprep.subr.mxu0 0.0
  %4097 = vmatpush1.msra.mxu0 0.0
  %4098 = vmatprep.subr.mxu0 0.0
  %4099 = vmatpush1.msra.mxu0 0.0
  %4100 = vmatprep.subr.mxu0 0.0
  %4101 = vmatpush1.msra.mxu0 0.0
  %4102 = vmatprep.mubr.f32.mxu0 0.0
  %4103 = vmatmul.mubr.f32.gmra.mrb[0].mxu0 %v4030
  %v4104 = vpop.f32.mrb[0].mxu0
  %v4105 = vadd.f32 0.0, %v4104
  %v4106 = vpop.f32.mrb[0].mxu0
  %4107 = vmatprep.mubr.f32.mxu0 0.0
  %4108 = vmatmul.mubr.f32.gmra.mrb[0].mxu0 %v4033
  %v4109 = vpop.f32.mrb[0].mxu0
  %v4110 = vadd.f32 0.0, %v4109
  %v4111 = vpop.f32.mrb[0].mxu0
  %4112 = vmatprep.mubr.f32.mxu0 0.0
  %4113 = vmatmul.mubr.f32.gmra.mrb[0].mxu0 %v4036
  %v4114 = vpop.f32.mrb[0].mxu0
  %v4115 = vadd.f32 0.0, %v4114
  %v4116 = vpop.f32.mrb[0].mxu0
  %4117 = vdwg.mxu0
  %v4118 = vadd.f32 %v3791, %v4105
  %v4119 = vadd.f32 %v3792, %v4110
  %v4120 = vadd.f32 %v3793, %v4115
  %v4121 = vadd.f32 %v2447, %v4118
  %v4122 = vadd.f32 %v2448, %v4119
  %v4123 = vadd.f32 %v2449, %v4120
  %s4124 = scalar_lea.vmem %s14, 1
  %v4125 = vld [vmem:[%s4124] sm:$0x1]
  %s4126 = scalar_lea.vmem %s15, 1
  %v4127 = vld [vmem:[%s4126] sm:$0x1]
  %v4128 = vsel %vm321, %v4121, 0.0
  %4129 = vadd.xlane.f32.xlu0 %v4128
  %v4130 = vpop.xlane.xlu0 %4129
  %v4131 = vsel %vm321, %v4122, 0.0
  %4132 = vadd.xlane.f32.xlu0 %v4131
  %v4133 = vpop.xlane.xlu0 %4132
  %v4134 = vsel %vm321, %v4123, 0.0
  %4135 = vadd.xlane.f32.xlu0 %v4134
  %v4136 = vpop.xlane.xlu0 %4135
  %v4137 = vmul.f32 %v4130, %v331
  %v4138 = vmul.f32 %v4133, %v331
  %v4139 = vmul.f32 %v4136, %v331
  %v4140 = vsub.f32 %v4121, %v4137
  %v4141 = vsub.f32 %v4122, %v4138
  %v4142 = vsub.f32 %v4123, %v4139
  %v4143 = vmul.f32 %v4140, %v4140
  %v4144 = vmul.f32 %v4141, %v4141
  %v4145 = vmul.f32 %v4142, %v4142
  %v4146 = vsel %vm321, %v4143, 0.0
  %4147 = vadd.xlane.f32.xlu0 %v4146
  %v4148 = vpop.xlane.xlu0 %4147
  %v4149 = vsel %vm321, %v4144, 0.0
  %4150 = vadd.xlane.f32.xlu0 %v4149
  %v4151 = vpop.xlane.xlu0 %4150
  %v4152 = vsel %vm321, %v4145, 0.0
  %4153 = vadd.xlane.f32.xlu0 %v4152
  %v4154 = vpop.xlane.xlu0 %4153
  %v4155 = vmul.f32 %v4148, %v331
  %v4156 = vmul.f32 %v4151, %v331
  %v4157 = vmul.f32 %v4154, %v331
  %v4158 = vadd.f32 %v4155, 1e-06
  %v4159 = vadd.f32 %v4156, 1e-06
  %v4160 = vadd.f32 %v4157, 1e-06
  %v4161 = vrsqrt.pop %v4158
  %v4162 = vrsqrt.pop %v4159
  %v4163 = vrsqrt.pop %v4160
  %v4164 = vmul.f32 %v4140, %v4161
  %v4165 = vmul.f32 %v4141, %v4162
  %v4166 = vmul.f32 %v4142, %v4163
  %v4168 = vlaneseq
  %v4169 = vshrl.u32 %v4168, 7
  %v4170 = vsub.s32 0, %v4169
  %v4171 = vrot.slane %v4125, %v4170
  %v4173 = vmul.f32 %v4164, %v4171
  %v4174 = vmul.f32 %v4165, %v4171
  %v4175 = vmul.f32 %v4166, %v4171
  %v4177 = vlaneseq
  %v4178 = vshrl.u32 %v4177, 7
  %v4179 = vsub.s32 0, %v4178
  %v4180 = vrot.slane %v4127, %v4179
  %v4182 = vadd.f32 %v4173, %v4180
  %v4183 = vadd.f32 %v4174, %v4180
  %v4184 = vadd.f32 %v4175, %v4180
  %s4185 = scalar_lea.vmem %s16, 128
  %v4186 = vld [vmem:[%s4185] sm:$0xff]
  %v4187 = vld [vmem:[%s4185 + $0x8] sm:$0xff]
  %v4188 = vld [vmem:[%s4185 + $0x10] sm:$0xff]
  %v4189 = vld [vmem:[%s4185 + $0x18] sm:$0xff]
  %v4190 = vld [vmem:[%s4185 + $0x20] sm:$0xff]
  %v4191 = vld [vmem:[%s4185 + $0x28] sm:$0xff]
  %v4192 = vld [vmem:[%s4185 + $0x30] sm:$0xff]
  %v4193 = vld [vmem:[%s4185 + $0x38] sm:$0xff]
  %v4194 = vld [vmem:[%s4185 + $0x40] sm:$0xff]
  %v4195 = vld [vmem:[%s4185 + $0x48] sm:$0xff]
  %v4196 = vld [vmem:[%s4185 + $0x50] sm:$0xff]
  %v4197 = vld [vmem:[%s4185 + $0x58] sm:$0xff]
  %v4198 = vld [vmem:[%s4185 + $0x60] sm:$0xff]
  %v4199 = vld [vmem:[%s4185 + $0x68] sm:$0xff]
  %v4200 = vld [vmem:[%s4185 + $0x70] sm:$0xff]
  %v4201 = vld [vmem:[%s4185 + $0x78] sm:$0xff]
  %s4202 = scalar_lea.vmem %s17, 2
  %v4203 = vld [vmem:[%s4202] sm:$0x3]
  %v4205 = vlaneseq
  %v4206 = vshrl.u32 %v4205, 7
  %v4207 = vsub.s32 0, %v4206
  %v4208 = vrot.slane %v4203, %v4207
  %v4209 = vlaneseq
  %v4210 = vshrl.u32 %v4209, 7
  %v4211 = vsub.s32 1, %v4210
  %v4212 = vrot.slane %v4203, %v4211
  %v4216 = vsel %vm321, %v4182, 0
  %v4219 = vsel %vm321, %v4183, 0
  %v4222 = vsel %vm321, %v4184, 0
  %4224 = vmatprep.subr.mxu0 %v4187
  %4225 = vmatpush1.msra.mxu0 %v4186
  %4226 = vmatprep.subr.mxu0 %v4189
  %4227 = vmatpush1.msra.mxu0 %v4188
  %4228 = vmatprep.subr.mxu0 %v4191
  %4229 = vmatpush1.msra.mxu0 %v4190
  %4230 = vmatprep.subr.mxu0 %v4193
  %4231 = vmatpush1.msra.mxu0 %v4192
  %4232 = vmatprep.subr.mxu0 %v4195
  %4233 = vmatpush1.msra.mxu0 %v4194
  %4234 = vmatprep.subr.mxu0 %v4197
  %4235 = vmatpush1.msra.mxu0 %v4196
  %4236 = vmatprep.subr.mxu0 %v4199
  %4237 = vmatpush1.msra.mxu0 %v4198
  %4238 = vmatprep.subr.mxu0 %v4201
  %4239 = vmatpush1.msra.mxu0 %v4200
  %4240 = vmatprep.subr.mxu0 0.0
  %4241 = vmatpush1.msra.mxu0 0.0
  %4242 = vmatprep.subr.mxu0 0.0
  %4243 = vmatpush1.msra.mxu0 0.0
  %4244 = vmatprep.subr.mxu0 0.0
  %4245 = vmatpush1.msra.mxu0 0.0
  %4246 = vmatprep.subr.mxu0 0.0
  %4247 = vmatpush1.msra.mxu0 0.0
  %4248 = vmatprep.subr.mxu0 0.0
  %4249 = vmatpush1.msra.mxu0 0.0
  %4250 = vmatprep.subr.mxu0 0.0
  %4251 = vmatpush1.msra.mxu0 0.0
  %4252 = vmatprep.subr.mxu0 0.0
  %4253 = vmatpush1.msra.mxu0 0.0
  %4254 = vmatprep.subr.mxu0 0.0
  %4255 = vmatpush1.msra.mxu0 0.0
  %4256 = vmatprep.subr.mxu0 0.0
  %4257 = vmatpush1.msra.mxu0 0.0
  %4258 = vmatprep.subr.mxu0 0.0
  %4259 = vmatpush1.msra.mxu0 0.0
  %4260 = vmatprep.subr.mxu0 0.0
  %4261 = vmatpush1.msra.mxu0 0.0
  %4262 = vmatprep.subr.mxu0 0.0
  %4263 = vmatpush1.msra.mxu0 0.0
  %4264 = vmatprep.subr.mxu0 0.0
  %4265 = vmatpush1.msra.mxu0 0.0
  %4266 = vmatprep.subr.mxu0 0.0
  %4267 = vmatpush1.msra.mxu0 0.0
  %4268 = vmatprep.subr.mxu0 0.0
  %4269 = vmatpush1.msra.mxu0 0.0
  %4270 = vmatprep.subr.mxu0 0.0
  %4271 = vmatpush1.msra.mxu0 0.0
  %4272 = vmatprep.subr.mxu0 0.0
  %4273 = vmatpush1.msra.mxu0 0.0
  %4274 = vmatprep.subr.mxu0 0.0
  %4275 = vmatpush1.msra.mxu0 0.0
  %4276 = vmatprep.subr.mxu0 0.0
  %4277 = vmatpush1.msra.mxu0 0.0
  %4278 = vmatprep.subr.mxu0 0.0
  %4279 = vmatpush1.msra.mxu0 0.0
  %4280 = vmatprep.subr.mxu0 0.0
  %4281 = vmatpush1.msra.mxu0 0.0
  %4282 = vmatprep.subr.mxu0 0.0
  %4283 = vmatpush1.msra.mxu0 0.0
  %4284 = vmatprep.subr.mxu0 0.0
  %4285 = vmatpush1.msra.mxu0 0.0
  %4286 = vmatprep.subr.mxu0 0.0
  %4287 = vmatpush1.msra.mxu0 0.0
  %4288 = vmatprep.mubr.f32.mxu0 0.0
  %4289 = vmatmul.mubr.f32.gmra.mrb[0].mxu0 %v4216
  %v4290 = vpop.f32.mrb[0].mxu0
  %v4291 = vadd.f32 %v4208, %v4290
  %v4292 = vpop.f32.mrb[0].mxu0
  %v4293 = vadd.f32 %v4212, %v4292
  %4294 = vmatprep.mubr.f32.mxu0 0.0
  %4295 = vmatmul.mubr.f32.gmra.mrb[0].mxu0 %v4219
  %v4296 = vpop.f32.mrb[0].mxu0
  %v4297 = vadd.f32 %v4208, %v4296
  %v4298 = vpop.f32.mrb[0].mxu0
  %v4299 = vadd.f32 %v4212, %v4298
  %4300 = vmatprep.mubr.f32.mxu0 0.0
  %4301 = vmatmul.mubr.f32.gmra.mrb[0].mxu0 %v4222
  %v4302 = vpop.f32.mrb[0].mxu0
  %v4303 = vadd.f32 %v4208, %v4302
  %v4304 = vpop.f32.mrb[0].mxu0
  %v4305 = vadd.f32 %v4212, %v4304
  %4306 = vdwg.mxu0
  %v4307 = vmul.f32 %v4291, 0.5
  %v4308 = vmul.f32 %v4293, 0.5
  %v4309 = vmul.f32 %v4297, 0.5
  %v4310 = vmul.f32 %v4299, 0.5
  %v4311 = vmul.f32 %v4303, 0.5
  %v4312 = vmul.f32 %v4305, 0.5
  %v4313 = vmul.f32 %v4291, 0.70710677
  %v4314 = vmul.f32 %v4293, 0.70710677
  %v4315 = vmul.f32 %v4297, 0.70710677
  %v4316 = vmul.f32 %v4299, 0.70710677
  %v4317 = vmul.f32 %v4303, 0.70710677
  %v4318 = vmul.f32 %v4305, 0.70710677
  %v4319 = vand.u32 2147483647, %v4313
  %v4320 = vand.u32 2147483647, %v4314
  %v4321 = vand.u32 2147483647, %v4315
  %v4322 = vand.u32 2147483647, %v4316
  %v4323 = vand.u32 2147483647, %v4317
  %v4324 = vand.u32 2147483647, %v4318
  %v4325 = vmul.f32 %v4319, 0.3275911
  %v4326 = vmul.f32 %v4320, 0.3275911
  %v4327 = vmul.f32 %v4321, 0.3275911
  %v4328 = vmul.f32 %v4322, 0.3275911
  %v4329 = vmul.f32 %v4323, 0.3275911
  %v4330 = vmul.f32 %v4324, 0.3275911
  %v4331 = vadd.f32 %v4325, 1.0
  %v4332 = vadd.f32 %v4326, 1.0
  %v4333 = vadd.f32 %v4327, 1.0
  %v4334 = vadd.f32 %v4328, 1.0
  %v4335 = vadd.f32 %v4329, 1.0
  %v4336 = vadd.f32 %v4330, 1.0
  %v4337 = vrcp.pop %v4331
  %v4338 = vmul.f32 1.0, %v4337
  %v4339 = vrcp.pop %v4332
  %v4340 = vmul.f32 1.0, %v4339
  %v4341 = vrcp.pop %v4333
  %v4342 = vmul.f32 1.0, %v4341
  %v4343 = vrcp.pop %v4334
  %v4344 = vmul.f32 1.0, %v4343
  %v4345 = vrcp.pop %v4335
  %v4346 = vmul.f32 1.0, %v4345
  %v4347 = vrcp.pop %v4336
  %v4348 = vmul.f32 1.0, %v4347
  %v4349 = vmul.f32 %v4338, 1.0614054
  %v4350 = vmul.f32 %v4340, 1.0614054
  %v4351 = vmul.f32 %v4342, 1.0614054
  %v4352 = vmul.f32 %v4344, 1.0614054
  %v4353 = vmul.f32 %v4346, 1.0614054
  %v4354 = vmul.f32 %v4348, 1.0614054
  %v4355 = vadd.f32 %v4349, -1.4531521
  %v4356 = vadd.f32 %v4350, -1.4531521
  %v4357 = vadd.f32 %v4351, -1.4531521
  %v4358 = vadd.f32 %v4352, -1.4531521
  %v4359 = vadd.f32 %v4353, -1.4531521
  %v4360 = vadd.f32 %v4354, -1.4531521
  %v4361 = vmul.f32 %v4338, %v4355
  %v4362 = vmul.f32 %v4340, %v4356
  %v4363 = vmul.f32 %v4342, %v4357
  %v4364 = vmul.f32 %v4344, %v4358
  %v4365 = vmul.f32 %v4346, %v4359
  %v4366 = vmul.f32 %v4348, %v4360
  %v4367 = vadd.f32 %v4361, 1.4214138
  %v4368 = vadd.f32 %v4362, 1.4214138
  %v4369 = vadd.f32 %v4363, 1.4214138
  %v4370 = vadd.f32 %v4364, 1.4214138
  %v4371 = vadd.f32 %v4365, 1.4214138
  %v4372 = vadd.f32 %v4366, 1.4214138
  %v4373 = vmul.f32 %v4338, %v4367
  %v4374 = vmul.f32 %v4340, %v4368
  %v4375 = vmul.f32 %v4342, %v4369
  %v4376 = vmul.f32 %v4344, %v4370
  %v4377 = vmul.f32 %v4346, %v4371
  %v4378 = vmul.f32 %v4348, %v4372
  %v4379 = vadd.f32 %v4373, -0.28449672
  %v4380 = vadd.f32 %v4374, -0.28449672
  %v4381 = vadd.f32 %v4375, -0.28449672
  %v4382 = vadd.f32 %v4376, -0.28449672
  %v4383 = vadd.f32 %v4377, -0.28449672
  %v4384 = vadd.f32 %v4378, -0.28449672
  %v4385 = vmul.f32 %v4338, %v4379
  %v4386 = vmul.f32 %v4340, %v4380
  %v4387 = vmul.f32 %v4342, %v4381
  %v4388 = vmul.f32 %v4344, %v4382
  %v4389 = vmul.f32 %v4346, %v4383
  %v4390 = vmul.f32 %v4348, %v4384
  %v4391 = vadd.f32 %v4385, 0.2548296
  %v4392 = vadd.f32 %v4386, 0.2548296
  %v4393 = vadd.f32 %v4387, 0.2548296
  %v4394 = vadd.f32 %v4388, 0.2548296
  %v4395 = vadd.f32 %v4389, 0.2548296
  %v4396 = vadd.f32 %v4390, 0.2548296
  %v4397 = vmul.f32 %v4338, %v4391
  %v4398 = vmul.f32 %v4340, %v4392
  %v4399 = vmul.f32 %v4342, %v4393
  %v4400 = vmul.f32 %v4344, %v4394
  %v4401 = vmul.f32 %v4346, %v4395
  %v4402 = vmul.f32 %v4348, %v4396
  %v4403 = vsub.f32 0.0, %v4319
  %v4404 = vsub.f32 0.0, %v4320
  %v4405 = vsub.f32 0.0, %v4321
  %v4406 = vsub.f32 0.0, %v4322
  %v4407 = vsub.f32 0.0, %v4323
  %v4408 = vsub.f32 0.0, %v4324
  %v4409 = vmul.f32 %v4403, %v4319
  %v4410 = vmul.f32 %v4404, %v4320
  %v4411 = vmul.f32 %v4405, %v4321
  %v4412 = vmul.f32 %v4406, %v4322
  %v4413 = vmul.f32 %v4407, %v4323
  %v4414 = vmul.f32 %v4408, %v4324
  %v4415 = vmul.f32 %v4409, 1.442695
  %v4416 = vpow.pop %v4415
  %v4417 = vmul.f32 %v4410, 1.442695
  %v4418 = vpow.pop %v4417
  %v4419 = vmul.f32 %v4411, 1.442695
  %v4420 = vpow.pop %v4419
  %v4421 = vmul.f32 %v4412, 1.442695
  %v4422 = vpow.pop %v4421
  %v4423 = vmul.f32 %v4413, 1.442695
  %v4424 = vpow.pop %v4423
  %v4425 = vmul.f32 %v4414, 1.442695
  %v4426 = vpow.pop %v4425
  %v4427 = vmul.f32 %v4397, %v4416
  %v4428 = vmul.f32 %v4398, %v4418
  %v4429 = vmul.f32 %v4399, %v4420
  %v4430 = vmul.f32 %v4400, %v4422
  %v4431 = vmul.f32 %v4401, %v4424
  %v4432 = vmul.f32 %v4402, %v4426
  %v4433 = vsub.f32 1.0, %v4427
  %v4434 = vsub.f32 1.0, %v4428
  %v4435 = vsub.f32 1.0, %v4429
  %v4436 = vsub.f32 1.0, %v4430
  %v4437 = vsub.f32 1.0, %v4431
  %v4438 = vsub.f32 1.0, %v4432
  %vm4439 = vcmp.ge.f32.partialorder %v4313, 0.0
  %vm4440 = vcmp.ge.f32.partialorder %v4314, 0.0
  %vm4441 = vcmp.ge.f32.partialorder %v4315, 0.0
  %vm4442 = vcmp.ge.f32.partialorder %v4316, 0.0
  %vm4443 = vcmp.ge.f32.partialorder %v4317, 0.0
  %vm4444 = vcmp.ge.f32.partialorder %v4318, 0.0
  %v4445 = vsub.f32 0.0, %v4433
  %v4446 = vsub.f32 0.0, %v4434
  %v4447 = vsub.f32 0.0, %v4435
  %v4448 = vsub.f32 0.0, %v4436
  %v4449 = vsub.f32 0.0, %v4437
  %v4450 = vsub.f32 0.0, %v4438
  %v4451 = vsel %vm4439, %v4433, %v4445
  %v4452 = vsel %vm4440, %v4434, %v4446
  %v4453 = vsel %vm4441, %v4435, %v4447
  %v4454 = vsel %vm4442, %v4436, %v4448
  %v4455 = vsel %vm4443, %v4437, %v4449
  %v4456 = vsel %vm4444, %v4438, %v4450
  %v4457 = vadd.f32 %v4451, 1.0
  %v4458 = vadd.f32 %v4452, 1.0
  %v4459 = vadd.f32 %v4453, 1.0
  %v4460 = vadd.f32 %v4454, 1.0
  %v4461 = vadd.f32 %v4455, 1.0
  %v4462 = vadd.f32 %v4456, 1.0
  %v4463 = vmul.f32 %v4307, %v4457
  %v4464 = vmul.f32 %v4308, %v4458
  %v4465 = vmul.f32 %v4309, %v4459
  %v4466 = vmul.f32 %v4310, %v4460
  %v4467 = vmul.f32 %v4311, %v4461
  %v4468 = vmul.f32 %v4312, %v4462
  %s4469 = scalar_lea.vmem %s18, 256
  %v4470 = vld [vmem:[%s4469] sm:$0xff]
  %v4471 = vld [vmem:[%s4469 + $0x8] sm:$0xff]
  %v4472 = vld [vmem:[%s4469 + $0x10] sm:$0xff]
  %v4473 = vld [vmem:[%s4469 + $0x18] sm:$0xff]
  %v4474 = vld [vmem:[%s4469 + $0x20] sm:$0xff]
  %v4475 = vld [vmem:[%s4469 + $0x28] sm:$0xff]
  %v4476 = vld [vmem:[%s4469 + $0x30] sm:$0xff]
  %v4477 = vld [vmem:[%s4469 + $0x38] sm:$0xff]
  %v4478 = vld [vmem:[%s4469 + $0x40] sm:$0xff]
  %v4479 = vld [vmem:[%s4469 + $0x48] sm:$0xff]
  %v4480 = vld [vmem:[%s4469 + $0x50] sm:$0xff]
  %v4481 = vld [vmem:[%s4469 + $0x58] sm:$0xff]
  %v4482 = vld [vmem:[%s4469 + $0x60] sm:$0xff]
  %v4483 = vld [vmem:[%s4469 + $0x68] sm:$0xff]
  %v4484 = vld [vmem:[%s4469 + $0x70] sm:$0xff]
  %v4485 = vld [vmem:[%s4469 + $0x78] sm:$0xff]
  %v4486 = vld [vmem:[%s4469 + $0x80] sm:$0xff]
  %v4487 = vld [vmem:[%s4469 + $0x88] sm:$0xff]
  %v4488 = vld [vmem:[%s4469 + $0x90] sm:$0xff]
  %v4489 = vld [vmem:[%s4469 + $0x98] sm:$0xff]
  %v4490 = vld [vmem:[%s4469 + $0xa0] sm:$0xff]
  %v4491 = vld [vmem:[%s4469 + $0xa8] sm:$0xff]
  %v4492 = vld [vmem:[%s4469 + $0xb0] sm:$0xff]
  %v4493 = vld [vmem:[%s4469 + $0xb8] sm:$0xff]
  %v4494 = vld [vmem:[%s4469 + $0xc0] sm:$0xff]
  %v4495 = vld [vmem:[%s4469 + $0xc8] sm:$0xff]
  %v4496 = vld [vmem:[%s4469 + $0xd0] sm:$0xff]
  %v4497 = vld [vmem:[%s4469 + $0xd8] sm:$0xff]
  %v4498 = vld [vmem:[%s4469 + $0xe0] sm:$0xff]
  %v4499 = vld [vmem:[%s4469 + $0xe8] sm:$0xff]
  %v4500 = vld [vmem:[%s4469 + $0xf0] sm:$0xff]
  %v4501 = vld [vmem:[%s4469 + $0xf8] sm:$0xff]
  %s4502 = scalar_lea.vmem %s19, 1
  %v4503 = vld [vmem:[%s4502] sm:$0x1]
  %v4505 = vlaneseq
  %v4506 = vshrl.u32 %v4505, 7
  %v4507 = vsub.s32 0, %v4506
  %v4508 = vrot.slane %v4503, %v4507
  %4510 = vmatprep.subr.mxu0 0.0
  %4511 = vmatpush1.msra.mxu0 %v4470
  %4512 = vmatprep.subr.mxu0 0.0
  %4513 = vmatpush1.msra.mxu0 %v4471
  %4514 = vmatprep.subr.mxu0 0.0
  %4515 = vmatpush1.msra.mxu0 %v4472
  %4516 = vmatprep.subr.mxu0 0.0
  %4517 = vmatpush1.msra.mxu0 %v4473
  %4518 = vmatprep.subr.mxu0 0.0
  %4519 = vmatpush1.msra.mxu0 %v4474
  %4520 = vmatprep.subr.mxu0 0.0
  %4521 = vmatpush1.msra.mxu0 %v4475
  %4522 = vmatprep.subr.mxu0 0.0
  %4523 = vmatpush1.msra.mxu0 %v4476
  %4524 = vmatprep.subr.mxu0 0.0
  %4525 = vmatpush1.msra.mxu0 %v4477
  %4526 = vmatprep.subr.mxu0 0.0
  %4527 = vmatpush1.msra.mxu0 %v4478
  %4528 = vmatprep.subr.mxu0 0.0
  %4529 = vmatpush1.msra.mxu0 %v4479
  %4530 = vmatprep.subr.mxu0 0.0
  %4531 = vmatpush1.msra.mxu0 %v4480
  %4532 = vmatprep.subr.mxu0 0.0
  %4533 = vmatpush1.msra.mxu0 %v4481
  %4534 = vmatprep.subr.mxu0 0.0
  %4535 = vmatpush1.msra.mxu0 %v4482
  %4536 = vmatprep.subr.mxu0 0.0
  %4537 = vmatpush1.msra.mxu0 %v4483
  %4538 = vmatprep.subr.mxu0 0.0
  %4539 = vmatpush1.msra.mxu0 %v4484
  %4540 = vmatprep.subr.mxu0 0.0
  %4541 = vmatpush1.msra.mxu0 %v4485
  %4542 = vmatprep.subr.mxu0 0.0
  %4543 = vmatpush1.msra.mxu0 %v4486
  %4544 = vmatprep.subr.mxu0 0.0
  %4545 = vmatpush1.msra.mxu0 %v4487
  %4546 = vmatprep.subr.mxu0 0.0
  %4547 = vmatpush1.msra.mxu0 %v4488
  %4548 = vmatprep.subr.mxu0 0.0
  %4549 = vmatpush1.msra.mxu0 %v4489
  %4550 = vmatprep.subr.mxu0 0.0
  %4551 = vmatpush1.msra.mxu0 %v4490
  %4552 = vmatprep.subr.mxu0 0.0
  %4553 = vmatpush1.msra.mxu0 %v4491
  %4554 = vmatprep.subr.mxu0 0.0
  %4555 = vmatpush1.msra.mxu0 %v4492
  %4556 = vmatprep.subr.mxu0 0.0
  %4557 = vmatpush1.msra.mxu0 %v4493
  %4558 = vmatprep.subr.mxu0 0.0
  %4559 = vmatpush1.msra.mxu0 %v4494
  %4560 = vmatprep.subr.mxu0 0.0
  %4561 = vmatpush1.msra.mxu0 %v4495
  %4562 = vmatprep.subr.mxu0 0.0
  %4563 = vmatpush1.msra.mxu0 %v4496
  %4564 = vmatprep.subr.mxu0 0.0
  %4565 = vmatpush1.msra.mxu0 %v4497
  %4566 = vmatprep.subr.mxu0 0.0
  %4567 = vmatpush1.msra.mxu0 %v4498
  %4568 = vmatprep.subr.mxu0 0.0
  %4569 = vmatpush1.msra.mxu0 %v4499
  %4570 = vmatprep.subr.mxu0 0.0
  %4571 = vmatpush1.msra.mxu0 %v4500
  %4572 = vmatprep.subr.mxu0 0.0
  %4573 = vmatpush1.msra.mxu0 %v4501
  %4574 = vmatprep.mubr.f32.mxu0 %v4464
  %4575 = vmatmul.mubr.f32.gmra.mrb[0].mxu0 %v4463
  %v4576 = vpop.f32.mrb[0].mxu0
  %v4577 = vadd.f32 %v4508, %v4576
  %v4578 = vpop.f32.mrb[0].mxu0
  %4579 = vmatprep.mubr.f32.mxu0 %v4466
  %4580 = vmatmul.mubr.f32.gmra.mrb[0].mxu0 %v4465
  %v4581 = vpop.f32.mrb[0].mxu0
  %v4582 = vadd.f32 %v4508, %v4581
  %v4583 = vpop.f32.mrb[0].mxu0
  %4584 = vmatprep.mubr.f32.mxu0 %v4468
  %4585 = vmatmul.mubr.f32.gmra.mrb[0].mxu0 %v4467
  %v4586 = vpop.f32.mrb[0].mxu0
  %v4587 = vadd.f32 %v4508, %v4586
  %v4588 = vpop.f32.mrb[0].mxu0
  %4589 = vdwg.mxu0
  %v4590 = vadd.f32 %v4121, %v4577
  %v4591 = vadd.f32 %v4122, %v4582
  %v4592 = vadd.f32 %v4123, %v4587
  %v4593 = vld [vmem:[%s20] sm:$0x1]
  %v4594 = vld [vmem:[%s21] sm:$0x1]
  %v4595 = vsel %vm321, %v4590, 0.0
  %4596 = vadd.xlane.f32.xlu0 %v4595
  %v4597 = vpop.xlane.xlu0 %4596
  %v4598 = vsel %vm321, %v4591, 0.0
  %4599 = vadd.xlane.f32.xlu0 %v4598
  %v4600 = vpop.xlane.xlu0 %4599
  %v4601 = vsel %vm321, %v4592, 0.0
  %4602 = vadd.xlane.f32.xlu0 %v4601
  %v4603 = vpop.xlane.xlu0 %4602
  %v4604 = vmul.f32 %v4597, %v331
  %v4605 = vmul.f32 %v4600, %v331
  %v4606 = vmul.f32 %v4603, %v331
  %v4607 = vsub.f32 %v4590, %v4604
  %v4608 = vsub.f32 %v4591, %v4605
  %v4609 = vsub.f32 %v4592, %v4606
  %v4610 = vmul.f32 %v4607, %v4607
  %v4611 = vmul.f32 %v4608, %v4608
  %v4612 = vmul.f32 %v4609, %v4609
  %v4613 = vsel %vm321, %v4610, 0.0
  %4614 = vadd.xlane.f32.xlu0 %v4613
  %v4615 = vpop.xlane.xlu0 %4614
  %v4616 = vsel %vm321, %v4611, 0.0
  %4617 = vadd.xlane.f32.xlu0 %v4616
  %v4618 = vpop.xlane.xlu0 %4617
  %v4619 = vsel %vm321, %v4612, 0.0
  %4620 = vadd.xlane.f32.xlu0 %v4619
  %v4621 = vpop.xlane.xlu0 %4620
  %v4622 = vmul.f32 %v4615, %v331
  %v4623 = vmul.f32 %v4618, %v331
  %v4624 = vmul.f32 %v4621, %v331
  %v4625 = vadd.f32 %v4622, 1e-06
  %v4626 = vadd.f32 %v4623, 1e-06
  %v4627 = vadd.f32 %v4624, 1e-06
  %v4628 = vrsqrt.pop %v4625
  %v4629 = vrsqrt.pop %v4626
  %v4630 = vrsqrt.pop %v4627
  %v4631 = vmul.f32 %v4607, %v4628
  %v4632 = vmul.f32 %v4608, %v4629
  %v4633 = vmul.f32 %v4609, %v4630
  %v4635 = vlaneseq
  %v4636 = vshrl.u32 %v4635, 7
  %v4637 = vsub.s32 0, %v4636
  %v4638 = vrot.slane %v4593, %v4637
  %v4640 = vmul.f32 %v4631, %v4638
  %v4641 = vmul.f32 %v4632, %v4638
  %v4642 = vmul.f32 %v4633, %v4638
  %v4644 = vlaneseq
  %v4645 = vshrl.u32 %v4644, 7
  %v4646 = vsub.s32 0, %v4645
  %v4647 = vrot.slane %v4594, %v4646
  %v4649 = vadd.f32 %v4640, %v4647
  %v4650 = vadd.f32 %v4641, %v4647
  %v4651 = vadd.f32 %v4642, %v4647
  %v4652 = vld [vmem:[%s22] sm:$0xff]
  %v4653 = vld [vmem:[%s22 + $0x8] sm:$0xff]
  %v4654 = vld [vmem:[%s22 + $0x10] sm:$0xff]
  %v4655 = vld [vmem:[%s22 + $0x18] sm:$0xff]
  %v4656 = vld [vmem:[%s22 + $0x20] sm:$0xff]
  %v4657 = vld [vmem:[%s22 + $0x28] sm:$0xff]
  %v4658 = vld [vmem:[%s22 + $0x30] sm:$0xff]
  %v4659 = vld [vmem:[%s22 + $0x38] sm:$0xff]
  %v4660 = vld [vmem:[%s23] sm:$0x1]
  %v4662 = vlaneseq
  %v4663 = vshrl.u32 %v4662, 7
  %v4664 = vsub.s32 0, %v4663
  %v4665 = vrot.slane %v4660, %v4664
  %v4668 = vsel %vm321, %v4649, 0
  %v4671 = vsel %vm321, %v4650, 0
  %v4674 = vsel %vm321, %v4651, 0
  %4676 = vmatprep.subr.mxu0 0.0
  %4677 = vmatpush1.msra.mxu0 %v4652
  %4678 = vmatprep.subr.mxu0 0.0
  %4679 = vmatpush1.msra.mxu0 %v4653
  %4680 = vmatprep.subr.mxu0 0.0
  %4681 = vmatpush1.msra.mxu0 %v4654
  %4682 = vmatprep.subr.mxu0 0.0
  %4683 = vmatpush1.msra.mxu0 %v4655
  %4684 = vmatprep.subr.mxu0 0.0
  %4685 = vmatpush1.msra.mxu0 %v4656
  %4686 = vmatprep.subr.mxu0 0.0
  %4687 = vmatpush1.msra.mxu0 %v4657
  %4688 = vmatprep.subr.mxu0 0.0
  %4689 = vmatpush1.msra.mxu0 %v4658
  %4690 = vmatprep.subr.mxu0 0.0
  %4691 = vmatpush1.msra.mxu0 %v4659
  %4692 = vmatprep.subr.mxu0 0.0
  %4693 = vmatpush1.msra.mxu0 0.0
  %4694 = vmatprep.subr.mxu0 0.0
  %4695 = vmatpush1.msra.mxu0 0.0
  %4696 = vmatprep.subr.mxu0 0.0
  %4697 = vmatpush1.msra.mxu0 0.0
  %4698 = vmatprep.subr.mxu0 0.0
  %4699 = vmatpush1.msra.mxu0 0.0
  %4700 = vmatprep.subr.mxu0 0.0
  %4701 = vmatpush1.msra.mxu0 0.0
  %4702 = vmatprep.subr.mxu0 0.0
  %4703 = vmatpush1.msra.mxu0 0.0
  %4704 = vmatprep.subr.mxu0 0.0
  %4705 = vmatpush1.msra.mxu0 0.0
  %4706 = vmatprep.subr.mxu0 0.0
  %4707 = vmatpush1.msra.mxu0 0.0
  %4708 = vmatprep.subr.mxu0 0.0
  %4709 = vmatpush1.msra.mxu0 0.0
  %4710 = vmatprep.subr.mxu0 0.0
  %4711 = vmatpush1.msra.mxu0 0.0
  %4712 = vmatprep.subr.mxu0 0.0
  %4713 = vmatpush1.msra.mxu0 0.0
  %4714 = vmatprep.subr.mxu0 0.0
  %4715 = vmatpush1.msra.mxu0 0.0
  %4716 = vmatprep.subr.mxu0 0.0
  %4717 = vmatpush1.msra.mxu0 0.0
  %4718 = vmatprep.subr.mxu0 0.0
  %4719 = vmatpush1.msra.mxu0 0.0
  %4720 = vmatprep.subr.mxu0 0.0
  %4721 = vmatpush1.msra.mxu0 0.0
  %4722 = vmatprep.subr.mxu0 0.0
  %4723 = vmatpush1.msra.mxu0 0.0
  %4724 = vmatprep.subr.mxu0 0.0
  %4725 = vmatpush1.msra.mxu0 0.0
  %4726 = vmatprep.subr.mxu0 0.0
  %4727 = vmatpush1.msra.mxu0 0.0
  %4728 = vmatprep.subr.mxu0 0.0
  %4729 = vmatpush1.msra.mxu0 0.0
  %4730 = vmatprep.subr.mxu0 0.0
  %4731 = vmatpush1.msra.mxu0 0.0
  %4732 = vmatprep.subr.mxu0 0.0
  %4733 = vmatpush1.msra.mxu0 0.0
  %4734 = vmatprep.subr.mxu0 0.0
  %4735 = vmatpush1.msra.mxu0 0.0
  %4736 = vmatprep.subr.mxu0 0.0
  %4737 = vmatpush1.msra.mxu0 0.0
  %4738 = vmatprep.subr.mxu0 0.0
  %4739 = vmatpush1.msra.mxu0 0.0
  %4740 = vmatprep.mubr.f32.mxu0 0.0
  %4741 = vmatmul.mubr.f32.gmra.mrb[0].mxu0 %v4668
  %v4742 = vpop.f32.mrb[0].mxu0
  %v4743 = vadd.f32 %v4665, %v4742
  %v4744 = vpop.f32.mrb[0].mxu0
  %4745 = vmatprep.mubr.f32.mxu0 0.0
  %4746 = vmatmul.mubr.f32.gmra.mrb[0].mxu0 %v4671
  %v4747 = vpop.f32.mrb[0].mxu0
  %v4748 = vadd.f32 %v4665, %v4747
  %v4749 = vpop.f32.mrb[0].mxu0
  %4750 = vmatprep.mubr.f32.mxu0 0.0
  %4751 = vmatmul.mubr.f32.gmra.mrb[0].mxu0 %v4674
  %v4752 = vpop.f32.mrb[0].mxu0
  %v4753 = vadd.f32 %v4665, %v4752
  %v4754 = vpop.f32.mrb[0].mxu0
  %4755 = vdwg.mxu0
  %4756 = vst [vmem:[%s24] sm:$0xff] %v4743
  %4757 = vst [vmem:[%s24 + $0x8] sm:$0xff] %v4748
  %4758 = vst [vmem:[%s24 + $0x10] sm:$0xff] %v4753
  // Predicated region
  $region98: #{vit3d_forward.1} parent=0 // pred_check
    _
  $region99: #{vit3d_forward.1} parent=0 // pred_check_branch
    %4760 = sbr.rel (0) target = $region101
  $region100: #{vit3d_forward.1} parent=0 // pred_region
    _
  $region101: #{vit3d_forward.1} parent=0 // pred_fallthru
    _
  // Predicated region
  $region102: #{vit3d_forward.1} parent=0 // pred_check
    _
  $region103: #{vit3d_forward.1} parent=0 // pred_check_branch
    %4762 = sbr.rel (0) target = $region105
  $region104: #{vit3d_forward.1} parent=0 // pred_region
    _
  $region105: #{vit3d_forward.1} parent=0 // pred_fallthru
    _

</llo_original>
